<compile_context>
chip_gen: v7x
topology: tpu7x:2x2x1
jax: 0.10.0
libtpu: 0.0.40
codegen_flags: <defaults>
</compile_context>

<pallas_src>
import functools

import numpy as np
import jax
import jax.numpy as jnp
from jax import lax
from jax.experimental import pallas as pl
from jax.experimental.pallas import tpu as pltpu


def _conv3x3_kernel(x_ref, w_ref, b_ref, g_ref, bt_ref, o_ref, *,
                    taps, m_rows, c0, cout, apply_gelu, apply_ln, eps):
    """Direct 3x3 conv tile: 9 shifted matmuls + bias [+ GELU] [+ LayerNorm]."""
    cpad = o_ref.shape[-1]
    acc = jnp.zeros((m_rows, cpad), jnp.float32)
    for i, (p, dr, dc) in enumerate(taps):
        off = dr * c0 + dc                         # static flat offset of this tap
        xs = x_ref[0, p, off:off + m_rows, :]      # (m_rows, Cin), bf16
        acc = acc + jnp.dot(xs, w_ref[i], preferred_element_type=jnp.float32)
    acc = acc + b_ref[...]                         # bias broadcast over rows
    if apply_gelu:
        # PyTorch nn.GELU() default = exact (erf-based) GELU
        acc = 0.5 * acc * (1.0 + lax.erf(acc * np.float32(1.0 / np.sqrt(2.0))))
    if apply_ln:
        # LayerNorm over the (real) channel dim; padded lanes masked out.
        ch = lax.broadcasted_iota(jnp.int32, (1, cpad), 1)
        mask = (ch < cout).astype(jnp.float32)
        inv_c = np.float32(1.0 / cout)
        mean = jnp.sum(acc * mask, axis=-1, keepdims=True) * inv_c
        cent = (acc - mean) * mask
        var = jnp.sum(cent * cent, axis=-1, keepdims=True) * inv_c
        acc = cent * lax.rsqrt(var + np.float32(eps))
        acc = acc * g_ref[...] + bt_ref[...]
    o_ref[0] = acc.astype(o_ref.dtype)


def conv3x3_fused(x, w, b, gamma, beta, *, stride, apply_gelu, apply_ln,
                  compute_dtype=jnp.bfloat16, rows_target=1024):
    """3x3 conv (padding=1) + optional exact GELU + optional channel LayerNorm.

    x: (N, H, W, Cin) NHWC.  w: (Cout, Cin, 3, 3) (PyTorch layout).
    Returns (N, Ho, Wo, Cout) in x.dtype.
    """
    N, H, W, Cin = x.shape
    Cout = w.shape[0]
    s = stride
    Ho = (H - 1) // s + 1
    Wo = (W - 1) // s + 1
    Cpad = ((Cout + 127) // 128) * 128
    out_dtype = x.dtype

    xc = x.astype(compute_dtype)
    xp = jnp.pad(xc, ((0, 0), (1, 1), (1, 1), (0, 0)))     # spatial pad = 1

    if s == 1:
        P, dr_max = 1, 2
        R0, C0 = Ho + 2, Wo + 2
        y = xp[:, None]                                    # (N, 1, R0, C0, Cin)
        taps = [(0, kh, kw) for kh in range(3) for kw in range(3)]
    elif s == 2:
        # Space-to-depth phase split: y[n, 2*pr+pc, r, c] = xp[n, 2r+pr, 2c+pc]
        P, dr_max = 4, 1
        R0, C0 = Ho + 1, Wo + 1
        xp = jnp.pad(xp, ((0, 0), (0, 2 * R0 - (H + 2)),
                          (0, 2 * C0 - (W + 2)), (0, 0)))
        y = xp.reshape(N, R0, 2, C0, 2, Cin).transpose(0, 2, 4, 1, 3, 5)
        y = y.reshape(N, 4, R0, C0, Cin)
        taps = [((kh % 2) * 2 + (kw % 2), kh // 2, kw // 2)
                for kh in range(3) for kw in range(3)]
    else:
        raise ValueError("stride must be 1 or 2")

    # Row tiling: TH output rows per grid step (~rows_target flattened rows).
    TH = max(1, min(Ho, rows_target // C0))
    n_t = -(-Ho // TH)
    band = TH + dr_max + 1                                 # +1: slack for tap column offset
    r_need = n_t * TH + dr_max + 1
    if r_need > R0:
        y = jnp.pad(y, ((0, 0), (0, 0), (0, r_need - R0), (0, 0), (0, 0)))
    row_idx = (jnp.arange(n_t)[:, None] * TH + jnp.arange(band)[None, :]).reshape(-1)
    yb = jnp.take(y, row_idx, axis=2)                      # (N, P, n_t*band, C0, Cin)
    yb = yb.reshape(N, P, n_t, band, C0, Cin).transpose(0, 2, 1, 3, 4, 5)
    m_tiles = N * n_t
    L = band * C0
    m_rows = TH * C0
    yb = yb.reshape(m_tiles, P, L, Cin)

    # Per-tap weights, channel dim padded to a full 128-lane multiple.
    w_taps = jnp.transpose(w, (2, 3, 1, 0)).reshape(9, Cin, Cout)
    w_taps = jnp.pad(w_taps, ((0, 0), (0, 0), (0, Cpad - Cout))).astype(compute_dtype)
    b_p = jnp.pad(b.astype(jnp.float32), (0, Cpad - Cout)).reshape(1, Cpad)
    g_p = jnp.pad(gamma.astype(jnp.float32), (0, Cpad - Cout)).reshape(1, Cpad)
    bt_p = jnp.pad(beta.astype(jnp.float32), (0, Cpad - Cout)).reshape(1, Cpad)

    kern = functools.partial(
        _conv3x3_kernel, taps=taps, m_rows=m_rows, c0=C0, cout=Cout,
        apply_gelu=apply_gelu, apply_ln=apply_ln, eps=1e-5)

    itemsize = jnp.dtype(compute_dtype).itemsize
    cost = pl.CostEstimate(
        flops=2 * m_tiles * m_rows * Cin * Cpad * 9,
        transcendentals=(m_tiles * m_rows * Cpad) if apply_gelu else 0,
        bytes_accessed=yb.size * itemsize + w_taps.size * itemsize
                       + m_tiles * m_rows * Cpad * jnp.dtype(out_dtype).itemsize)

    out = pl.pallas_call(
        kern,
        out_shape=jax.ShapeDtypeStruct((m_tiles, m_rows, Cpad), out_dtype),
        grid=(m_tiles,),
        in_specs=[
            pl.BlockSpec((1, P, L, Cin), lambda i: (i, 0, 0, 0)),   # activation band
            pl.BlockSpec((9, Cin, Cpad), lambda i: (0, 0, 0)),      # weights: VMEM resident
            pl.BlockSpec((1, Cpad), lambda i: (0, 0)),              # bias
            pl.BlockSpec((1, Cpad), lambda i: (0, 0)),              # LN gamma
            pl.BlockSpec((1, Cpad), lambda i: (0, 0)),              # LN beta
        ],
        out_specs=pl.BlockSpec((1, m_rows, Cpad), lambda i: (i, 0, 0)),
        compiler_params=pltpu.CompilerParams(dimension_semantics=("parallel",)),
        cost_estimate=cost,
    )(yb, w_taps, b_p, g_p, bt_p)

    # Strip padded spatial columns / padded channels / padded rows.
    out = out.reshape(N, n_t, TH, C0, Cpad)[:, :, :, :Wo, :Cout]
    out = out.reshape(N, n_t * TH, Wo, Cout)[:, :Ho]
    return out


def init_patch_embed_params(key, patch_size=(4, 4), in_chans=4, embed_dim=96):
    num_block = int(np.log2(patch_size[0]))
    dims = [embed_dim // (2 ** i) for i in range(num_block)]
    dims.append(in_chans)
    dims = dims[::-1]                                       # e.g. [4, 48, 96]
    blocks = []
    for i in range(num_block):
        cin, cout = dims[i], dims[i + 1]
        key, k1, k2, k3, k4 = jax.random.split(key, 5)
        blocks.append({
            "w1": 0.05 * jax.random.normal(k1, (cout, cin, 3, 3), jnp.float32),
            "b1": 0.01 * jax.random.normal(k2, (cout,), jnp.float32),
            "g1": jnp.ones((cout,), jnp.float32),
            "bt1": jnp.zeros((cout,), jnp.float32),
            "w2": 0.05 * jax.random.normal(k3, (cout, cout, 3, 3), jnp.float32),
            "b2": 0.01 * jax.random.normal(k4, (cout,), jnp.float32),
            "g2": jnp.ones((cout,), jnp.float32),
            "bt2": jnp.zeros((cout,), jnp.float32),
        })
    return blocks


def patch_embed_forward(x_nchw, blocks, patch_size=(4, 4)):
    """Mirrors PatchEmbed.forward (norm_layer=None). x_nchw: (N, C, H, W)."""
    N, C, H, W = x_nchw.shape
    # Replicates the reference module's (quirky) padding gates exactly:
    # W-padding is gated on H % patch_size[0], H-padding on H % patch_size[1].
    if H % patch_size[0] != 0:
        x_nchw = jnp.pad(x_nchw, ((0, 0), (0, 0), (0, 0),
                                  (0, patch_size[0] - W % patch_size[0])))
    if H % patch_size[1] != 0:
        x_nchw = jnp.pad(x_nchw, ((0, 0), (0, 0),
                                  (0, patch_size[1] - H % patch_size[1]), (0, 0)))
    x = jnp.transpose(x_nchw, (0, 2, 3, 1))                 # NCHW -> NHWC
    n_blocks = len(blocks)
    for bi, blk in enumerate(blocks):
        last = bi == n_blocks - 1
        # project.conv1 (stride 2) -> GELU -> LayerNorm(channels)
        x = conv3x3_fused(x, blk["w1"], blk["b1"], blk["g1"], blk["bt1"],
                          stride=2, apply_gelu=True, apply_ln=True)
        # project.conv2 (stride 1) -> (GELU -> LayerNorm unless last block)
        x = conv3x3_fused(x, blk["w2"], blk["b2"], blk["g2"], blk["bt2"],
                          stride=1, apply_gelu=not last, apply_ln=not last)
    # norm_layer=None in the reference config -> no final norm
    return jnp.transpose(x, (0, 3, 1, 2))                   # NHWC -> NCHW


def _ref_forward(x_nchw, blocks, patch_size=(4, 4)):
    """Pure-JAX (XLA conv) f32 reference of the same forward pass."""
    def conv(x, w, b, stride):
        out = lax.conv_general_dilated(
            x, jnp.transpose(w, (2, 3, 1, 0)), (stride, stride),
            ((1, 1), (1, 1)), dimension_numbers=("NHWC", "HWIO", "NHWC"))
        return out + b.reshape(1, 1, 1, -1)

    def gelu(v):
        return 0.5 * v * (1.0 + lax.erf(v * np.float32(1.0 / np.sqrt(2.0))))

    def ln(v, g, bt, eps=1e-5):
        m = jnp.mean(v, -1, keepdims=True)
        var = jnp.mean(jnp.square(v - m), -1, keepdims=True)
        return (v - m) * lax.rsqrt(var + eps) * g + bt

    N, C, H, W = x_nchw.shape
    if H % patch_size[0] != 0:
        x_nchw = jnp.pad(x_nchw, ((0, 0), (0, 0), (0, 0),
                                  (0, patch_size[0] - W % patch_size[0])))
    if H % patch_size[1] != 0:
        x_nchw = jnp.pad(x_nchw, ((0, 0), (0, 0),
                                  (0, patch_size[1] - H % patch_size[1]), (0, 0)))
    x = jnp.transpose(x_nchw, (0, 2, 3, 1))
    n_blocks = len(blocks)
    for bi, blk in enumerate(blocks):
        last = bi == n_blocks - 1
        x = ln(gelu(conv(x, blk["w1"], blk["b1"], 2)), blk["g1"], blk["bt1"])
        x = conv(x, blk["w2"], blk["b2"], 1)
        if not last:
            x = ln(gelu(x), blk["g2"], blk["bt2"])
    return jnp.transpose(x, (0, 3, 1, 2))


if __name__ == "__main__":
    key = jax.random.PRNGKey(0)
    k_param, k_in = jax.random.split(key)

    patch_size = (4, 4)
    in_chans, embed_dim = 4, 96
    blocks = init_patch_embed_params(k_param, patch_size, in_chans, embed_dim)

    x = jax.random.normal(k_in, (2, in_chans, 16, 16), jnp.float32)

    fwd = jax.jit(functools.partial(patch_embed_forward, patch_size=patch_size))
    out = jax.block_until_ready(fwd(x, blocks))

    assert out.shape == (2, embed_dim, 4, 4), out.shape
    assert out.dtype == jnp.float32
    assert bool(jnp.all(jnp.isfinite(out)))

    # Numerical sanity check vs an all-f32 XLA reference (bf16 MXU inputs ->
    # loose tolerance; a structural bug would be O(1) off).
    ref = jax.block_until_ready(_ref_forward(x, blocks, patch_size))
    max_err = float(jnp.max(jnp.abs(out - ref)))
    assert max_err < 0.25, f"max abs err vs reference: {max_err}"

    print("KERNEL_OK")
</pallas_src>

<mosaic_0001>
module attributes {stable_mosaic.version = 11 : i64} {
  func.func @_conv3x3_kernel(%arg0: i32, %arg1: memref<1x4x90x4xbf16, #tpu.memory_space<vmem>>, %arg2: memref<9x4x128xbf16, #tpu.memory_space<vmem>>, %arg3: memref<1x128xf32, #tpu.memory_space<vmem>>, %arg4: memref<1x128xf32, #tpu.memory_space<vmem>>, %arg5: memref<1x128xf32, #tpu.memory_space<vmem>>, %arg6: memref<1x72x128xf32, #tpu.memory_space<vmem>>) attributes {dimension_semantics = [#tpu.dimension_semantics<parallel>], iteration_bounds = array<i64: 2>, scalar_prefetch = 0 : i64, scratch_operands = 0 : i64, tpu.core_type = #tpu.core_type<tc>, window_params = [{transform_indices = @transform_0, window_bounds = array<i64: 1, 4, 90, 4>}, {pipeline_mode = #tpu.pipeline_mode<synchronous>, transform_indices = @transform_1, window_bounds = array<i64: 9, 4, 128>}, {pipeline_mode = #tpu.pipeline_mode<synchronous>, transform_indices = @transform_2, window_bounds = array<i64: 1, 128>}, {pipeline_mode = #tpu.pipeline_mode<synchronous>, transform_indices = @transform_3, window_bounds = array<i64: 1, 128>}, {pipeline_mode = #tpu.pipeline_mode<synchronous>, transform_indices = @transform_4, window_bounds = array<i64: 1, 128>}, {transform_indices = @transform_5, window_bounds = array<i64: 1, 72, 128>}]} {
    %cst = arith.constant 0.000000e+00 : f32
    %0 = vector.broadcast %cst : f32 to vector<72x128xf32>
    %c0 = arith.constant 0 : index
    %c0_0 = arith.constant 0 : index
    %c0_1 = arith.constant 0 : index
    %c0_2 = arith.constant 0 : index
    %1 = vector.load %arg1[%c0, %c0_0, %c0_1, %c0_2] : memref<1x4x90x4xbf16, #tpu.memory_space<vmem>>, vector<1x1x72x4xbf16>
    %2 = vector.shape_cast %1 : vector<1x1x72x4xbf16> to vector<72x4xbf16>
    %c0_3 = arith.constant 0 : index
    %c0_4 = arith.constant 0 : index
    %c0_5 = arith.constant 0 : index
    %3 = vector.load %arg2[%c0_3, %c0_4, %c0_5] : memref<9x4x128xbf16, #tpu.memory_space<vmem>>, vector<1x4x128xbf16>
    %4 = vector.shape_cast %3 : vector<1x4x128xbf16> to vector<4x128xbf16>
    %cst_6 = arith.constant dense<0.000000e+00> : vector<72x128xf32>
    %5 = tpu.matmul %2, %4, %cst_6 {dimension_numbers = #tpu.dot_dimension_numbers<[1], [0], [0], [1], [0, 0, 1, 1], [], []>} : vector<72x4xbf16>, vector<4x128xbf16>, vector<72x128xf32> -> vector<72x128xf32>
    %6 = arith.addf %0, %5 : vector<72x128xf32>
    %c0_7 = arith.constant 0 : index
    %c1 = arith.constant 1 : index
    %c0_8 = arith.constant 0 : index
    %c0_9 = arith.constant 0 : index
    %7 = vector.load %arg1[%c0_7, %c1, %c0_8, %c0_9] : memref<1x4x90x4xbf16, #tpu.memory_space<vmem>>, vector<1x1x72x4xbf16>
    %8 = vector.shape_cast %7 : vector<1x1x72x4xbf16> to vector<72x4xbf16>
    %c1_10 = arith.constant 1 : index
    %c0_11 = arith.constant 0 : index
    %c0_12 = arith.constant 0 : index
    %9 = vector.load %arg2[%c1_10, %c0_11, %c0_12] : memref<9x4x128xbf16, #tpu.memory_space<vmem>>, vector<1x4x128xbf16>
    %10 = vector.shape_cast %9 : vector<1x4x128xbf16> to vector<4x128xbf16>
    %cst_13 = arith.constant dense<0.000000e+00> : vector<72x128xf32>
    %11 = tpu.matmul %8, %10, %cst_13 {dimension_numbers = #tpu.dot_dimension_numbers<[1], [0], [0], [1], [0, 0, 1, 1], [], []>} : vector<72x4xbf16>, vector<4x128xbf16>, vector<72x128xf32> -> vector<72x128xf32>
    %12 = arith.addf %6, %11 : vector<72x128xf32>
    %c0_14 = arith.constant 0 : index
    %c0_15 = arith.constant 0 : index
    %c1_16 = arith.constant 1 : index
    %c0_17 = arith.constant 0 : index
    %13 = vector.load %arg1[%c0_14, %c0_15, %c1_16, %c0_17] : memref<1x4x90x4xbf16, #tpu.memory_space<vmem>>, vector<1x1x72x4xbf16>
    %14 = vector.shape_cast %13 : vector<1x1x72x4xbf16> to vector<72x4xbf16>
    %c2 = arith.constant 2 : index
    %c0_18 = arith.constant 0 : index
    %c0_19 = arith.constant 0 : index
    %15 = vector.load %arg2[%c2, %c0_18, %c0_19] : memref<9x4x128xbf16, #tpu.memory_space<vmem>>, vector<1x4x128xbf16>
    %16 = vector.shape_cast %15 : vector<1x4x128xbf16> to vector<4x128xbf16>
    %cst_20 = arith.constant dense<0.000000e+00> : vector<72x128xf32>
    %17 = tpu.matmul %14, %16, %cst_20 {dimension_numbers = #tpu.dot_dimension_numbers<[1], [0], [0], [1], [0, 0, 1, 1], [], []>} : vector<72x4xbf16>, vector<4x128xbf16>, vector<72x128xf32> -> vector<72x128xf32>
    %18 = arith.addf %12, %17 : vector<72x128xf32>
    %c0_21 = arith.constant 0 : index
    %c2_22 = arith.constant 2 : index
    %c0_23 = arith.constant 0 : index
    %c0_24 = arith.constant 0 : index
    %19 = vector.load %arg1[%c0_21, %c2_22, %c0_23, %c0_24] : memref<1x4x90x4xbf16, #tpu.memory_space<vmem>>, vector<1x1x72x4xbf16>
    %20 = vector.shape_cast %19 : vector<1x1x72x4xbf16> to vector<72x4xbf16>
    %c3 = arith.constant 3 : index
    %c0_25 = arith.constant 0 : index
    %c0_26 = arith.constant 0 : index
    %21 = vector.load %arg2[%c3, %c0_25, %c0_26] : memref<9x4x128xbf16, #tpu.memory_space<vmem>>, vector<1x4x128xbf16>
    %22 = vector.shape_cast %21 : vector<1x4x128xbf16> to vector<4x128xbf16>
    %cst_27 = arith.constant dense<0.000000e+00> : vector<72x128xf32>
    %23 = tpu.matmul %20, %22, %cst_27 {dimension_numbers = #tpu.dot_dimension_numbers<[1], [0], [0], [1], [0, 0, 1, 1], [], []>} : vector<72x4xbf16>, vector<4x128xbf16>, vector<72x128xf32> -> vector<72x128xf32>
    %24 = arith.addf %18, %23 : vector<72x128xf32>
    %c0_28 = arith.constant 0 : index
    %c3_29 = arith.constant 3 : index
    %c0_30 = arith.constant 0 : index
    %c0_31 = arith.constant 0 : index
    %25 = vector.load %arg1[%c0_28, %c3_29, %c0_30, %c0_31] : memref<1x4x90x4xbf16, #tpu.memory_space<vmem>>, vector<1x1x72x4xbf16>
    %26 = vector.shape_cast %25 : vector<1x1x72x4xbf16> to vector<72x4xbf16>
    %c4 = arith.constant 4 : index
    %c0_32 = arith.constant 0 : index
    %c0_33 = arith.constant 0 : index
    %27 = vector.load %arg2[%c4, %c0_32, %c0_33] : memref<9x4x128xbf16, #tpu.memory_space<vmem>>, vector<1x4x128xbf16>
    %28 = vector.shape_cast %27 : vector<1x4x128xbf16> to vector<4x128xbf16>
    %cst_34 = arith.constant dense<0.000000e+00> : vector<72x128xf32>
    %29 = tpu.matmul %26, %28, %cst_34 {dimension_numbers = #tpu.dot_dimension_numbers<[1], [0], [0], [1], [0, 0, 1, 1], [], []>} : vector<72x4xbf16>, vector<4x128xbf16>, vector<72x128xf32> -> vector<72x128xf32>
    %30 = arith.addf %24, %29 : vector<72x128xf32>
    %c0_35 = arith.constant 0 : index
    %c2_36 = arith.constant 2 : index
    %c1_37 = arith.constant 1 : index
    %c0_38 = arith.constant 0 : index
    %31 = vector.load %arg1[%c0_35, %c2_36, %c1_37, %c0_38] : memref<1x4x90x4xbf16, #tpu.memory_space<vmem>>, vector<1x1x72x4xbf16>
    %32 = vector.shape_cast %31 : vector<1x1x72x4xbf16> to vector<72x4xbf16>
    %c5 = arith.constant 5 : index
    %c0_39 = arith.constant 0 : index
    %c0_40 = arith.constant 0 : index
    %33 = vector.load %arg2[%c5, %c0_39, %c0_40] : memref<9x4x128xbf16, #tpu.memory_space<vmem>>, vector<1x4x128xbf16>
    %34 = vector.shape_cast %33 : vector<1x4x128xbf16> to vector<4x128xbf16>
    %cst_41 = arith.constant dense<0.000000e+00> : vector<72x128xf32>
    %35 = tpu.matmul %32, %34, %cst_41 {dimension_numbers = #tpu.dot_dimension_numbers<[1], [0], [0], [1], [0, 0, 1, 1], [], []>} : vector<72x4xbf16>, vector<4x128xbf16>, vector<72x128xf32> -> vector<72x128xf32>
    %36 = arith.addf %30, %35 : vector<72x128xf32>
    %c0_42 = arith.constant 0 : index
    %c0_43 = arith.constant 0 : index
    %c9 = arith.constant 9 : index
    %c0_44 = arith.constant 0 : index
    %37 = vector.load %arg1[%c0_42, %c0_43, %c9, %c0_44] : memref<1x4x90x4xbf16, #tpu.memory_space<vmem>>, vector<1x1x72x4xbf16>
    %38 = vector.shape_cast %37 : vector<1x1x72x4xbf16> to vector<72x4xbf16>
    %c6 = arith.constant 6 : index
    %c0_45 = arith.constant 0 : index
    %c0_46 = arith.constant 0 : index
    %39 = vector.load %arg2[%c6, %c0_45, %c0_46] : memref<9x4x128xbf16, #tpu.memory_space<vmem>>, vector<1x4x128xbf16>
    %40 = vector.shape_cast %39 : vector<1x4x128xbf16> to vector<4x128xbf16>
    %cst_47 = arith.constant dense<0.000000e+00> : vector<72x128xf32>
    %41 = tpu.matmul %38, %40, %cst_47 {dimension_numbers = #tpu.dot_dimension_numbers<[1], [0], [0], [1], [0, 0, 1, 1], [], []>} : vector<72x4xbf16>, vector<4x128xbf16>, vector<72x128xf32> -> vector<72x128xf32>
    %42 = arith.addf %36, %41 : vector<72x128xf32>
    %c0_48 = arith.constant 0 : index
    %c1_49 = arith.constant 1 : index
    %c9_50 = arith.constant 9 : index
    %c0_51 = arith.constant 0 : index
    %43 = vector.load %arg1[%c0_48, %c1_49, %c9_50, %c0_51] : memref<1x4x90x4xbf16, #tpu.memory_space<vmem>>, vector<1x1x72x4xbf16>
    %44 = vector.shape_cast %43 : vector<1x1x72x4xbf16> to vector<72x4xbf16>
    %c7 = arith.constant 7 : index
    %c0_52 = arith.constant 0 : index
    %c0_53 = arith.constant 0 : index
    %45 = vector.load %arg2[%c7, %c0_52, %c0_53] : memref<9x4x128xbf16, #tpu.memory_space<vmem>>, vector<1x4x128xbf16>
    %46 = vector.shape_cast %45 : vector<1x4x128xbf16> to vector<4x128xbf16>
    %cst_54 = arith.constant dense<0.000000e+00> : vector<72x128xf32>
    %47 = tpu.matmul %44, %46, %cst_54 {dimension_numbers = #tpu.dot_dimension_numbers<[1], [0], [0], [1], [0, 0, 1, 1], [], []>} : vector<72x4xbf16>, vector<4x128xbf16>, vector<72x128xf32> -> vector<72x128xf32>
    %48 = arith.addf %42, %47 : vector<72x128xf32>
    %c0_55 = arith.constant 0 : index
    %c0_56 = arith.constant 0 : index
    %c10 = arith.constant 10 : index
    %c0_57 = arith.constant 0 : index
    %49 = vector.load %arg1[%c0_55, %c0_56, %c10, %c0_57] : memref<1x4x90x4xbf16, #tpu.memory_space<vmem>>, vector<1x1x72x4xbf16>
    %50 = vector.shape_cast %49 : vector<1x1x72x4xbf16> to vector<72x4xbf16>
    %c8 = arith.constant 8 : index
    %c0_58 = arith.constant 0 : index
    %c0_59 = arith.constant 0 : index
    %51 = vector.load %arg2[%c8, %c0_58, %c0_59] : memref<9x4x128xbf16, #tpu.memory_space<vmem>>, vector<1x4x128xbf16>
    %52 = vector.shape_cast %51 : vector<1x4x128xbf16> to vector<4x128xbf16>
    %cst_60 = arith.constant dense<0.000000e+00> : vector<72x128xf32>
    %53 = tpu.matmul %50, %52, %cst_60 {dimension_numbers = #tpu.dot_dimension_numbers<[1], [0], [0], [1], [0, 0, 1, 1], [], []>} : vector<72x4xbf16>, vector<4x128xbf16>, vector<72x128xf32> -> vector<72x128xf32>
    %54 = arith.addf %48, %53 : vector<72x128xf32>
    %c0_61 = arith.constant 0 : index
    %c0_62 = arith.constant 0 : index
    %55 = vector.load %arg3[%c0_61, %c0_62] : memref<1x128xf32, #tpu.memory_space<vmem>>, vector<1x128xf32>
    %56 = vector.broadcast %55 : vector<1x128xf32> to vector<72x128xf32>
    %57 = arith.addf %54, %56 : vector<72x128xf32>
    %cst_63 = arith.constant 5.000000e-01 : f32
    %58 = vector.broadcast %cst_63 : f32 to vector<72x128xf32>
    %59 = arith.mulf %58, %57 : vector<72x128xf32>
    %cst_64 = arith.constant 0.707106769 : f32
    %60 = vector.broadcast %cst_64 : f32 to vector<72x128xf32>
    %61 = arith.mulf %57, %60 : vector<72x128xf32>
    %62 = math.erf %61 : vector<72x128xf32>
    %cst_65 = arith.constant 1.000000e+00 : f32
    %63 = vector.broadcast %cst_65 : f32 to vector<72x128xf32>
    %64 = arith.addf %63, %62 : vector<72x128xf32>
    %65 = arith.mulf %59, %64 : vector<72x128xf32>
    %66 = tpu.iota {dimensions = array<i32: 1>} : vector<1x128xi32>
    %c48_i32 = arith.constant 48 : i32
    %67 = vector.broadcast %c48_i32 : i32 to vector<1x128xi32>
    %68 = arith.cmpi slt, %66, %67 : vector<1x128xi32>
    %69 = arith.extui %68 : vector<1x128xi1> to vector<1x128xi32>
    %70 = arith.sitofp %69 : vector<1x128xi32> to vector<1x128xf32>
    %71 = vector.broadcast %70 : vector<1x128xf32> to vector<72x128xf32>
    %72 = arith.mulf %65, %71 : vector<72x128xf32>
    %cst_66 = arith.constant dense<0.000000e+00> : vector<72xf32>
    %73 = vector.multi_reduction <add>, %72, %cst_66 [1] : vector<72x128xf32> to vector<72xf32>
    %74 = vector.shape_cast %73 : vector<72xf32> to vector<72x1xf32>
    %cst_67 = arith.constant 0.020833334 : f32
    %75 = vector.broadcast %cst_67 : f32 to vector<72x1xf32>
    %76 = arith.mulf %74, %75 : vector<72x1xf32>
    %77 = vector.broadcast %76 : vector<72x1xf32> to vector<72x128xf32>
    %78 = arith.subf %65, %77 : vector<72x128xf32>
    %79 = vector.broadcast %70 : vector<1x128xf32> to vector<72x128xf32>
    %80 = arith.mulf %78, %79 : vector<72x128xf32>
    %81 = arith.mulf %80, %80 : vector<72x128xf32>
    %cst_68 = arith.constant dense<0.000000e+00> : vector<72xf32>
    %82 = vector.multi_reduction <add>, %81, %cst_68 [1] : vector<72x128xf32> to vector<72xf32>
    %83 = vector.shape_cast %82 : vector<72xf32> to vector<72x1xf32>
    %cst_69 = arith.constant 0.020833334 : f32
    %84 = vector.broadcast %cst_69 : f32 to vector<72x1xf32>
    %85 = arith.mulf %83, %84 : vector<72x1xf32>
    %cst_70 = arith.constant 9.99999974E-6 : f32
    %86 = vector.broadcast %cst_70 : f32 to vector<72x1xf32>
    %87 = arith.addf %85, %86 : vector<72x1xf32>
    %88 = math.rsqrt %87 : vector<72x1xf32>
    %89 = vector.broadcast %88 : vector<72x1xf32> to vector<72x128xf32>
    %90 = arith.mulf %80, %89 : vector<72x128xf32>
    %c0_71 = arith.constant 0 : index
    %c0_72 = arith.constant 0 : index
    %91 = vector.load %arg4[%c0_71, %c0_72] : memref<1x128xf32, #tpu.memory_space<vmem>>, vector<1x128xf32>
    %92 = vector.broadcast %91 : vector<1x128xf32> to vector<72x128xf32>
    %93 = arith.mulf %90, %92 : vector<72x128xf32>
    %c0_73 = arith.constant 0 : index
    %c0_74 = arith.constant 0 : index
    %94 = vector.load %arg5[%c0_73, %c0_74] : memref<1x128xf32, #tpu.memory_space<vmem>>, vector<1x128xf32>
    %95 = vector.broadcast %94 : vector<1x128xf32> to vector<72x128xf32>
    %96 = arith.addf %93, %95 : vector<72x128xf32>
    %c0_75 = arith.constant 0 : index
    %c0_76 = arith.constant 0 : index
    %c0_77 = arith.constant 0 : index
    %97 = vector.load %arg6[%c0_75, %c0_76, %c0_77] : memref<1x72x128xf32, #tpu.memory_space<vmem>>, vector<1x72x128xf32>
    %98 = vector.shape_cast %97 : vector<1x72x128xf32> to vector<72x128xf32>
    %99 = vector.shape_cast %96 : vector<72x128xf32> to vector<1x72x128xf32>
    tpu.vector_store %arg6[%c0_75, %c0_76, %c0_77], %99 {strides = array<i32>} : memref<1x72x128xf32, #tpu.memory_space<vmem>>, vector<1x72x128xf32>,
    return
  }
  func.func @transform_0(%arg0: i32) -> (i32, i32, i32, i32) {
    %c0_i32 = arith.constant 0 : i32
    %c0_i32_0 = arith.constant 0 : i32
    %c0_i32_1 = arith.constant 0 : i32
    %c0_i32_2 = arith.constant 0 : i32
    return %arg0, %c0_i32, %c0_i32_0, %c0_i32_1 : i32, i32, i32, i32
  }
  func.func @transform_1(%arg0: i32) -> (i32, i32, i32) {
    %c0_i32 = arith.constant 0 : i32
    %c0_i32_0 = arith.constant 0 : i32
    %c0_i32_1 = arith.constant 0 : i32
    %c0_i32_2 = arith.constant 0 : i32
    return %c0_i32, %c0_i32_0, %c0_i32_1 : i32, i32, i32
  }
  func.func @transform_2(%arg0: i32) -> (i32, i32) {
    %c0_i32 = arith.constant 0 : i32
    %c0_i32_0 = arith.constant 0 : i32
    %c0_i32_1 = arith.constant 0 : i32
    return %c0_i32, %c0_i32_0 : i32, i32
  }
  func.func @transform_3(%arg0: i32) -> (i32, i32) {
    %c0_i32 = arith.constant 0 : i32
    %c0_i32_0 = arith.constant 0 : i32
    %c0_i32_1 = arith.constant 0 : i32
    return %c0_i32, %c0_i32_0 : i32, i32
  }
  func.func @transform_4(%arg0: i32) -> (i32, i32) {
    %c0_i32 = arith.constant 0 : i32
    %c0_i32_0 = arith.constant 0 : i32
    %c0_i32_1 = arith.constant 0 : i32
    return %c0_i32, %c0_i32_0 : i32, i32
  }
  func.func @transform_5(%arg0: i32) -> (i32, i32, i32) {
    %c0_i32 = arith.constant 0 : i32
    %c0_i32_0 = arith.constant 0 : i32
    %c0_i32_1 = arith.constant 0 : i32
    return %arg0, %c0_i32, %c0_i32_0 : i32, i32, i32
  }
}

module attributes {stable_mosaic.version = 11 : i64} {
  func.func @_conv3x3_kernel(%arg0: i32, %arg1: memref<1x1x110x48xbf16, #tpu.memory_space<vmem>>, %arg2: memref<9x48x128xbf16, #tpu.memory_space<vmem>>, %arg3: memref<1x128xf32, #tpu.memory_space<vmem>>, %arg4: memref<1x128xf32, #tpu.memory_space<vmem>>, %arg5: memref<1x128xf32, #tpu.memory_space<vmem>>, %arg6: memref<1x80x128xf32, #tpu.memory_space<vmem>>) attributes {dimension_semantics = [#tpu.dimension_semantics<parallel>], iteration_bounds = array<i64: 2>, scalar_prefetch = 0 : i64, scratch_operands = 0 : i64, tpu.core_type = #tpu.core_type<tc>, window_params = [{transform_indices = @transform_0, window_bounds = array<i64: 1, 1, 110, 48>}, {pipeline_mode = #tpu.pipeline_mode<synchronous>, transform_indices = @transform_1, window_bounds = array<i64: 9, 48, 128>}, {pipeline_mode = #tpu.pipeline_mode<synchronous>, transform_indices = @transform_2, window_bounds = array<i64: 1, 128>}, {pipeline_mode = #tpu.pipeline_mode<synchronous>, transform_indices = @transform_3, window_bounds = array<i64: 1, 128>}, {pipeline_mode = #tpu.pipeline_mode<synchronous>, transform_indices = @transform_4, window_bounds = array<i64: 1, 128>}, {transform_indices = @transform_5, window_bounds = array<i64: 1, 80, 128>}]} {
    %cst = arith.constant 0.000000e+00 : f32
    %0 = vector.broadcast %cst : f32 to vector<80x128xf32>
    %c0 = arith.constant 0 : index
    %c0_0 = arith.constant 0 : index
    %c0_1 = arith.constant 0 : index
    %c0_2 = arith.constant 0 : index
    %1 = vector.load %arg1[%c0, %c0_0, %c0_1, %c0_2] : memref<1x1x110x48xbf16, #tpu.memory_space<vmem>>, vector<1x1x80x48xbf16>
    %2 = vector.shape_cast %1 : vector<1x1x80x48xbf16> to vector<80x48xbf16>
    %c0_3 = arith.constant 0 : index
    %c0_4 = arith.constant 0 : index
    %c0_5 = arith.constant 0 : index
    %3 = vector.load %arg2[%c0_3, %c0_4, %c0_5] : memref<9x48x128xbf16, #tpu.memory_space<vmem>>, vector<1x48x128xbf16>
    %4 = vector.shape_cast %3 : vector<1x48x128xbf16> to vector<48x128xbf16>
    %cst_6 = arith.constant dense<0.000000e+00> : vector<80x128xf32>
    %5 = tpu.matmul %2, %4, %cst_6 {dimension_numbers = #tpu.dot_dimension_numbers<[1], [0], [0], [1], [0, 0, 1, 1], [], []>} : vector<80x48xbf16>, vector<48x128xbf16>, vector<80x128xf32> -> vector<80x128xf32>
    %6 = arith.addf %0, %5 : vector<80x128xf32>
    %c0_7 = arith.constant 0 : index
    %c0_8 = arith.constant 0 : index
    %c1 = arith.constant 1 : index
    %c0_9 = arith.constant 0 : index
    %7 = vector.load %arg1[%c0_7, %c0_8, %c1, %c0_9] : memref<1x1x110x48xbf16, #tpu.memory_space<vmem>>, vector<1x1x80x48xbf16>
    %8 = vector.shape_cast %7 : vector<1x1x80x48xbf16> to vector<80x48xbf16>
    %c1_10 = arith.constant 1 : index
    %c0_11 = arith.constant 0 : index
    %c0_12 = arith.constant 0 : index
    %9 = vector.load %arg2[%c1_10, %c0_11, %c0_12] : memref<9x48x128xbf16, #tpu.memory_space<vmem>>, vector<1x48x128xbf16>
    %10 = vector.shape_cast %9 : vector<1x48x128xbf16> to vector<48x128xbf16>
    %cst_13 = arith.constant dense<0.000000e+00> : vector<80x128xf32>
    %11 = tpu.matmul %8, %10, %cst_13 {dimension_numbers = #tpu.dot_dimension_numbers<[1], [0], [0], [1], [0, 0, 1, 1], [], []>} : vector<80x48xbf16>, vector<48x128xbf16>, vector<80x128xf32> -> vector<80x128xf32>
    %12 = arith.addf %6, %11 : vector<80x128xf32>
    %c0_14 = arith.constant 0 : index
    %c0_15 = arith.constant 0 : index
    %c2 = arith.constant 2 : index
    %c0_16 = arith.constant 0 : index
    %13 = vector.load %arg1[%c0_14, %c0_15, %c2, %c0_16] : memref<1x1x110x48xbf16, #tpu.memory_space<vmem>>, vector<1x1x80x48xbf16>
    %14 = vector.shape_cast %13 : vector<1x1x80x48xbf16> to vector<80x48xbf16>
    %c2_17 = arith.constant 2 : index
    %c0_18 = arith.constant 0 : index
    %c0_19 = arith.constant 0 : index
    %15 = vector.load %arg2[%c2_17, %c0_18, %c0_19] : memref<9x48x128xbf16, #tpu.memory_space<vmem>>, vector<1x48x128xbf16>
    %16 = vector.shape_cast %15 : vector<1x48x128xbf16> to vector<48x128xbf16>
    %cst_20 = arith.constant dense<0.000000e+00> : vector<80x128xf32>
    %17 = tpu.matmul %14, %16, %cst_20 {dimension_numbers = #tpu.dot_dimension_numbers<[1], [0], [0], [1], [0, 0, 1, 1], [], []>} : vector<80x48xbf16>, vector<48x128xbf16>, vector<80x128xf32> -> vector<80x128xf32>
    %18 = arith.addf %12, %17 : vector<80x128xf32>
    %c0_21 = arith.constant 0 : index
    %c0_22 = arith.constant 0 : index
    %c10 = arith.constant 10 : index
    %c0_23 = arith.constant 0 : index
    %19 = vector.load %arg1[%c0_21, %c0_22, %c10, %c0_23] : memref<1x1x110x48xbf16, #tpu.memory_space<vmem>>, vector<1x1x80x48xbf16>
    %20 = vector.shape_cast %19 : vector<1x1x80x48xbf16> to vector<80x48xbf16>
    %c3 = arith.constant 3 : index
    %c0_24 = arith.constant 0 : index
    %c0_25 = arith.constant 0 : index
    %21 = vector.load %arg2[%c3, %c0_24, %c0_25] : memref<9x48x128xbf16, #tpu.memory_space<vmem>>, vector<1x48x128xbf16>
    %22 = vector.shape_cast %21 : vector<1x48x128xbf16> to vector<48x128xbf16>
    %cst_26 = arith.constant dense<0.000000e+00> : vector<80x128xf32>
    %23 = tpu.matmul %20, %22, %cst_26 {dimension_numbers = #tpu.dot_dimension_numbers<[1], [0], [0], [1], [0, 0, 1, 1], [], []>} : vector<80x48xbf16>, vector<48x128xbf16>, vector<80x128xf32> -> vector<80x128xf32>
    %24 = arith.addf %18, %23 : vector<80x128xf32>
    %c0_27 = arith.constant 0 : index
    %c0_28 = arith.constant 0 : index
    %c11 = arith.constant 11 : index
    %c0_29 = arith.constant 0 : index
    %25 = vector.load %arg1[%c0_27, %c0_28, %c11, %c0_29] : memref<1x1x110x48xbf16, #tpu.memory_space<vmem>>, vector<1x1x80x48xbf16>
    %26 = vector.shape_cast %25 : vector<1x1x80x48xbf16> to vector<80x48xbf16>
    %c4 = arith.constant 4 : index
    %c0_30 = arith.constant 0 : index
    %c0_31 = arith.constant 0 : index
    %27 = vector.load %arg2[%c4, %c0_30, %c0_31] : memref<9x48x128xbf16, #tpu.memory_space<vmem>>, vector<1x48x128xbf16>
    %28 = vector.shape_cast %27 : vector<1x48x128xbf16> to vector<48x128xbf16>
    %cst_32 = arith.constant dense<0.000000e+00> : vector<80x128xf32>
    %29 = tpu.matmul %26, %28, %cst_32 {dimension_numbers = #tpu.dot_dimension_numbers<[1], [0], [0], [1], [0, 0, 1, 1], [], []>} : vector<80x48xbf16>, vector<48x128xbf16>, vector<80x128xf32> -> vector<80x128xf32>
    %30 = arith.addf %24, %29 : vector<80x128xf32>
    %c0_33 = arith.constant 0 : index
    %c0_34 = arith.constant 0 : index
    %c12 = arith.constant 12 : index
    %c0_35 = arith.constant 0 : index
    %31 = vector.load %arg1[%c0_33, %c0_34, %c12, %c0_35] : memref<1x1x110x48xbf16, #tpu.memory_space<vmem>>, vector<1x1x80x48xbf16>
    %32 = vector.shape_cast %31 : vector<1x1x80x48xbf16> to vector<80x48xbf16>
    %c5 = arith.constant 5 : index
    %c0_36 = arith.constant 0 : index
    %c0_37 = arith.constant 0 : index
    %33 = vector.load %arg2[%c5, %c0_36, %c0_37] : memref<9x48x128xbf16, #tpu.memory_space<vmem>>, vector<1x48x128xbf16>
    %34 = vector.shape_cast %33 : vector<1x48x128xbf16> to vector<48x128xbf16>
    %cst_38 = arith.constant dense<0.000000e+00> : vector<80x128xf32>
    %35 = tpu.matmul %32, %34, %cst_38 {dimension_numbers = #tpu.dot_dimension_numbers<[1], [0], [0], [1], [0, 0, 1, 1], [], []>} : vector<80x48xbf16>, vector<48x128xbf16>, vector<80x128xf32> -> vector<80x128xf32>
    %36 = arith.addf %30, %35 : vector<80x128xf32>
    %c0_39 = arith.constant 0 : index
    %c0_40 = arith.constant 0 : index
    %c20 = arith.constant 20 : index
    %c0_41 = arith.constant 0 : index
    %37 = vector.load %arg1[%c0_39, %c0_40, %c20, %c0_41] : memref<1x1x110x48xbf16, #tpu.memory_space<vmem>>, vector<1x1x80x48xbf16>
    %38 = vector.shape_cast %37 : vector<1x1x80x48xbf16> to vector<80x48xbf16>
    %c6 = arith.constant 6 : index
    %c0_42 = arith.constant 0 : index
    %c0_43 = arith.constant 0 : index
    %39 = vector.load %arg2[%c6, %c0_42, %c0_43] : memref<9x48x128xbf16, #tpu.memory_space<vmem>>, vector<1x48x128xbf16>
    %40 = vector.shape_cast %39 : vector<1x48x128xbf16> to vector<48x128xbf16>
    %cst_44 = arith.constant dense<0.000000e+00> : vector<80x128xf32>
    %41 = tpu.matmul %38, %40, %cst_44 {dimension_numbers = #tpu.dot_dimension_numbers<[1], [0], [0], [1], [0, 0, 1, 1], [], []>} : vector<80x48xbf16>, vector<48x128xbf16>, vector<80x128xf32> -> vector<80x128xf32>
    %42 = arith.addf %36, %41 : vector<80x128xf32>
    %c0_45 = arith.constant 0 : index
    %c0_46 = arith.constant 0 : index
    %c21 = arith.constant 21 : index
    %c0_47 = arith.constant 0 : index
    %43 = vector.load %arg1[%c0_45, %c0_46, %c21, %c0_47] : memref<1x1x110x48xbf16, #tpu.memory_space<vmem>>, vector<1x1x80x48xbf16>
    %44 = vector.shape_cast %43 : vector<1x1x80x48xbf16> to vector<80x48xbf16>
    %c7 = arith.constant 7 : index
    %c0_48 = arith.constant 0 : index
    %c0_49 = arith.constant 0 : index
    %45 = vector.load %arg2[%c7, %c0_48, %c0_49] : memref<9x48x128xbf16, #tpu.memory_space<vmem>>, vector<1x48x128xbf16>
    %46 = vector.shape_cast %45 : vector<1x48x128xbf16> to vector<48x128xbf16>
    %cst_50 = arith.constant dense<0.000000e+00> : vector<80x128xf32>
    %47 = tpu.matmul %44, %46, %cst_50 {dimension_numbers = #tpu.dot_dimension_numbers<[1], [0], [0], [1], [0, 0, 1, 1], [], []>} : vector<80x48xbf16>, vector<48x128xbf16>, vector<80x128xf32> -> vector<80x128xf32>
    %48 = arith.addf %42, %47 : vector<80x128xf32>
    %c0_51 = arith.constant 0 : index
    %c0_52 = arith.constant 0 : index
    %c22 = arith.constant 22 : index
    %c0_53 = arith.constant 0 : index
    %49 = vector.load %arg1[%c0_51, %c0_52, %c22, %c0_53] : memref<1x1x110x48xbf16, #tpu.memory_space<vmem>>, vector<1x1x80x48xbf16>
    %50 = vector.shape_cast %49 : vector<1x1x80x48xbf16> to vector<80x48xbf16>
    %c8 = arith.constant 8 : index
    %c0_54 = arith.constant 0 : index
    %c0_55 = arith.constant 0 : index
    %51 = vector.load %arg2[%c8, %c0_54, %c0_55] : memref<9x48x128xbf16, #tpu.memory_space<vmem>>, vector<1x48x128xbf16>
    %52 = vector.shape_cast %51 : vector<1x48x128xbf16> to vector<48x128xbf16>
    %cst_56 = arith.constant dense<0.000000e+00> : vector<80x128xf32>
    %53 = tpu.matmul %50, %52, %cst_56 {dimension_numbers = #tpu.dot_dimension_numbers<[1], [0], [0], [1], [0, 0, 1, 1], [], []>} : vector<80x48xbf16>, vector<48x128xbf16>, vector<80x128xf32> -> vector<80x128xf32>
    %54 = arith.addf %48, %53 : vector<80x128xf32>
    %c0_57 = arith.constant 0 : index
    %c0_58 = arith.constant 0 : index
    %55 = vector.load %arg3[%c0_57, %c0_58] : memref<1x128xf32, #tpu.memory_space<vmem>>, vector<1x128xf32>
    %56 = vector.broadcast %55 : vector<1x128xf32> to vector<80x128xf32>
    %57 = arith.addf %54, %56 : vector<80x128xf32>
    %cst_59 = arith.constant 5.000000e-01 : f32
    %58 = vector.broadcast %cst_59 : f32 to vector<80x128xf32>
    %59 = arith.mulf %58, %57 : vector<80x128xf32>
    %cst_60 = arith.constant 0.707106769 : f32
    %60 = vector.broadcast %cst_60 : f32 to vector<80x128xf32>
    %61 = arith.mulf %57, %60 : vector<80x128xf32>
    %62 = math.erf %61 : vector<80x128xf32>
    %cst_61 = arith.constant 1.000000e+00 : f32
    %63 = vector.broadcast %cst_61 : f32 to vector<80x128xf32>
    %64 = arith.addf %63, %62 : vector<80x128xf32>
    %65 = arith.mulf %59, %64 : vector<80x128xf32>
    %66 = tpu.iota {dimensions = array<i32: 1>} : vector<1x128xi32>
    %c48_i32 = arith.constant 48 : i32
    %67 = vector.broadcast %c48_i32 : i32 to vector<1x128xi32>
    %68 = arith.cmpi slt, %66, %67 : vector<1x128xi32>
    %69 = arith.extui %68 : vector<1x128xi1> to vector<1x128xi32>
    %70 = arith.sitofp %69 : vector<1x128xi32> to vector<1x128xf32>
    %71 = vector.broadcast %70 : vector<1x128xf32> to vector<80x128xf32>
    %72 = arith.mulf %65, %71 : vector<80x128xf32>
    %cst_62 = arith.constant dense<0.000000e+00> : vector<80xf32>
    %73 = vector.multi_reduction <add>, %72, %cst_62 [1] : vector<80x128xf32> to vector<80xf32>
    %74 = vector.shape_cast %73 : vector<80xf32> to vector<80x1xf32>
    %cst_63 = arith.constant 0.020833334 : f32
    %75 = vector.broadcast %cst_63 : f32 to vector<80x1xf32>
    %76 = arith.mulf %74, %75 : vector<80x1xf32>
    %77 = vector.broadcast %76 : vector<80x1xf32> to vector<80x128xf32>
    %78 = arith.subf %65, %77 : vector<80x128xf32>
    %79 = vector.broadcast %70 : vector<1x128xf32> to vector<80x128xf32>
    %80 = arith.mulf %78, %79 : vector<80x128xf32>
    %81 = arith.mulf %80, %80 : vector<80x128xf32>
    %cst_64 = arith.constant dense<0.000000e+00> : vector<80xf32>
    %82 = vector.multi_reduction <add>, %81, %cst_64 [1] : vector<80x128xf32> to vector<80xf32>
    %83 = vector.shape_cast %82 : vector<80xf32> to vector<80x1xf32>
    %cst_65 = arith.constant 0.020833334 : f32
    %84 = vector.broadcast %cst_65 : f32 to vector<80x1xf32>
    %85 = arith.mulf %83, %84 : vector<80x1xf32>
    %cst_66 = arith.constant 9.99999974E-6 : f32
    %86 = vector.broadcast %cst_66 : f32 to vector<80x1xf32>
    %87 = arith.addf %85, %86 : vector<80x1xf32>
    %88 = math.rsqrt %87 : vector<80x1xf32>
    %89 = vector.broadcast %88 : vector<80x1xf32> to vector<80x128xf32>
    %90 = arith.mulf %80, %89 : vector<80x128xf32>
    %c0_67 = arith.constant 0 : index
    %c0_68 = arith.constant 0 : index
    %91 = vector.load %arg4[%c0_67, %c0_68] : memref<1x128xf32, #tpu.memory_space<vmem>>, vector<1x128xf32>
    %92 = vector.broadcast %91 : vector<1x128xf32> to vector<80x128xf32>
    %93 = arith.mulf %90, %92 : vector<80x128xf32>
    %c0_69 = arith.constant 0 : index
    %c0_70 = arith.constant 0 : index
    %94 = vector.load %arg5[%c0_69, %c0_70] : memref<1x128xf32, #tpu.memory_space<vmem>>, vector<1x128xf32>
    %95 = vector.broadcast %94 : vector<1x128xf32> to vector<80x128xf32>
    %96 = arith.addf %93, %95 : vector<80x128xf32>
    %c0_71 = arith.constant 0 : index
    %c0_72 = arith.constant 0 : index
    %c0_73 = arith.constant 0 : index
    %97 = vector.load %arg6[%c0_71, %c0_72, %c0_73] : memref<1x80x128xf32, #tpu.memory_space<vmem>>, vector<1x80x128xf32>
    %98 = vector.shape_cast %97 : vector<1x80x128xf32> to vector<80x128xf32>
    %99 = vector.shape_cast %96 : vector<80x128xf32> to vector<1x80x128xf32>
    tpu.vector_store %arg6[%c0_71, %c0_72, %c0_73], %99 {strides = array<i32>} : memref<1x80x128xf32, #tpu.memory_space<vmem>>, vector<1x80x128xf32>,
    return
  }
  func.func @transform_0(%arg0: i32) -> (i32, i32, i32, i32) {
    %c0_i32 = arith.constant 0 : i32
    %c0_i32_0 = arith.constant 0 : i32
    %c0_i32_1 = arith.constant 0 : i32
    %c0_i32_2 = arith.constant 0 : i32
    return %arg0, %c0_i32, %c0_i32_0, %c0_i32_1 : i32, i32, i32, i32
  }
  func.func @transform_1(%arg0: i32) -> (i32, i32, i32) {
    %c0_i32 = arith.constant 0 : i32
    %c0_i32_0 = arith.constant 0 : i32
    %c0_i32_1 = arith.constant 0 : i32
    %c0_i32_2 = arith.constant 0 : i32
    return %c0_i32, %c0_i32_0, %c0_i32_1 : i32, i32, i32
  }
  func.func @transform_2(%arg0: i32) -> (i32, i32) {
    %c0_i32 = arith.constant 0 : i32
    %c0_i32_0 = arith.constant 0 : i32
    %c0_i32_1 = arith.constant 0 : i32
    return %c0_i32, %c0_i32_0 : i32, i32
  }
  func.func @transform_3(%arg0: i32) -> (i32, i32) {
    %c0_i32 = arith.constant 0 : i32
    %c0_i32_0 = arith.constant 0 : i32
    %c0_i32_1 = arith.constant 0 : i32
    return %c0_i32, %c0_i32_0 : i32, i32
  }
  func.func @transform_4(%arg0: i32) -> (i32, i32) {
    %c0_i32 = arith.constant 0 : i32
    %c0_i32_0 = arith.constant 0 : i32
    %c0_i32_1 = arith.constant 0 : i32
    return %c0_i32, %c0_i32_0 : i32, i32
  }
  func.func @transform_5(%arg0: i32) -> (i32, i32, i32) {
    %c0_i32 = arith.constant 0 : i32
    %c0_i32_0 = arith.constant 0 : i32
    %c0_i32_1 = arith.constant 0 : i32
    return %arg0, %c0_i32, %c0_i32_0 : i32, i32, i32
  }
}

module attributes {stable_mosaic.version = 11 : i64} {
  func.func @_conv3x3_kernel(%arg0: i32, %arg1: memref<1x4x30x48xbf16, #tpu.memory_space<vmem>>, %arg2: memref<9x48x128xbf16, #tpu.memory_space<vmem>>, %arg3: memref<1x128xf32, #tpu.memory_space<vmem>>, %arg4: memref<1x128xf32, #tpu.memory_space<vmem>>, %arg5: memref<1x128xf32, #tpu.memory_space<vmem>>, %arg6: memref<1x20x128xf32, #tpu.memory_space<vmem>>) attributes {dimension_semantics = [#tpu.dimension_semantics<parallel>], iteration_bounds = array<i64: 2>, scalar_prefetch = 0 : i64, scratch_operands = 0 : i64, tpu.core_type = #tpu.core_type<tc>, window_params = [{transform_indices = @transform_0, window_bounds = array<i64: 1, 4, 30, 48>}, {pipeline_mode = #tpu.pipeline_mode<synchronous>, transform_indices = @transform_1, window_bounds = array<i64: 9, 48, 128>}, {pipeline_mode = #tpu.pipeline_mode<synchronous>, transform_indices = @transform_2, window_bounds = array<i64: 1, 128>}, {pipeline_mode = #tpu.pipeline_mode<synchronous>, transform_indices = @transform_3, window_bounds = array<i64: 1, 128>}, {pipeline_mode = #tpu.pipeline_mode<synchronous>, transform_indices = @transform_4, window_bounds = array<i64: 1, 128>}, {transform_indices = @transform_5, window_bounds = array<i64: 1, 20, 128>}]} {
    %cst = arith.constant 0.000000e+00 : f32
    %0 = vector.broadcast %cst : f32 to vector<20x128xf32>
    %c0 = arith.constant 0 : index
    %c0_0 = arith.constant 0 : index
    %c0_1 = arith.constant 0 : index
    %c0_2 = arith.constant 0 : index
    %1 = vector.load %arg1[%c0, %c0_0, %c0_1, %c0_2] : memref<1x4x30x48xbf16, #tpu.memory_space<vmem>>, vector<1x1x20x48xbf16>
    %2 = vector.shape_cast %1 : vector<1x1x20x48xbf16> to vector<20x48xbf16>
    %c0_3 = arith.constant 0 : index
    %c0_4 = arith.constant 0 : index
    %c0_5 = arith.constant 0 : index
    %3 = vector.load %arg2[%c0_3, %c0_4, %c0_5] : memref<9x48x128xbf16, #tpu.memory_space<vmem>>, vector<1x48x128xbf16>
    %4 = vector.shape_cast %3 : vector<1x48x128xbf16> to vector<48x128xbf16>
    %cst_6 = arith.constant dense<0.000000e+00> : vector<20x128xf32>
    %5 = tpu.matmul %2, %4, %cst_6 {dimension_numbers = #tpu.dot_dimension_numbers<[1], [0], [0], [1], [0, 0, 1, 1], [], []>} : vector<20x48xbf16>, vector<48x128xbf16>, vector<20x128xf32> -> vector<20x128xf32>
    %6 = arith.addf %0, %5 : vector<20x128xf32>
    %c0_7 = arith.constant 0 : index
    %c1 = arith.constant 1 : index
    %c0_8 = arith.constant 0 : index
    %c0_9 = arith.constant 0 : index
    %7 = vector.load %arg1[%c0_7, %c1, %c0_8, %c0_9] : memref<1x4x30x48xbf16, #tpu.memory_space<vmem>>, vector<1x1x20x48xbf16>
    %8 = vector.shape_cast %7 : vector<1x1x20x48xbf16> to vector<20x48xbf16>
    %c1_10 = arith.constant 1 : index
    %c0_11 = arith.constant 0 : index
    %c0_12 = arith.constant 0 : index
    %9 = vector.load %arg2[%c1_10, %c0_11, %c0_12] : memref<9x48x128xbf16, #tpu.memory_space<vmem>>, vector<1x48x128xbf16>
    %10 = vector.shape_cast %9 : vector<1x48x128xbf16> to vector<48x128xbf16>
    %cst_13 = arith.constant dense<0.000000e+00> : vector<20x128xf32>
    %11 = tpu.matmul %8, %10, %cst_13 {dimension_numbers = #tpu.dot_dimension_numbers<[1], [0], [0], [1], [0, 0, 1, 1], [], []>} : vector<20x48xbf16>, vector<48x128xbf16>, vector<20x128xf32> -> vector<20x128xf32>
    %12 = arith.addf %6, %11 : vector<20x128xf32>
    %c0_14 = arith.constant 0 : index
    %c0_15 = arith.constant 0 : index
    %c1_16 = arith.constant 1 : index
    %c0_17 = arith.constant 0 : index
    %13 = vector.load %arg1[%c0_14, %c0_15, %c1_16, %c0_17] : memref<1x4x30x48xbf16, #tpu.memory_space<vmem>>, vector<1x1x20x48xbf16>
    %14 = vector.shape_cast %13 : vector<1x1x20x48xbf16> to vector<20x48xbf16>
    %c2 = arith.constant 2 : index
    %c0_18 = arith.constant 0 : index
    %c0_19 = arith.constant 0 : index
    %15 = vector.load %arg2[%c2, %c0_18, %c0_19] : memref<9x48x128xbf16, #tpu.memory_space<vmem>>, vector<1x48x128xbf16>
    %16 = vector.shape_cast %15 : vector<1x48x128xbf16> to vector<48x128xbf16>
    %cst_20 = arith.constant dense<0.000000e+00> : vector<20x128xf32>
    %17 = tpu.matmul %14, %16, %cst_20 {dimension_numbers = #tpu.dot_dimension_numbers<[1], [0], [0], [1], [0, 0, 1, 1], [], []>} : vector<20x48xbf16>, vector<48x128xbf16>, vector<20x128xf32> -> vector<20x128xf32>
    %18 = arith.addf %12, %17 : vector<20x128xf32>
    %c0_21 = arith.constant 0 : index
    %c2_22 = arith.constant 2 : index
    %c0_23 = arith.constant 0 : index
    %c0_24 = arith.constant 0 : index
    %19 = vector.load %arg1[%c0_21, %c2_22, %c0_23, %c0_24] : memref<1x4x30x48xbf16, #tpu.memory_space<vmem>>, vector<1x1x20x48xbf16>
    %20 = vector.shape_cast %19 : vector<1x1x20x48xbf16> to vector<20x48xbf16>
    %c3 = arith.constant 3 : index
    %c0_25 = arith.constant 0 : index
    %c0_26 = arith.constant 0 : index
    %21 = vector.load %arg2[%c3, %c0_25, %c0_26] : memref<9x48x128xbf16, #tpu.memory_space<vmem>>, vector<1x48x128xbf16>
    %22 = vector.shape_cast %21 : vector<1x48x128xbf16> to vector<48x128xbf16>
    %cst_27 = arith.constant dense<0.000000e+00> : vector<20x128xf32>
    %23 = tpu.matmul %20, %22, %cst_27 {dimension_numbers = #tpu.dot_dimension_numbers<[1], [0], [0], [1], [0, 0, 1, 1], [], []>} : vector<20x48xbf16>, vector<48x128xbf16>, vector<20x128xf32> -> vector<20x128xf32>
    %24 = arith.addf %18, %23 : vector<20x128xf32>
    %c0_28 = arith.constant 0 : index
    %c3_29 = arith.constant 3 : index
    %c0_30 = arith.constant 0 : index
    %c0_31 = arith.constant 0 : index
    %25 = vector.load %arg1[%c0_28, %c3_29, %c0_30, %c0_31] : memref<1x4x30x48xbf16, #tpu.memory_space<vmem>>, vector<1x1x20x48xbf16>
    %26 = vector.shape_cast %25 : vector<1x1x20x48xbf16> to vector<20x48xbf16>
    %c4 = arith.constant 4 : index
    %c0_32 = arith.constant 0 : index
    %c0_33 = arith.constant 0 : index
    %27 = vector.load %arg2[%c4, %c0_32, %c0_33] : memref<9x48x128xbf16, #tpu.memory_space<vmem>>, vector<1x48x128xbf16>
    %28 = vector.shape_cast %27 : vector<1x48x128xbf16> to vector<48x128xbf16>
    %cst_34 = arith.constant dense<0.000000e+00> : vector<20x128xf32>
    %29 = tpu.matmul %26, %28, %cst_34 {dimension_numbers = #tpu.dot_dimension_numbers<[1], [0], [0], [1], [0, 0, 1, 1], [], []>} : vector<20x48xbf16>, vector<48x128xbf16>, vector<20x128xf32> -> vector<20x128xf32>
    %30 = arith.addf %24, %29 : vector<20x128xf32>
    %c0_35 = arith.constant 0 : index
    %c2_36 = arith.constant 2 : index
    %c1_37 = arith.constant 1 : index
    %c0_38 = arith.constant 0 : index
    %31 = vector.load %arg1[%c0_35, %c2_36, %c1_37, %c0_38] : memref<1x4x30x48xbf16, #tpu.memory_space<vmem>>, vector<1x1x20x48xbf16>
    %32 = vector.shape_cast %31 : vector<1x1x20x48xbf16> to vector<20x48xbf16>
    %c5 = arith.constant 5 : index
    %c0_39 = arith.constant 0 : index
    %c0_40 = arith.constant 0 : index
    %33 = vector.load %arg2[%c5, %c0_39, %c0_40] : memref<9x48x128xbf16, #tpu.memory_space<vmem>>, vector<1x48x128xbf16>
    %34 = vector.shape_cast %33 : vector<1x48x128xbf16> to vector<48x128xbf16>
    %cst_41 = arith.constant dense<0.000000e+00> : vector<20x128xf32>
    %35 = tpu.matmul %32, %34, %cst_41 {dimension_numbers = #tpu.dot_dimension_numbers<[1], [0], [0], [1], [0, 0, 1, 1], [], []>} : vector<20x48xbf16>, vector<48x128xbf16>, vector<20x128xf32> -> vector<20x128xf32>
    %36 = arith.addf %30, %35 : vector<20x128xf32>
    %c0_42 = arith.constant 0 : index
    %c0_43 = arith.constant 0 : index
    %c5_44 = arith.constant 5 : index
    %c0_45 = arith.constant 0 : index
    %37 = vector.load %arg1[%c0_42, %c0_43, %c5_44, %c0_45] : memref<1x4x30x48xbf16, #tpu.memory_space<vmem>>, vector<1x1x20x48xbf16>
    %38 = vector.shape_cast %37 : vector<1x1x20x48xbf16> to vector<20x48xbf16>
    %c6 = arith.constant 6 : index
    %c0_46 = arith.constant 0 : index
    %c0_47 = arith.constant 0 : index
    %39 = vector.load %arg2[%c6, %c0_46, %c0_47] : memref<9x48x128xbf16, #tpu.memory_space<vmem>>, vector<1x48x128xbf16>
    %40 = vector.shape_cast %39 : vector<1x48x128xbf16> to vector<48x128xbf16>
    %cst_48 = arith.constant dense<0.000000e+00> : vector<20x128xf32>
    %41 = tpu.matmul %38, %40, %cst_48 {dimension_numbers = #tpu.dot_dimension_numbers<[1], [0], [0], [1], [0, 0, 1, 1], [], []>} : vector<20x48xbf16>, vector<48x128xbf16>, vector<20x128xf32> -> vector<20x128xf32>
    %42 = arith.addf %36, %41 : vector<20x128xf32>
    %c0_49 = arith.constant 0 : index
    %c1_50 = arith.constant 1 : index
    %c5_51 = arith.constant 5 : index
    %c0_52 = arith.constant 0 : index
    %43 = vector.load %arg1[%c0_49, %c1_50, %c5_51, %c0_52] : memref<1x4x30x48xbf16, #tpu.memory_space<vmem>>, vector<1x1x20x48xbf16>
    %44 = vector.shape_cast %43 : vector<1x1x20x48xbf16> to vector<20x48xbf16>
    %c7 = arith.constant 7 : index
    %c0_53 = arith.constant 0 : index
    %c0_54 = arith.constant 0 : index
    %45 = vector.load %arg2[%c7, %c0_53, %c0_54] : memref<9x48x128xbf16, #tpu.memory_space<vmem>>, vector<1x48x128xbf16>
    %46 = vector.shape_cast %45 : vector<1x48x128xbf16> to vector<48x128xbf16>
    %cst_55 = arith.constant dense<0.000000e+00> : vector<20x128xf32>
    %47 = tpu.matmul %44, %46, %cst_55 {dimension_numbers = #tpu.dot_dimension_numbers<[1], [0], [0], [1], [0, 0, 1, 1], [], []>} : vector<20x48xbf16>, vector<48x128xbf16>, vector<20x128xf32> -> vector<20x128xf32>
    %48 = arith.addf %42, %47 : vector<20x128xf32>
    %c0_56 = arith.constant 0 : index
    %c0_57 = arith.constant 0 : index
    %c6_58 = arith.constant 6 : index
    %c0_59 = arith.constant 0 : index
    %49 = vector.load %arg1[%c0_56, %c0_57, %c6_58, %c0_59] : memref<1x4x30x48xbf16, #tpu.memory_space<vmem>>, vector<1x1x20x48xbf16>
    %50 = vector.shape_cast %49 : vector<1x1x20x48xbf16> to vector<20x48xbf16>
    %c8 = arith.constant 8 : index
    %c0_60 = arith.constant 0 : index
    %c0_61 = arith.constant 0 : index
    %51 = vector.load %arg2[%c8, %c0_60, %c0_61] : memref<9x48x128xbf16, #tpu.memory_space<vmem>>, vector<1x48x128xbf16>
    %52 = vector.shape_cast %51 : vector<1x48x128xbf16> to vector<48x128xbf16>
    %cst_62 = arith.constant dense<0.000000e+00> : vector<20x128xf32>
    %53 = tpu.matmul %50, %52, %cst_62 {dimension_numbers = #tpu.dot_dimension_numbers<[1], [0], [0], [1], [0, 0, 1, 1], [], []>} : vector<20x48xbf16>, vector<48x128xbf16>, vector<20x128xf32> -> vector<20x128xf32>
    %54 = arith.addf %48, %53 : vector<20x128xf32>
    %c0_63 = arith.constant 0 : index
    %c0_64 = arith.constant 0 : index
    %55 = vector.load %arg3[%c0_63, %c0_64] : memref<1x128xf32, #tpu.memory_space<vmem>>, vector<1x128xf32>
    %56 = vector.broadcast %55 : vector<1x128xf32> to vector<20x128xf32>
    %57 = arith.addf %54, %56 : vector<20x128xf32>
    %cst_65 = arith.constant 5.000000e-01 : f32
    %58 = vector.broadcast %cst_65 : f32 to vector<20x128xf32>
    %59 = arith.mulf %58, %57 : vector<20x128xf32>
    %cst_66 = arith.constant 0.707106769 : f32
    %60 = vector.broadcast %cst_66 : f32 to vector<20x128xf32>
    %61 = arith.mulf %57, %60 : vector<20x128xf32>
    %62 = math.erf %61 : vector<20x128xf32>
    %cst_67 = arith.constant 1.000000e+00 : f32
    %63 = vector.broadcast %cst_67 : f32 to vector<20x128xf32>
    %64 = arith.addf %63, %62 : vector<20x128xf32>
    %65 = arith.mulf %59, %64 : vector<20x128xf32>
    %66 = tpu.iota {dimensions = array<i32: 1>} : vector<1x128xi32>
    %c96_i32 = arith.constant 96 : i32
    %67 = vector.broadcast %c96_i32 : i32 to vector<1x128xi32>
    %68 = arith.cmpi slt, %66, %67 : vector<1x128xi32>
    %69 = arith.extui %68 : vector<1x128xi1> to vector<1x128xi32>
    %70 = arith.sitofp %69 : vector<1x128xi32> to vector<1x128xf32>
    %71 = vector.broadcast %70 : vector<1x128xf32> to vector<20x128xf32>
    %72 = arith.mulf %65, %71 : vector<20x128xf32>
    %cst_68 = arith.constant dense<0.000000e+00> : vector<20xf32>
    %73 = vector.multi_reduction <add>, %72, %cst_68 [1] : vector<20x128xf32> to vector<20xf32>
    %74 = vector.shape_cast %73 : vector<20xf32> to vector<20x1xf32>
    %cst_69 = arith.constant 0.010416667 : f32
    %75 = vector.broadcast %cst_69 : f32 to vector<20x1xf32>
    %76 = arith.mulf %74, %75 : vector<20x1xf32>
    %77 = vector.broadcast %76 : vector<20x1xf32> to vector<20x128xf32>
    %78 = arith.subf %65, %77 : vector<20x128xf32>
    %79 = vector.broadcast %70 : vector<1x128xf32> to vector<20x128xf32>
    %80 = arith.mulf %78, %79 : vector<20x128xf32>
    %81 = arith.mulf %80, %80 : vector<20x128xf32>
    %cst_70 = arith.constant dense<0.000000e+00> : vector<20xf32>
    %82 = vector.multi_reduction <add>, %81, %cst_70 [1] : vector<20x128xf32> to vector<20xf32>
    %83 = vector.shape_cast %82 : vector<20xf32> to vector<20x1xf32>
    %cst_71 = arith.constant 0.010416667 : f32
    %84 = vector.broadcast %cst_71 : f32 to vector<20x1xf32>
    %85 = arith.mulf %83, %84 : vector<20x1xf32>
    %cst_72 = arith.constant 9.99999974E-6 : f32
    %86 = vector.broadcast %cst_72 : f32 to vector<20x1xf32>
    %87 = arith.addf %85, %86 : vector<20x1xf32>
    %88 = math.rsqrt %87 : vector<20x1xf32>
    %89 = vector.broadcast %88 : vector<20x1xf32> to vector<20x128xf32>
    %90 = arith.mulf %80, %89 : vector<20x128xf32>
    %c0_73 = arith.constant 0 : index
    %c0_74 = arith.constant 0 : index
    %91 = vector.load %arg4[%c0_73, %c0_74] : memref<1x128xf32, #tpu.memory_space<vmem>>, vector<1x128xf32>
    %92 = vector.broadcast %91 : vector<1x128xf32> to vector<20x128xf32>
    %93 = arith.mulf %90, %92 : vector<20x128xf32>
    %c0_75 = arith.constant 0 : index
    %c0_76 = arith.constant 0 : index
    %94 = vector.load %arg5[%c0_75, %c0_76] : memref<1x128xf32, #tpu.memory_space<vmem>>, vector<1x128xf32>
    %95 = vector.broadcast %94 : vector<1x128xf32> to vector<20x128xf32>
    %96 = arith.addf %93, %95 : vector<20x128xf32>
    %c0_77 = arith.constant 0 : index
    %c0_78 = arith.constant 0 : index
    %c0_79 = arith.constant 0 : index
    %97 = vector.load %arg6[%c0_77, %c0_78, %c0_79] : memref<1x20x128xf32, #tpu.memory_space<vmem>>, vector<1x20x128xf32>
    %98 = vector.shape_cast %97 : vector<1x20x128xf32> to vector<20x128xf32>
    %99 = vector.shape_cast %96 : vector<20x128xf32> to vector<1x20x128xf32>
    tpu.vector_store %arg6[%c0_77, %c0_78, %c0_79], %99 {strides = array<i32>} : memref<1x20x128xf32, #tpu.memory_space<vmem>>, vector<1x20x128xf32>,
    return
  }
  func.func @transform_0(%arg0: i32) -> (i32, i32, i32, i32) {
    %c0_i32 = arith.constant 0 : i32
    %c0_i32_0 = arith.constant 0 : i32
    %c0_i32_1 = arith.constant 0 : i32
    %c0_i32_2 = arith.constant 0 : i32
    return %arg0, %c0_i32, %c0_i32_0, %c0_i32_1 : i32, i32, i32, i32
  }
  func.func @transform_1(%arg0: i32) -> (i32, i32, i32) {
    %c0_i32 = arith.constant 0 : i32
    %c0_i32_0 = arith.constant 0 : i32
    %c0_i32_1 = arith.constant 0 : i32
    %c0_i32_2 = arith.constant 0 : i32
    return %c0_i32, %c0_i32_0, %c0_i32_1 : i32, i32, i32
  }
  func.func @transform_2(%arg0: i32) -> (i32, i32) {
    %c0_i32 = arith.constant 0 : i32
    %c0_i32_0 = arith.constant 0 : i32
    %c0_i32_1 = arith.constant 0 : i32
    return %c0_i32, %c0_i32_0 : i32, i32
  }
  func.func @transform_3(%arg0: i32) -> (i32, i32) {
    %c0_i32 = arith.constant 0 : i32
    %c0_i32_0 = arith.constant 0 : i32
    %c0_i32_1 = arith.constant 0 : i32
    return %c0_i32, %c0_i32_0 : i32, i32
  }
  func.func @transform_4(%arg0: i32) -> (i32, i32) {
    %c0_i32 = arith.constant 0 : i32
    %c0_i32_0 = arith.constant 0 : i32
    %c0_i32_1 = arith.constant 0 : i32
    return %c0_i32, %c0_i32_0 : i32, i32
  }
  func.func @transform_5(%arg0: i32) -> (i32, i32, i32) {
    %c0_i32 = arith.constant 0 : i32
    %c0_i32_0 = arith.constant 0 : i32
    %c0_i32_1 = arith.constant 0 : i32
    return %arg0, %c0_i32, %c0_i32_0 : i32, i32, i32
  }
}

module attributes {stable_mosaic.version = 11 : i64} {
  func.func @_conv3x3_kernel(%arg0: i32, %arg1: memref<1x1x42x96xbf16, #tpu.memory_space<vmem>>, %arg2: memref<9x96x128xbf16, #tpu.memory_space<vmem>>, %arg3: memref<1x128xf32, #tpu.memory_space<vmem>>, %arg4: memref<1x128xf32, #tpu.memory_space<vmem>>, %arg5: memref<1x128xf32, #tpu.memory_space<vmem>>, %arg6: memref<1x24x128xf32, #tpu.memory_space<vmem>>) attributes {dimension_semantics = [#tpu.dimension_semantics<parallel>], iteration_bounds = array<i64: 2>, scalar_prefetch = 0 : i64, scratch_operands = 0 : i64, tpu.core_type = #tpu.core_type<tc>, window_params = [{transform_indices = @transform_0, window_bounds = array<i64: 1, 1, 42, 96>}, {pipeline_mode = #tpu.pipeline_mode<synchronous>, transform_indices = @transform_1, window_bounds = array<i64: 9, 96, 128>}, {pipeline_mode = #tpu.pipeline_mode<synchronous>, transform_indices = @transform_2, window_bounds = array<i64: 1, 128>}, {pipeline_mode = #tpu.pipeline_mode<synchronous>, transform_indices = @transform_3, window_bounds = array<i64: 1, 128>}, {pipeline_mode = #tpu.pipeline_mode<synchronous>, transform_indices = @transform_4, window_bounds = array<i64: 1, 128>}, {transform_indices = @transform_5, window_bounds = array<i64: 1, 24, 128>}]} {
    %cst = arith.constant 0.000000e+00 : f32
    %0 = vector.broadcast %cst : f32 to vector<24x128xf32>
    %c0 = arith.constant 0 : index
    %c0_0 = arith.constant 0 : index
    %c0_1 = arith.constant 0 : index
    %c0_2 = arith.constant 0 : index
    %1 = vector.load %arg1[%c0, %c0_0, %c0_1, %c0_2] : memref<1x1x42x96xbf16, #tpu.memory_space<vmem>>, vector<1x1x24x96xbf16>
    %2 = vector.shape_cast %1 : vector<1x1x24x96xbf16> to vector<24x96xbf16>
    %c0_3 = arith.constant 0 : index
    %c0_4 = arith.constant 0 : index
    %c0_5 = arith.constant 0 : index
    %3 = vector.load %arg2[%c0_3, %c0_4, %c0_5] : memref<9x96x128xbf16, #tpu.memory_space<vmem>>, vector<1x96x128xbf16>
    %4 = vector.shape_cast %3 : vector<1x96x128xbf16> to vector<96x128xbf16>
    %cst_6 = arith.constant dense<0.000000e+00> : vector<24x128xf32>
    %5 = tpu.matmul %2, %4, %cst_6 {dimension_numbers = #tpu.dot_dimension_numbers<[1], [0], [0], [1], [0, 0, 1, 1], [], []>} : vector<24x96xbf16>, vector<96x128xbf16>, vector<24x128xf32> -> vector<24x128xf32>
    %6 = arith.addf %0, %5 : vector<24x128xf32>
    %c0_7 = arith.constant 0 : index
    %c0_8 = arith.constant 0 : index
    %c1 = arith.constant 1 : index
    %c0_9 = arith.constant 0 : index
    %7 = vector.load %arg1[%c0_7, %c0_8, %c1, %c0_9] : memref<1x1x42x96xbf16, #tpu.memory_space<vmem>>, vector<1x1x24x96xbf16>
    %8 = vector.shape_cast %7 : vector<1x1x24x96xbf16> to vector<24x96xbf16>
    %c1_10 = arith.constant 1 : index
    %c0_11 = arith.constant 0 : index
    %c0_12 = arith.constant 0 : index
    %9 = vector.load %arg2[%c1_10, %c0_11, %c0_12] : memref<9x96x128xbf16, #tpu.memory_space<vmem>>, vector<1x96x128xbf16>
    %10 = vector.shape_cast %9 : vector<1x96x128xbf16> to vector<96x128xbf16>
    %cst_13 = arith.constant dense<0.000000e+00> : vector<24x128xf32>
    %11 = tpu.matmul %8, %10, %cst_13 {dimension_numbers = #tpu.dot_dimension_numbers<[1], [0], [0], [1], [0, 0, 1, 1], [], []>} : vector<24x96xbf16>, vector<96x128xbf16>, vector<24x128xf32> -> vector<24x128xf32>
    %12 = arith.addf %6, %11 : vector<24x128xf32>
    %c0_14 = arith.constant 0 : index
    %c0_15 = arith.constant 0 : index
    %c2 = arith.constant 2 : index
    %c0_16 = arith.constant 0 : index
    %13 = vector.load %arg1[%c0_14, %c0_15, %c2, %c0_16] : memref<1x1x42x96xbf16, #tpu.memory_space<vmem>>, vector<1x1x24x96xbf16>
    %14 = vector.shape_cast %13 : vector<1x1x24x96xbf16> to vector<24x96xbf16>
    %c2_17 = arith.constant 2 : index
    %c0_18 = arith.constant 0 : index
    %c0_19 = arith.constant 0 : index
    %15 = vector.load %arg2[%c2_17, %c0_18, %c0_19] : memref<9x96x128xbf16, #tpu.memory_space<vmem>>, vector<1x96x128xbf16>
    %16 = vector.shape_cast %15 : vector<1x96x128xbf16> to vector<96x128xbf16>
    %cst_20 = arith.constant dense<0.000000e+00> : vector<24x128xf32>
    %17 = tpu.matmul %14, %16, %cst_20 {dimension_numbers = #tpu.dot_dimension_numbers<[1], [0], [0], [1], [0, 0, 1, 1], [], []>} : vector<24x96xbf16>, vector<96x128xbf16>, vector<24x128xf32> -> vector<24x128xf32>
    %18 = arith.addf %12, %17 : vector<24x128xf32>
    %c0_21 = arith.constant 0 : index
    %c0_22 = arith.constant 0 : index
    %c6 = arith.constant 6 : index
    %c0_23 = arith.constant 0 : index
    %19 = vector.load %arg1[%c0_21, %c0_22, %c6, %c0_23] : memref<1x1x42x96xbf16, #tpu.memory_space<vmem>>, vector<1x1x24x96xbf16>
    %20 = vector.shape_cast %19 : vector<1x1x24x96xbf16> to vector<24x96xbf16>
    %c3 = arith.constant 3 : index
    %c0_24 = arith.constant 0 : index
    %c0_25 = arith.constant 0 : index
    %21 = vector.load %arg2[%c3, %c0_24, %c0_25] : memref<9x96x128xbf16, #tpu.memory_space<vmem>>, vector<1x96x128xbf16>
    %22 = vector.shape_cast %21 : vector<1x96x128xbf16> to vector<96x128xbf16>
    %cst_26 = arith.constant dense<0.000000e+00> : vector<24x128xf32>
    %23 = tpu.matmul %20, %22, %cst_26 {dimension_numbers = #tpu.dot_dimension_numbers<[1], [0], [0], [1], [0, 0, 1, 1], [], []>} : vector<24x96xbf16>, vector<96x128xbf16>, vector<24x128xf32> -> vector<24x128xf32>
    %24 = arith.addf %18, %23 : vector<24x128xf32>
    %c0_27 = arith.constant 0 : index
    %c0_28 = arith.constant 0 : index
    %c7 = arith.constant 7 : index
    %c0_29 = arith.constant 0 : index
    %25 = vector.load %arg1[%c0_27, %c0_28, %c7, %c0_29] : memref<1x1x42x96xbf16, #tpu.memory_space<vmem>>, vector<1x1x24x96xbf16>
    %26 = vector.shape_cast %25 : vector<1x1x24x96xbf16> to vector<24x96xbf16>
    %c4 = arith.constant 4 : index
    %c0_30 = arith.constant 0 : index
    %c0_31 = arith.constant 0 : index
    %27 = vector.load %arg2[%c4, %c0_30, %c0_31] : memref<9x96x128xbf16, #tpu.memory_space<vmem>>, vector<1x96x128xbf16>
    %28 = vector.shape_cast %27 : vector<1x96x128xbf16> to vector<96x128xbf16>
    %cst_32 = arith.constant dense<0.000000e+00> : vector<24x128xf32>
    %29 = tpu.matmul %26, %28, %cst_32 {dimension_numbers = #tpu.dot_dimension_numbers<[1], [0], [0], [1], [0, 0, 1, 1], [], []>} : vector<24x96xbf16>, vector<96x128xbf16>, vector<24x128xf32> -> vector<24x128xf32>
    %30 = arith.addf %24, %29 : vector<24x128xf32>
    %c0_33 = arith.constant 0 : index
    %c0_34 = arith.constant 0 : index
    %c8 = arith.constant 8 : index
    %c0_35 = arith.constant 0 : index
    %31 = vector.load %arg1[%c0_33, %c0_34, %c8, %c0_35] : memref<1x1x42x96xbf16, #tpu.memory_space<vmem>>, vector<1x1x24x96xbf16>
    %32 = vector.shape_cast %31 : vector<1x1x24x96xbf16> to vector<24x96xbf16>
    %c5 = arith.constant 5 : index
    %c0_36 = arith.constant 0 : index
    %c0_37 = arith.constant 0 : index
    %33 = vector.load %arg2[%c5, %c0_36, %c0_37] : memref<9x96x128xbf16, #tpu.memory_space<vmem>>, vector<1x96x128xbf16>
    %34 = vector.shape_cast %33 : vector<1x96x128xbf16> to vector<96x128xbf16>
    %cst_38 = arith.constant dense<0.000000e+00> : vector<24x128xf32>
    %35 = tpu.matmul %32, %34, %cst_38 {dimension_numbers = #tpu.dot_dimension_numbers<[1], [0], [0], [1], [0, 0, 1, 1], [], []>} : vector<24x96xbf16>, vector<96x128xbf16>, vector<24x128xf32> -> vector<24x128xf32>
    %36 = arith.addf %30, %35 : vector<24x128xf32>
    %c0_39 = arith.constant 0 : index
    %c0_40 = arith.constant 0 : index
    %c12 = arith.constant 12 : index
    %c0_41 = arith.constant 0 : index
    %37 = vector.load %arg1[%c0_39, %c0_40, %c12, %c0_41] : memref<1x1x42x96xbf16, #tpu.memory_space<vmem>>, vector<1x1x24x96xbf16>
    %38 = vector.shape_cast %37 : vector<1x1x24x96xbf16> to vector<24x96xbf16>
    %c6_42 = arith.constant 6 : index
    %c0_43 = arith.constant 0 : index
    %c0_44 = arith.constant 0 : index
    %39 = vector.load %arg2[%c6_42, %c0_43, %c0_44] : memref<9x96x128xbf16, #tpu.memory_space<vmem>>, vector<1x96x128xbf16>
    %40 = vector.shape_cast %39 : vector<1x96x128xbf16> to vector<96x128xbf16>
    %cst_45 = arith.constant dense<0.000000e+00> : vector<24x128xf32>
    %41 = tpu.matmul %38, %40, %cst_45 {dimension_numbers = #tpu.dot_dimension_numbers<[1], [0], [0], [1], [0, 0, 1, 1], [], []>} : vector<24x96xbf16>, vector<96x128xbf16>, vector<24x128xf32> -> vector<24x128xf32>
    %42 = arith.addf %36, %41 : vector<24x128xf32>
    %c0_46 = arith.constant 0 : index
    %c0_47 = arith.constant 0 : index
    %c13 = arith.constant 13 : index
    %c0_48 = arith.constant 0 : index
    %43 = vector.load %arg1[%c0_46, %c0_47, %c13, %c0_48] : memref<1x1x42x96xbf16, #tpu.memory_space<vmem>>, vector<1x1x24x96xbf16>
    %44 = vector.shape_cast %43 : vector<1x1x24x96xbf16> to vector<24x96xbf16>
    %c7_49 = arith.constant 7 : index
    %c0_50 = arith.constant 0 : index
    %c0_51 = arith.constant 0 : index
    %45 = vector.load %arg2[%c7_49, %c0_50, %c0_51] : memref<9x96x128xbf16, #tpu.memory_space<vmem>>, vector<1x96x128xbf16>
    %46 = vector.shape_cast %45 : vector<1x96x128xbf16> to vector<96x128xbf16>
    %cst_52 = arith.constant dense<0.000000e+00> : vector<24x128xf32>
    %47 = tpu.matmul %44, %46, %cst_52 {dimension_numbers = #tpu.dot_dimension_numbers<[1], [0], [0], [1], [0, 0, 1, 1], [], []>} : vector<24x96xbf16>, vector<96x128xbf16>, vector<24x128xf32> -> vector<24x128xf32>
    %48 = arith.addf %42, %47 : vector<24x128xf32>
    %c0_53 = arith.constant 0 : index
    %c0_54 = arith.constant 0 : index
    %c14 = arith.constant 14 : index
    %c0_55 = arith.constant 0 : index
    %49 = vector.load %arg1[%c0_53, %c0_54, %c14, %c0_55] : memref<1x1x42x96xbf16, #tpu.memory_space<vmem>>, vector<1x1x24x96xbf16>
    %50 = vector.shape_cast %49 : vector<1x1x24x96xbf16> to vector<24x96xbf16>
    %c8_56 = arith.constant 8 : index
    %c0_57 = arith.constant 0 : index
    %c0_58 = arith.constant 0 : index
    %51 = vector.load %arg2[%c8_56, %c0_57, %c0_58] : memref<9x96x128xbf16, #tpu.memory_space<vmem>>, vector<1x96x128xbf16>
    %52 = vector.shape_cast %51 : vector<1x96x128xbf16> to vector<96x128xbf16>
    %cst_59 = arith.constant dense<0.000000e+00> : vector<24x128xf32>
    %53 = tpu.matmul %50, %52, %cst_59 {dimension_numbers = #tpu.dot_dimension_numbers<[1], [0], [0], [1], [0, 0, 1, 1], [], []>} : vector<24x96xbf16>, vector<96x128xbf16>, vector<24x128xf32> -> vector<24x128xf32>
    %54 = arith.addf %48, %53 : vector<24x128xf32>
    %c0_60 = arith.constant 0 : index
    %c0_61 = arith.constant 0 : index
    %55 = vector.load %arg3[%c0_60, %c0_61] : memref<1x128xf32, #tpu.memory_space<vmem>>, vector<1x128xf32>
    %56 = vector.broadcast %55 : vector<1x128xf32> to vector<24x128xf32>
    %57 = arith.addf %54, %56 : vector<24x128xf32>
    %c0_62 = arith.constant 0 : index
    %c0_63 = arith.constant 0 : index
    %c0_64 = arith.constant 0 : index
    %58 = vector.load %arg6[%c0_62, %c0_63, %c0_64] : memref<1x24x128xf32, #tpu.memory_space<vmem>>, vector<1x24x128xf32>
    %59 = vector.shape_cast %58 : vector<1x24x128xf32> to vector<24x128xf32>
    %60 = vector.shape_cast %57 : vector<24x128xf32> to vector<1x24x128xf32>
    tpu.vector_store %arg6[%c0_62, %c0_63, %c0_64], %60 {strides = array<i32>} : memref<1x24x128xf32, #tpu.memory_space<vmem>>, vector<1x24x128xf32>,
    return
  }
  func.func @transform_0(%arg0: i32) -> (i32, i32, i32, i32) {
    %c0_i32 = arith.constant 0 : i32
    %c0_i32_0 = arith.constant 0 : i32
    %c0_i32_1 = arith.constant 0 : i32
    %c0_i32_2 = arith.constant 0 : i32
    return %arg0, %c0_i32, %c0_i32_0, %c0_i32_1 : i32, i32, i32, i32
  }
  func.func @transform_1(%arg0: i32) -> (i32, i32, i32) {
    %c0_i32 = arith.constant 0 : i32
    %c0_i32_0 = arith.constant 0 : i32
    %c0_i32_1 = arith.constant 0 : i32
    %c0_i32_2 = arith.constant 0 : i32
    return %c0_i32, %c0_i32_0, %c0_i32_1 : i32, i32, i32
  }
  func.func @transform_2(%arg0: i32) -> (i32, i32) {
    %c0_i32 = arith.constant 0 : i32
    %c0_i32_0 = arith.constant 0 : i32
    %c0_i32_1 = arith.constant 0 : i32
    return %c0_i32, %c0_i32_0 : i32, i32
  }
  func.func @transform_3(%arg0: i32) -> (i32, i32) {
    %c0_i32 = arith.constant 0 : i32
    %c0_i32_0 = arith.constant 0 : i32
    %c0_i32_1 = arith.constant 0 : i32
    return %c0_i32, %c0_i32_0 : i32, i32
  }
  func.func @transform_4(%arg0: i32) -> (i32, i32) {
    %c0_i32 = arith.constant 0 : i32
    %c0_i32_0 = arith.constant 0 : i32
    %c0_i32_1 = arith.constant 0 : i32
    return %c0_i32, %c0_i32_0 : i32, i32
  }
  func.func @transform_5(%arg0: i32) -> (i32, i32, i32) {
    %c0_i32 = arith.constant 0 : i32
    %c0_i32_0 = arith.constant 0 : i32
    %c0_i32_1 = arith.constant 0 : i32
    return %arg0, %c0_i32, %c0_i32_0 : i32, i32, i32
  }
}

</mosaic_0001>

<llo_original>
// kernel: patch_embed_forward.4
$region0: #{patch_embed_forward.4}
  #allocation0 [shape = 'u32[]', space=smem, size = 0x4, offset = 0x4, fixed_abs, tag = 'smem constant byte address 0x4 - core index']
  #allocation1 [shape = 'u32[144,128]{1,0:T(1,128)}', space=vmem, size = 0x12000, scoped, tag = 'internal scratch']
  %s0 = inlined_call_operand.vmem [shape: bf16[2,4,90,4], index: 0, kind: input, shape index: {}]
  %s1 = inlined_call_operand.vmem [shape: bf16[9,4,128], index: 1, kind: input, shape index: {}]
  %s2 = inlined_call_operand.vmem [shape: f32[1,128], index: 2, kind: input, shape index: {}]
  %s3 = inlined_call_operand.vmem [shape: f32[1,128], index: 3, kind: input, shape index: {}]
  %s4 = inlined_call_operand.vmem [shape: f32[1,128], index: 4, kind: input, shape index: {}]
  %s5 = inlined_call_operand.vmem [shape: f32[2,72,128], index: 5, kind: output, shape index: {}]
  %s6 = sld [smem:[#allocation0]]
  $region53: #{patch_embed_forward.4} parent=0
    _
  %s8 = ssub.s32 1, %s6
  %s9 = scalar_select 0, %s8, %s6
  loop: start=0, step=1, limit=4
  $region2: #{patch_embed_forward.4} parent=0 // loop_pre_header
    _
  $region3: #{patch_embed_forward.4} parent=0 // loop_header
    %s11 = sphi 0, %s15
    %p12 = scmp.ge.s32.totalorder %s11, 4
    %s21 = sphi 0, %s23
    %s24 = sphi 0, %s21
    %s25 = sphi 0, %s24
    %s41 = sphi 0, %s25
    %s45 = sphi 0, %s45
    %s47 = sphi 0, %s45
    %s48 = sphi 0, %s47
    %s62 = sphi 0, %s48
    %s66 = sphi 0, %s66
    %s68 = sphi 0, %s66
    %s69 = sphi 0, %s68
    %s83 = sphi 0, %s69
    %s87 = sphi 0, %s87
    %s89 = sphi 0, %s87
    %s90 = sphi 0, %s89
    %s104 = sphi 0, %s90
    %s108 = sphi 0, %s108
    %s110 = sphi 0, %s108
    %s111 = sphi 0, %s110
    %s125 = sphi 0, %s111
    %s131 = sphi 0, %s133
    %s134 = sphi 0, %s131
    %s135 = sphi 0, %s134
    %s151 = sphi 0, %s135
  $region4: #{patch_embed_forward.4} parent=0 // loop_header_branch
    %14 = sbr.rel (%p12) target = $region8
  $region5: #{patch_embed_forward.4} parent=0 // loop_body
    %s16 = ssub.s32 %s11, 1
    %s17 = ssub.s32 %s11, 2
    %s18 = sadd.s32 %s11, 1
    %s19 = ssub.s32 %s11, %s18
    %p20 = scmp.eq.s32.totalorder %s19, 0
    %s22 = sadd.s32 %s21, 1
    %s23 = scalar_select %p20, %s21, %s22
    %p26 = pneg %p20
    %p27 = scmp.eq.s32.totalorder %s11, 1
    %p28 = por %p26, %p27
    %p29 = scmp.ne.s32.totalorder %s21, %s24
    %p30 = scmp.eq.s32.totalorder %s11, 0
    %p31 = por %p29, %p30
    %p32 = scmp.ne.s32.totalorder %s21, %s24
    %p33 = scmp.eq.s32.totalorder %s16, 1
    %p34 = por %p32, %p33
    %p35 = scmp.ne.s32.totalorder %s24, %s25
    %p36 = scmp.eq.s32.totalorder %s16, 0
    %p37 = por %p35, %p36
    %p38 = scmp.ne.s32.totalorder %s24, %s25
    %p39 = scmp.eq.s32.totalorder %s17, 1
    %p40 = por %p38, %p39
    %p42 = scmp.ne.s32.totalorder %s25, %s41
    %p43 = scmp.eq.s32.totalorder %s17, 0
    %p44 = por %p42, %p43
    %s46 = sadd.s32 %s45, 1
    %p49 = scmp.eq.s32.totalorder %s11, 1
    %p50 = scmp.ne.s32.totalorder %s45, %s47
    %p51 = scmp.eq.s32.totalorder %s11, 0
    %p52 = por %p50, %p51
    %p53 = scmp.ne.s32.totalorder %s45, %s47
    %p54 = scmp.eq.s32.totalorder %s16, 1
    %p55 = por %p53, %p54
    %p56 = scmp.ne.s32.totalorder %s47, %s48
    %p57 = scmp.eq.s32.totalorder %s16, 0
    %p58 = por %p56, %p57
    %p59 = scmp.ne.s32.totalorder %s47, %s48
    %p60 = scmp.eq.s32.totalorder %s17, 1
    %p61 = por %p59, %p60
    %p63 = scmp.ne.s32.totalorder %s48, %s62
    %p64 = scmp.eq.s32.totalorder %s17, 0
    %p65 = por %p63, %p64
    %s67 = sadd.s32 %s66, 1
    %p70 = scmp.eq.s32.totalorder %s11, 1
    %p71 = scmp.ne.s32.totalorder %s66, %s68
    %p72 = scmp.eq.s32.totalorder %s11, 0
    %p73 = por %p71, %p72
    %p74 = scmp.ne.s32.totalorder %s66, %s68
    %p75 = scmp.eq.s32.totalorder %s16, 1
    %p76 = por %p74, %p75
    %p77 = scmp.ne.s32.totalorder %s68, %s69
    %p78 = scmp.eq.s32.totalorder %s16, 0
    %p79 = por %p77, %p78
    %p80 = scmp.ne.s32.totalorder %s68, %s69
    %p81 = scmp.eq.s32.totalorder %s17, 1
    %p82 = por %p80, %p81
    %p84 = scmp.ne.s32.totalorder %s69, %s83
    %p85 = scmp.eq.s32.totalorder %s17, 0
    %p86 = por %p84, %p85
    %s88 = sadd.s32 %s87, 1
    %p91 = scmp.eq.s32.totalorder %s11, 1
    %p92 = scmp.ne.s32.totalorder %s87, %s89
    %p93 = scmp.eq.s32.totalorder %s11, 0
    %p94 = por %p92, %p93
    %p95 = scmp.ne.s32.totalorder %s87, %s89
    %p96 = scmp.eq.s32.totalorder %s16, 1
    %p97 = por %p95, %p96
    %p98 = scmp.ne.s32.totalorder %s89, %s90
    %p99 = scmp.eq.s32.totalorder %s16, 0
    %p100 = por %p98, %p99
    %p101 = scmp.ne.s32.totalorder %s89, %s90
    %p102 = scmp.eq.s32.totalorder %s17, 1
    %p103 = por %p101, %p102
    %p105 = scmp.ne.s32.totalorder %s90, %s104
    %p106 = scmp.eq.s32.totalorder %s17, 0
    %p107 = por %p105, %p106
    %s109 = sadd.s32 %s108, 1
    %p112 = scmp.eq.s32.totalorder %s11, 1
    %p113 = scmp.ne.s32.totalorder %s108, %s110
    %p114 = scmp.eq.s32.totalorder %s11, 0
    %p115 = por %p113, %p114
    %p116 = scmp.ne.s32.totalorder %s108, %s110
    %p117 = scmp.eq.s32.totalorder %s16, 1
    %p118 = por %p116, %p117
    %p119 = scmp.ne.s32.totalorder %s110, %s111
    %p120 = scmp.eq.s32.totalorder %s16, 0
    %p121 = por %p119, %p120
    %p122 = scmp.ne.s32.totalorder %s110, %s111
    %p123 = scmp.eq.s32.totalorder %s17, 1
    %p124 = por %p122, %p123
    %p126 = scmp.ne.s32.totalorder %s111, %s125
    %p127 = scmp.eq.s32.totalorder %s17, 0
    %p128 = por %p126, %p127
    %s129 = ssub.s32 %s11, %s18
    %p130 = scmp.eq.s32.totalorder %s129, 0
    %s132 = sadd.s32 %s131, 1
    %s133 = scalar_select %p130, %s131, %s132
    %p136 = pneg %p130
    %p137 = scmp.eq.s32.totalorder %s11, 1
    %p138 = por %p136, %p137
    %p139 = scmp.ne.s32.totalorder %s131, %s134
    %p140 = scmp.eq.s32.totalorder %s11, 0
    %p141 = por %p139, %p140
    %p142 = scmp.ne.s32.totalorder %s131, %s134
    %p143 = scmp.eq.s32.totalorder %s16, 1
    %p144 = por %p142, %p143
    %p145 = scmp.ne.s32.totalorder %s134, %s135
    %p146 = scmp.eq.s32.totalorder %s16, 0
    %p147 = por %p145, %p146
    %p148 = scmp.ne.s32.totalorder %s134, %s135
    %p149 = scmp.eq.s32.totalorder %s17, 1
    %p150 = por %p148, %p149
    %p152 = scmp.ne.s32.totalorder %s135, %s151
    %p153 = scmp.eq.s32.totalorder %s17, 0
    %p154 = por %p152, %p153
    %p155 = scmp.le.s32.totalorder 1, %s11
    %p156 = scmp.lt.s32.totalorder %s11, 3
    %p157 = pnand %p155, %p156
    %p158 = pneg %p157
    // Predicated region
    $region9: #{patch_embed_forward.4} parent=5 // pred_check
      _
    $region10: #{patch_embed_forward.4} parent=5 // pred_check_branch
      %160 = sbr.rel (%p157) target = $region12
    $region11: #{patch_embed_forward.4} parent=5 // pred_region
      %s161 = ssub.s32 %s11, 1
      // Predicated region
      $region13: #{patch_embed_forward.4} parent=11 // pred_check
        %p162 = pneg %p58
      $region14: #{patch_embed_forward.4} parent=11 // pred_check_branch
        %164 = sbr.rel (%p162) target = $region16
      $region15: #{patch_embed_forward.4} parent=11 // pred_region
        _
      $region16: #{patch_embed_forward.4} parent=11 // pred_fallthru
        _
      // Predicated region
      $region17: #{patch_embed_forward.4} parent=11 // pred_check
        %p165 = pneg %p79
      $region18: #{patch_embed_forward.4} parent=11 // pred_check_branch
        %167 = sbr.rel (%p165) target = $region20
      $region19: #{patch_embed_forward.4} parent=11 // pred_region
        _
      $region20: #{patch_embed_forward.4} parent=11 // pred_fallthru
        _
      // Predicated region
      $region21: #{patch_embed_forward.4} parent=11 // pred_check
        %p168 = pneg %p100
      $region22: #{patch_embed_forward.4} parent=11 // pred_check_branch
        %170 = sbr.rel (%p168) target = $region24
      $region23: #{patch_embed_forward.4} parent=11 // pred_region
        _
      $region24: #{patch_embed_forward.4} parent=11 // pred_fallthru
        _
      // Predicated region
      $region25: #{patch_embed_forward.4} parent=11 // pred_check
        %p171 = pneg %p121
      $region26: #{patch_embed_forward.4} parent=11 // pred_check_branch
        %173 = sbr.rel (%p171) target = $region28
      $region27: #{patch_embed_forward.4} parent=11 // pred_region
        _
      $region28: #{patch_embed_forward.4} parent=11 // pred_fallthru
        _
    $region12: #{patch_embed_forward.4} parent=5 // pred_fallthru
      _
    %p174 = scmp.lt.s32.totalorder %s11, 2
    // Predicated region
    $region29: #{patch_embed_forward.4} parent=5 // pred_check
      %p175 = pneg %p174
    $region30: #{patch_embed_forward.4} parent=5 // pred_check_branch
      %177 = sbr.rel (%p175) target = $region32
    $region31: #{patch_embed_forward.4} parent=5 // pred_region
      // Predicated region
      $region33: #{patch_embed_forward.4} parent=31 // pred_check
        %p178 = pneg %p31
      $region34: #{patch_embed_forward.4} parent=31 // pred_check_branch
        %180 = sbr.rel (%p178) target = $region36
      $region35: #{patch_embed_forward.4} parent=31 // pred_region
        %p181 = scmp.lt.s32.totalorder %s11, 1
        %s182 = scalar_select %p181, %s11, 1
        %s183 = smul.addr %s182, 48
        %s184 = smul.addr %s183, 4
        %s185 = scalar_lea.vmem %s0, %s184
      $region36: #{patch_embed_forward.4} parent=31 // pred_fallthru
        _
    $region32: #{patch_embed_forward.4} parent=5 // pred_fallthru
      _
    %p186 = scmp.le.s32.totalorder 1, %s11
    %p187 = scmp.lt.s32.totalorder %s11, 3
    %p188 = pnand %p186, %p187
    %p189 = pneg %p188
    // Predicated region
    $region37: #{patch_embed_forward.4} parent=5 // pred_check
      _
    $region38: #{patch_embed_forward.4} parent=5 // pred_check_branch
      %191 = sbr.rel (%p188) target = $region40
    $region39: #{patch_embed_forward.4} parent=5 // pred_region
      %s192 = ssub.s32 %s11, 1
      %p193 = scmp.lt.s32.totalorder %s16, 1
      %s194 = scalar_select %p193, %s16, 1
      %s195 = smul.addr %s194, 48
      %s196 = smul.addr %s195, 4
      %s197 = scalar_lea.vmem %s0, %s196
      %p198 = pneg %p37
      %p199 = pneg %p34
      %p200 = pneg %p58
      %p201 = pneg %p55
      %p202 = pneg %p79
      %p203 = pneg %p76
      %p204 = pneg %p100
      %p205 = pneg %p97
      %p206 = pneg %p121
      %p207 = pneg %p118
      %p208 = pneg %p147
      %p209 = pneg %p144
      %p210 = scmp.lt.s32.totalorder %s16, 1
      %s211 = scalar_select %p210, %s16, 1
      %s212 = smul.addr %s211, 9
      %s213 = smul.addr %s212, 8
      %s214 = scalar_lea.vmem %s5, %s213
      %p215 = scmp.lt.s32.totalorder %s16, 1
      %s216 = scalar_select %p215, %s16, 1
      %s217 = smul.addr %s216, 48
      %s218 = smul.addr %s217, 4
      %s219 = scalar_lea.vmem %s0, %s218
      %p220 = scmp.lt.s32.totalorder %s16, 1
      %s221 = scalar_select %p220, %s16, 1
      %s222 = smul.addr %s221, 9
      %s223 = smul.addr %s222, 8
      %s224 = scalar_lea.vmem %s5, %s223
      %v226 = vld [vmem:[%s219] sm:$0xf]
      %v227 = vld [vmem:[%s219 + $0x4] sm:$0xf]
      %v228 = vld [vmem:[%s219 + $0x8] sm:$0xf]
      %v229 = vld [vmem:[%s219 + $0xc] sm:$0xf]
      %v230 = vld [vmem:[%s219 + $0x10] sm:$0xf]
      %v231 = vld [vmem:[%s219 + $0x14] sm:$0xf]
      %v232 = vld [vmem:[%s219 + $0x18] sm:$0xf]
      %v233 = vld [vmem:[%s219 + $0x1c] sm:$0xf]
      %v234 = vld [vmem:[%s219 + $0x20] sm:$0xf]
      %v235 = vld [vmem:[%s1] sm:$0x3]
      %s236 = scalar_lea.vmem %s219, 48
      %v237 = vld [vmem:[%s236] sm:$0xf]
      %v238 = vld [vmem:[%s236 + $0x4] sm:$0xf]
      %v239 = vld [vmem:[%s236 + $0x8] sm:$0xf]
      %v240 = vld [vmem:[%s236 + $0xc] sm:$0xf]
      %v241 = vld [vmem:[%s236 + $0x10] sm:$0xf]
      %v242 = vld [vmem:[%s236 + $0x14] sm:$0xf]
      %v243 = vld [vmem:[%s236 + $0x18] sm:$0xf]
      %v244 = vld [vmem:[%s236 + $0x1c] sm:$0xf]
      %v245 = vld [vmem:[%s236 + $0x20] sm:$0xf]
      %s246 = scalar_lea.vmem %s1, 2
      %v247 = vld [vmem:[%s246] sm:$0x3]
      %v257 = vunpack.c.l.b16 %v237
      %v258 = vunpack.c.l.b16 %v238
      %v259 = vunpack.c.l.b16 %v239
      %v260 = vunpack.c.l.b16 %v240
      %v261 = vunpack.c.l.b16 %v241
      %v262 = vunpack.c.l.b16 %v242
      %v263 = vunpack.c.l.b16 %v243
      %v264 = vunpack.c.l.b16 %v244
      %v265 = vunpack.c.l.b16 %v245
      %v266 = vpack.c.b16 %v258, %v257
      %v267 = vpack.c.b16 %v260, %v259
      %v268 = vpack.c.b16 %v262, %v261
      %v269 = vpack.c.b16 %v264, %v263
      %v270 = vpack.c.b16 %v265, %v265
      %vm271 = vcmask 31744
      %v273 = vsel %vm271, %v266, 0
      %v276 = vsel %vm271, %v267, 0
      %v279 = vsel %vm271, %v268, 0
      %v282 = vsel %vm271, %v269, 0
      %v285 = vsel %vm271, %v270, 0
      %vm287 = vcmask 1041408
      %v289 = vsel %vm287, %v247, 0
      %291 = vmatprep.subr.bf16.mxu0 0
      %292 = vmatpush1.bf16.msra.mxu0 %v289
      %293 = vmatprep.subr.bf16.mxu0 0
      %294 = vmatpush1.bf16.msra.mxu0 0
      %295 = vmatprep.subr.bf16.mxu0 0
      %296 = vmatpush1.bf16.msra.mxu0 0
      %297 = vmatprep.subr.bf16.mxu0 0
      %298 = vmatpush1.bf16.msra.mxu0 0
      %299 = vmatprep.subr.bf16.mxu0 0
      %300 = vmatpush1.bf16.msra.mxu0 0
      %301 = vmatprep.subr.bf16.mxu0 0
      %302 = vmatpush1.bf16.msra.mxu0 0
      %303 = vmatprep.subr.bf16.mxu0 0
      %304 = vmatpush1.bf16.msra.mxu0 0
      %305 = vmatprep.subr.bf16.mxu0 0
      %306 = vmatpush1.bf16.msra.mxu0 0
      %307 = vmatprep.subr.bf16.mxu0 0
      %308 = vmatpush1.bf16.msra.mxu0 0
      %309 = vmatprep.subr.bf16.mxu0 0
      %310 = vmatpush1.bf16.msra.mxu0 0
      %311 = vmatprep.subr.bf16.mxu0 0
      %312 = vmatpush1.bf16.msra.mxu0 0
      %313 = vmatprep.subr.bf16.mxu0 0
      %314 = vmatpush1.bf16.msra.mxu0 0
      %315 = vmatprep.subr.bf16.mxu0 0
      %316 = vmatpush1.bf16.msra.mxu0 0
      %317 = vmatprep.subr.bf16.mxu0 0
      %318 = vmatpush1.bf16.msra.mxu0 0
      %319 = vmatprep.subr.bf16.mxu0 0
      %320 = vmatpush1.bf16.msra.mxu0 0
      %321 = vmatprep.subr.bf16.mxu0 0
      %322 = vmatpush1.bf16.msra.mxu0 0
      %323 = vmatprep.mubr.bf16.mxu0 0
      %324 = vmatmul.mubr.bf16.gmra.mrb[0].mxu0 %v273
      %v325 = vpop.f32.mrb[0].mxu0
      %v326 = vadd.f32 0.0, %v325
      %v327 = vpop.f32.mrb[0].mxu0
      %v328 = vpop.f32.mrb[0].mxu0
      %v329 = vadd.f32 0.0, %v328
      %v330 = vpop.f32.mrb[0].mxu0
      %331 = vmatprep.mubr.bf16.mxu0 0
      %332 = vmatmul.mubr.bf16.gmra.mrb[0].mxu0 %v276
      %v333 = vpop.f32.mrb[0].mxu0
      %v334 = vadd.f32 0.0, %v333
      %v335 = vpop.f32.mrb[0].mxu0
      %v336 = vpop.f32.mrb[0].mxu0
      %v337 = vadd.f32 0.0, %v336
      %v338 = vpop.f32.mrb[0].mxu0
      %339 = vmatprep.mubr.bf16.mxu0 0
      %340 = vmatmul.mubr.bf16.gmra.mrb[0].mxu0 %v279
      %v341 = vpop.f32.mrb[0].mxu0
      %v342 = vadd.f32 0.0, %v341
      %v343 = vpop.f32.mrb[0].mxu0
      %v344 = vpop.f32.mrb[0].mxu0
      %v345 = vadd.f32 0.0, %v344
      %v346 = vpop.f32.mrb[0].mxu0
      %347 = vmatprep.mubr.bf16.mxu0 0
      %348 = vmatmul.mubr.bf16.gmra.mrb[0].mxu0 %v282
      %v349 = vpop.f32.mrb[0].mxu0
      %v350 = vadd.f32 0.0, %v349
      %v351 = vpop.f32.mrb[0].mxu0
      %v352 = vpop.f32.mrb[0].mxu0
      %v353 = vadd.f32 0.0, %v352
      %v354 = vpop.f32.mrb[0].mxu0
      %355 = vmatprep.mubr.bf16.mxu0 0
      %356 = vmatmul.mubr.bf16.gmra.mrb[0].mxu0 %v285
      %v357 = vpop.f32.mrb[0].mxu0
      %v358 = vadd.f32 0.0, %v357
      %v359 = vpop.f32.mrb[0].mxu0
      %v360 = vpop.f32.mrb[0].mxu0
      %v361 = vpop.f32.mrb[0].mxu0
      %362 = vdwg.mxu0
      %v372 = vunpack.c.l.b16 %v226
      %v373 = vunpack.c.l.b16 %v227
      %v374 = vunpack.c.l.b16 %v228
      %v375 = vunpack.c.l.b16 %v229
      %v376 = vunpack.c.l.b16 %v230
      %v377 = vunpack.c.l.b16 %v231
      %v378 = vunpack.c.l.b16 %v232
      %v379 = vunpack.c.l.b16 %v233
      %v380 = vunpack.c.l.b16 %v234
      %v381 = vpack.c.b16 %v373, %v372
      %v382 = vpack.c.b16 %v375, %v374
      %v383 = vpack.c.b16 %v377, %v376
      %v384 = vpack.c.b16 %v379, %v378
      %v385 = vpack.c.b16 %v380, %v380
      %v387 = vsel %vm271, %v381, 0
      %v390 = vsel %vm271, %v382, 0
      %v393 = vsel %vm271, %v383, 0
      %v396 = vsel %vm271, %v384, 0
      %v399 = vsel %vm271, %v385, 0
      %v402 = vsel %vm287, %v235, 0
      %404 = vmatprep.subr.bf16.mxu0 0
      %405 = vmatpush1.bf16.msra.mxu0 %v402
      %406 = vmatprep.subr.bf16.mxu0 0
      %407 = vmatpush1.bf16.msra.mxu0 0
      %408 = vmatprep.subr.bf16.mxu0 0
      %409 = vmatpush1.bf16.msra.mxu0 0
      %410 = vmatprep.subr.bf16.mxu0 0
      %411 = vmatpush1.bf16.msra.mxu0 0
      %412 = vmatprep.subr.bf16.mxu0 0
      %413 = vmatpush1.bf16.msra.mxu0 0
      %414 = vmatprep.subr.bf16.mxu0 0
      %415 = vmatpush1.bf16.msra.mxu0 0
      %416 = vmatprep.subr.bf16.mxu0 0
      %417 = vmatpush1.bf16.msra.mxu0 0
      %418 = vmatprep.subr.bf16.mxu0 0
      %419 = vmatpush1.bf16.msra.mxu0 0
      %420 = vmatprep.subr.bf16.mxu0 0
      %421 = vmatpush1.bf16.msra.mxu0 0
      %422 = vmatprep.subr.bf16.mxu0 0
      %423 = vmatpush1.bf16.msra.mxu0 0
      %424 = vmatprep.subr.bf16.mxu0 0
      %425 = vmatpush1.bf16.msra.mxu0 0
      %426 = vmatprep.subr.bf16.mxu0 0
      %427 = vmatpush1.bf16.msra.mxu0 0
      %428 = vmatprep.subr.bf16.mxu0 0
      %429 = vmatpush1.bf16.msra.mxu0 0
      %430 = vmatprep.subr.bf16.mxu0 0
      %431 = vmatpush1.bf16.msra.mxu0 0
      %432 = vmatprep.subr.bf16.mxu0 0
      %433 = vmatpush1.bf16.msra.mxu0 0
      %434 = vmatprep.subr.bf16.mxu0 0
      %435 = vmatpush1.bf16.msra.mxu0 0
      %436 = vmatprep.mubr.bf16.mxu0 0
      %437 = vmatmul.mubr.bf16.gmra.mrb[0].mxu0 %v387
      %v438 = vpop.f32.mrb[0].mxu0
      %v439 = vadd.f32 %v326, %v438
      %v440 = vpop.f32.mrb[0].mxu0
      %v441 = vpop.f32.mrb[0].mxu0
      %v442 = vadd.f32 %v329, %v441
      %v443 = vpop.f32.mrb[0].mxu0
      %444 = vmatprep.mubr.bf16.mxu0 0
      %445 = vmatmul.mubr.bf16.gmra.mrb[0].mxu0 %v390
      %v446 = vpop.f32.mrb[0].mxu0
      %v447 = vadd.f32 %v334, %v446
      %v448 = vpop.f32.mrb[0].mxu0
      %v449 = vpop.f32.mrb[0].mxu0
      %v450 = vadd.f32 %v337, %v449
      %v451 = vpop.f32.mrb[0].mxu0
      %452 = vmatprep.mubr.bf16.mxu0 0
      %453 = vmatmul.mubr.bf16.gmra.mrb[0].mxu0 %v393
      %v454 = vpop.f32.mrb[0].mxu0
      %v455 = vadd.f32 %v342, %v454
      %v456 = vpop.f32.mrb[0].mxu0
      %v457 = vpop.f32.mrb[0].mxu0
      %v458 = vadd.f32 %v345, %v457
      %v459 = vpop.f32.mrb[0].mxu0
      %460 = vmatprep.mubr.bf16.mxu0 0
      %461 = vmatmul.mubr.bf16.gmra.mrb[0].mxu0 %v396
      %v462 = vpop.f32.mrb[0].mxu0
      %v463 = vadd.f32 %v350, %v462
      %v464 = vpop.f32.mrb[0].mxu0
      %v465 = vpop.f32.mrb[0].mxu0
      %v466 = vadd.f32 %v353, %v465
      %v467 = vpop.f32.mrb[0].mxu0
      %468 = vmatprep.mubr.bf16.mxu0 0
      %469 = vmatmul.mubr.bf16.gmra.mrb[0].mxu0 %v399
      %v470 = vpop.f32.mrb[0].mxu0
      %v471 = vadd.f32 %v358, %v470
      %v472 = vpop.f32.mrb[0].mxu0
      %v473 = vpop.f32.mrb[0].mxu0
      %v474 = vpop.f32.mrb[0].mxu0
      %475 = vdwg.mxu0
      %v476 = vld [vmem:[%s219] sm:$0xf]
      %v477 = vld [vmem:[%s219 + $0x4] sm:$0xf]
      %v478 = vld [vmem:[%s219 + $0x8] sm:$0xf]
      %v479 = vld [vmem:[%s219 + $0xc] sm:$0xf]
      %v480 = vld [vmem:[%s219 + $0x10] sm:$0xf]
      %v481 = vld [vmem:[%s219 + $0x14] sm:$0xf]
      %v482 = vld [vmem:[%s219 + $0x18] sm:$0xf]
      %v483 = vld [vmem:[%s219 + $0x1c] sm:$0xf]
      %v484 = vld [vmem:[%s219 + $0x20] sm:$0xf]
      %v485 = vld [vmem:[%s219 + $0x24] sm:$0x1]
      %s486 = scalar_lea.vmem %s1, 4
      %v487 = vld [vmem:[%s486] sm:$0x3]
      %v498 = vunpack.c.l.b16 %v476
      %v499 = vunpack.c.l.b16 %v477
      %v500 = vunpack.c.l.b16 %v478
      %v501 = vunpack.c.l.b16 %v479
      %v502 = vunpack.c.l.b16 %v480
      %v503 = vunpack.c.l.b16 %v481
      %v504 = vunpack.c.l.b16 %v482
      %v505 = vunpack.c.l.b16 %v483
      %v506 = vunpack.c.l.b16 %v484
      %v507 = vunpack.c.l.b16 %v485
      %v508 = vpack.c.b16 %v499, %v498
      %v509 = vpack.c.b16 %v501, %v500
      %v510 = vpack.c.b16 %v503, %v502
      %v511 = vpack.c.b16 %v505, %v504
      %v512 = vpack.c.b16 %v507, %v506
      %vm513 = vsmask.f32 7424
      %v515 = vshrl.u32 %v508, 16
      %v517 = vshll.u32 %v508, 16
      %v519 = vrot.slane %v517, 1
      %v520 = vor.u32 %v515, %v519
      %v522 = vshll.u32 %v509, 16
      %v524 = vrot.slane %v522, 1
      %v525 = vsel %vm513, %v520, %v524
      %v526 = vshrl.u32 %v509, 16
      %v528 = vor.u32 %v526, %v524
      %v530 = vshll.u32 %v510, 16
      %v532 = vrot.slane %v530, 1
      %v533 = vsel %vm513, %v528, %v532
      %v534 = vshrl.u32 %v510, 16
      %v536 = vor.u32 %v534, %v532
      %v538 = vshll.u32 %v511, 16
      %v540 = vrot.slane %v538, 1
      %v541 = vsel %vm513, %v536, %v540
      %v542 = vshrl.u32 %v511, 16
      %v544 = vor.u32 %v542, %v540
      %v546 = vshll.u32 %v512, 16
      %v548 = vrot.slane %v546, 1
      %v549 = vsel %vm513, %v544, %v548
      %v550 = vshrl.u32 %v512, 16
      %v552 = vor.u32 %v550, %v548
      %v554 = vsel %vm271, %v525, 0
      %v557 = vsel %vm271, %v533, 0
      %v560 = vsel %vm271, %v541, 0
      %v563 = vsel %vm271, %v549, 0
      %v566 = vsel %vm271, %v552, 0
      %v569 = vsel %vm287, %v487, 0
      %571 = vmatprep.subr.bf16.mxu0 0
      %572 = vmatpush1.bf16.msra.mxu0 %v569
      %573 = vmatprep.subr.bf16.mxu0 0
      %574 = vmatpush1.bf16.msra.mxu0 0
      %575 = vmatprep.subr.bf16.mxu0 0
      %576 = vmatpush1.bf16.msra.mxu0 0
      %577 = vmatprep.subr.bf16.mxu0 0
      %578 = vmatpush1.bf16.msra.mxu0 0
      %579 = vmatprep.subr.bf16.mxu0 0
      %580 = vmatpush1.bf16.msra.mxu0 0
      %581 = vmatprep.subr.bf16.mxu0 0
      %582 = vmatpush1.bf16.msra.mxu0 0
      %583 = vmatprep.subr.bf16.mxu0 0
      %584 = vmatpush1.bf16.msra.mxu0 0
      %585 = vmatprep.subr.bf16.mxu0 0
      %586 = vmatpush1.bf16.msra.mxu0 0
      %587 = vmatprep.subr.bf16.mxu0 0
      %588 = vmatpush1.bf16.msra.mxu0 0
      %589 = vmatprep.subr.bf16.mxu0 0
      %590 = vmatpush1.bf16.msra.mxu0 0
      %591 = vmatprep.subr.bf16.mxu0 0
      %592 = vmatpush1.bf16.msra.mxu0 0
      %593 = vmatprep.subr.bf16.mxu0 0
      %594 = vmatpush1.bf16.msra.mxu0 0
      %595 = vmatprep.subr.bf16.mxu0 0
      %596 = vmatpush1.bf16.msra.mxu0 0
      %597 = vmatprep.subr.bf16.mxu0 0
      %598 = vmatpush1.bf16.msra.mxu0 0
      %599 = vmatprep.subr.bf16.mxu0 0
      %600 = vmatpush1.bf16.msra.mxu0 0
      %601 = vmatprep.subr.bf16.mxu0 0
      %602 = vmatpush1.bf16.msra.mxu0 0
      %603 = vmatprep.mubr.bf16.mxu0 0
      %604 = vmatmul.mubr.bf16.gmra.mrb[0].mxu0 %v554
      %v605 = vpop.f32.mrb[0].mxu0
      %v606 = vadd.f32 0.0, %v605
      %v607 = vpop.f32.mrb[0].mxu0
      %v608 = vpop.f32.mrb[0].mxu0
      %v609 = vadd.f32 0.0, %v608
      %v610 = vpop.f32.mrb[0].mxu0
      %611 = vmatprep.mubr.bf16.mxu0 0
      %612 = vmatmul.mubr.bf16.gmra.mrb[0].mxu0 %v557
      %v613 = vpop.f32.mrb[0].mxu0
      %v614 = vadd.f32 0.0, %v613
      %v615 = vpop.f32.mrb[0].mxu0
      %v616 = vpop.f32.mrb[0].mxu0
      %v617 = vadd.f32 0.0, %v616
      %v618 = vpop.f32.mrb[0].mxu0
      %619 = vmatprep.mubr.bf16.mxu0 0
      %620 = vmatmul.mubr.bf16.gmra.mrb[0].mxu0 %v560
      %v621 = vpop.f32.mrb[0].mxu0
      %v622 = vadd.f32 0.0, %v621
      %v623 = vpop.f32.mrb[0].mxu0
      %v624 = vpop.f32.mrb[0].mxu0
      %v625 = vadd.f32 0.0, %v624
      %v626 = vpop.f32.mrb[0].mxu0
      %627 = vmatprep.mubr.bf16.mxu0 0
      %628 = vmatmul.mubr.bf16.gmra.mrb[0].mxu0 %v563
      %v629 = vpop.f32.mrb[0].mxu0
      %v630 = vadd.f32 0.0, %v629
      %v631 = vpop.f32.mrb[0].mxu0
      %v632 = vpop.f32.mrb[0].mxu0
      %v633 = vadd.f32 0.0, %v632
      %v634 = vpop.f32.mrb[0].mxu0
      %635 = vmatprep.mubr.bf16.mxu0 0
      %636 = vmatmul.mubr.bf16.gmra.mrb[0].mxu0 %v566
      %v637 = vpop.f32.mrb[0].mxu0
      %v638 = vadd.f32 0.0, %v637
      %v639 = vpop.f32.mrb[0].mxu0
      %v640 = vpop.f32.mrb[0].mxu0
      %v641 = vpop.f32.mrb[0].mxu0
      %642 = vdwg.mxu0
      %v643 = vadd.f32 %v439, %v606
      %v644 = vadd.f32 %v442, %v609
      %v645 = vadd.f32 %v447, %v614
      %v646 = vadd.f32 %v450, %v617
      %v647 = vadd.f32 %v455, %v622
      %v648 = vadd.f32 %v458, %v625
      %v649 = vadd.f32 %v463, %v630
      %v650 = vadd.f32 %v466, %v633
      %v651 = vadd.f32 %v471, %v638
      %s652 = scalar_lea.vmem %s219, 96
      %v653 = vld [vmem:[%s652] sm:$0xf]
      %v654 = vld [vmem:[%s652 + $0x4] sm:$0xf]
      %v655 = vld [vmem:[%s652 + $0x8] sm:$0xf]
      %v656 = vld [vmem:[%s652 + $0xc] sm:$0xf]
      %v657 = vld [vmem:[%s652 + $0x10] sm:$0xf]
      %v658 = vld [vmem:[%s652 + $0x14] sm:$0xf]
      %v659 = vld [vmem:[%s652 + $0x18] sm:$0xf]
      %v660 = vld [vmem:[%s652 + $0x1c] sm:$0xf]
      %v661 = vld [vmem:[%s652 + $0x20] sm:$0xf]
      %s662 = scalar_lea.vmem %s1, 6
      %v663 = vld [vmem:[%s662] sm:$0x3]
      %v673 = vunpack.c.l.b16 %v653
      %v674 = vunpack.c.l.b16 %v654
      %v675 = vunpack.c.l.b16 %v655
      %v676 = vunpack.c.l.b16 %v656
      %v677 = vunpack.c.l.b16 %v657
      %v678 = vunpack.c.l.b16 %v658
      %v679 = vunpack.c.l.b16 %v659
      %v680 = vunpack.c.l.b16 %v660
      %v681 = vunpack.c.l.b16 %v661
      %v682 = vpack.c.b16 %v674, %v673
      %v683 = vpack.c.b16 %v676, %v675
      %v684 = vpack.c.b16 %v678, %v677
      %v685 = vpack.c.b16 %v680, %v679
      %v686 = vpack.c.b16 %v681, %v681
      %v688 = vsel %vm271, %v682, 0
      %v691 = vsel %vm271, %v683, 0
      %v694 = vsel %vm271, %v684, 0
      %v697 = vsel %vm271, %v685, 0
      %v700 = vsel %vm271, %v686, 0
      %v703 = vsel %vm287, %v663, 0
      %705 = vmatprep.subr.bf16.mxu0 0
      %706 = vmatpush1.bf16.msra.mxu0 %v703
      %707 = vmatprep.subr.bf16.mxu0 0
      %708 = vmatpush1.bf16.msra.mxu0 0
      %709 = vmatprep.subr.bf16.mxu0 0
      %710 = vmatpush1.bf16.msra.mxu0 0
      %711 = vmatprep.subr.bf16.mxu0 0
      %712 = vmatpush1.bf16.msra.mxu0 0
      %713 = vmatprep.subr.bf16.mxu0 0
      %714 = vmatpush1.bf16.msra.mxu0 0
      %715 = vmatprep.subr.bf16.mxu0 0
      %716 = vmatpush1.bf16.msra.mxu0 0
      %717 = vmatprep.subr.bf16.mxu0 0
      %718 = vmatpush1.bf16.msra.mxu0 0
      %719 = vmatprep.subr.bf16.mxu0 0
      %720 = vmatpush1.bf16.msra.mxu0 0
      %721 = vmatprep.subr.bf16.mxu0 0
      %722 = vmatpush1.bf16.msra.mxu0 0
      %723 = vmatprep.subr.bf16.mxu0 0
      %724 = vmatpush1.bf16.msra.mxu0 0
      %725 = vmatprep.subr.bf16.mxu0 0
      %726 = vmatpush1.bf16.msra.mxu0 0
      %727 = vmatprep.subr.bf16.mxu0 0
      %728 = vmatpush1.bf16.msra.mxu0 0
      %729 = vmatprep.subr.bf16.mxu0 0
      %730 = vmatpush1.bf16.msra.mxu0 0
      %731 = vmatprep.subr.bf16.mxu0 0
      %732 = vmatpush1.bf16.msra.mxu0 0
      %733 = vmatprep.subr.bf16.mxu0 0
      %734 = vmatpush1.bf16.msra.mxu0 0
      %735 = vmatprep.subr.bf16.mxu0 0
      %736 = vmatpush1.bf16.msra.mxu0 0
      %737 = vmatprep.mubr.bf16.mxu0 0
      %738 = vmatmul.mubr.bf16.gmra.mrb[0].mxu0 %v688
      %v739 = vpop.f32.mrb[0].mxu0
      %v740 = vadd.f32 0.0, %v739
      %v741 = vpop.f32.mrb[0].mxu0
      %v742 = vpop.f32.mrb[0].mxu0
      %v743 = vadd.f32 0.0, %v742
      %v744 = vpop.f32.mrb[0].mxu0
      %745 = vmatprep.mubr.bf16.mxu0 0
      %746 = vmatmul.mubr.bf16.gmra.mrb[0].mxu0 %v691
      %v747 = vpop.f32.mrb[0].mxu0
      %v748 = vadd.f32 0.0, %v747
      %v749 = vpop.f32.mrb[0].mxu0
      %v750 = vpop.f32.mrb[0].mxu0
      %v751 = vadd.f32 0.0, %v750
      %v752 = vpop.f32.mrb[0].mxu0
      %753 = vmatprep.mubr.bf16.mxu0 0
      %754 = vmatmul.mubr.bf16.gmra.mrb[0].mxu0 %v694
      %v755 = vpop.f32.mrb[0].mxu0
      %v756 = vadd.f32 0.0, %v755
      %v757 = vpop.f32.mrb[0].mxu0
      %v758 = vpop.f32.mrb[0].mxu0
      %v759 = vadd.f32 0.0, %v758
      %v760 = vpop.f32.mrb[0].mxu0
      %761 = vmatprep.mubr.bf16.mxu0 0
      %762 = vmatmul.mubr.bf16.gmra.mrb[0].mxu0 %v697
      %v763 = vpop.f32.mrb[0].mxu0
      %v764 = vadd.f32 0.0, %v763
      %v765 = vpop.f32.mrb[0].mxu0
      %v766 = vpop.f32.mrb[0].mxu0
      %v767 = vadd.f32 0.0, %v766
      %v768 = vpop.f32.mrb[0].mxu0
      %769 = vmatprep.mubr.bf16.mxu0 0
      %770 = vmatmul.mubr.bf16.gmra.mrb[0].mxu0 %v700
      %v771 = vpop.f32.mrb[0].mxu0
      %v772 = vadd.f32 0.0, %v771
      %v773 = vpop.f32.mrb[0].mxu0
      %v774 = vpop.f32.mrb[0].mxu0
      %v775 = vpop.f32.mrb[0].mxu0
      %776 = vdwg.mxu0
      %v777 = vadd.f32 %v643, %v740
      %v778 = vadd.f32 %v644, %v743
      %v779 = vadd.f32 %v645, %v748
      %v780 = vadd.f32 %v646, %v751
      %v781 = vadd.f32 %v647, %v756
      %v782 = vadd.f32 %v648, %v759
      %v783 = vadd.f32 %v649, %v764
      %v784 = vadd.f32 %v650, %v767
      %v785 = vadd.f32 %v651, %v772
      %s786 = scalar_lea.vmem %s219, 144
      %v787 = vld [vmem:[%s786] sm:$0xf]
      %v788 = vld [vmem:[%s786 + $0x4] sm:$0xf]
      %v789 = vld [vmem:[%s786 + $0x8] sm:$0xf]
      %v790 = vld [vmem:[%s786 + $0xc] sm:$0xf]
      %v791 = vld [vmem:[%s786 + $0x10] sm:$0xf]
      %v792 = vld [vmem:[%s786 + $0x14] sm:$0xf]
      %v793 = vld [vmem:[%s786 + $0x18] sm:$0xf]
      %v794 = vld [vmem:[%s786 + $0x1c] sm:$0xf]
      %v795 = vld [vmem:[%s786 + $0x20] sm:$0xf]
      %s796 = scalar_lea.vmem %s1, 8
      %v797 = vld [vmem:[%s796] sm:$0x3]
      %v807 = vunpack.c.l.b16 %v787
      %v808 = vunpack.c.l.b16 %v788
      %v809 = vunpack.c.l.b16 %v789
      %v810 = vunpack.c.l.b16 %v790
      %v811 = vunpack.c.l.b16 %v791
      %v812 = vunpack.c.l.b16 %v792
      %v813 = vunpack.c.l.b16 %v793
      %v814 = vunpack.c.l.b16 %v794
      %v815 = vunpack.c.l.b16 %v795
      %v816 = vpack.c.b16 %v808, %v807
      %v817 = vpack.c.b16 %v810, %v809
      %v818 = vpack.c.b16 %v812, %v811
      %v819 = vpack.c.b16 %v814, %v813
      %v820 = vpack.c.b16 %v815, %v815
      %v822 = vsel %vm271, %v816, 0
      %v825 = vsel %vm271, %v817, 0
      %v828 = vsel %vm271, %v818, 0
      %v831 = vsel %vm271, %v819, 0
      %v834 = vsel %vm271, %v820, 0
      %v837 = vsel %vm287, %v797, 0
      %839 = vmatprep.subr.bf16.mxu0 0
      %840 = vmatpush1.bf16.msra.mxu0 %v837
      %841 = vmatprep.subr.bf16.mxu0 0
      %842 = vmatpush1.bf16.msra.mxu0 0
      %843 = vmatprep.subr.bf16.mxu0 0
      %844 = vmatpush1.bf16.msra.mxu0 0
      %845 = vmatprep.subr.bf16.mxu0 0
      %846 = vmatpush1.bf16.msra.mxu0 0
      %847 = vmatprep.subr.bf16.mxu0 0
      %848 = vmatpush1.bf16.msra.mxu0 0
      %849 = vmatprep.subr.bf16.mxu0 0
      %850 = vmatpush1.bf16.msra.mxu0 0
      %851 = vmatprep.subr.bf16.mxu0 0
      %852 = vmatpush1.bf16.msra.mxu0 0
      %853 = vmatprep.subr.bf16.mxu0 0
      %854 = vmatpush1.bf16.msra.mxu0 0
      %855 = vmatprep.subr.bf16.mxu0 0
      %856 = vmatpush1.bf16.msra.mxu0 0
      %857 = vmatprep.subr.bf16.mxu0 0
      %858 = vmatpush1.bf16.msra.mxu0 0
      %859 = vmatprep.subr.bf16.mxu0 0
      %860 = vmatpush1.bf16.msra.mxu0 0
      %861 = vmatprep.subr.bf16.mxu0 0
      %862 = vmatpush1.bf16.msra.mxu0 0
      %863 = vmatprep.subr.bf16.mxu0 0
      %864 = vmatpush1.bf16.msra.mxu0 0
      %865 = vmatprep.subr.bf16.mxu0 0
      %866 = vmatpush1.bf16.msra.mxu0 0
      %867 = vmatprep.subr.bf16.mxu0 0
      %868 = vmatpush1.bf16.msra.mxu0 0
      %869 = vmatprep.subr.bf16.mxu0 0
      %870 = vmatpush1.bf16.msra.mxu0 0
      %871 = vmatprep.mubr.bf16.mxu0 0
      %872 = vmatmul.mubr.bf16.gmra.mrb[0].mxu0 %v822
      %v873 = vpop.f32.mrb[0].mxu0
      %v874 = vadd.f32 0.0, %v873
      %v875 = vpop.f32.mrb[0].mxu0
      %v876 = vpop.f32.mrb[0].mxu0
      %v877 = vadd.f32 0.0, %v876
      %v878 = vpop.f32.mrb[0].mxu0
      %879 = vmatprep.mubr.bf16.mxu0 0
      %880 = vmatmul.mubr.bf16.gmra.mrb[0].mxu0 %v825
      %v881 = vpop.f32.mrb[0].mxu0
      %v882 = vadd.f32 0.0, %v881
      %v883 = vpop.f32.mrb[0].mxu0
      %v884 = vpop.f32.mrb[0].mxu0
      %v885 = vadd.f32 0.0, %v884
      %v886 = vpop.f32.mrb[0].mxu0
      %887 = vmatprep.mubr.bf16.mxu0 0
      %888 = vmatmul.mubr.bf16.gmra.mrb[0].mxu0 %v828
      %v889 = vpop.f32.mrb[0].mxu0
      %v890 = vadd.f32 0.0, %v889
      %v891 = vpop.f32.mrb[0].mxu0
      %v892 = vpop.f32.mrb[0].mxu0
      %v893 = vadd.f32 0.0, %v892
      %v894 = vpop.f32.mrb[0].mxu0
      %895 = vmatprep.mubr.bf16.mxu0 0
      %896 = vmatmul.mubr.bf16.gmra.mrb[0].mxu0 %v831
      %v897 = vpop.f32.mrb[0].mxu0
      %v898 = vadd.f32 0.0, %v897
      %v899 = vpop.f32.mrb[0].mxu0
      %v900 = vpop.f32.mrb[0].mxu0
      %v901 = vadd.f32 0.0, %v900
      %v902 = vpop.f32.mrb[0].mxu0
      %903 = vmatprep.mubr.bf16.mxu0 0
      %904 = vmatmul.mubr.bf16.gmra.mrb[0].mxu0 %v834
      %v905 = vpop.f32.mrb[0].mxu0
      %v906 = vadd.f32 0.0, %v905
      %v907 = vpop.f32.mrb[0].mxu0
      %v908 = vpop.f32.mrb[0].mxu0
      %v909 = vpop.f32.mrb[0].mxu0
      %910 = vdwg.mxu0
      %v911 = vadd.f32 %v777, %v874
      %v912 = vadd.f32 %v778, %v877
      %v913 = vadd.f32 %v779, %v882
      %v914 = vadd.f32 %v780, %v885
      %v915 = vadd.f32 %v781, %v890
      %v916 = vadd.f32 %v782, %v893
      %v917 = vadd.f32 %v783, %v898
      %v918 = vadd.f32 %v784, %v901
      %v919 = vadd.f32 %v785, %v906
      %v920 = vld [vmem:[%s652] sm:$0xf]
      %v921 = vld [vmem:[%s652 + $0x4] sm:$0xf]
      %v922 = vld [vmem:[%s652 + $0x8] sm:$0xf]
      %v923 = vld [vmem:[%s652 + $0xc] sm:$0xf]
      %v924 = vld [vmem:[%s652 + $0x10] sm:$0xf]
      %v925 = vld [vmem:[%s652 + $0x14] sm:$0xf]
      %v926 = vld [vmem:[%s652 + $0x18] sm:$0xf]
      %v927 = vld [vmem:[%s652 + $0x1c] sm:$0xf]
      %v928 = vld [vmem:[%s652 + $0x20] sm:$0xf]
      %v929 = vld [vmem:[%s652 + $0x24] sm:$0x1]
      %s930 = scalar_lea.vmem %s1, 10
      %v931 = vld [vmem:[%s930] sm:$0x3]
      %v942 = vunpack.c.l.b16 %v920
      %v943 = vunpack.c.l.b16 %v921
      %v944 = vunpack.c.l.b16 %v922
      %v945 = vunpack.c.l.b16 %v923
      %v946 = vunpack.c.l.b16 %v924
      %v947 = vunpack.c.l.b16 %v925
      %v948 = vunpack.c.l.b16 %v926
      %v949 = vunpack.c.l.b16 %v927
      %v950 = vunpack.c.l.b16 %v928
      %v951 = vunpack.c.l.b16 %v929
      %v952 = vpack.c.b16 %v943, %v942
      %v953 = vpack.c.b16 %v945, %v944
      %v954 = vpack.c.b16 %v947, %v946
      %v955 = vpack.c.b16 %v949, %v948
      %v956 = vpack.c.b16 %v951, %v950
      %v958 = vshrl.u32 %v952, 16
      %v960 = vshll.u32 %v952, 16
      %v962 = vrot.slane %v960, 1
      %v963 = vor.u32 %v958, %v962
      %v965 = vshll.u32 %v953, 16
      %v967 = vrot.slane %v965, 1
      %v968 = vsel %vm513, %v963, %v967
      %v969 = vshrl.u32 %v953, 16
      %v971 = vor.u32 %v969, %v967
      %v973 = vshll.u32 %v954, 16
      %v975 = vrot.slane %v973, 1
      %v976 = vsel %vm513, %v971, %v975
      %v977 = vshrl.u32 %v954, 16
      %v979 = vor.u32 %v977, %v975
      %v981 = vshll.u32 %v955, 16
      %v983 = vrot.slane %v981, 1
      %v984 = vsel %vm513, %v979, %v983
      %v985 = vshrl.u32 %v955, 16
      %v987 = vor.u32 %v985, %v983
      %v989 = vshll.u32 %v956, 16
      %v991 = vrot.slane %v989, 1
      %v992 = vsel %vm513, %v987, %v991
      %v993 = vshrl.u32 %v956, 16
      %v995 = vor.u32 %v993, %v991
      %v997 = vsel %vm271, %v968, 0
      %v1000 = vsel %vm271, %v976, 0
      %v1003 = vsel %vm271, %v984, 0
      %v1006 = vsel %vm271, %v992, 0
      %v1009 = vsel %vm271, %v995, 0
      %v1012 = vsel %vm287, %v931, 0
      %1014 = vmatprep.subr.bf16.mxu0 0
      %1015 = vmatpush1.bf16.msra.mxu0 %v1012
      %1016 = vmatprep.subr.bf16.mxu0 0
      %1017 = vmatpush1.bf16.msra.mxu0 0
      %1018 = vmatprep.subr.bf16.mxu0 0
      %1019 = vmatpush1.bf16.msra.mxu0 0
      %1020 = vmatprep.subr.bf16.mxu0 0
      %1021 = vmatpush1.bf16.msra.mxu0 0
      %1022 = vmatprep.subr.bf16.mxu0 0
      %1023 = vmatpush1.bf16.msra.mxu0 0
      %1024 = vmatprep.subr.bf16.mxu0 0
      %1025 = vmatpush1.bf16.msra.mxu0 0
      %1026 = vmatprep.subr.bf16.mxu0 0
      %1027 = vmatpush1.bf16.msra.mxu0 0
      %1028 = vmatprep.subr.bf16.mxu0 0
      %1029 = vmatpush1.bf16.msra.mxu0 0
      %1030 = vmatprep.subr.bf16.mxu0 0
      %1031 = vmatpush1.bf16.msra.mxu0 0
      %1032 = vmatprep.subr.bf16.mxu0 0
      %1033 = vmatpush1.bf16.msra.mxu0 0
      %1034 = vmatprep.subr.bf16.mxu0 0
      %1035 = vmatpush1.bf16.msra.mxu0 0
      %1036 = vmatprep.subr.bf16.mxu0 0
      %1037 = vmatpush1.bf16.msra.mxu0 0
      %1038 = vmatprep.subr.bf16.mxu0 0
      %1039 = vmatpush1.bf16.msra.mxu0 0
      %1040 = vmatprep.subr.bf16.mxu0 0
      %1041 = vmatpush1.bf16.msra.mxu0 0
      %1042 = vmatprep.subr.bf16.mxu0 0
      %1043 = vmatpush1.bf16.msra.mxu0 0
      %1044 = vmatprep.subr.bf16.mxu0 0
      %1045 = vmatpush1.bf16.msra.mxu0 0
      %1046 = vmatprep.mubr.bf16.mxu0 0
      %1047 = vmatmul.mubr.bf16.gmra.mrb[0].mxu0 %v997
      %v1048 = vpop.f32.mrb[0].mxu0
      %v1049 = vadd.f32 0.0, %v1048
      %v1050 = vpop.f32.mrb[0].mxu0
      %v1051 = vpop.f32.mrb[0].mxu0
      %v1052 = vadd.f32 0.0, %v1051
      %v1053 = vpop.f32.mrb[0].mxu0
      %1054 = vmatprep.mubr.bf16.mxu0 0
      %1055 = vmatmul.mubr.bf16.gmra.mrb[0].mxu0 %v1000
      %v1056 = vpop.f32.mrb[0].mxu0
      %v1057 = vadd.f32 0.0, %v1056
      %v1058 = vpop.f32.mrb[0].mxu0
      %v1059 = vpop.f32.mrb[0].mxu0
      %v1060 = vadd.f32 0.0, %v1059
      %v1061 = vpop.f32.mrb[0].mxu0
      %1062 = vmatprep.mubr.bf16.mxu0 0
      %1063 = vmatmul.mubr.bf16.gmra.mrb[0].mxu0 %v1003
      %v1064 = vpop.f32.mrb[0].mxu0
      %v1065 = vadd.f32 0.0, %v1064
      %v1066 = vpop.f32.mrb[0].mxu0
      %v1067 = vpop.f32.mrb[0].mxu0
      %v1068 = vadd.f32 0.0, %v1067
      %v1069 = vpop.f32.mrb[0].mxu0
      %1070 = vmatprep.mubr.bf16.mxu0 0
      %1071 = vmatmul.mubr.bf16.gmra.mrb[0].mxu0 %v1006
      %v1072 = vpop.f32.mrb[0].mxu0
      %v1073 = vadd.f32 0.0, %v1072
      %v1074 = vpop.f32.mrb[0].mxu0
      %v1075 = vpop.f32.mrb[0].mxu0
      %v1076 = vadd.f32 0.0, %v1075
      %v1077 = vpop.f32.mrb[0].mxu0
      %1078 = vmatprep.mubr.bf16.mxu0 0
      %1079 = vmatmul.mubr.bf16.gmra.mrb[0].mxu0 %v1009
      %v1080 = vpop.f32.mrb[0].mxu0
      %v1081 = vadd.f32 0.0, %v1080
      %v1082 = vpop.f32.mrb[0].mxu0
      %v1083 = vpop.f32.mrb[0].mxu0
      %v1084 = vpop.f32.mrb[0].mxu0
      %1085 = vdwg.mxu0
      %v1086 = vadd.f32 %v911, %v1049
      %v1087 = vadd.f32 %v912, %v1052
      %v1088 = vadd.f32 %v913, %v1057
      %v1089 = vadd.f32 %v914, %v1060
      %v1090 = vadd.f32 %v915, %v1065
      %v1091 = vadd.f32 %v916, %v1068
      %v1092 = vadd.f32 %v917, %v1073
      %v1093 = vadd.f32 %v918, %v1076
      %v1094 = vadd.f32 %v919, %v1081
      %v1095 = vld [vmem:[%s219 + $0x4] sm:$0xf]
      %v1096 = vld [vmem:[%s219 + $0x8] sm:$0xf]
      %v1097 = vld [vmem:[%s219 + $0xc] sm:$0xf]
      %v1098 = vld [vmem:[%s219 + $0x10] sm:$0xf]
      %v1099 = vld [vmem:[%s219 + $0x14] sm:$0xf]
      %v1100 = vld [vmem:[%s219 + $0x18] sm:$0xf]
      %v1101 = vld [vmem:[%s219 + $0x1c] sm:$0xf]
      %v1102 = vld [vmem:[%s219 + $0x20] sm:$0xf]
      %v1103 = vld [vmem:[%s219 + $0x24] sm:$0xf]
      %v1104 = vld [vmem:[%s219 + $0x28] sm:$0x1]
      %s1105 = scalar_lea.vmem %s1, 12
      %v1106 = vld [vmem:[%s1105] sm:$0x3]
      %v1117 = vunpack.c.l.b16 %v1095
      %v1118 = vunpack.c.l.b16 %v1096
      %v1119 = vunpack.c.l.b16 %v1097
      %v1120 = vunpack.c.l.b16 %v1098
      %v1121 = vunpack.c.l.b16 %v1099
      %v1122 = vunpack.c.l.b16 %v1100
      %v1123 = vunpack.c.l.b16 %v1101
      %v1124 = vunpack.c.l.b16 %v1102
      %v1125 = vunpack.c.l.b16 %v1103
      %v1126 = vunpack.c.l.b16 %v1104
      %v1127 = vpack.c.b16 %v1118, %v1117
      %v1128 = vpack.c.b16 %v1120, %v1119
      %v1129 = vpack.c.b16 %v1122, %v1121
      %v1130 = vpack.c.b16 %v1124, %v1123
      %v1131 = vpack.c.b16 %v1126, %v1125
      %v1133 = vshrl.u32 %v1127, 16
      %v1135 = vshll.u32 %v1127, 16
      %v1137 = vrot.slane %v1135, 1
      %v1138 = vor.u32 %v1133, %v1137
      %v1140 = vshll.u32 %v1128, 16
      %v1142 = vrot.slane %v1140, 1
      %v1143 = vsel %vm513, %v1138, %v1142
      %v1144 = vshrl.u32 %v1128, 16
      %v1146 = vor.u32 %v1144, %v1142
      %v1148 = vshll.u32 %v1129, 16
      %v1150 = vrot.slane %v1148, 1
      %v1151 = vsel %vm513, %v1146, %v1150
      %v1152 = vshrl.u32 %v1129, 16
      %v1154 = vor.u32 %v1152, %v1150
      %v1156 = vshll.u32 %v1130, 16
      %v1158 = vrot.slane %v1156, 1
      %v1159 = vsel %vm513, %v1154, %v1158
      %v1160 = vshrl.u32 %v1130, 16
      %v1162 = vor.u32 %v1160, %v1158
      %v1164 = vshll.u32 %v1131, 16
      %v1166 = vrot.slane %v1164, 1
      %v1167 = vsel %vm513, %v1162, %v1166
      %v1168 = vshrl.u32 %v1131, 16
      %v1170 = vor.u32 %v1168, %v1166
      %v1172 = vsel %vm271, %v1143, 0
      %v1175 = vsel %vm271, %v1151, 0
      %v1178 = vsel %vm271, %v1159, 0
      %v1181 = vsel %vm271, %v1167, 0
      %v1184 = vsel %vm271, %v1170, 0
      %v1187 = vsel %vm287, %v1106, 0
      %1189 = vmatprep.subr.bf16.mxu0 0
      %1190 = vmatpush1.bf16.msra.mxu0 %v1187
      %1191 = vmatprep.subr.bf16.mxu0 0
      %1192 = vmatpush1.bf16.msra.mxu0 0
      %1193 = vmatprep.subr.bf16.mxu0 0
      %1194 = vmatpush1.bf16.msra.mxu0 0
      %1195 = vmatprep.subr.bf16.mxu0 0
      %1196 = vmatpush1.bf16.msra.mxu0 0
      %1197 = vmatprep.subr.bf16.mxu0 0
      %1198 = vmatpush1.bf16.msra.mxu0 0
      %1199 = vmatprep.subr.bf16.mxu0 0
      %1200 = vmatpush1.bf16.msra.mxu0 0
      %1201 = vmatprep.subr.bf16.mxu0 0
      %1202 = vmatpush1.bf16.msra.mxu0 0
      %1203 = vmatprep.subr.bf16.mxu0 0
      %1204 = vmatpush1.bf16.msra.mxu0 0
      %1205 = vmatprep.subr.bf16.mxu0 0
      %1206 = vmatpush1.bf16.msra.mxu0 0
      %1207 = vmatprep.subr.bf16.mxu0 0
      %1208 = vmatpush1.bf16.msra.mxu0 0
      %1209 = vmatprep.subr.bf16.mxu0 0
      %1210 = vmatpush1.bf16.msra.mxu0 0
      %1211 = vmatprep.subr.bf16.mxu0 0
      %1212 = vmatpush1.bf16.msra.mxu0 0
      %1213 = vmatprep.subr.bf16.mxu0 0
      %1214 = vmatpush1.bf16.msra.mxu0 0
      %1215 = vmatprep.subr.bf16.mxu0 0
      %1216 = vmatpush1.bf16.msra.mxu0 0
      %1217 = vmatprep.subr.bf16.mxu0 0
      %1218 = vmatpush1.bf16.msra.mxu0 0
      %1219 = vmatprep.subr.bf16.mxu0 0
      %1220 = vmatpush1.bf16.msra.mxu0 0
      %1221 = vmatprep.mubr.bf16.mxu0 0
      %1222 = vmatmul.mubr.bf16.gmra.mrb[0].mxu0 %v1172
      %v1223 = vpop.f32.mrb[0].mxu0
      %v1224 = vadd.f32 0.0, %v1223
      %v1225 = vpop.f32.mrb[0].mxu0
      %v1226 = vpop.f32.mrb[0].mxu0
      %v1227 = vadd.f32 0.0, %v1226
      %v1228 = vpop.f32.mrb[0].mxu0
      %1229 = vmatprep.mubr.bf16.mxu0 0
      %1230 = vmatmul.mubr.bf16.gmra.mrb[0].mxu0 %v1175
      %v1231 = vpop.f32.mrb[0].mxu0
      %v1232 = vadd.f32 0.0, %v1231
      %v1233 = vpop.f32.mrb[0].mxu0
      %v1234 = vpop.f32.mrb[0].mxu0
      %v1235 = vadd.f32 0.0, %v1234
      %v1236 = vpop.f32.mrb[0].mxu0
      %1237 = vmatprep.mubr.bf16.mxu0 0
      %1238 = vmatmul.mubr.bf16.gmra.mrb[0].mxu0 %v1178
      %v1239 = vpop.f32.mrb[0].mxu0
      %v1240 = vadd.f32 0.0, %v1239
      %v1241 = vpop.f32.mrb[0].mxu0
      %v1242 = vpop.f32.mrb[0].mxu0
      %v1243 = vadd.f32 0.0, %v1242
      %v1244 = vpop.f32.mrb[0].mxu0
      %1245 = vmatprep.mubr.bf16.mxu0 0
      %1246 = vmatmul.mubr.bf16.gmra.mrb[0].mxu0 %v1181
      %v1247 = vpop.f32.mrb[0].mxu0
      %v1248 = vadd.f32 0.0, %v1247
      %v1249 = vpop.f32.mrb[0].mxu0
      %v1250 = vpop.f32.mrb[0].mxu0
      %v1251 = vadd.f32 0.0, %v1250
      %v1252 = vpop.f32.mrb[0].mxu0
      %1253 = vmatprep.mubr.bf16.mxu0 0
      %1254 = vmatmul.mubr.bf16.gmra.mrb[0].mxu0 %v1184
      %v1255 = vpop.f32.mrb[0].mxu0
      %v1256 = vadd.f32 0.0, %v1255
      %v1257 = vpop.f32.mrb[0].mxu0
      %v1258 = vpop.f32.mrb[0].mxu0
      %v1259 = vpop.f32.mrb[0].mxu0
      %1260 = vdwg.mxu0
      %v1261 = vadd.f32 %v1086, %v1224
      %v1262 = vadd.f32 %v1087, %v1227
      %v1263 = vadd.f32 %v1088, %v1232
      %v1264 = vadd.f32 %v1089, %v1235
      %v1265 = vadd.f32 %v1090, %v1240
      %v1266 = vadd.f32 %v1091, %v1243
      %v1267 = vadd.f32 %v1092, %v1248
      %v1268 = vadd.f32 %v1093, %v1251
      %v1269 = vadd.f32 %v1094, %v1256
      %v1270 = vld [vmem:[%s236 + $0x4] sm:$0xf]
      %v1271 = vld [vmem:[%s236 + $0x8] sm:$0xf]
      %v1272 = vld [vmem:[%s236 + $0xc] sm:$0xf]
      %v1273 = vld [vmem:[%s236 + $0x10] sm:$0xf]
      %v1274 = vld [vmem:[%s236 + $0x14] sm:$0xf]
      %v1275 = vld [vmem:[%s236 + $0x18] sm:$0xf]
      %v1276 = vld [vmem:[%s236 + $0x1c] sm:$0xf]
      %v1277 = vld [vmem:[%s236 + $0x20] sm:$0xf]
      %v1278 = vld [vmem:[%s236 + $0x24] sm:$0xf]
      %v1279 = vld [vmem:[%s236 + $0x28] sm:$0x1]
      %s1280 = scalar_lea.vmem %s1, 14
      %v1281 = vld [vmem:[%s1280] sm:$0x3]
      %v1292 = vunpack.c.l.b16 %v1270
      %v1293 = vunpack.c.l.b16 %v1271
      %v1294 = vunpack.c.l.b16 %v1272
      %v1295 = vunpack.c.l.b16 %v1273
      %v1296 = vunpack.c.l.b16 %v1274
      %v1297 = vunpack.c.l.b16 %v1275
      %v1298 = vunpack.c.l.b16 %v1276
      %v1299 = vunpack.c.l.b16 %v1277
      %v1300 = vunpack.c.l.b16 %v1278
      %v1301 = vunpack.c.l.b16 %v1279
      %v1302 = vpack.c.b16 %v1293, %v1292
      %v1303 = vpack.c.b16 %v1295, %v1294
      %v1304 = vpack.c.b16 %v1297, %v1296
      %v1305 = vpack.c.b16 %v1299, %v1298
      %v1306 = vpack.c.b16 %v1301, %v1300
      %v1308 = vshrl.u32 %v1302, 16
      %v1310 = vshll.u32 %v1302, 16
      %v1312 = vrot.slane %v1310, 1
      %v1313 = vor.u32 %v1308, %v1312
      %v1315 = vshll.u32 %v1303, 16
      %v1317 = vrot.slane %v1315, 1
      %v1318 = vsel %vm513, %v1313, %v1317
      %v1319 = vshrl.u32 %v1303, 16
      %v1321 = vor.u32 %v1319, %v1317
      %v1323 = vshll.u32 %v1304, 16
      %v1325 = vrot.slane %v1323, 1
      %v1326 = vsel %vm513, %v1321, %v1325
      %v1327 = vshrl.u32 %v1304, 16
      %v1329 = vor.u32 %v1327, %v1325
      %v1331 = vshll.u32 %v1305, 16
      %v1333 = vrot.slane %v1331, 1
      %v1334 = vsel %vm513, %v1329, %v1333
      %v1335 = vshrl.u32 %v1305, 16
      %v1337 = vor.u32 %v1335, %v1333
      %v1339 = vshll.u32 %v1306, 16
      %v1341 = vrot.slane %v1339, 1
      %v1342 = vsel %vm513, %v1337, %v1341
      %v1343 = vshrl.u32 %v1306, 16
      %v1345 = vor.u32 %v1343, %v1341
      %v1347 = vsel %vm271, %v1318, 0
      %v1350 = vsel %vm271, %v1326, 0
      %v1353 = vsel %vm271, %v1334, 0
      %v1356 = vsel %vm271, %v1342, 0
      %v1359 = vsel %vm271, %v1345, 0
      %v1362 = vsel %vm287, %v1281, 0
      %1364 = vmatprep.subr.bf16.mxu0 0
      %1365 = vmatpush1.bf16.msra.mxu0 %v1362
      %1366 = vmatprep.subr.bf16.mxu0 0
      %1367 = vmatpush1.bf16.msra.mxu0 0
      %1368 = vmatprep.subr.bf16.mxu0 0
      %1369 = vmatpush1.bf16.msra.mxu0 0
      %1370 = vmatprep.subr.bf16.mxu0 0
      %1371 = vmatpush1.bf16.msra.mxu0 0
      %1372 = vmatprep.subr.bf16.mxu0 0
      %1373 = vmatpush1.bf16.msra.mxu0 0
      %1374 = vmatprep.subr.bf16.mxu0 0
      %1375 = vmatpush1.bf16.msra.mxu0 0
      %1376 = vmatprep.subr.bf16.mxu0 0
      %1377 = vmatpush1.bf16.msra.mxu0 0
      %1378 = vmatprep.subr.bf16.mxu0 0
      %1379 = vmatpush1.bf16.msra.mxu0 0
      %1380 = vmatprep.subr.bf16.mxu0 0
      %1381 = vmatpush1.bf16.msra.mxu0 0
      %1382 = vmatprep.subr.bf16.mxu0 0
      %1383 = vmatpush1.bf16.msra.mxu0 0
      %1384 = vmatprep.subr.bf16.mxu0 0
      %1385 = vmatpush1.bf16.msra.mxu0 0
      %1386 = vmatprep.subr.bf16.mxu0 0
      %1387 = vmatpush1.bf16.msra.mxu0 0
      %1388 = vmatprep.subr.bf16.mxu0 0
      %1389 = vmatpush1.bf16.msra.mxu0 0
      %1390 = vmatprep.subr.bf16.mxu0 0
      %1391 = vmatpush1.bf16.msra.mxu0 0
      %1392 = vmatprep.subr.bf16.mxu0 0
      %1393 = vmatpush1.bf16.msra.mxu0 0
      %1394 = vmatprep.subr.bf16.mxu0 0
      %1395 = vmatpush1.bf16.msra.mxu0 0
      %1396 = vmatprep.mubr.bf16.mxu0 0
      %1397 = vmatmul.mubr.bf16.gmra.mrb[0].mxu0 %v1347
      %v1398 = vpop.f32.mrb[0].mxu0
      %v1399 = vadd.f32 0.0, %v1398
      %v1400 = vpop.f32.mrb[0].mxu0
      %v1401 = vpop.f32.mrb[0].mxu0
      %v1402 = vadd.f32 0.0, %v1401
      %v1403 = vpop.f32.mrb[0].mxu0
      %1404 = vmatprep.mubr.bf16.mxu0 0
      %1405 = vmatmul.mubr.bf16.gmra.mrb[0].mxu0 %v1350
      %v1406 = vpop.f32.mrb[0].mxu0
      %v1407 = vadd.f32 0.0, %v1406
      %v1408 = vpop.f32.mrb[0].mxu0
      %v1409 = vpop.f32.mrb[0].mxu0
      %v1410 = vadd.f32 0.0, %v1409
      %v1411 = vpop.f32.mrb[0].mxu0
      %1412 = vmatprep.mubr.bf16.mxu0 0
      %1413 = vmatmul.mubr.bf16.gmra.mrb[0].mxu0 %v1353
      %v1414 = vpop.f32.mrb[0].mxu0
      %v1415 = vadd.f32 0.0, %v1414
      %v1416 = vpop.f32.mrb[0].mxu0
      %v1417 = vpop.f32.mrb[0].mxu0
      %v1418 = vadd.f32 0.0, %v1417
      %v1419 = vpop.f32.mrb[0].mxu0
      %1420 = vmatprep.mubr.bf16.mxu0 0
      %1421 = vmatmul.mubr.bf16.gmra.mrb[0].mxu0 %v1356
      %v1422 = vpop.f32.mrb[0].mxu0
      %v1423 = vadd.f32 0.0, %v1422
      %v1424 = vpop.f32.mrb[0].mxu0
      %v1425 = vpop.f32.mrb[0].mxu0
      %v1426 = vadd.f32 0.0, %v1425
      %v1427 = vpop.f32.mrb[0].mxu0
      %1428 = vmatprep.mubr.bf16.mxu0 0
      %1429 = vmatmul.mubr.bf16.gmra.mrb[0].mxu0 %v1359
      %v1430 = vpop.f32.mrb[0].mxu0
      %v1431 = vadd.f32 0.0, %v1430
      %v1432 = vpop.f32.mrb[0].mxu0
      %v1433 = vpop.f32.mrb[0].mxu0
      %v1434 = vpop.f32.mrb[0].mxu0
      %1435 = vdwg.mxu0
      %v1436 = vadd.f32 %v1261, %v1399
      %v1437 = vadd.f32 %v1262, %v1402
      %v1438 = vadd.f32 %v1263, %v1407
      %v1439 = vadd.f32 %v1264, %v1410
      %v1440 = vadd.f32 %v1265, %v1415
      %v1441 = vadd.f32 %v1266, %v1418
      %v1442 = vadd.f32 %v1267, %v1423
      %v1443 = vadd.f32 %v1268, %v1426
      %v1444 = vadd.f32 %v1269, %v1431
      %v1445 = vld [vmem:[%s219 + $0x4] sm:$0xe]
      %s1446 = scalar_lea.vmem %s1, 16
      %v1447 = vld [vmem:[%s1446] sm:$0x3]
      %v1449 = vunpack.c.l.b16 %v1445
      %v1450 = vpack.c.b16 %v1118, %v1449
      %vm1451 = vcmask 1046528
      %v1452 = vrot.slane %v1450, 1
      %v1453 = vrot.slane %v1128, 1
      %v1454 = vsel %vm1451, %v1452, %v1453
      %v1455 = vrot.slane %v1129, 1
      %v1456 = vsel %vm1451, %v1453, %v1455
      %v1457 = vrot.slane %v1130, 1
      %v1458 = vsel %vm1451, %v1455, %v1457
      %v1459 = vrot.slane %v1131, 1
      %v1460 = vsel %vm1451, %v1457, %v1459
      %v1462 = vsel %vm271, %v1454, 0
      %v1465 = vsel %vm271, %v1456, 0
      %v1468 = vsel %vm271, %v1458, 0
      %v1471 = vsel %vm271, %v1460, 0
      %v1474 = vsel %vm271, %v1459, 0
      %v1477 = vsel %vm287, %v1447, 0
      %1479 = vmatprep.subr.bf16.mxu0 0
      %1480 = vmatpush1.bf16.msra.mxu0 %v1477
      %1481 = vmatprep.subr.bf16.mxu0 0
      %1482 = vmatpush1.bf16.msra.mxu0 0
      %1483 = vmatprep.subr.bf16.mxu0 0
      %1484 = vmatpush1.bf16.msra.mxu0 0
      %1485 = vmatprep.subr.bf16.mxu0 0
      %1486 = vmatpush1.bf16.msra.mxu0 0
      %1487 = vmatprep.subr.bf16.mxu0 0
      %1488 = vmatpush1.bf16.msra.mxu0 0
      %1489 = vmatprep.subr.bf16.mxu0 0
      %1490 = vmatpush1.bf16.msra.mxu0 0
      %1491 = vmatprep.subr.bf16.mxu0 0
      %1492 = vmatpush1.bf16.msra.mxu0 0
      %1493 = vmatprep.subr.bf16.mxu0 0
      %1494 = vmatpush1.bf16.msra.mxu0 0
      %1495 = vmatprep.subr.bf16.mxu0 0
      %1496 = vmatpush1.bf16.msra.mxu0 0
      %1497 = vmatprep.subr.bf16.mxu0 0
      %1498 = vmatpush1.bf16.msra.mxu0 0
      %1499 = vmatprep.subr.bf16.mxu0 0
      %1500 = vmatpush1.bf16.msra.mxu0 0
      %1501 = vmatprep.subr.bf16.mxu0 0
      %1502 = vmatpush1.bf16.msra.mxu0 0
      %1503 = vmatprep.subr.bf16.mxu0 0
      %1504 = vmatpush1.bf16.msra.mxu0 0
      %1505 = vmatprep.subr.bf16.mxu0 0
      %1506 = vmatpush1.bf16.msra.mxu0 0
      %1507 = vmatprep.subr.bf16.mxu0 0
      %1508 = vmatpush1.bf16.msra.mxu0 0
      %1509 = vmatprep.subr.bf16.mxu0 0
      %1510 = vmatpush1.bf16.msra.mxu0 0
      %1511 = vmatprep.mubr.bf16.mxu0 0
      %1512 = vmatmul.mubr.bf16.gmra.mrb[0].mxu0 %v1462
      %v1513 = vpop.f32.mrb[0].mxu0
      %v1514 = vadd.f32 0.0, %v1513
      %v1515 = vpop.f32.mrb[0].mxu0
      %v1516 = vpop.f32.mrb[0].mxu0
      %v1517 = vadd.f32 0.0, %v1516
      %v1518 = vpop.f32.mrb[0].mxu0
      %1519 = vmatprep.mubr.bf16.mxu0 0
      %1520 = vmatmul.mubr.bf16.gmra.mrb[0].mxu0 %v1465
      %v1521 = vpop.f32.mrb[0].mxu0
      %v1522 = vadd.f32 0.0, %v1521
      %v1523 = vpop.f32.mrb[0].mxu0
      %v1524 = vpop.f32.mrb[0].mxu0
      %v1525 = vadd.f32 0.0, %v1524
      %v1526 = vpop.f32.mrb[0].mxu0
      %1527 = vmatprep.mubr.bf16.mxu0 0
      %1528 = vmatmul.mubr.bf16.gmra.mrb[0].mxu0 %v1468
      %v1529 = vpop.f32.mrb[0].mxu0
      %v1530 = vadd.f32 0.0, %v1529
      %v1531 = vpop.f32.mrb[0].mxu0
      %v1532 = vpop.f32.mrb[0].mxu0
      %v1533 = vadd.f32 0.0, %v1532
      %v1534 = vpop.f32.mrb[0].mxu0
      %1535 = vmatprep.mubr.bf16.mxu0 0
      %1536 = vmatmul.mubr.bf16.gmra.mrb[0].mxu0 %v1471
      %v1537 = vpop.f32.mrb[0].mxu0
      %v1538 = vadd.f32 0.0, %v1537
      %v1539 = vpop.f32.mrb[0].mxu0
      %v1540 = vpop.f32.mrb[0].mxu0
      %v1541 = vadd.f32 0.0, %v1540
      %v1542 = vpop.f32.mrb[0].mxu0
      %1543 = vmatprep.mubr.bf16.mxu0 0
      %1544 = vmatmul.mubr.bf16.gmra.mrb[0].mxu0 %v1474
      %v1545 = vpop.f32.mrb[0].mxu0
      %v1546 = vadd.f32 0.0, %v1545
      %v1547 = vpop.f32.mrb[0].mxu0
      %v1548 = vpop.f32.mrb[0].mxu0
      %v1549 = vpop.f32.mrb[0].mxu0
      %1550 = vdwg.mxu0
      %v1551 = vadd.f32 %v1436, %v1514
      %v1552 = vadd.f32 %v1437, %v1517
      %v1553 = vadd.f32 %v1438, %v1522
      %v1554 = vadd.f32 %v1439, %v1525
      %v1555 = vadd.f32 %v1440, %v1530
      %v1556 = vadd.f32 %v1441, %v1533
      %v1557 = vadd.f32 %v1442, %v1538
      %v1558 = vadd.f32 %v1443, %v1541
      %v1559 = vadd.f32 %v1444, %v1546
      %v1560 = vld [vmem:[%s2] sm:$0x1]
      %v1562 = vlaneseq
      %v1563 = vshrl.u32 %v1562, 7
      %v1564 = vsub.s32 0, %v1563
      %v1565 = vrot.slane %v1560, %v1564
      %v1567 = vadd.f32 %v1551, %v1565
      %v1568 = vadd.f32 %v1552, %v1565
      %v1569 = vadd.f32 %v1553, %v1565
      %v1570 = vadd.f32 %v1554, %v1565
      %v1571 = vadd.f32 %v1555, %v1565
      %v1572 = vadd.f32 %v1556, %v1565
      %v1573 = vadd.f32 %v1557, %v1565
      %v1574 = vadd.f32 %v1558, %v1565
      %v1575 = vadd.f32 %v1559, %v1565
      %v1576 = vmul.f32 %v1567, 0.5
      %v1577 = vmul.f32 %v1568, 0.5
      %v1578 = vmul.f32 %v1569, 0.5
      %v1579 = vmul.f32 %v1570, 0.5
      %v1580 = vmul.f32 %v1571, 0.5
      %v1581 = vmul.f32 %v1572, 0.5
      %v1582 = vmul.f32 %v1573, 0.5
      %v1583 = vmul.f32 %v1574, 0.5
      %v1584 = vmul.f32 %v1575, 0.5
      %v1585 = vmul.f32 %v1567, 0.70710677
      %v1586 = vmul.f32 %v1568, 0.70710677
      %v1587 = vmul.f32 %v1569, 0.70710677
      %v1588 = vmul.f32 %v1570, 0.70710677
      %v1589 = vmul.f32 %v1571, 0.70710677
      %v1590 = vmul.f32 %v1572, 0.70710677
      %v1591 = vmul.f32 %v1573, 0.70710677
      %v1592 = vmul.f32 %v1574, 0.70710677
      %v1593 = vmul.f32 %v1575, 0.70710677
      %v1594 = verf.f32.pop %v1585
      %v1595 = verf.f32.pop %v1586
      %v1596 = verf.f32.pop %v1587
      %v1597 = verf.f32.pop %v1588
      %v1598 = verf.f32.pop %v1589
      %v1599 = verf.f32.pop %v1590
      %v1600 = verf.f32.pop %v1591
      %v1601 = verf.f32.pop %v1592
      %v1602 = verf.f32.pop %v1593
      %v1603 = vadd.f32 %v1594, 1.0
      %v1604 = vadd.f32 %v1595, 1.0
      %v1605 = vadd.f32 %v1596, 1.0
      %v1606 = vadd.f32 %v1597, 1.0
      %v1607 = vadd.f32 %v1598, 1.0
      %v1608 = vadd.f32 %v1599, 1.0
      %v1609 = vadd.f32 %v1600, 1.0
      %v1610 = vadd.f32 %v1601, 1.0
      %v1611 = vadd.f32 %v1602, 1.0
      %v1612 = vmul.f32 %v1576, %v1603
      %v1613 = vmul.f32 %v1577, %v1604
      %v1614 = vmul.f32 %v1578, %v1605
      %v1615 = vmul.f32 %v1579, %v1606
      %v1616 = vmul.f32 %v1580, %v1607
      %v1617 = vmul.f32 %v1581, %v1608
      %v1618 = vmul.f32 %v1582, %v1609
      %v1619 = vmul.f32 %v1583, %v1610
      %v1620 = vmul.f32 %v1584, %v1611
      %v1621 = vlaneseq
      %v1622 = vand.u32 %v1621, 127
      %vm1623 = vcmp.lt.s32.totalorder %v1622, 48
      %v1624 = vsel %vm1623, 1, 0
      %v1625 = vcvt.s32.f32 %v1624
      %v1626 = vmul.f32 %v1612, %v1625
      %v1627 = vmul.f32 %v1613, %v1625
      %v1628 = vmul.f32 %v1614, %v1625
      %v1629 = vmul.f32 %v1615, %v1625
      %v1630 = vmul.f32 %v1616, %v1625
      %v1631 = vmul.f32 %v1617, %v1625
      %v1632 = vmul.f32 %v1618, %v1625
      %v1633 = vmul.f32 %v1619, %v1625
      %v1634 = vmul.f32 %v1620, %v1625
      %1635 = vadd.xlane.f32.xlu0 %v1626
      %v1636 = vpop.xlane.xlu0 %1635
      %1637 = vadd.xlane.f32.xlu0 %v1627
      %v1638 = vpop.xlane.xlu0 %1637
      %1639 = vadd.xlane.f32.xlu0 %v1628
      %v1640 = vpop.xlane.xlu0 %1639
      %1641 = vadd.xlane.f32.xlu0 %v1629
      %v1642 = vpop.xlane.xlu0 %1641
      %1643 = vadd.xlane.f32.xlu0 %v1630
      %v1644 = vpop.xlane.xlu0 %1643
      %1645 = vadd.xlane.f32.xlu0 %v1631
      %v1646 = vpop.xlane.xlu0 %1645
      %1647 = vadd.xlane.f32.xlu0 %v1632
      %v1648 = vpop.xlane.xlu0 %1647
      %1649 = vadd.xlane.f32.xlu0 %v1633
      %v1650 = vpop.xlane.xlu0 %1649
      %1651 = vadd.xlane.f32.xlu0 %v1634
      %v1652 = vpop.xlane.xlu0 %1651
      %v1653 = vmul.f32 %v1636, 0.020833334
      %v1654 = vmul.f32 %v1638, 0.020833334
      %v1655 = vmul.f32 %v1640, 0.020833334
      %v1656 = vmul.f32 %v1642, 0.020833334
      %v1657 = vmul.f32 %v1644, 0.020833334
      %v1658 = vmul.f32 %v1646, 0.020833334
      %v1659 = vmul.f32 %v1648, 0.020833334
      %v1660 = vmul.f32 %v1650, 0.020833334
      %v1661 = vmul.f32 %v1652, 0.020833334
      %v1662 = vsub.f32 %v1612, %v1653
      %v1663 = vsub.f32 %v1613, %v1654
      %v1664 = vsub.f32 %v1614, %v1655
      %v1665 = vsub.f32 %v1615, %v1656
      %v1666 = vsub.f32 %v1616, %v1657
      %v1667 = vsub.f32 %v1617, %v1658
      %v1668 = vsub.f32 %v1618, %v1659
      %v1669 = vsub.f32 %v1619, %v1660
      %v1670 = vsub.f32 %v1620, %v1661
      %v1671 = vmul.f32 %v1662, %v1625
      %v1672 = vmul.f32 %v1663, %v1625
      %v1673 = vmul.f32 %v1664, %v1625
      %v1674 = vmul.f32 %v1665, %v1625
      %v1675 = vmul.f32 %v1666, %v1625
      %v1676 = vmul.f32 %v1667, %v1625
      %v1677 = vmul.f32 %v1668, %v1625
      %v1678 = vmul.f32 %v1669, %v1625
      %v1679 = vmul.f32 %v1670, %v1625
      %v1680 = vmul.f32 %v1671, %v1671
      %v1681 = vmul.f32 %v1672, %v1672
      %v1682 = vmul.f32 %v1673, %v1673
      %v1683 = vmul.f32 %v1674, %v1674
      %v1684 = vmul.f32 %v1675, %v1675
      %v1685 = vmul.f32 %v1676, %v1676
      %v1686 = vmul.f32 %v1677, %v1677
      %v1687 = vmul.f32 %v1678, %v1678
      %v1688 = vmul.f32 %v1679, %v1679
      %1689 = vadd.xlane.f32.xlu0 %v1680
      %v1690 = vpop.xlane.xlu0 %1689
      %1691 = vadd.xlane.f32.xlu0 %v1681
      %v1692 = vpop.xlane.xlu0 %1691
      %1693 = vadd.xlane.f32.xlu0 %v1682
      %v1694 = vpop.xlane.xlu0 %1693
      %1695 = vadd.xlane.f32.xlu0 %v1683
      %v1696 = vpop.xlane.xlu0 %1695
      %1697 = vadd.xlane.f32.xlu0 %v1684
      %v1698 = vpop.xlane.xlu0 %1697
      %1699 = vadd.xlane.f32.xlu0 %v1685
      %v1700 = vpop.xlane.xlu0 %1699
      %1701 = vadd.xlane.f32.xlu0 %v1686
      %v1702 = vpop.xlane.xlu0 %1701
      %1703 = vadd.xlane.f32.xlu0 %v1687
      %v1704 = vpop.xlane.xlu0 %1703
      %1705 = vadd.xlane.f32.xlu0 %v1688
      %v1706 = vpop.xlane.xlu0 %1705
      %v1707 = vmul.f32 %v1690, 0.020833334
      %v1708 = vmul.f32 %v1692, 0.020833334
      %v1709 = vmul.f32 %v1694, 0.020833334
      %v1710 = vmul.f32 %v1696, 0.020833334
      %v1711 = vmul.f32 %v1698, 0.020833334
      %v1712 = vmul.f32 %v1700, 0.020833334
      %v1713 = vmul.f32 %v1702, 0.020833334
      %v1714 = vmul.f32 %v1704, 0.020833334
      %v1715 = vmul.f32 %v1706, 0.020833334
      %v1716 = vadd.f32 %v1707, 1e-05
      %v1717 = vadd.f32 %v1708, 1e-05
      %v1718 = vadd.f32 %v1709, 1e-05
      %v1719 = vadd.f32 %v1710, 1e-05
      %v1720 = vadd.f32 %v1711, 1e-05
      %v1721 = vadd.f32 %v1712, 1e-05
      %v1722 = vadd.f32 %v1713, 1e-05
      %v1723 = vadd.f32 %v1714, 1e-05
      %v1724 = vadd.f32 %v1715, 1e-05
      %v1725 = vrsqrt.pop %v1716
      %v1726 = vrsqrt.pop %v1717
      %v1727 = vrsqrt.pop %v1718
      %v1728 = vrsqrt.pop %v1719
      %v1729 = vrsqrt.pop %v1720
      %v1730 = vrsqrt.pop %v1721
      %v1731 = vrsqrt.pop %v1722
      %v1732 = vrsqrt.pop %v1723
      %v1733 = vrsqrt.pop %v1724
      %v1734 = vmul.f32 %v1671, %v1725
      %v1735 = vmul.f32 %v1672, %v1726
      %v1736 = vmul.f32 %v1673, %v1727
      %v1737 = vmul.f32 %v1674, %v1728
      %v1738 = vmul.f32 %v1675, %v1729
      %v1739 = vmul.f32 %v1676, %v1730
      %v1740 = vmul.f32 %v1677, %v1731
      %v1741 = vmul.f32 %v1678, %v1732
      %v1742 = vmul.f32 %v1679, %v1733
      %v1743 = vld [vmem:[%s3] sm:$0x1]
      %v1745 = vlaneseq
      %v1746 = vshrl.u32 %v1745, 7
      %v1747 = vsub.s32 0, %v1746
      %v1748 = vrot.slane %v1743, %v1747
      %v1750 = vmul.f32 %v1734, %v1748
      %v1751 = vmul.f32 %v1735, %v1748
      %v1752 = vmul.f32 %v1736, %v1748
      %v1753 = vmul.f32 %v1737, %v1748
      %v1754 = vmul.f32 %v1738, %v1748
      %v1755 = vmul.f32 %v1739, %v1748
      %v1756 = vmul.f32 %v1740, %v1748
      %v1757 = vmul.f32 %v1741, %v1748
      %v1758 = vmul.f32 %v1742, %v1748
      %v1759 = vld [vmem:[%s4] sm:$0x1]
      %v1761 = vlaneseq
      %v1762 = vshrl.u32 %v1761, 7
      %v1763 = vsub.s32 0, %v1762
      %v1764 = vrot.slane %v1759, %v1763
      %v1766 = vadd.f32 %v1750, %v1764
      %v1767 = vadd.f32 %v1751, %v1764
      %v1768 = vadd.f32 %v1752, %v1764
      %v1769 = vadd.f32 %v1753, %v1764
      %v1770 = vadd.f32 %v1754, %v1764
      %v1771 = vadd.f32 %v1755, %v1764
      %v1772 = vadd.f32 %v1756, %v1764
      %v1773 = vadd.f32 %v1757, %v1764
      %v1774 = vadd.f32 %v1758, %v1764
      %1775 = vst [vmem:[%s224] sm:$0xff] %v1766
      %1776 = vst [vmem:[%s224 + $0x8] sm:$0xff] %v1767
      %1777 = vst [vmem:[%s224 + $0x10] sm:$0xff] %v1768
      %1778 = vst [vmem:[%s224 + $0x18] sm:$0xff] %v1769
      %1779 = vst [vmem:[%s224 + $0x20] sm:$0xff] %v1770
      %1780 = vst [vmem:[%s224 + $0x28] sm:$0xff] %v1771
      %1781 = vst [vmem:[%s224 + $0x30] sm:$0xff] %v1772
      %1782 = vst [vmem:[%s224 + $0x38] sm:$0xff] %v1773
      %1783 = vst [vmem:[%s224 + $0x40] sm:$0xff] %v1774
      %p1784 = scmp.lt.s32.totalorder %s16, 1
      %s1785 = scalar_select %p1784, %s16, 1
      %s1786 = smul.addr %s1785, 9
      %s1787 = smul.addr %s1786, 8
      %s1788 = scalar_lea.vmem %s5, %s1787
      // Predicated region
      $region41: #{patch_embed_forward.4} parent=39 // pred_check
        %p1789 = pneg %p144
      $region42: #{patch_embed_forward.4} parent=39 // pred_check_branch
        %1791 = sbr.rel (%p1789) target = $region44
      $region43: #{patch_embed_forward.4} parent=39 // pred_region
        _
      $region44: #{patch_embed_forward.4} parent=39 // pred_fallthru
        _
    $region40: #{patch_embed_forward.4} parent=5 // pred_fallthru
      _
    %p1792 = scmp.le.s32.totalorder 2, %s11
    // Predicated region
    $region45: #{patch_embed_forward.4} parent=5 // pred_check
      %p1793 = pneg %p1792
    $region46: #{patch_embed_forward.4} parent=5 // pred_check_branch
      %1795 = sbr.rel (%p1793) target = $region48
    $region47: #{patch_embed_forward.4} parent=5 // pred_region
      %s1796 = ssub.s32 %s11, 2
      // Predicated region
      $region49: #{patch_embed_forward.4} parent=47 // pred_check
        %p1797 = pneg %p150
      $region50: #{patch_embed_forward.4} parent=47 // pred_check_branch
        %1799 = sbr.rel (%p1797) target = $region52
      $region51: #{patch_embed_forward.4} parent=47 // pred_region
        %p1800 = scmp.lt.s32.totalorder %s17, 1
        %s1801 = scalar_select %p1800, %s17, 1
        %s1802 = smul.addr %s1801, 9
        %s1803 = smul.addr %s1802, 8
        %s1804 = scalar_lea.vmem %s5, %s1803
      $region52: #{patch_embed_forward.4} parent=47 // pred_fallthru
        _
    $region48: #{patch_embed_forward.4} parent=5 // pred_fallthru
      _
  $region6: #{patch_embed_forward.4} parent=0 // loop_footer
    %s15 = sadd.s32 1, %s11
  $region7: #{patch_embed_forward.4} parent=0 // loop_footer_branch
    %10 = sbr.rel target = $region3
  $region8: #{patch_embed_forward.4} parent=0 // loop_exit
    _

// kernel: patch_embed_forward.5
$region0: #{patch_embed_forward.5}
  #allocation0 [shape = 'u32[]', space=smem, size = 0x4, offset = 0x4, fixed_abs, tag = 'smem constant byte address 0x4 - core index']
  #allocation1 [shape = 'u32[144,128]{1,0:T(1,128)}', space=vmem, size = 0x12000, scoped, tag = 'internal scratch']
  %s0 = inlined_call_operand.vmem [shape: bf16[2,1,110,48], index: 0, kind: input, shape index: {}]
  %s1 = inlined_call_operand.vmem [shape: bf16[9,48,128], index: 1, kind: input, shape index: {}]
  %s2 = inlined_call_operand.vmem [shape: f32[1,128], index: 2, kind: input, shape index: {}]
  %s3 = inlined_call_operand.vmem [shape: f32[1,128], index: 3, kind: input, shape index: {}]
  %s4 = inlined_call_operand.vmem [shape: f32[1,128], index: 4, kind: input, shape index: {}]
  %s5 = inlined_call_operand.vmem [shape: f32[2,80,128], index: 5, kind: output, shape index: {}]
  %s6 = sld [smem:[#allocation0]]
  $region53: #{patch_embed_forward.5} parent=0
    _
  %s8 = ssub.s32 1, %s6
  %s9 = scalar_select 0, %s8, %s6
  loop: start=0, step=1, limit=4
  $region2: #{patch_embed_forward.5} parent=0 // loop_pre_header
    _
  $region3: #{patch_embed_forward.5} parent=0 // loop_header
    %s11 = sphi 0, %s15
    %p12 = scmp.ge.s32.totalorder %s11, 4
    %s21 = sphi 0, %s23
    %s24 = sphi 0, %s21
    %s25 = sphi 0, %s24
    %s41 = sphi 0, %s25
    %s45 = sphi 0, %s45
    %s47 = sphi 0, %s45
    %s48 = sphi 0, %s47
    %s62 = sphi 0, %s48
    %s66 = sphi 0, %s66
    %s68 = sphi 0, %s66
    %s69 = sphi 0, %s68
    %s83 = sphi 0, %s69
    %s87 = sphi 0, %s87
    %s89 = sphi 0, %s87
    %s90 = sphi 0, %s89
    %s104 = sphi 0, %s90
    %s108 = sphi 0, %s108
    %s110 = sphi 0, %s108
    %s111 = sphi 0, %s110
    %s125 = sphi 0, %s111
    %s131 = sphi 0, %s133
    %s134 = sphi 0, %s131
    %s135 = sphi 0, %s134
    %s151 = sphi 0, %s135
  $region4: #{patch_embed_forward.5} parent=0 // loop_header_branch
    %14 = sbr.rel (%p12) target = $region8
  $region5: #{patch_embed_forward.5} parent=0 // loop_body
    %s16 = ssub.s32 %s11, 1
    %s17 = ssub.s32 %s11, 2
    %s18 = sadd.s32 %s11, 1
    %s19 = ssub.s32 %s11, %s18
    %p20 = scmp.eq.s32.totalorder %s19, 0
    %s22 = sadd.s32 %s21, 1
    %s23 = scalar_select %p20, %s21, %s22
    %p26 = pneg %p20
    %p27 = scmp.eq.s32.totalorder %s11, 1
    %p28 = por %p26, %p27
    %p29 = scmp.ne.s32.totalorder %s21, %s24
    %p30 = scmp.eq.s32.totalorder %s11, 0
    %p31 = por %p29, %p30
    %p32 = scmp.ne.s32.totalorder %s21, %s24
    %p33 = scmp.eq.s32.totalorder %s16, 1
    %p34 = por %p32, %p33
    %p35 = scmp.ne.s32.totalorder %s24, %s25
    %p36 = scmp.eq.s32.totalorder %s16, 0
    %p37 = por %p35, %p36
    %p38 = scmp.ne.s32.totalorder %s24, %s25
    %p39 = scmp.eq.s32.totalorder %s17, 1
    %p40 = por %p38, %p39
    %p42 = scmp.ne.s32.totalorder %s25, %s41
    %p43 = scmp.eq.s32.totalorder %s17, 0
    %p44 = por %p42, %p43
    %s46 = sadd.s32 %s45, 1
    %p49 = scmp.eq.s32.totalorder %s11, 1
    %p50 = scmp.ne.s32.totalorder %s45, %s47
    %p51 = scmp.eq.s32.totalorder %s11, 0
    %p52 = por %p50, %p51
    %p53 = scmp.ne.s32.totalorder %s45, %s47
    %p54 = scmp.eq.s32.totalorder %s16, 1
    %p55 = por %p53, %p54
    %p56 = scmp.ne.s32.totalorder %s47, %s48
    %p57 = scmp.eq.s32.totalorder %s16, 0
    %p58 = por %p56, %p57
    %p59 = scmp.ne.s32.totalorder %s47, %s48
    %p60 = scmp.eq.s32.totalorder %s17, 1
    %p61 = por %p59, %p60
    %p63 = scmp.ne.s32.totalorder %s48, %s62
    %p64 = scmp.eq.s32.totalorder %s17, 0
    %p65 = por %p63, %p64
    %s67 = sadd.s32 %s66, 1
    %p70 = scmp.eq.s32.totalorder %s11, 1
    %p71 = scmp.ne.s32.totalorder %s66, %s68
    %p72 = scmp.eq.s32.totalorder %s11, 0
    %p73 = por %p71, %p72
    %p74 = scmp.ne.s32.totalorder %s66, %s68
    %p75 = scmp.eq.s32.totalorder %s16, 1
    %p76 = por %p74, %p75
    %p77 = scmp.ne.s32.totalorder %s68, %s69
    %p78 = scmp.eq.s32.totalorder %s16, 0
    %p79 = por %p77, %p78
    %p80 = scmp.ne.s32.totalorder %s68, %s69
    %p81 = scmp.eq.s32.totalorder %s17, 1
    %p82 = por %p80, %p81
    %p84 = scmp.ne.s32.totalorder %s69, %s83
    %p85 = scmp.eq.s32.totalorder %s17, 0
    %p86 = por %p84, %p85
    %s88 = sadd.s32 %s87, 1
    %p91 = scmp.eq.s32.totalorder %s11, 1
    %p92 = scmp.ne.s32.totalorder %s87, %s89
    %p93 = scmp.eq.s32.totalorder %s11, 0
    %p94 = por %p92, %p93
    %p95 = scmp.ne.s32.totalorder %s87, %s89
    %p96 = scmp.eq.s32.totalorder %s16, 1
    %p97 = por %p95, %p96
    %p98 = scmp.ne.s32.totalorder %s89, %s90
    %p99 = scmp.eq.s32.totalorder %s16, 0
    %p100 = por %p98, %p99
    %p101 = scmp.ne.s32.totalorder %s89, %s90
    %p102 = scmp.eq.s32.totalorder %s17, 1
    %p103 = por %p101, %p102
    %p105 = scmp.ne.s32.totalorder %s90, %s104
    %p106 = scmp.eq.s32.totalorder %s17, 0
    %p107 = por %p105, %p106
    %s109 = sadd.s32 %s108, 1
    %p112 = scmp.eq.s32.totalorder %s11, 1
    %p113 = scmp.ne.s32.totalorder %s108, %s110
    %p114 = scmp.eq.s32.totalorder %s11, 0
    %p115 = por %p113, %p114
    %p116 = scmp.ne.s32.totalorder %s108, %s110
    %p117 = scmp.eq.s32.totalorder %s16, 1
    %p118 = por %p116, %p117
    %p119 = scmp.ne.s32.totalorder %s110, %s111
    %p120 = scmp.eq.s32.totalorder %s16, 0
    %p121 = por %p119, %p120
    %p122 = scmp.ne.s32.totalorder %s110, %s111
    %p123 = scmp.eq.s32.totalorder %s17, 1
    %p124 = por %p122, %p123
    %p126 = scmp.ne.s32.totalorder %s111, %s125
    %p127 = scmp.eq.s32.totalorder %s17, 0
    %p128 = por %p126, %p127
    %s129 = ssub.s32 %s11, %s18
    %p130 = scmp.eq.s32.totalorder %s129, 0
    %s132 = sadd.s32 %s131, 1
    %s133 = scalar_select %p130, %s131, %s132
    %p136 = pneg %p130
    %p137 = scmp.eq.s32.totalorder %s11, 1
    %p138 = por %p136, %p137
    %p139 = scmp.ne.s32.totalorder %s131, %s134
    %p140 = scmp.eq.s32.totalorder %s11, 0
    %p141 = por %p139, %p140
    %p142 = scmp.ne.s32.totalorder %s131, %s134
    %p143 = scmp.eq.s32.totalorder %s16, 1
    %p144 = por %p142, %p143
    %p145 = scmp.ne.s32.totalorder %s134, %s135
    %p146 = scmp.eq.s32.totalorder %s16, 0
    %p147 = por %p145, %p146
    %p148 = scmp.ne.s32.totalorder %s134, %s135
    %p149 = scmp.eq.s32.totalorder %s17, 1
    %p150 = por %p148, %p149
    %p152 = scmp.ne.s32.totalorder %s135, %s151
    %p153 = scmp.eq.s32.totalorder %s17, 0
    %p154 = por %p152, %p153
    %p155 = scmp.le.s32.totalorder 1, %s11
    %p156 = scmp.lt.s32.totalorder %s11, 3
    %p157 = pnand %p155, %p156
    %p158 = pneg %p157
    // Predicated region
    $region9: #{patch_embed_forward.5} parent=5 // pred_check
      _
    $region10: #{patch_embed_forward.5} parent=5 // pred_check_branch
      %160 = sbr.rel (%p157) target = $region12
    $region11: #{patch_embed_forward.5} parent=5 // pred_region
      %s161 = ssub.s32 %s11, 1
      // Predicated region
      $region13: #{patch_embed_forward.5} parent=11 // pred_check
        %p162 = pneg %p58
      $region14: #{patch_embed_forward.5} parent=11 // pred_check_branch
        %164 = sbr.rel (%p162) target = $region16
      $region15: #{patch_embed_forward.5} parent=11 // pred_region
        _
      $region16: #{patch_embed_forward.5} parent=11 // pred_fallthru
        _
      // Predicated region
      $region17: #{patch_embed_forward.5} parent=11 // pred_check
        %p165 = pneg %p79
      $region18: #{patch_embed_forward.5} parent=11 // pred_check_branch
        %167 = sbr.rel (%p165) target = $region20
      $region19: #{patch_embed_forward.5} parent=11 // pred_region
        _
      $region20: #{patch_embed_forward.5} parent=11 // pred_fallthru
        _
      // Predicated region
      $region21: #{patch_embed_forward.5} parent=11 // pred_check
        %p168 = pneg %p100
      $region22: #{patch_embed_forward.5} parent=11 // pred_check_branch
        %170 = sbr.rel (%p168) target = $region24
      $region23: #{patch_embed_forward.5} parent=11 // pred_region
        _
      $region24: #{patch_embed_forward.5} parent=11 // pred_fallthru
        _
      // Predicated region
      $region25: #{patch_embed_forward.5} parent=11 // pred_check
        %p171 = pneg %p121
      $region26: #{patch_embed_forward.5} parent=11 // pred_check_branch
        %173 = sbr.rel (%p171) target = $region28
      $region27: #{patch_embed_forward.5} parent=11 // pred_region
        _
      $region28: #{patch_embed_forward.5} parent=11 // pred_fallthru
        _
    $region12: #{patch_embed_forward.5} parent=5 // pred_fallthru
      _
    %p174 = scmp.lt.s32.totalorder %s11, 2
    // Predicated region
    $region29: #{patch_embed_forward.5} parent=5 // pred_check
      %p175 = pneg %p174
    $region30: #{patch_embed_forward.5} parent=5 // pred_check_branch
      %177 = sbr.rel (%p175) target = $region32
    $region31: #{patch_embed_forward.5} parent=5 // pred_region
      // Predicated region
      $region33: #{patch_embed_forward.5} parent=31 // pred_check
        %p178 = pneg %p31
      $region34: #{patch_embed_forward.5} parent=31 // pred_check_branch
        %180 = sbr.rel (%p178) target = $region36
      $region35: #{patch_embed_forward.5} parent=31 // pred_region
        %p181 = scmp.lt.s32.totalorder %s11, 1
        %s182 = scalar_select %p181, %s11, 1
        %s183 = smul.addr %s182, 14
        %s184 = smul.addr %s183, 4
        %s185 = scalar_lea.vmem %s0, %s184
      $region36: #{patch_embed_forward.5} parent=31 // pred_fallthru
        _
    $region32: #{patch_embed_forward.5} parent=5 // pred_fallthru
      _
    %p186 = scmp.le.s32.totalorder 1, %s11
    %p187 = scmp.lt.s32.totalorder %s11, 3
    %p188 = pnand %p186, %p187
    %p189 = pneg %p188
    // Predicated region
    $region37: #{patch_embed_forward.5} parent=5 // pred_check
      _
    $region38: #{patch_embed_forward.5} parent=5 // pred_check_branch
      %191 = sbr.rel (%p188) target = $region40
    $region39: #{patch_embed_forward.5} parent=5 // pred_region
      %s192 = ssub.s32 %s11, 1
      %p193 = scmp.lt.s32.totalorder %s16, 1
      %s194 = scalar_select %p193, %s16, 1
      %s195 = smul.addr %s194, 14
      %s196 = smul.addr %s195, 4
      %s197 = scalar_lea.vmem %s0, %s196
      %p198 = pneg %p37
      %p199 = pneg %p34
      %p200 = pneg %p58
      %p201 = pneg %p55
      %p202 = pneg %p79
      %p203 = pneg %p76
      %p204 = pneg %p100
      %p205 = pneg %p97
      %p206 = pneg %p121
      %p207 = pneg %p118
      %p208 = pneg %p147
      %p209 = pneg %p144
      %p210 = scmp.lt.s32.totalorder %s16, 1
      %s211 = scalar_select %p210, %s16, 1
      %s212 = smul.addr %s211, 10
      %s213 = smul.addr %s212, 8
      %s214 = scalar_lea.vmem %s5, %s213
      %p215 = scmp.lt.s32.totalorder %s16, 1
      %s216 = scalar_select %p215, %s16, 1
      %s217 = smul.addr %s216, 14
      %s218 = smul.addr %s217, 4
      %s219 = scalar_lea.vmem %s0, %s218
      %p220 = scmp.lt.s32.totalorder %s16, 1
      %s221 = scalar_select %p220, %s16, 1
      %s222 = smul.addr %s221, 10
      %s223 = smul.addr %s222, 8
      %s224 = scalar_lea.vmem %s5, %s223
      %v226 = vld [vmem:[%s219] sm:$0xf]
      %v227 = vld [vmem:[%s219 + $0x4] sm:$0xf]
      %v228 = vld [vmem:[%s219 + $0x8] sm:$0xf]
      %v229 = vld [vmem:[%s219 + $0xc] sm:$0xf]
      %v230 = vld [vmem:[%s219 + $0x10] sm:$0xf]
      %v231 = vld [vmem:[%s219 + $0x14] sm:$0xf]
      %v232 = vld [vmem:[%s219 + $0x18] sm:$0xf]
      %v233 = vld [vmem:[%s219 + $0x1c] sm:$0xf]
      %v234 = vld [vmem:[%s219 + $0x20] sm:$0xf]
      %v235 = vld [vmem:[%s219 + $0x24] sm:$0xf]
      %v236 = vld [vmem:[%s1] sm:$0xf]
      %v237 = vld [vmem:[%s1 + $0x4] sm:$0xf]
      %v238 = vld [vmem:[%s1 + $0x8] sm:$0xf]
      %v239 = vld [vmem:[%s1 + $0xc] sm:$0xf]
      %v240 = vld [vmem:[%s1 + $0x10] sm:$0xf]
      %v241 = vld [vmem:[%s1 + $0x14] sm:$0xf]
      %v242 = vld [vmem:[%s219 + $0x28] sm:$0x1]
      %s243 = scalar_lea.vmem %s1, 24
      %v244 = vld [vmem:[%s243] sm:$0xf]
      %v245 = vld [vmem:[%s243 + $0x4] sm:$0xf]
      %v246 = vld [vmem:[%s243 + $0x8] sm:$0xf]
      %v247 = vld [vmem:[%s243 + $0xc] sm:$0xf]
      %v248 = vld [vmem:[%s243 + $0x10] sm:$0xf]
      %v249 = vld [vmem:[%s243 + $0x14] sm:$0xf]
      %v261 = vunpack.c.l.b16 %v226
      %v262 = vunpack.c.l.b16 %v227
      %v263 = vunpack.c.l.b16 %v228
      %v264 = vunpack.c.l.b16 %v229
      %v265 = vunpack.c.l.b16 %v230
      %v266 = vunpack.c.l.b16 %v231
      %v267 = vunpack.c.l.b16 %v232
      %v268 = vunpack.c.l.b16 %v233
      %v269 = vunpack.c.l.b16 %v234
      %v270 = vunpack.c.l.b16 %v235
      %v271 = vunpack.c.l.b16 %v242
      %v272 = vpack.c.b16 %v262, %v261
      %v273 = vpack.c.b16 %v264, %v263
      %v274 = vpack.c.b16 %v266, %v265
      %v275 = vpack.c.b16 %v268, %v267
      %v276 = vpack.c.b16 %v270, %v269
      %v277 = vpack.c.b16 %v271, %v271
      %vm278 = vsmask.f32 7424
      %v280 = vshrl.u32 %v272, 16
      %v282 = vshll.u32 %v272, 16
      %v284 = vrot.slane %v282, 1
      %v285 = vor.u32 %v280, %v284
      %v287 = vshll.u32 %v273, 16
      %v289 = vrot.slane %v287, 1
      %v290 = vsel %vm278, %v285, %v289
      %v291 = vshrl.u32 %v273, 16
      %v293 = vor.u32 %v291, %v289
      %v295 = vshll.u32 %v274, 16
      %v297 = vrot.slane %v295, 1
      %v298 = vsel %vm278, %v293, %v297
      %v299 = vshrl.u32 %v274, 16
      %v301 = vor.u32 %v299, %v297
      %v303 = vshll.u32 %v275, 16
      %v305 = vrot.slane %v303, 1
      %v306 = vsel %vm278, %v301, %v305
      %v307 = vshrl.u32 %v275, 16
      %v309 = vor.u32 %v307, %v305
      %v311 = vshll.u32 %v276, 16
      %v313 = vrot.slane %v311, 1
      %v314 = vsel %vm278, %v309, %v313
      %v315 = vshrl.u32 %v276, 16
      %v317 = vor.u32 %v315, %v313
      %v319 = vshll.u32 %v277, 16
      %v321 = vrot.slane %v319, 1
      %v322 = vsel %vm278, %v317, %v321
      %v329 = vunpack.c.l.b16 %v244
      %v330 = vunpack.c.l.b16 %v245
      %v331 = vunpack.c.l.b16 %v246
      %v332 = vunpack.c.l.b16 %v247
      %v333 = vunpack.c.l.b16 %v248
      %v334 = vunpack.c.l.b16 %v249
      %v335 = vpack.c.b16 %v330, %v329
      %v336 = vpack.c.b16 %v332, %v331
      %v337 = vpack.c.b16 %v334, %v333
      %vm341 = vcmask 392192
      %v343 = vsel %vm341, %v290, 0
      %v346 = vsel %vm341, %v298, 0
      %v349 = vsel %vm341, %v306, 0
      %v352 = vsel %vm341, %v314, 0
      %v355 = vsel %vm341, %v322, 0
      %357 = vmatprep.subr.bf16.mxu0 0
      %358 = vmatpush1.bf16.msra.mxu0 %v335
      %359 = vmatprep.subr.bf16.mxu0 0
      %360 = vmatpush1.bf16.msra.mxu0 %v336
      %361 = vmatprep.subr.bf16.mxu0 0
      %362 = vmatpush1.bf16.msra.mxu0 %v337
      %363 = vmatprep.subr.bf16.mxu0 0
      %364 = vmatpush1.bf16.msra.mxu0 0
      %365 = vmatprep.subr.bf16.mxu0 0
      %366 = vmatpush1.bf16.msra.mxu0 0
      %367 = vmatprep.subr.bf16.mxu0 0
      %368 = vmatpush1.bf16.msra.mxu0 0
      %369 = vmatprep.subr.bf16.mxu0 0
      %370 = vmatpush1.bf16.msra.mxu0 0
      %371 = vmatprep.subr.bf16.mxu0 0
      %372 = vmatpush1.bf16.msra.mxu0 0
      %373 = vmatprep.subr.bf16.mxu0 0
      %374 = vmatpush1.bf16.msra.mxu0 0
      %375 = vmatprep.subr.bf16.mxu0 0
      %376 = vmatpush1.bf16.msra.mxu0 0
      %377 = vmatprep.subr.bf16.mxu0 0
      %378 = vmatpush1.bf16.msra.mxu0 0
      %379 = vmatprep.subr.bf16.mxu0 0
      %380 = vmatpush1.bf16.msra.mxu0 0
      %381 = vmatprep.subr.bf16.mxu0 0
      %382 = vmatpush1.bf16.msra.mxu0 0
      %383 = vmatprep.subr.bf16.mxu0 0
      %384 = vmatpush1.bf16.msra.mxu0 0
      %385 = vmatprep.subr.bf16.mxu0 0
      %386 = vmatpush1.bf16.msra.mxu0 0
      %387 = vmatprep.subr.bf16.mxu0 0
      %388 = vmatpush1.bf16.msra.mxu0 0
      %389 = vmatprep.mubr.bf16.mxu0 0
      %390 = vmatmul.mubr.bf16.gmra.mrb[0].mxu0 %v343
      %v391 = vpop.f32.mrb[0].mxu0
      %v392 = vadd.f32 0.0, %v391
      %v393 = vpop.f32.mrb[0].mxu0
      %v394 = vpop.f32.mrb[0].mxu0
      %v395 = vadd.f32 0.0, %v394
      %v396 = vpop.f32.mrb[0].mxu0
      %397 = vmatprep.mubr.bf16.mxu0 0
      %398 = vmatmul.mubr.bf16.gmra.mrb[0].mxu0 %v346
      %v399 = vpop.f32.mrb[0].mxu0
      %v400 = vadd.f32 0.0, %v399
      %v401 = vpop.f32.mrb[0].mxu0
      %v402 = vpop.f32.mrb[0].mxu0
      %v403 = vadd.f32 0.0, %v402
      %v404 = vpop.f32.mrb[0].mxu0
      %405 = vmatprep.mubr.bf16.mxu0 0
      %406 = vmatmul.mubr.bf16.gmra.mrb[0].mxu0 %v349
      %v407 = vpop.f32.mrb[0].mxu0
      %v408 = vadd.f32 0.0, %v407
      %v409 = vpop.f32.mrb[0].mxu0
      %v410 = vpop.f32.mrb[0].mxu0
      %v411 = vadd.f32 0.0, %v410
      %v412 = vpop.f32.mrb[0].mxu0
      %413 = vmatprep.mubr.bf16.mxu0 0
      %414 = vmatmul.mubr.bf16.gmra.mrb[0].mxu0 %v352
      %v415 = vpop.f32.mrb[0].mxu0
      %v416 = vadd.f32 0.0, %v415
      %v417 = vpop.f32.mrb[0].mxu0
      %v418 = vpop.f32.mrb[0].mxu0
      %v419 = vadd.f32 0.0, %v418
      %v420 = vpop.f32.mrb[0].mxu0
      %421 = vmatprep.mubr.bf16.mxu0 0
      %422 = vmatmul.mubr.bf16.gmra.mrb[0].mxu0 %v355
      %v423 = vpop.f32.mrb[0].mxu0
      %v424 = vadd.f32 0.0, %v423
      %v425 = vpop.f32.mrb[0].mxu0
      %v426 = vpop.f32.mrb[0].mxu0
      %v427 = vadd.f32 0.0, %v426
      %v428 = vpop.f32.mrb[0].mxu0
      %429 = vdwg.mxu0
      %v436 = vunpack.c.l.b16 %v236
      %v437 = vunpack.c.l.b16 %v237
      %v438 = vunpack.c.l.b16 %v238
      %v439 = vunpack.c.l.b16 %v239
      %v440 = vunpack.c.l.b16 %v240
      %v441 = vunpack.c.l.b16 %v241
      %v442 = vpack.c.b16 %v437, %v436
      %v443 = vpack.c.b16 %v439, %v438
      %v444 = vpack.c.b16 %v441, %v440
      %v448 = vsel %vm341, %v272, 0
      %v450 = vsel %vm341, %v273, 0
      %v452 = vsel %vm341, %v274, 0
      %v454 = vsel %vm341, %v275, 0
      %v456 = vsel %vm341, %v276, 0
      %458 = vmatprep.subr.bf16.mxu0 0
      %459 = vmatpush1.bf16.msra.mxu0 %v442
      %460 = vmatprep.subr.bf16.mxu0 0
      %461 = vmatpush1.bf16.msra.mxu0 %v443
      %462 = vmatprep.subr.bf16.mxu0 0
      %463 = vmatpush1.bf16.msra.mxu0 %v444
      %464 = vmatprep.subr.bf16.mxu0 0
      %465 = vmatpush1.bf16.msra.mxu0 0
      %466 = vmatprep.subr.bf16.mxu0 0
      %467 = vmatpush1.bf16.msra.mxu0 0
      %468 = vmatprep.subr.bf16.mxu0 0
      %469 = vmatpush1.bf16.msra.mxu0 0
      %470 = vmatprep.subr.bf16.mxu0 0
      %471 = vmatpush1.bf16.msra.mxu0 0
      %472 = vmatprep.subr.bf16.mxu0 0
      %473 = vmatpush1.bf16.msra.mxu0 0
      %474 = vmatprep.subr.bf16.mxu0 0
      %475 = vmatpush1.bf16.msra.mxu0 0
      %476 = vmatprep.subr.bf16.mxu0 0
      %477 = vmatpush1.bf16.msra.mxu0 0
      %478 = vmatprep.subr.bf16.mxu0 0
      %479 = vmatpush1.bf16.msra.mxu0 0
      %480 = vmatprep.subr.bf16.mxu0 0
      %481 = vmatpush1.bf16.msra.mxu0 0
      %482 = vmatprep.subr.bf16.mxu0 0
      %483 = vmatpush1.bf16.msra.mxu0 0
      %484 = vmatprep.subr.bf16.mxu0 0
      %485 = vmatpush1.bf16.msra.mxu0 0
      %486 = vmatprep.subr.bf16.mxu0 0
      %487 = vmatpush1.bf16.msra.mxu0 0
      %488 = vmatprep.subr.bf16.mxu0 0
      %489 = vmatpush1.bf16.msra.mxu0 0
      %490 = vmatprep.mubr.bf16.mxu0 0
      %491 = vmatmul.mubr.bf16.gmra.mrb[0].mxu0 %v448
      %v492 = vpop.f32.mrb[0].mxu0
      %v493 = vadd.f32 %v392, %v492
      %v494 = vpop.f32.mrb[0].mxu0
      %v495 = vpop.f32.mrb[0].mxu0
      %v496 = vadd.f32 %v395, %v495
      %v497 = vpop.f32.mrb[0].mxu0
      %498 = vmatprep.mubr.bf16.mxu0 0
      %499 = vmatmul.mubr.bf16.gmra.mrb[0].mxu0 %v450
      %v500 = vpop.f32.mrb[0].mxu0
      %v501 = vadd.f32 %v400, %v500
      %v502 = vpop.f32.mrb[0].mxu0
      %v503 = vpop.f32.mrb[0].mxu0
      %v504 = vadd.f32 %v403, %v503
      %v505 = vpop.f32.mrb[0].mxu0
      %506 = vmatprep.mubr.bf16.mxu0 0
      %507 = vmatmul.mubr.bf16.gmra.mrb[0].mxu0 %v452
      %v508 = vpop.f32.mrb[0].mxu0
      %v509 = vadd.f32 %v408, %v508
      %v510 = vpop.f32.mrb[0].mxu0
      %v511 = vpop.f32.mrb[0].mxu0
      %v512 = vadd.f32 %v411, %v511
      %v513 = vpop.f32.mrb[0].mxu0
      %514 = vmatprep.mubr.bf16.mxu0 0
      %515 = vmatmul.mubr.bf16.gmra.mrb[0].mxu0 %v454
      %v516 = vpop.f32.mrb[0].mxu0
      %v517 = vadd.f32 %v416, %v516
      %v518 = vpop.f32.mrb[0].mxu0
      %v519 = vpop.f32.mrb[0].mxu0
      %v520 = vadd.f32 %v419, %v519
      %v521 = vpop.f32.mrb[0].mxu0
      %522 = vmatprep.mubr.bf16.mxu0 0
      %523 = vmatmul.mubr.bf16.gmra.mrb[0].mxu0 %v456
      %v524 = vpop.f32.mrb[0].mxu0
      %v525 = vadd.f32 %v424, %v524
      %v526 = vpop.f32.mrb[0].mxu0
      %v527 = vpop.f32.mrb[0].mxu0
      %v528 = vadd.f32 %v427, %v527
      %v529 = vpop.f32.mrb[0].mxu0
      %530 = vdwg.mxu0
      %v531 = vld [vmem:[%s219] sm:$0xe]
      %s532 = scalar_lea.vmem %s1, 48
      %v533 = vld [vmem:[%s532] sm:$0xf]
      %v534 = vld [vmem:[%s532 + $0x4] sm:$0xf]
      %v535 = vld [vmem:[%s532 + $0x8] sm:$0xf]
      %v536 = vld [vmem:[%s532 + $0xc] sm:$0xf]
      %v537 = vld [vmem:[%s532 + $0x10] sm:$0xf]
      %v538 = vld [vmem:[%s532 + $0x14] sm:$0xf]
      %v540 = vunpack.c.l.b16 %v531
      %v541 = vpack.c.b16 %v262, %v540
      %vm542 = vcmask 1046528
      %v543 = vrot.slane %v541, 1
      %v544 = vrot.slane %v273, 1
      %v545 = vsel %vm542, %v543, %v544
      %v546 = vrot.slane %v274, 1
      %v547 = vsel %vm542, %v544, %v546
      %v548 = vrot.slane %v275, 1
      %v549 = vsel %vm542, %v546, %v548
      %v550 = vrot.slane %v276, 1
      %v551 = vsel %vm542, %v548, %v550
      %v552 = vrot.slane %v277, 1
      %v553 = vsel %vm542, %v550, %v552
      %v560 = vunpack.c.l.b16 %v533
      %v561 = vunpack.c.l.b16 %v534
      %v562 = vunpack.c.l.b16 %v535
      %v563 = vunpack.c.l.b16 %v536
      %v564 = vunpack.c.l.b16 %v537
      %v565 = vunpack.c.l.b16 %v538
      %v566 = vpack.c.b16 %v561, %v560
      %v567 = vpack.c.b16 %v563, %v562
      %v568 = vpack.c.b16 %v565, %v564
      %v573 = vsel %vm341, %v545, 0
      %v576 = vsel %vm341, %v547, 0
      %v579 = vsel %vm341, %v549, 0
      %v582 = vsel %vm341, %v551, 0
      %v585 = vsel %vm341, %v553, 0
      %587 = vmatprep.subr.bf16.mxu0 0
      %588 = vmatpush1.bf16.msra.mxu0 %v566
      %589 = vmatprep.subr.bf16.mxu0 0
      %590 = vmatpush1.bf16.msra.mxu0 %v567
      %591 = vmatprep.subr.bf16.mxu0 0
      %592 = vmatpush1.bf16.msra.mxu0 %v568
      %593 = vmatprep.subr.bf16.mxu0 0
      %594 = vmatpush1.bf16.msra.mxu0 0
      %595 = vmatprep.subr.bf16.mxu0 0
      %596 = vmatpush1.bf16.msra.mxu0 0
      %597 = vmatprep.subr.bf16.mxu0 0
      %598 = vmatpush1.bf16.msra.mxu0 0
      %599 = vmatprep.subr.bf16.mxu0 0
      %600 = vmatpush1.bf16.msra.mxu0 0
      %601 = vmatprep.subr.bf16.mxu0 0
      %602 = vmatpush1.bf16.msra.mxu0 0
      %603 = vmatprep.subr.bf16.mxu0 0
      %604 = vmatpush1.bf16.msra.mxu0 0
      %605 = vmatprep.subr.bf16.mxu0 0
      %606 = vmatpush1.bf16.msra.mxu0 0
      %607 = vmatprep.subr.bf16.mxu0 0
      %608 = vmatpush1.bf16.msra.mxu0 0
      %609 = vmatprep.subr.bf16.mxu0 0
      %610 = vmatpush1.bf16.msra.mxu0 0
      %611 = vmatprep.subr.bf16.mxu0 0
      %612 = vmatpush1.bf16.msra.mxu0 0
      %613 = vmatprep.subr.bf16.mxu0 0
      %614 = vmatpush1.bf16.msra.mxu0 0
      %615 = vmatprep.subr.bf16.mxu0 0
      %616 = vmatpush1.bf16.msra.mxu0 0
      %617 = vmatprep.subr.bf16.mxu0 0
      %618 = vmatpush1.bf16.msra.mxu0 0
      %619 = vmatprep.mubr.bf16.mxu0 0
      %620 = vmatmul.mubr.bf16.gmra.mrb[0].mxu0 %v573
      %v621 = vpop.f32.mrb[0].mxu0
      %v622 = vadd.f32 0.0, %v621
      %v623 = vpop.f32.mrb[0].mxu0
      %v624 = vpop.f32.mrb[0].mxu0
      %v625 = vadd.f32 0.0, %v624
      %v626 = vpop.f32.mrb[0].mxu0
      %627 = vmatprep.mubr.bf16.mxu0 0
      %628 = vmatmul.mubr.bf16.gmra.mrb[0].mxu0 %v576
      %v629 = vpop.f32.mrb[0].mxu0
      %v630 = vadd.f32 0.0, %v629
      %v631 = vpop.f32.mrb[0].mxu0
      %v632 = vpop.f32.mrb[0].mxu0
      %v633 = vadd.f32 0.0, %v632
      %v634 = vpop.f32.mrb[0].mxu0
      %635 = vmatprep.mubr.bf16.mxu0 0
      %636 = vmatmul.mubr.bf16.gmra.mrb[0].mxu0 %v579
      %v637 = vpop.f32.mrb[0].mxu0
      %v638 = vadd.f32 0.0, %v637
      %v639 = vpop.f32.mrb[0].mxu0
      %v640 = vpop.f32.mrb[0].mxu0
      %v641 = vadd.f32 0.0, %v640
      %v642 = vpop.f32.mrb[0].mxu0
      %643 = vmatprep.mubr.bf16.mxu0 0
      %644 = vmatmul.mubr.bf16.gmra.mrb[0].mxu0 %v582
      %v645 = vpop.f32.mrb[0].mxu0
      %v646 = vadd.f32 0.0, %v645
      %v647 = vpop.f32.mrb[0].mxu0
      %v648 = vpop.f32.mrb[0].mxu0
      %v649 = vadd.f32 0.0, %v648
      %v650 = vpop.f32.mrb[0].mxu0
      %651 = vmatprep.mubr.bf16.mxu0 0
      %652 = vmatmul.mubr.bf16.gmra.mrb[0].mxu0 %v585
      %v653 = vpop.f32.mrb[0].mxu0
      %v654 = vadd.f32 0.0, %v653
      %v655 = vpop.f32.mrb[0].mxu0
      %v656 = vpop.f32.mrb[0].mxu0
      %v657 = vadd.f32 0.0, %v656
      %v658 = vpop.f32.mrb[0].mxu0
      %659 = vdwg.mxu0
      %v660 = vadd.f32 %v493, %v622
      %v661 = vadd.f32 %v496, %v625
      %v662 = vadd.f32 %v501, %v630
      %v663 = vadd.f32 %v504, %v633
      %v664 = vadd.f32 %v509, %v638
      %v665 = vadd.f32 %v512, %v641
      %v666 = vadd.f32 %v517, %v646
      %v667 = vadd.f32 %v520, %v649
      %v668 = vadd.f32 %v525, %v654
      %v669 = vadd.f32 %v528, %v657
      %v670 = vld [vmem:[%s219 + $0x4] sm:$0xe]
      %v671 = vld [vmem:[%s219 + $0x8] sm:$0xf]
      %v672 = vld [vmem:[%s219 + $0xc] sm:$0xf]
      %v673 = vld [vmem:[%s219 + $0x10] sm:$0xf]
      %v674 = vld [vmem:[%s219 + $0x14] sm:$0xf]
      %v675 = vld [vmem:[%s219 + $0x18] sm:$0xf]
      %v676 = vld [vmem:[%s219 + $0x1c] sm:$0xf]
      %v677 = vld [vmem:[%s219 + $0x20] sm:$0xf]
      %v678 = vld [vmem:[%s219 + $0x24] sm:$0xf]
      %v679 = vld [vmem:[%s219 + $0x28] sm:$0xf]
      %v680 = vld [vmem:[%s219 + $0x2c] sm:$0x1]
      %s681 = scalar_lea.vmem %s1, 72
      %v682 = vld [vmem:[%s681] sm:$0xf]
      %v683 = vld [vmem:[%s681 + $0x4] sm:$0xf]
      %v684 = vld [vmem:[%s681 + $0x8] sm:$0xf]
      %v685 = vld [vmem:[%s681 + $0xc] sm:$0xf]
      %v686 = vld [vmem:[%s681 + $0x10] sm:$0xf]
      %v687 = vld [vmem:[%s681 + $0x14] sm:$0xf]
      %v699 = vunpack.c.l.b16 %v670
      %v700 = vunpack.c.l.b16 %v671
      %v701 = vunpack.c.l.b16 %v672
      %v702 = vunpack.c.l.b16 %v673
      %v703 = vunpack.c.l.b16 %v674
      %v704 = vunpack.c.l.b16 %v675
      %v705 = vunpack.c.l.b16 %v676
      %v706 = vunpack.c.l.b16 %v677
      %v707 = vunpack.c.l.b16 %v678
      %v708 = vunpack.c.l.b16 %v679
      %v709 = vunpack.c.l.b16 %v680
      %v710 = vpack.c.b16 %v700, %v699
      %v711 = vpack.c.b16 %v702, %v701
      %v712 = vpack.c.b16 %v704, %v703
      %v713 = vpack.c.b16 %v706, %v705
      %v714 = vpack.c.b16 %v708, %v707
      %v715 = vpack.c.b16 %v709, %v709
      %v716 = vrot.slane %v710, 1
      %v717 = vrot.slane %v711, 1
      %v718 = vsel %vm542, %v716, %v717
      %v719 = vrot.slane %v712, 1
      %v720 = vsel %vm542, %v717, %v719
      %v721 = vrot.slane %v713, 1
      %v722 = vsel %vm542, %v719, %v721
      %v723 = vrot.slane %v714, 1
      %v724 = vsel %vm542, %v721, %v723
      %v725 = vrot.slane %v715, 1
      %v726 = vsel %vm542, %v723, %v725
      %v733 = vunpack.c.l.b16 %v682
      %v734 = vunpack.c.l.b16 %v683
      %v735 = vunpack.c.l.b16 %v684
      %v736 = vunpack.c.l.b16 %v685
      %v737 = vunpack.c.l.b16 %v686
      %v738 = vunpack.c.l.b16 %v687
      %v739 = vpack.c.b16 %v734, %v733
      %v740 = vpack.c.b16 %v736, %v735
      %v741 = vpack.c.b16 %v738, %v737
      %v746 = vsel %vm341, %v718, 0
      %v749 = vsel %vm341, %v720, 0
      %v752 = vsel %vm341, %v722, 0
      %v755 = vsel %vm341, %v724, 0
      %v758 = vsel %vm341, %v726, 0
      %760 = vmatprep.subr.bf16.mxu0 0
      %761 = vmatpush1.bf16.msra.mxu0 %v739
      %762 = vmatprep.subr.bf16.mxu0 0
      %763 = vmatpush1.bf16.msra.mxu0 %v740
      %764 = vmatprep.subr.bf16.mxu0 0
      %765 = vmatpush1.bf16.msra.mxu0 %v741
      %766 = vmatprep.subr.bf16.mxu0 0
      %767 = vmatpush1.bf16.msra.mxu0 0
      %768 = vmatprep.subr.bf16.mxu0 0
      %769 = vmatpush1.bf16.msra.mxu0 0
      %770 = vmatprep.subr.bf16.mxu0 0
      %771 = vmatpush1.bf16.msra.mxu0 0
      %772 = vmatprep.subr.bf16.mxu0 0
      %773 = vmatpush1.bf16.msra.mxu0 0
      %774 = vmatprep.subr.bf16.mxu0 0
      %775 = vmatpush1.bf16.msra.mxu0 0
      %776 = vmatprep.subr.bf16.mxu0 0
      %777 = vmatpush1.bf16.msra.mxu0 0
      %778 = vmatprep.subr.bf16.mxu0 0
      %779 = vmatpush1.bf16.msra.mxu0 0
      %780 = vmatprep.subr.bf16.mxu0 0
      %781 = vmatpush1.bf16.msra.mxu0 0
      %782 = vmatprep.subr.bf16.mxu0 0
      %783 = vmatpush1.bf16.msra.mxu0 0
      %784 = vmatprep.subr.bf16.mxu0 0
      %785 = vmatpush1.bf16.msra.mxu0 0
      %786 = vmatprep.subr.bf16.mxu0 0
      %787 = vmatpush1.bf16.msra.mxu0 0
      %788 = vmatprep.subr.bf16.mxu0 0
      %789 = vmatpush1.bf16.msra.mxu0 0
      %790 = vmatprep.subr.bf16.mxu0 0
      %791 = vmatpush1.bf16.msra.mxu0 0
      %792 = vmatprep.mubr.bf16.mxu0 0
      %793 = vmatmul.mubr.bf16.gmra.mrb[0].mxu0 %v746
      %v794 = vpop.f32.mrb[0].mxu0
      %v795 = vadd.f32 0.0, %v794
      %v796 = vpop.f32.mrb[0].mxu0
      %v797 = vpop.f32.mrb[0].mxu0
      %v798 = vadd.f32 0.0, %v797
      %v799 = vpop.f32.mrb[0].mxu0
      %800 = vmatprep.mubr.bf16.mxu0 0
      %801 = vmatmul.mubr.bf16.gmra.mrb[0].mxu0 %v749
      %v802 = vpop.f32.mrb[0].mxu0
      %v803 = vadd.f32 0.0, %v802
      %v804 = vpop.f32.mrb[0].mxu0
      %v805 = vpop.f32.mrb[0].mxu0
      %v806 = vadd.f32 0.0, %v805
      %v807 = vpop.f32.mrb[0].mxu0
      %808 = vmatprep.mubr.bf16.mxu0 0
      %809 = vmatmul.mubr.bf16.gmra.mrb[0].mxu0 %v752
      %v810 = vpop.f32.mrb[0].mxu0
      %v811 = vadd.f32 0.0, %v810
      %v812 = vpop.f32.mrb[0].mxu0
      %v813 = vpop.f32.mrb[0].mxu0
      %v814 = vadd.f32 0.0, %v813
      %v815 = vpop.f32.mrb[0].mxu0
      %816 = vmatprep.mubr.bf16.mxu0 0
      %817 = vmatmul.mubr.bf16.gmra.mrb[0].mxu0 %v755
      %v818 = vpop.f32.mrb[0].mxu0
      %v819 = vadd.f32 0.0, %v818
      %v820 = vpop.f32.mrb[0].mxu0
      %v821 = vpop.f32.mrb[0].mxu0
      %v822 = vadd.f32 0.0, %v821
      %v823 = vpop.f32.mrb[0].mxu0
      %824 = vmatprep.mubr.bf16.mxu0 0
      %825 = vmatmul.mubr.bf16.gmra.mrb[0].mxu0 %v758
      %v826 = vpop.f32.mrb[0].mxu0
      %v827 = vadd.f32 0.0, %v826
      %v828 = vpop.f32.mrb[0].mxu0
      %v829 = vpop.f32.mrb[0].mxu0
      %v830 = vadd.f32 0.0, %v829
      %v831 = vpop.f32.mrb[0].mxu0
      %832 = vdwg.mxu0
      %v833 = vadd.f32 %v660, %v795
      %v834 = vadd.f32 %v661, %v798
      %v835 = vadd.f32 %v662, %v803
      %v836 = vadd.f32 %v663, %v806
      %v837 = vadd.f32 %v664, %v811
      %v838 = vadd.f32 %v665, %v814
      %v839 = vadd.f32 %v666, %v819
      %v840 = vadd.f32 %v667, %v822
      %v841 = vadd.f32 %v668, %v827
      %v842 = vadd.f32 %v669, %v830
      %v843 = vld [vmem:[%s219 + $0x2c] sm:$0x3]
      %s844 = scalar_lea.vmem %s1, 96
      %v845 = vld [vmem:[%s844] sm:$0xf]
      %v846 = vld [vmem:[%s844 + $0x4] sm:$0xf]
      %v847 = vld [vmem:[%s844 + $0x8] sm:$0xf]
      %v848 = vld [vmem:[%s844 + $0xc] sm:$0xf]
      %v849 = vld [vmem:[%s844 + $0x10] sm:$0xf]
      %v850 = vld [vmem:[%s844 + $0x14] sm:$0xf]
      %v852 = vunpack.c.l.b16 %v843
      %v853 = vpack.c.b16 %v852, %v852
      %vm854 = vsmask.f32 6400
      %v856 = vshrl.u32 %v710, 16
      %v858 = vrot.slane %v856, 1
      %v859 = vshll.u32 %v710, 16
      %v861 = vrot.slane %v859, 2
      %v862 = vor.u32 %v858, %v861
      %v864 = vshrl.u32 %v711, 16
      %v866 = vrot.slane %v864, 1
      %v867 = vshll.u32 %v711, 16
      %v869 = vrot.slane %v867, 2
      %v870 = vor.u32 %v866, %v869
      %v871 = vsel %vm854, %v862, %v870
      %v873 = vshrl.u32 %v712, 16
      %v875 = vrot.slane %v873, 1
      %v876 = vshll.u32 %v712, 16
      %v878 = vrot.slane %v876, 2
      %v879 = vor.u32 %v875, %v878
      %v880 = vsel %vm854, %v870, %v879
      %v882 = vshrl.u32 %v713, 16
      %v884 = vrot.slane %v882, 1
      %v885 = vshll.u32 %v713, 16
      %v887 = vrot.slane %v885, 2
      %v888 = vor.u32 %v884, %v887
      %v889 = vsel %vm854, %v879, %v888
      %v891 = vshrl.u32 %v714, 16
      %v893 = vrot.slane %v891, 1
      %v894 = vshll.u32 %v714, 16
      %v896 = vrot.slane %v894, 2
      %v897 = vor.u32 %v893, %v896
      %v898 = vsel %vm854, %v888, %v897
      %v900 = vshrl.u32 %v853, 16
      %v902 = vrot.slane %v900, 1
      %v903 = vshll.u32 %v853, 16
      %v905 = vrot.slane %v903, 2
      %v906 = vor.u32 %v902, %v905
      %v907 = vsel %vm854, %v897, %v906
      %v914 = vunpack.c.l.b16 %v845
      %v915 = vunpack.c.l.b16 %v846
      %v916 = vunpack.c.l.b16 %v847
      %v917 = vunpack.c.l.b16 %v848
      %v918 = vunpack.c.l.b16 %v849
      %v919 = vunpack.c.l.b16 %v850
      %v920 = vpack.c.b16 %v915, %v914
      %v921 = vpack.c.b16 %v917, %v916
      %v922 = vpack.c.b16 %v919, %v918
      %v927 = vsel %vm341, %v871, 0
      %v930 = vsel %vm341, %v880, 0
      %v933 = vsel %vm341, %v889, 0
      %v936 = vsel %vm341, %v898, 0
      %v939 = vsel %vm341, %v907, 0
      %941 = vmatprep.subr.bf16.mxu0 0
      %942 = vmatpush1.bf16.msra.mxu0 %v920
      %943 = vmatprep.subr.bf16.mxu0 0
      %944 = vmatpush1.bf16.msra.mxu0 %v921
      %945 = vmatprep.subr.bf16.mxu0 0
      %946 = vmatpush1.bf16.msra.mxu0 %v922
      %947 = vmatprep.subr.bf16.mxu0 0
      %948 = vmatpush1.bf16.msra.mxu0 0
      %949 = vmatprep.subr.bf16.mxu0 0
      %950 = vmatpush1.bf16.msra.mxu0 0
      %951 = vmatprep.subr.bf16.mxu0 0
      %952 = vmatpush1.bf16.msra.mxu0 0
      %953 = vmatprep.subr.bf16.mxu0 0
      %954 = vmatpush1.bf16.msra.mxu0 0
      %955 = vmatprep.subr.bf16.mxu0 0
      %956 = vmatpush1.bf16.msra.mxu0 0
      %957 = vmatprep.subr.bf16.mxu0 0
      %958 = vmatpush1.bf16.msra.mxu0 0
      %959 = vmatprep.subr.bf16.mxu0 0
      %960 = vmatpush1.bf16.msra.mxu0 0
      %961 = vmatprep.subr.bf16.mxu0 0
      %962 = vmatpush1.bf16.msra.mxu0 0
      %963 = vmatprep.subr.bf16.mxu0 0
      %964 = vmatpush1.bf16.msra.mxu0 0
      %965 = vmatprep.subr.bf16.mxu0 0
      %966 = vmatpush1.bf16.msra.mxu0 0
      %967 = vmatprep.subr.bf16.mxu0 0
      %968 = vmatpush1.bf16.msra.mxu0 0
      %969 = vmatprep.subr.bf16.mxu0 0
      %970 = vmatpush1.bf16.msra.mxu0 0
      %971 = vmatprep.subr.bf16.mxu0 0
      %972 = vmatpush1.bf16.msra.mxu0 0
      %973 = vmatprep.mubr.bf16.mxu0 0
      %974 = vmatmul.mubr.bf16.gmra.mrb[0].mxu0 %v927
      %v975 = vpop.f32.mrb[0].mxu0
      %v976 = vadd.f32 0.0, %v975
      %v977 = vpop.f32.mrb[0].mxu0
      %v978 = vpop.f32.mrb[0].mxu0
      %v979 = vadd.f32 0.0, %v978
      %v980 = vpop.f32.mrb[0].mxu0
      %981 = vmatprep.mubr.bf16.mxu0 0
      %982 = vmatmul.mubr.bf16.gmra.mrb[0].mxu0 %v930
      %v983 = vpop.f32.mrb[0].mxu0
      %v984 = vadd.f32 0.0, %v983
      %v985 = vpop.f32.mrb[0].mxu0
      %v986 = vpop.f32.mrb[0].mxu0
      %v987 = vadd.f32 0.0, %v986
      %v988 = vpop.f32.mrb[0].mxu0
      %989 = vmatprep.mubr.bf16.mxu0 0
      %990 = vmatmul.mubr.bf16.gmra.mrb[0].mxu0 %v933
      %v991 = vpop.f32.mrb[0].mxu0
      %v992 = vadd.f32 0.0, %v991
      %v993 = vpop.f32.mrb[0].mxu0
      %v994 = vpop.f32.mrb[0].mxu0
      %v995 = vadd.f32 0.0, %v994
      %v996 = vpop.f32.mrb[0].mxu0
      %997 = vmatprep.mubr.bf16.mxu0 0
      %998 = vmatmul.mubr.bf16.gmra.mrb[0].mxu0 %v936
      %v999 = vpop.f32.mrb[0].mxu0
      %v1000 = vadd.f32 0.0, %v999
      %v1001 = vpop.f32.mrb[0].mxu0
      %v1002 = vpop.f32.mrb[0].mxu0
      %v1003 = vadd.f32 0.0, %v1002
      %v1004 = vpop.f32.mrb[0].mxu0
      %1005 = vmatprep.mubr.bf16.mxu0 0
      %1006 = vmatmul.mubr.bf16.gmra.mrb[0].mxu0 %v939
      %v1007 = vpop.f32.mrb[0].mxu0
      %v1008 = vadd.f32 0.0, %v1007
      %v1009 = vpop.f32.mrb[0].mxu0
      %v1010 = vpop.f32.mrb[0].mxu0
      %v1011 = vadd.f32 0.0, %v1010
      %v1012 = vpop.f32.mrb[0].mxu0
      %1013 = vdwg.mxu0
      %v1014 = vadd.f32 %v833, %v976
      %v1015 = vadd.f32 %v834, %v979
      %v1016 = vadd.f32 %v835, %v984
      %v1017 = vadd.f32 %v836, %v987
      %v1018 = vadd.f32 %v837, %v992
      %v1019 = vadd.f32 %v838, %v995
      %v1020 = vadd.f32 %v839, %v1000
      %v1021 = vadd.f32 %v840, %v1003
      %v1022 = vadd.f32 %v841, %v1008
      %v1023 = vadd.f32 %v842, %v1011
      %v1024 = vld [vmem:[%s219 + $0x4] sm:$0xc]
      %s1025 = scalar_lea.vmem %s1, 120
      %v1026 = vld [vmem:[%s1025] sm:$0xf]
      %v1027 = vld [vmem:[%s1025 + $0x4] sm:$0xf]
      %v1028 = vld [vmem:[%s1025 + $0x8] sm:$0xf]
      %v1029 = vld [vmem:[%s1025 + $0xc] sm:$0xf]
      %v1030 = vld [vmem:[%s1025 + $0x10] sm:$0xf]
      %v1031 = vld [vmem:[%s1025 + $0x14] sm:$0xf]
      %v1033 = vunpack.c.l.b16 %v1024
      %v1034 = vpack.c.b16 %v700, %v1033
      %vm1035 = vcmask 1045504
      %v1036 = vrot.slane %v1034, 2
      %v1037 = vrot.slane %v711, 2
      %v1038 = vsel %vm1035, %v1036, %v1037
      %v1039 = vrot.slane %v712, 2
      %v1040 = vsel %vm1035, %v1037, %v1039
      %v1041 = vrot.slane %v713, 2
      %v1042 = vsel %vm1035, %v1039, %v1041
      %v1043 = vrot.slane %v714, 2
      %v1044 = vsel %vm1035, %v1041, %v1043
      %v1045 = vrot.slane %v853, 2
      %v1046 = vsel %vm1035, %v1043, %v1045
      %v1053 = vunpack.c.l.b16 %v1026
      %v1054 = vunpack.c.l.b16 %v1027
      %v1055 = vunpack.c.l.b16 %v1028
      %v1056 = vunpack.c.l.b16 %v1029
      %v1057 = vunpack.c.l.b16 %v1030
      %v1058 = vunpack.c.l.b16 %v1031
      %v1059 = vpack.c.b16 %v1054, %v1053
      %v1060 = vpack.c.b16 %v1056, %v1055
      %v1061 = vpack.c.b16 %v1058, %v1057
      %v1066 = vsel %vm341, %v1038, 0
      %v1069 = vsel %vm341, %v1040, 0
      %v1072 = vsel %vm341, %v1042, 0
      %v1075 = vsel %vm341, %v1044, 0
      %v1078 = vsel %vm341, %v1046, 0
      %1080 = vmatprep.subr.bf16.mxu0 0
      %1081 = vmatpush1.bf16.msra.mxu0 %v1059
      %1082 = vmatprep.subr.bf16.mxu0 0
      %1083 = vmatpush1.bf16.msra.mxu0 %v1060
      %1084 = vmatprep.subr.bf16.mxu0 0
      %1085 = vmatpush1.bf16.msra.mxu0 %v1061
      %1086 = vmatprep.subr.bf16.mxu0 0
      %1087 = vmatpush1.bf16.msra.mxu0 0
      %1088 = vmatprep.subr.bf16.mxu0 0
      %1089 = vmatpush1.bf16.msra.mxu0 0
      %1090 = vmatprep.subr.bf16.mxu0 0
      %1091 = vmatpush1.bf16.msra.mxu0 0
      %1092 = vmatprep.subr.bf16.mxu0 0
      %1093 = vmatpush1.bf16.msra.mxu0 0
      %1094 = vmatprep.subr.bf16.mxu0 0
      %1095 = vmatpush1.bf16.msra.mxu0 0
      %1096 = vmatprep.subr.bf16.mxu0 0
      %1097 = vmatpush1.bf16.msra.mxu0 0
      %1098 = vmatprep.subr.bf16.mxu0 0
      %1099 = vmatpush1.bf16.msra.mxu0 0
      %1100 = vmatprep.subr.bf16.mxu0 0
      %1101 = vmatpush1.bf16.msra.mxu0 0
      %1102 = vmatprep.subr.bf16.mxu0 0
      %1103 = vmatpush1.bf16.msra.mxu0 0
      %1104 = vmatprep.subr.bf16.mxu0 0
      %1105 = vmatpush1.bf16.msra.mxu0 0
      %1106 = vmatprep.subr.bf16.mxu0 0
      %1107 = vmatpush1.bf16.msra.mxu0 0
      %1108 = vmatprep.subr.bf16.mxu0 0
      %1109 = vmatpush1.bf16.msra.mxu0 0
      %1110 = vmatprep.subr.bf16.mxu0 0
      %1111 = vmatpush1.bf16.msra.mxu0 0
      %1112 = vmatprep.mubr.bf16.mxu0 0
      %1113 = vmatmul.mubr.bf16.gmra.mrb[0].mxu0 %v1066
      %v1114 = vpop.f32.mrb[0].mxu0
      %v1115 = vadd.f32 0.0, %v1114
      %v1116 = vpop.f32.mrb[0].mxu0
      %v1117 = vpop.f32.mrb[0].mxu0
      %v1118 = vadd.f32 0.0, %v1117
      %v1119 = vpop.f32.mrb[0].mxu0
      %1120 = vmatprep.mubr.bf16.mxu0 0
      %1121 = vmatmul.mubr.bf16.gmra.mrb[0].mxu0 %v1069
      %v1122 = vpop.f32.mrb[0].mxu0
      %v1123 = vadd.f32 0.0, %v1122
      %v1124 = vpop.f32.mrb[0].mxu0
      %v1125 = vpop.f32.mrb[0].mxu0
      %v1126 = vadd.f32 0.0, %v1125
      %v1127 = vpop.f32.mrb[0].mxu0
      %1128 = vmatprep.mubr.bf16.mxu0 0
      %1129 = vmatmul.mubr.bf16.gmra.mrb[0].mxu0 %v1072
      %v1130 = vpop.f32.mrb[0].mxu0
      %v1131 = vadd.f32 0.0, %v1130
      %v1132 = vpop.f32.mrb[0].mxu0
      %v1133 = vpop.f32.mrb[0].mxu0
      %v1134 = vadd.f32 0.0, %v1133
      %v1135 = vpop.f32.mrb[0].mxu0
      %1136 = vmatprep.mubr.bf16.mxu0 0
      %1137 = vmatmul.mubr.bf16.gmra.mrb[0].mxu0 %v1075
      %v1138 = vpop.f32.mrb[0].mxu0
      %v1139 = vadd.f32 0.0, %v1138
      %v1140 = vpop.f32.mrb[0].mxu0
      %v1141 = vpop.f32.mrb[0].mxu0
      %v1142 = vadd.f32 0.0, %v1141
      %v1143 = vpop.f32.mrb[0].mxu0
      %1144 = vmatprep.mubr.bf16.mxu0 0
      %1145 = vmatmul.mubr.bf16.gmra.mrb[0].mxu0 %v1078
      %v1146 = vpop.f32.mrb[0].mxu0
      %v1147 = vadd.f32 0.0, %v1146
      %v1148 = vpop.f32.mrb[0].mxu0
      %v1149 = vpop.f32.mrb[0].mxu0
      %v1150 = vadd.f32 0.0, %v1149
      %v1151 = vpop.f32.mrb[0].mxu0
      %1152 = vdwg.mxu0
      %v1153 = vadd.f32 %v1014, %v1115
      %v1154 = vadd.f32 %v1015, %v1118
      %v1155 = vadd.f32 %v1016, %v1123
      %v1156 = vadd.f32 %v1017, %v1126
      %v1157 = vadd.f32 %v1018, %v1131
      %v1158 = vadd.f32 %v1019, %v1134
      %v1159 = vadd.f32 %v1020, %v1139
      %v1160 = vadd.f32 %v1021, %v1142
      %v1161 = vadd.f32 %v1022, %v1147
      %v1162 = vadd.f32 %v1023, %v1150
      %v1163 = vld [vmem:[%s219 + $0x8] sm:$0xc]
      %v1164 = vld [vmem:[%s219 + $0xc] sm:$0xf]
      %v1165 = vld [vmem:[%s219 + $0x10] sm:$0xf]
      %v1166 = vld [vmem:[%s219 + $0x14] sm:$0xf]
      %v1167 = vld [vmem:[%s219 + $0x18] sm:$0xf]
      %v1168 = vld [vmem:[%s219 + $0x1c] sm:$0xf]
      %v1169 = vld [vmem:[%s219 + $0x20] sm:$0xf]
      %v1170 = vld [vmem:[%s219 + $0x24] sm:$0xf]
      %v1171 = vld [vmem:[%s219 + $0x28] sm:$0xf]
      %v1172 = vld [vmem:[%s219 + $0x2c] sm:$0xf]
      %v1173 = vld [vmem:[%s219 + $0x30] sm:$0x3]
      %s1174 = scalar_lea.vmem %s1, 144
      %v1175 = vld [vmem:[%s1174] sm:$0xf]
      %v1176 = vld [vmem:[%s1174 + $0x4] sm:$0xf]
      %v1177 = vld [vmem:[%s1174 + $0x8] sm:$0xf]
      %v1178 = vld [vmem:[%s1174 + $0xc] sm:$0xf]
      %v1179 = vld [vmem:[%s1174 + $0x10] sm:$0xf]
      %v1180 = vld [vmem:[%s1174 + $0x14] sm:$0xf]
      %v1192 = vunpack.c.l.b16 %v1163
      %v1193 = vunpack.c.l.b16 %v1164
      %v1194 = vunpack.c.l.b16 %v1165
      %v1195 = vunpack.c.l.b16 %v1166
      %v1196 = vunpack.c.l.b16 %v1167
      %v1197 = vunpack.c.l.b16 %v1168
      %v1198 = vunpack.c.l.b16 %v1169
      %v1199 = vunpack.c.l.b16 %v1170
      %v1200 = vunpack.c.l.b16 %v1171
      %v1201 = vunpack.c.l.b16 %v1172
      %v1202 = vunpack.c.l.b16 %v1173
      %v1203 = vpack.c.b16 %v1193, %v1192
      %v1204 = vpack.c.b16 %v1195, %v1194
      %v1205 = vpack.c.b16 %v1197, %v1196
      %v1206 = vpack.c.b16 %v1199, %v1198
      %v1207 = vpack.c.b16 %v1201, %v1200
      %v1208 = vpack.c.b16 %v1202, %v1202
      %v1209 = vrot.slane %v1203, 2
      %v1210 = vrot.slane %v1204, 2
      %v1211 = vsel %vm1035, %v1209, %v1210
      %v1212 = vrot.slane %v1205, 2
      %v1213 = vsel %vm1035, %v1210, %v1212
      %v1214 = vrot.slane %v1206, 2
      %v1215 = vsel %vm1035, %v1212, %v1214
      %v1216 = vrot.slane %v1207, 2
      %v1217 = vsel %vm1035, %v1214, %v1216
      %v1218 = vrot.slane %v1208, 2
      %v1219 = vsel %vm1035, %v1216, %v1218
      %v1226 = vunpack.c.l.b16 %v1175
      %v1227 = vunpack.c.l.b16 %v1176
      %v1228 = vunpack.c.l.b16 %v1177
      %v1229 = vunpack.c.l.b16 %v1178
      %v1230 = vunpack.c.l.b16 %v1179
      %v1231 = vunpack.c.l.b16 %v1180
      %v1232 = vpack.c.b16 %v1227, %v1226
      %v1233 = vpack.c.b16 %v1229, %v1228
      %v1234 = vpack.c.b16 %v1231, %v1230
      %v1239 = vsel %vm341, %v1211, 0
      %v1242 = vsel %vm341, %v1213, 0
      %v1245 = vsel %vm341, %v1215, 0
      %v1248 = vsel %vm341, %v1217, 0
      %v1251 = vsel %vm341, %v1219, 0
      %1253 = vmatprep.subr.bf16.mxu0 0
      %1254 = vmatpush1.bf16.msra.mxu0 %v1232
      %1255 = vmatprep.subr.bf16.mxu0 0
      %1256 = vmatpush1.bf16.msra.mxu0 %v1233
      %1257 = vmatprep.subr.bf16.mxu0 0
      %1258 = vmatpush1.bf16.msra.mxu0 %v1234
      %1259 = vmatprep.subr.bf16.mxu0 0
      %1260 = vmatpush1.bf16.msra.mxu0 0
      %1261 = vmatprep.subr.bf16.mxu0 0
      %1262 = vmatpush1.bf16.msra.mxu0 0
      %1263 = vmatprep.subr.bf16.mxu0 0
      %1264 = vmatpush1.bf16.msra.mxu0 0
      %1265 = vmatprep.subr.bf16.mxu0 0
      %1266 = vmatpush1.bf16.msra.mxu0 0
      %1267 = vmatprep.subr.bf16.mxu0 0
      %1268 = vmatpush1.bf16.msra.mxu0 0
      %1269 = vmatprep.subr.bf16.mxu0 0
      %1270 = vmatpush1.bf16.msra.mxu0 0
      %1271 = vmatprep.subr.bf16.mxu0 0
      %1272 = vmatpush1.bf16.msra.mxu0 0
      %1273 = vmatprep.subr.bf16.mxu0 0
      %1274 = vmatpush1.bf16.msra.mxu0 0
      %1275 = vmatprep.subr.bf16.mxu0 0
      %1276 = vmatpush1.bf16.msra.mxu0 0
      %1277 = vmatprep.subr.bf16.mxu0 0
      %1278 = vmatpush1.bf16.msra.mxu0 0
      %1279 = vmatprep.subr.bf16.mxu0 0
      %1280 = vmatpush1.bf16.msra.mxu0 0
      %1281 = vmatprep.subr.bf16.mxu0 0
      %1282 = vmatpush1.bf16.msra.mxu0 0
      %1283 = vmatprep.subr.bf16.mxu0 0
      %1284 = vmatpush1.bf16.msra.mxu0 0
      %1285 = vmatprep.mubr.bf16.mxu0 0
      %1286 = vmatmul.mubr.bf16.gmra.mrb[0].mxu0 %v1239
      %v1287 = vpop.f32.mrb[0].mxu0
      %v1288 = vadd.f32 0.0, %v1287
      %v1289 = vpop.f32.mrb[0].mxu0
      %v1290 = vpop.f32.mrb[0].mxu0
      %v1291 = vadd.f32 0.0, %v1290
      %v1292 = vpop.f32.mrb[0].mxu0
      %1293 = vmatprep.mubr.bf16.mxu0 0
      %1294 = vmatmul.mubr.bf16.gmra.mrb[0].mxu0 %v1242
      %v1295 = vpop.f32.mrb[0].mxu0
      %v1296 = vadd.f32 0.0, %v1295
      %v1297 = vpop.f32.mrb[0].mxu0
      %v1298 = vpop.f32.mrb[0].mxu0
      %v1299 = vadd.f32 0.0, %v1298
      %v1300 = vpop.f32.mrb[0].mxu0
      %1301 = vmatprep.mubr.bf16.mxu0 0
      %1302 = vmatmul.mubr.bf16.gmra.mrb[0].mxu0 %v1245
      %v1303 = vpop.f32.mrb[0].mxu0
      %v1304 = vadd.f32 0.0, %v1303
      %v1305 = vpop.f32.mrb[0].mxu0
      %v1306 = vpop.f32.mrb[0].mxu0
      %v1307 = vadd.f32 0.0, %v1306
      %v1308 = vpop.f32.mrb[0].mxu0
      %1309 = vmatprep.mubr.bf16.mxu0 0
      %1310 = vmatmul.mubr.bf16.gmra.mrb[0].mxu0 %v1248
      %v1311 = vpop.f32.mrb[0].mxu0
      %v1312 = vadd.f32 0.0, %v1311
      %v1313 = vpop.f32.mrb[0].mxu0
      %v1314 = vpop.f32.mrb[0].mxu0
      %v1315 = vadd.f32 0.0, %v1314
      %v1316 = vpop.f32.mrb[0].mxu0
      %1317 = vmatprep.mubr.bf16.mxu0 0
      %1318 = vmatmul.mubr.bf16.gmra.mrb[0].mxu0 %v1251
      %v1319 = vpop.f32.mrb[0].mxu0
      %v1320 = vadd.f32 0.0, %v1319
      %v1321 = vpop.f32.mrb[0].mxu0
      %v1322 = vpop.f32.mrb[0].mxu0
      %v1323 = vadd.f32 0.0, %v1322
      %v1324 = vpop.f32.mrb[0].mxu0
      %1325 = vdwg.mxu0
      %v1326 = vadd.f32 %v1153, %v1288
      %v1327 = vadd.f32 %v1154, %v1291
      %v1328 = vadd.f32 %v1155, %v1296
      %v1329 = vadd.f32 %v1156, %v1299
      %v1330 = vadd.f32 %v1157, %v1304
      %v1331 = vadd.f32 %v1158, %v1307
      %v1332 = vadd.f32 %v1159, %v1312
      %v1333 = vadd.f32 %v1160, %v1315
      %v1334 = vadd.f32 %v1161, %v1320
      %v1335 = vadd.f32 %v1162, %v1323
      %v1336 = vld [vmem:[%s219 + $0x30] sm:$0x7]
      %s1337 = scalar_lea.vmem %s1, 168
      %v1338 = vld [vmem:[%s1337] sm:$0xf]
      %v1339 = vld [vmem:[%s1337 + $0x4] sm:$0xf]
      %v1340 = vld [vmem:[%s1337 + $0x8] sm:$0xf]
      %v1341 = vld [vmem:[%s1337 + $0xc] sm:$0xf]
      %v1342 = vld [vmem:[%s1337 + $0x10] sm:$0xf]
      %v1343 = vld [vmem:[%s1337 + $0x14] sm:$0xf]
      %v1345 = vunpack.c.l.b16 %v1336
      %v1346 = vpack.c.b16 %v1345, %v1345
      %vm1347 = vsmask.f32 5376
      %v1349 = vshrl.u32 %v1203, 16
      %v1351 = vrot.slane %v1349, 2
      %v1352 = vshll.u32 %v1203, 16
      %v1354 = vrot.slane %v1352, 3
      %v1355 = vor.u32 %v1351, %v1354
      %v1357 = vshrl.u32 %v1204, 16
      %v1359 = vrot.slane %v1357, 2
      %v1360 = vshll.u32 %v1204, 16
      %v1362 = vrot.slane %v1360, 3
      %v1363 = vor.u32 %v1359, %v1362
      %v1364 = vsel %vm1347, %v1355, %v1363
      %v1366 = vshrl.u32 %v1205, 16
      %v1368 = vrot.slane %v1366, 2
      %v1369 = vshll.u32 %v1205, 16
      %v1371 = vrot.slane %v1369, 3
      %v1372 = vor.u32 %v1368, %v1371
      %v1373 = vsel %vm1347, %v1363, %v1372
      %v1375 = vshrl.u32 %v1206, 16
      %v1377 = vrot.slane %v1375, 2
      %v1378 = vshll.u32 %v1206, 16
      %v1380 = vrot.slane %v1378, 3
      %v1381 = vor.u32 %v1377, %v1380
      %v1382 = vsel %vm1347, %v1372, %v1381
      %v1384 = vshrl.u32 %v1207, 16
      %v1386 = vrot.slane %v1384, 2
      %v1387 = vshll.u32 %v1207, 16
      %v1389 = vrot.slane %v1387, 3
      %v1390 = vor.u32 %v1386, %v1389
      %v1391 = vsel %vm1347, %v1381, %v1390
      %v1393 = vshrl.u32 %v1346, 16
      %v1395 = vrot.slane %v1393, 2
      %v1396 = vshll.u32 %v1346, 16
      %v1398 = vrot.slane %v1396, 3
      %v1399 = vor.u32 %v1395, %v1398
      %v1400 = vsel %vm1347, %v1390, %v1399
      %v1407 = vunpack.c.l.b16 %v1338
      %v1408 = vunpack.c.l.b16 %v1339
      %v1409 = vunpack.c.l.b16 %v1340
      %v1410 = vunpack.c.l.b16 %v1341
      %v1411 = vunpack.c.l.b16 %v1342
      %v1412 = vunpack.c.l.b16 %v1343
      %v1413 = vpack.c.b16 %v1408, %v1407
      %v1414 = vpack.c.b16 %v1410, %v1409
      %v1415 = vpack.c.b16 %v1412, %v1411
      %v1420 = vsel %vm341, %v1364, 0
      %v1423 = vsel %vm341, %v1373, 0
      %v1426 = vsel %vm341, %v1382, 0
      %v1429 = vsel %vm341, %v1391, 0
      %v1432 = vsel %vm341, %v1400, 0
      %1434 = vmatprep.subr.bf16.mxu0 0
      %1435 = vmatpush1.bf16.msra.mxu0 %v1413
      %1436 = vmatprep.subr.bf16.mxu0 0
      %1437 = vmatpush1.bf16.msra.mxu0 %v1414
      %1438 = vmatprep.subr.bf16.mxu0 0
      %1439 = vmatpush1.bf16.msra.mxu0 %v1415
      %1440 = vmatprep.subr.bf16.mxu0 0
      %1441 = vmatpush1.bf16.msra.mxu0 0
      %1442 = vmatprep.subr.bf16.mxu0 0
      %1443 = vmatpush1.bf16.msra.mxu0 0
      %1444 = vmatprep.subr.bf16.mxu0 0
      %1445 = vmatpush1.bf16.msra.mxu0 0
      %1446 = vmatprep.subr.bf16.mxu0 0
      %1447 = vmatpush1.bf16.msra.mxu0 0
      %1448 = vmatprep.subr.bf16.mxu0 0
      %1449 = vmatpush1.bf16.msra.mxu0 0
      %1450 = vmatprep.subr.bf16.mxu0 0
      %1451 = vmatpush1.bf16.msra.mxu0 0
      %1452 = vmatprep.subr.bf16.mxu0 0
      %1453 = vmatpush1.bf16.msra.mxu0 0
      %1454 = vmatprep.subr.bf16.mxu0 0
      %1455 = vmatpush1.bf16.msra.mxu0 0
      %1456 = vmatprep.subr.bf16.mxu0 0
      %1457 = vmatpush1.bf16.msra.mxu0 0
      %1458 = vmatprep.subr.bf16.mxu0 0
      %1459 = vmatpush1.bf16.msra.mxu0 0
      %1460 = vmatprep.subr.bf16.mxu0 0
      %1461 = vmatpush1.bf16.msra.mxu0 0
      %1462 = vmatprep.subr.bf16.mxu0 0
      %1463 = vmatpush1.bf16.msra.mxu0 0
      %1464 = vmatprep.subr.bf16.mxu0 0
      %1465 = vmatpush1.bf16.msra.mxu0 0
      %1466 = vmatprep.mubr.bf16.mxu0 0
      %1467 = vmatmul.mubr.bf16.gmra.mrb[0].mxu0 %v1420
      %v1468 = vpop.f32.mrb[0].mxu0
      %v1469 = vadd.f32 0.0, %v1468
      %v1470 = vpop.f32.mrb[0].mxu0
      %v1471 = vpop.f32.mrb[0].mxu0
      %v1472 = vadd.f32 0.0, %v1471
      %v1473 = vpop.f32.mrb[0].mxu0
      %1474 = vmatprep.mubr.bf16.mxu0 0
      %1475 = vmatmul.mubr.bf16.gmra.mrb[0].mxu0 %v1423
      %v1476 = vpop.f32.mrb[0].mxu0
      %v1477 = vadd.f32 0.0, %v1476
      %v1478 = vpop.f32.mrb[0].mxu0
      %v1479 = vpop.f32.mrb[0].mxu0
      %v1480 = vadd.f32 0.0, %v1479
      %v1481 = vpop.f32.mrb[0].mxu0
      %1482 = vmatprep.mubr.bf16.mxu0 0
      %1483 = vmatmul.mubr.bf16.gmra.mrb[0].mxu0 %v1426
      %v1484 = vpop.f32.mrb[0].mxu0
      %v1485 = vadd.f32 0.0, %v1484
      %v1486 = vpop.f32.mrb[0].mxu0
      %v1487 = vpop.f32.mrb[0].mxu0
      %v1488 = vadd.f32 0.0, %v1487
      %v1489 = vpop.f32.mrb[0].mxu0
      %1490 = vmatprep.mubr.bf16.mxu0 0
      %1491 = vmatmul.mubr.bf16.gmra.mrb[0].mxu0 %v1429
      %v1492 = vpop.f32.mrb[0].mxu0
      %v1493 = vadd.f32 0.0, %v1492
      %v1494 = vpop.f32.mrb[0].mxu0
      %v1495 = vpop.f32.mrb[0].mxu0
      %v1496 = vadd.f32 0.0, %v1495
      %v1497 = vpop.f32.mrb[0].mxu0
      %1498 = vmatprep.mubr.bf16.mxu0 0
      %1499 = vmatmul.mubr.bf16.gmra.mrb[0].mxu0 %v1432
      %v1500 = vpop.f32.mrb[0].mxu0
      %v1501 = vadd.f32 0.0, %v1500
      %v1502 = vpop.f32.mrb[0].mxu0
      %v1503 = vpop.f32.mrb[0].mxu0
      %v1504 = vadd.f32 0.0, %v1503
      %v1505 = vpop.f32.mrb[0].mxu0
      %1506 = vdwg.mxu0
      %v1507 = vadd.f32 %v1326, %v1469
      %v1508 = vadd.f32 %v1327, %v1472
      %v1509 = vadd.f32 %v1328, %v1477
      %v1510 = vadd.f32 %v1329, %v1480
      %v1511 = vadd.f32 %v1330, %v1485
      %v1512 = vadd.f32 %v1331, %v1488
      %v1513 = vadd.f32 %v1332, %v1493
      %v1514 = vadd.f32 %v1333, %v1496
      %v1515 = vadd.f32 %v1334, %v1501
      %v1516 = vadd.f32 %v1335, %v1504
      %v1517 = vld [vmem:[%s219 + $0x8] sm:$0x8]
      %s1518 = scalar_lea.vmem %s1, 192
      %v1519 = vld [vmem:[%s1518] sm:$0xf]
      %v1520 = vld [vmem:[%s1518 + $0x4] sm:$0xf]
      %v1521 = vld [vmem:[%s1518 + $0x8] sm:$0xf]
      %v1522 = vld [vmem:[%s1518 + $0xc] sm:$0xf]
      %v1523 = vld [vmem:[%s1518 + $0x10] sm:$0xf]
      %v1524 = vld [vmem:[%s1518 + $0x14] sm:$0xf]
      %v1526 = vunpack.c.l.b16 %v1517
      %v1527 = vpack.c.b16 %v1193, %v1526
      %vm1528 = vcmask 1044480
      %v1529 = vrot.slane %v1527, 3
      %v1530 = vrot.slane %v1204, 3
      %v1531 = vsel %vm1528, %v1529, %v1530
      %v1532 = vrot.slane %v1205, 3
      %v1533 = vsel %vm1528, %v1530, %v1532
      %v1534 = vrot.slane %v1206, 3
      %v1535 = vsel %vm1528, %v1532, %v1534
      %v1536 = vrot.slane %v1207, 3
      %v1537 = vsel %vm1528, %v1534, %v1536
      %v1538 = vrot.slane %v1346, 3
      %v1539 = vsel %vm1528, %v1536, %v1538
      %v1546 = vunpack.c.l.b16 %v1519
      %v1547 = vunpack.c.l.b16 %v1520
      %v1548 = vunpack.c.l.b16 %v1521
      %v1549 = vunpack.c.l.b16 %v1522
      %v1550 = vunpack.c.l.b16 %v1523
      %v1551 = vunpack.c.l.b16 %v1524
      %v1552 = vpack.c.b16 %v1547, %v1546
      %v1553 = vpack.c.b16 %v1549, %v1548
      %v1554 = vpack.c.b16 %v1551, %v1550
      %v1559 = vsel %vm341, %v1531, 0
      %v1562 = vsel %vm341, %v1533, 0
      %v1565 = vsel %vm341, %v1535, 0
      %v1568 = vsel %vm341, %v1537, 0
      %v1571 = vsel %vm341, %v1539, 0
      %1573 = vmatprep.subr.bf16.mxu0 0
      %1574 = vmatpush1.bf16.msra.mxu0 %v1552
      %1575 = vmatprep.subr.bf16.mxu0 0
      %1576 = vmatpush1.bf16.msra.mxu0 %v1553
      %1577 = vmatprep.subr.bf16.mxu0 0
      %1578 = vmatpush1.bf16.msra.mxu0 %v1554
      %1579 = vmatprep.subr.bf16.mxu0 0
      %1580 = vmatpush1.bf16.msra.mxu0 0
      %1581 = vmatprep.subr.bf16.mxu0 0
      %1582 = vmatpush1.bf16.msra.mxu0 0
      %1583 = vmatprep.subr.bf16.mxu0 0
      %1584 = vmatpush1.bf16.msra.mxu0 0
      %1585 = vmatprep.subr.bf16.mxu0 0
      %1586 = vmatpush1.bf16.msra.mxu0 0
      %1587 = vmatprep.subr.bf16.mxu0 0
      %1588 = vmatpush1.bf16.msra.mxu0 0
      %1589 = vmatprep.subr.bf16.mxu0 0
      %1590 = vmatpush1.bf16.msra.mxu0 0
      %1591 = vmatprep.subr.bf16.mxu0 0
      %1592 = vmatpush1.bf16.msra.mxu0 0
      %1593 = vmatprep.subr.bf16.mxu0 0
      %1594 = vmatpush1.bf16.msra.mxu0 0
      %1595 = vmatprep.subr.bf16.mxu0 0
      %1596 = vmatpush1.bf16.msra.mxu0 0
      %1597 = vmatprep.subr.bf16.mxu0 0
      %1598 = vmatpush1.bf16.msra.mxu0 0
      %1599 = vmatprep.subr.bf16.mxu0 0
      %1600 = vmatpush1.bf16.msra.mxu0 0
      %1601 = vmatprep.subr.bf16.mxu0 0
      %1602 = vmatpush1.bf16.msra.mxu0 0
      %1603 = vmatprep.subr.bf16.mxu0 0
      %1604 = vmatpush1.bf16.msra.mxu0 0
      %1605 = vmatprep.mubr.bf16.mxu0 0
      %1606 = vmatmul.mubr.bf16.gmra.mrb[0].mxu0 %v1559
      %v1607 = vpop.f32.mrb[0].mxu0
      %v1608 = vadd.f32 0.0, %v1607
      %v1609 = vpop.f32.mrb[0].mxu0
      %v1610 = vpop.f32.mrb[0].mxu0
      %v1611 = vadd.f32 0.0, %v1610
      %v1612 = vpop.f32.mrb[0].mxu0
      %1613 = vmatprep.mubr.bf16.mxu0 0
      %1614 = vmatmul.mubr.bf16.gmra.mrb[0].mxu0 %v1562
      %v1615 = vpop.f32.mrb[0].mxu0
      %v1616 = vadd.f32 0.0, %v1615
      %v1617 = vpop.f32.mrb[0].mxu0
      %v1618 = vpop.f32.mrb[0].mxu0
      %v1619 = vadd.f32 0.0, %v1618
      %v1620 = vpop.f32.mrb[0].mxu0
      %1621 = vmatprep.mubr.bf16.mxu0 0
      %1622 = vmatmul.mubr.bf16.gmra.mrb[0].mxu0 %v1565
      %v1623 = vpop.f32.mrb[0].mxu0
      %v1624 = vadd.f32 0.0, %v1623
      %v1625 = vpop.f32.mrb[0].mxu0
      %v1626 = vpop.f32.mrb[0].mxu0
      %v1627 = vadd.f32 0.0, %v1626
      %v1628 = vpop.f32.mrb[0].mxu0
      %1629 = vmatprep.mubr.bf16.mxu0 0
      %1630 = vmatmul.mubr.bf16.gmra.mrb[0].mxu0 %v1568
      %v1631 = vpop.f32.mrb[0].mxu0
      %v1632 = vadd.f32 0.0, %v1631
      %v1633 = vpop.f32.mrb[0].mxu0
      %v1634 = vpop.f32.mrb[0].mxu0
      %v1635 = vadd.f32 0.0, %v1634
      %v1636 = vpop.f32.mrb[0].mxu0
      %1637 = vmatprep.mubr.bf16.mxu0 0
      %1638 = vmatmul.mubr.bf16.gmra.mrb[0].mxu0 %v1571
      %v1639 = vpop.f32.mrb[0].mxu0
      %v1640 = vadd.f32 0.0, %v1639
      %v1641 = vpop.f32.mrb[0].mxu0
      %v1642 = vpop.f32.mrb[0].mxu0
      %v1643 = vadd.f32 0.0, %v1642
      %v1644 = vpop.f32.mrb[0].mxu0
      %1645 = vdwg.mxu0
      %v1646 = vadd.f32 %v1507, %v1608
      %v1647 = vadd.f32 %v1508, %v1611
      %v1648 = vadd.f32 %v1509, %v1616
      %v1649 = vadd.f32 %v1510, %v1619
      %v1650 = vadd.f32 %v1511, %v1624
      %v1651 = vadd.f32 %v1512, %v1627
      %v1652 = vadd.f32 %v1513, %v1632
      %v1653 = vadd.f32 %v1514, %v1635
      %v1654 = vadd.f32 %v1515, %v1640
      %v1655 = vadd.f32 %v1516, %v1643
      %v1656 = vld [vmem:[%s2] sm:$0x1]
      %v1658 = vlaneseq
      %v1659 = vshrl.u32 %v1658, 7
      %v1660 = vsub.s32 0, %v1659
      %v1661 = vrot.slane %v1656, %v1660
      %v1663 = vadd.f32 %v1646, %v1661
      %v1664 = vadd.f32 %v1647, %v1661
      %v1665 = vadd.f32 %v1648, %v1661
      %v1666 = vadd.f32 %v1649, %v1661
      %v1667 = vadd.f32 %v1650, %v1661
      %v1668 = vadd.f32 %v1651, %v1661
      %v1669 = vadd.f32 %v1652, %v1661
      %v1670 = vadd.f32 %v1653, %v1661
      %v1671 = vadd.f32 %v1654, %v1661
      %v1672 = vadd.f32 %v1655, %v1661
      %v1673 = vmul.f32 %v1663, 0.5
      %v1674 = vmul.f32 %v1664, 0.5
      %v1675 = vmul.f32 %v1665, 0.5
      %v1676 = vmul.f32 %v1666, 0.5
      %v1677 = vmul.f32 %v1667, 0.5
      %v1678 = vmul.f32 %v1668, 0.5
      %v1679 = vmul.f32 %v1669, 0.5
      %v1680 = vmul.f32 %v1670, 0.5
      %v1681 = vmul.f32 %v1671, 0.5
      %v1682 = vmul.f32 %v1672, 0.5
      %v1683 = vmul.f32 %v1663, 0.70710677
      %v1684 = vmul.f32 %v1664, 0.70710677
      %v1685 = vmul.f32 %v1665, 0.70710677
      %v1686 = vmul.f32 %v1666, 0.70710677
      %v1687 = vmul.f32 %v1667, 0.70710677
      %v1688 = vmul.f32 %v1668, 0.70710677
      %v1689 = vmul.f32 %v1669, 0.70710677
      %v1690 = vmul.f32 %v1670, 0.70710677
      %v1691 = vmul.f32 %v1671, 0.70710677
      %v1692 = vmul.f32 %v1672, 0.70710677
      %v1693 = verf.f32.pop %v1683
      %v1694 = verf.f32.pop %v1684
      %v1695 = verf.f32.pop %v1685
      %v1696 = verf.f32.pop %v1686
      %v1697 = verf.f32.pop %v1687
      %v1698 = verf.f32.pop %v1688
      %v1699 = verf.f32.pop %v1689
      %v1700 = verf.f32.pop %v1690
      %v1701 = verf.f32.pop %v1691
      %v1702 = verf.f32.pop %v1692
      %v1703 = vadd.f32 %v1693, 1.0
      %v1704 = vadd.f32 %v1694, 1.0
      %v1705 = vadd.f32 %v1695, 1.0
      %v1706 = vadd.f32 %v1696, 1.0
      %v1707 = vadd.f32 %v1697, 1.0
      %v1708 = vadd.f32 %v1698, 1.0
      %v1709 = vadd.f32 %v1699, 1.0
      %v1710 = vadd.f32 %v1700, 1.0
      %v1711 = vadd.f32 %v1701, 1.0
      %v1712 = vadd.f32 %v1702, 1.0
      %v1713 = vmul.f32 %v1673, %v1703
      %v1714 = vmul.f32 %v1674, %v1704
      %v1715 = vmul.f32 %v1675, %v1705
      %v1716 = vmul.f32 %v1676, %v1706
      %v1717 = vmul.f32 %v1677, %v1707
      %v1718 = vmul.f32 %v1678, %v1708
      %v1719 = vmul.f32 %v1679, %v1709
      %v1720 = vmul.f32 %v1680, %v1710
      %v1721 = vmul.f32 %v1681, %v1711
      %v1722 = vmul.f32 %v1682, %v1712
      %v1723 = vlaneseq
      %v1724 = vand.u32 %v1723, 127
      %vm1725 = vcmp.lt.s32.totalorder %v1724, 48
      %v1726 = vsel %vm1725, 1, 0
      %v1727 = vcvt.s32.f32 %v1726
      %v1728 = vmul.f32 %v1713, %v1727
      %v1729 = vmul.f32 %v1714, %v1727
      %v1730 = vmul.f32 %v1715, %v1727
      %v1731 = vmul.f32 %v1716, %v1727
      %v1732 = vmul.f32 %v1717, %v1727
      %v1733 = vmul.f32 %v1718, %v1727
      %v1734 = vmul.f32 %v1719, %v1727
      %v1735 = vmul.f32 %v1720, %v1727
      %v1736 = vmul.f32 %v1721, %v1727
      %v1737 = vmul.f32 %v1722, %v1727
      %1738 = vadd.xlane.f32.xlu0 %v1728
      %v1739 = vpop.xlane.xlu0 %1738
      %1740 = vadd.xlane.f32.xlu0 %v1729
      %v1741 = vpop.xlane.xlu0 %1740
      %1742 = vadd.xlane.f32.xlu0 %v1730
      %v1743 = vpop.xlane.xlu0 %1742
      %1744 = vadd.xlane.f32.xlu0 %v1731
      %v1745 = vpop.xlane.xlu0 %1744
      %1746 = vadd.xlane.f32.xlu0 %v1732
      %v1747 = vpop.xlane.xlu0 %1746
      %1748 = vadd.xlane.f32.xlu0 %v1733
      %v1749 = vpop.xlane.xlu0 %1748
      %1750 = vadd.xlane.f32.xlu0 %v1734
      %v1751 = vpop.xlane.xlu0 %1750
      %1752 = vadd.xlane.f32.xlu0 %v1735
      %v1753 = vpop.xlane.xlu0 %1752
      %1754 = vadd.xlane.f32.xlu0 %v1736
      %v1755 = vpop.xlane.xlu0 %1754
      %1756 = vadd.xlane.f32.xlu0 %v1737
      %v1757 = vpop.xlane.xlu0 %1756
      %v1758 = vmul.f32 %v1739, 0.020833334
      %v1759 = vmul.f32 %v1741, 0.020833334
      %v1760 = vmul.f32 %v1743, 0.020833334
      %v1761 = vmul.f32 %v1745, 0.020833334
      %v1762 = vmul.f32 %v1747, 0.020833334
      %v1763 = vmul.f32 %v1749, 0.020833334
      %v1764 = vmul.f32 %v1751, 0.020833334
      %v1765 = vmul.f32 %v1753, 0.020833334
      %v1766 = vmul.f32 %v1755, 0.020833334
      %v1767 = vmul.f32 %v1757, 0.020833334
      %v1768 = vsub.f32 %v1713, %v1758
      %v1769 = vsub.f32 %v1714, %v1759
      %v1770 = vsub.f32 %v1715, %v1760
      %v1771 = vsub.f32 %v1716, %v1761
      %v1772 = vsub.f32 %v1717, %v1762
      %v1773 = vsub.f32 %v1718, %v1763
      %v1774 = vsub.f32 %v1719, %v1764
      %v1775 = vsub.f32 %v1720, %v1765
      %v1776 = vsub.f32 %v1721, %v1766
      %v1777 = vsub.f32 %v1722, %v1767
      %v1778 = vmul.f32 %v1768, %v1727
      %v1779 = vmul.f32 %v1769, %v1727
      %v1780 = vmul.f32 %v1770, %v1727
      %v1781 = vmul.f32 %v1771, %v1727
      %v1782 = vmul.f32 %v1772, %v1727
      %v1783 = vmul.f32 %v1773, %v1727
      %v1784 = vmul.f32 %v1774, %v1727
      %v1785 = vmul.f32 %v1775, %v1727
      %v1786 = vmul.f32 %v1776, %v1727
      %v1787 = vmul.f32 %v1777, %v1727
      %v1788 = vmul.f32 %v1778, %v1778
      %v1789 = vmul.f32 %v1779, %v1779
      %v1790 = vmul.f32 %v1780, %v1780
      %v1791 = vmul.f32 %v1781, %v1781
      %v1792 = vmul.f32 %v1782, %v1782
      %v1793 = vmul.f32 %v1783, %v1783
      %v1794 = vmul.f32 %v1784, %v1784
      %v1795 = vmul.f32 %v1785, %v1785
      %v1796 = vmul.f32 %v1786, %v1786
      %v1797 = vmul.f32 %v1787, %v1787
      %1798 = vadd.xlane.f32.xlu0 %v1788
      %v1799 = vpop.xlane.xlu0 %1798
      %1800 = vadd.xlane.f32.xlu0 %v1789
      %v1801 = vpop.xlane.xlu0 %1800
      %1802 = vadd.xlane.f32.xlu0 %v1790
      %v1803 = vpop.xlane.xlu0 %1802
      %1804 = vadd.xlane.f32.xlu0 %v1791
      %v1805 = vpop.xlane.xlu0 %1804
      %1806 = vadd.xlane.f32.xlu0 %v1792
      %v1807 = vpop.xlane.xlu0 %1806
      %1808 = vadd.xlane.f32.xlu0 %v1793
      %v1809 = vpop.xlane.xlu0 %1808
      %1810 = vadd.xlane.f32.xlu0 %v1794
      %v1811 = vpop.xlane.xlu0 %1810
      %1812 = vadd.xlane.f32.xlu0 %v1795
      %v1813 = vpop.xlane.xlu0 %1812
      %1814 = vadd.xlane.f32.xlu0 %v1796
      %v1815 = vpop.xlane.xlu0 %1814
      %1816 = vadd.xlane.f32.xlu0 %v1797
      %v1817 = vpop.xlane.xlu0 %1816
      %v1818 = vmul.f32 %v1799, 0.020833334
      %v1819 = vmul.f32 %v1801, 0.020833334
      %v1820 = vmul.f32 %v1803, 0.020833334
      %v1821 = vmul.f32 %v1805, 0.020833334
      %v1822 = vmul.f32 %v1807, 0.020833334
      %v1823 = vmul.f32 %v1809, 0.020833334
      %v1824 = vmul.f32 %v1811, 0.020833334
      %v1825 = vmul.f32 %v1813, 0.020833334
      %v1826 = vmul.f32 %v1815, 0.020833334
      %v1827 = vmul.f32 %v1817, 0.020833334
      %v1828 = vadd.f32 %v1818, 1e-05
      %v1829 = vadd.f32 %v1819, 1e-05
      %v1830 = vadd.f32 %v1820, 1e-05
      %v1831 = vadd.f32 %v1821, 1e-05
      %v1832 = vadd.f32 %v1822, 1e-05
      %v1833 = vadd.f32 %v1823, 1e-05
      %v1834 = vadd.f32 %v1824, 1e-05
      %v1835 = vadd.f32 %v1825, 1e-05
      %v1836 = vadd.f32 %v1826, 1e-05
      %v1837 = vadd.f32 %v1827, 1e-05
      %v1838 = vrsqrt.pop %v1828
      %v1839 = vrsqrt.pop %v1829
      %v1840 = vrsqrt.pop %v1830
      %v1841 = vrsqrt.pop %v1831
      %v1842 = vrsqrt.pop %v1832
      %v1843 = vrsqrt.pop %v1833
      %v1844 = vrsqrt.pop %v1834
      %v1845 = vrsqrt.pop %v1835
      %v1846 = vrsqrt.pop %v1836
      %v1847 = vrsqrt.pop %v1837
      %v1848 = vmul.f32 %v1778, %v1838
      %v1849 = vmul.f32 %v1779, %v1839
      %v1850 = vmul.f32 %v1780, %v1840
      %v1851 = vmul.f32 %v1781, %v1841
      %v1852 = vmul.f32 %v1782, %v1842
      %v1853 = vmul.f32 %v1783, %v1843
      %v1854 = vmul.f32 %v1784, %v1844
      %v1855 = vmul.f32 %v1785, %v1845
      %v1856 = vmul.f32 %v1786, %v1846
      %v1857 = vmul.f32 %v1787, %v1847
      %v1858 = vld [vmem:[%s3] sm:$0x1]
      %v1860 = vlaneseq
      %v1861 = vshrl.u32 %v1860, 7
      %v1862 = vsub.s32 0, %v1861
      %v1863 = vrot.slane %v1858, %v1862
      %v1865 = vmul.f32 %v1848, %v1863
      %v1866 = vmul.f32 %v1849, %v1863
      %v1867 = vmul.f32 %v1850, %v1863
      %v1868 = vmul.f32 %v1851, %v1863
      %v1869 = vmul.f32 %v1852, %v1863
      %v1870 = vmul.f32 %v1853, %v1863
      %v1871 = vmul.f32 %v1854, %v1863
      %v1872 = vmul.f32 %v1855, %v1863
      %v1873 = vmul.f32 %v1856, %v1863
      %v1874 = vmul.f32 %v1857, %v1863
      %v1875 = vld [vmem:[%s4] sm:$0x1]
      %v1877 = vlaneseq
      %v1878 = vshrl.u32 %v1877, 7
      %v1879 = vsub.s32 0, %v1878
      %v1880 = vrot.slane %v1875, %v1879
      %v1882 = vadd.f32 %v1865, %v1880
      %v1883 = vadd.f32 %v1866, %v1880
      %v1884 = vadd.f32 %v1867, %v1880
      %v1885 = vadd.f32 %v1868, %v1880
      %v1886 = vadd.f32 %v1869, %v1880
      %v1887 = vadd.f32 %v1870, %v1880
      %v1888 = vadd.f32 %v1871, %v1880
      %v1889 = vadd.f32 %v1872, %v1880
      %v1890 = vadd.f32 %v1873, %v1880
      %v1891 = vadd.f32 %v1874, %v1880
      %1892 = vst [vmem:[%s224] sm:$0xff] %v1882
      %1893 = vst [vmem:[%s224 + $0x8] sm:$0xff] %v1883
      %1894 = vst [vmem:[%s224 + $0x10] sm:$0xff] %v1884
      %1895 = vst [vmem:[%s224 + $0x18] sm:$0xff] %v1885
      %1896 = vst [vmem:[%s224 + $0x20] sm:$0xff] %v1886
      %1897 = vst [vmem:[%s224 + $0x28] sm:$0xff] %v1887
      %1898 = vst [vmem:[%s224 + $0x30] sm:$0xff] %v1888
      %1899 = vst [vmem:[%s224 + $0x38] sm:$0xff] %v1889
      %1900 = vst [vmem:[%s224 + $0x40] sm:$0xff] %v1890
      %1901 = vst [vmem:[%s224 + $0x48] sm:$0xff] %v1891
      %p1902 = scmp.lt.s32.totalorder %s16, 1
      %s1903 = scalar_select %p1902, %s16, 1
      %s1904 = smul.addr %s1903, 10
      %s1905 = smul.addr %s1904, 8
      %s1906 = scalar_lea.vmem %s5, %s1905
      // Predicated region
      $region41: #{patch_embed_forward.5} parent=39 // pred_check
        %p1907 = pneg %p144
      $region42: #{patch_embed_forward.5} parent=39 // pred_check_branch
        %1909 = sbr.rel (%p1907) target = $region44
      $region43: #{patch_embed_forward.5} parent=39 // pred_region
        _
      $region44: #{patch_embed_forward.5} parent=39 // pred_fallthru
        _
    $region40: #{patch_embed_forward.5} parent=5 // pred_fallthru
      _
    %p1910 = scmp.le.s32.totalorder 2, %s11
    // Predicated region
    $region45: #{patch_embed_forward.5} parent=5 // pred_check
      %p1911 = pneg %p1910
    $region46: #{patch_embed_forward.5} parent=5 // pred_check_branch
      %1913 = sbr.rel (%p1911) target = $region48
    $region47: #{patch_embed_forward.5} parent=5 // pred_region
      %s1914 = ssub.s32 %s11, 2
      // Predicated region
      $region49: #{patch_embed_forward.5} parent=47 // pred_check
        %p1915 = pneg %p150
      $region50: #{patch_embed_forward.5} parent=47 // pred_check_branch
        %1917 = sbr.rel (%p1915) target = $region52
      $region51: #{patch_embed_forward.5} parent=47 // pred_region
        %p1918 = scmp.lt.s32.totalorder %s17, 1
        %s1919 = scalar_select %p1918, %s17, 1
        %s1920 = smul.addr %s1919, 10
        %s1921 = smul.addr %s1920, 8
        %s1922 = scalar_lea.vmem %s5, %s1921
      $region52: #{patch_embed_forward.5} parent=47 // pred_fallthru
        _
    $region48: #{patch_embed_forward.5} parent=5 // pred_fallthru
      _
  $region6: #{patch_embed_forward.5} parent=0 // loop_footer
    %s15 = sadd.s32 1, %s11
  $region7: #{patch_embed_forward.5} parent=0 // loop_footer_branch
    %10 = sbr.rel target = $region3
  $region8: #{patch_embed_forward.5} parent=0 // loop_exit
    _

// kernel: patch_embed_forward.6
$region0: #{patch_embed_forward.6}
  #allocation0 [shape = 'u32[]', space=smem, size = 0x4, offset = 0x4, fixed_abs, tag = 'smem constant byte address 0x4 - core index']
  #allocation1 [shape = 'u32[144,128]{1,0:T(1,128)}', space=vmem, size = 0x12000, scoped, tag = 'internal scratch']
  %s0 = inlined_call_operand.vmem [shape: bf16[2,4,30,48], index: 0, kind: input, shape index: {}]
  %s1 = inlined_call_operand.vmem [shape: bf16[9,48,128], index: 1, kind: input, shape index: {}]
  %s2 = inlined_call_operand.vmem [shape: f32[1,128], index: 2, kind: input, shape index: {}]
  %s3 = inlined_call_operand.vmem [shape: f32[1,128], index: 3, kind: input, shape index: {}]
  %s4 = inlined_call_operand.vmem [shape: f32[1,128], index: 4, kind: input, shape index: {}]
  %s5 = inlined_call_operand.vmem [shape: f32[2,20,128], index: 5, kind: output, shape index: {}]
  %s6 = sld [smem:[#allocation0]]
  $region53: #{patch_embed_forward.6} parent=0
    _
  %s8 = ssub.s32 1, %s6
  %s9 = scalar_select 0, %s8, %s6
  loop: start=0, step=1, limit=4
  $region2: #{patch_embed_forward.6} parent=0 // loop_pre_header
    _
  $region3: #{patch_embed_forward.6} parent=0 // loop_header
    %s11 = sphi 0, %s15
    %p12 = scmp.ge.s32.totalorder %s11, 4
    %s21 = sphi 0, %s23
    %s24 = sphi 0, %s21
    %s25 = sphi 0, %s24
    %s41 = sphi 0, %s25
    %s45 = sphi 0, %s45
    %s47 = sphi 0, %s45
    %s48 = sphi 0, %s47
    %s62 = sphi 0, %s48
    %s66 = sphi 0, %s66
    %s68 = sphi 0, %s66
    %s69 = sphi 0, %s68
    %s83 = sphi 0, %s69
    %s87 = sphi 0, %s87
    %s89 = sphi 0, %s87
    %s90 = sphi 0, %s89
    %s104 = sphi 0, %s90
    %s108 = sphi 0, %s108
    %s110 = sphi 0, %s108
    %s111 = sphi 0, %s110
    %s125 = sphi 0, %s111
    %s131 = sphi 0, %s133
    %s134 = sphi 0, %s131
    %s135 = sphi 0, %s134
    %s151 = sphi 0, %s135
  $region4: #{patch_embed_forward.6} parent=0 // loop_header_branch
    %14 = sbr.rel (%p12) target = $region8
  $region5: #{patch_embed_forward.6} parent=0 // loop_body
    %s16 = ssub.s32 %s11, 1
    %s17 = ssub.s32 %s11, 2
    %s18 = sadd.s32 %s11, 1
    %s19 = ssub.s32 %s11, %s18
    %p20 = scmp.eq.s32.totalorder %s19, 0
    %s22 = sadd.s32 %s21, 1
    %s23 = scalar_select %p20, %s21, %s22
    %p26 = pneg %p20
    %p27 = scmp.eq.s32.totalorder %s11, 1
    %p28 = por %p26, %p27
    %p29 = scmp.ne.s32.totalorder %s21, %s24
    %p30 = scmp.eq.s32.totalorder %s11, 0
    %p31 = por %p29, %p30
    %p32 = scmp.ne.s32.totalorder %s21, %s24
    %p33 = scmp.eq.s32.totalorder %s16, 1
    %p34 = por %p32, %p33
    %p35 = scmp.ne.s32.totalorder %s24, %s25
    %p36 = scmp.eq.s32.totalorder %s16, 0
    %p37 = por %p35, %p36
    %p38 = scmp.ne.s32.totalorder %s24, %s25
    %p39 = scmp.eq.s32.totalorder %s17, 1
    %p40 = por %p38, %p39
    %p42 = scmp.ne.s32.totalorder %s25, %s41
    %p43 = scmp.eq.s32.totalorder %s17, 0
    %p44 = por %p42, %p43
    %s46 = sadd.s32 %s45, 1
    %p49 = scmp.eq.s32.totalorder %s11, 1
    %p50 = scmp.ne.s32.totalorder %s45, %s47
    %p51 = scmp.eq.s32.totalorder %s11, 0
    %p52 = por %p50, %p51
    %p53 = scmp.ne.s32.totalorder %s45, %s47
    %p54 = scmp.eq.s32.totalorder %s16, 1
    %p55 = por %p53, %p54
    %p56 = scmp.ne.s32.totalorder %s47, %s48
    %p57 = scmp.eq.s32.totalorder %s16, 0
    %p58 = por %p56, %p57
    %p59 = scmp.ne.s32.totalorder %s47, %s48
    %p60 = scmp.eq.s32.totalorder %s17, 1
    %p61 = por %p59, %p60
    %p63 = scmp.ne.s32.totalorder %s48, %s62
    %p64 = scmp.eq.s32.totalorder %s17, 0
    %p65 = por %p63, %p64
    %s67 = sadd.s32 %s66, 1
    %p70 = scmp.eq.s32.totalorder %s11, 1
    %p71 = scmp.ne.s32.totalorder %s66, %s68
    %p72 = scmp.eq.s32.totalorder %s11, 0
    %p73 = por %p71, %p72
    %p74 = scmp.ne.s32.totalorder %s66, %s68
    %p75 = scmp.eq.s32.totalorder %s16, 1
    %p76 = por %p74, %p75
    %p77 = scmp.ne.s32.totalorder %s68, %s69
    %p78 = scmp.eq.s32.totalorder %s16, 0
    %p79 = por %p77, %p78
    %p80 = scmp.ne.s32.totalorder %s68, %s69
    %p81 = scmp.eq.s32.totalorder %s17, 1
    %p82 = por %p80, %p81
    %p84 = scmp.ne.s32.totalorder %s69, %s83
    %p85 = scmp.eq.s32.totalorder %s17, 0
    %p86 = por %p84, %p85
    %s88 = sadd.s32 %s87, 1
    %p91 = scmp.eq.s32.totalorder %s11, 1
    %p92 = scmp.ne.s32.totalorder %s87, %s89
    %p93 = scmp.eq.s32.totalorder %s11, 0
    %p94 = por %p92, %p93
    %p95 = scmp.ne.s32.totalorder %s87, %s89
    %p96 = scmp.eq.s32.totalorder %s16, 1
    %p97 = por %p95, %p96
    %p98 = scmp.ne.s32.totalorder %s89, %s90
    %p99 = scmp.eq.s32.totalorder %s16, 0
    %p100 = por %p98, %p99
    %p101 = scmp.ne.s32.totalorder %s89, %s90
    %p102 = scmp.eq.s32.totalorder %s17, 1
    %p103 = por %p101, %p102
    %p105 = scmp.ne.s32.totalorder %s90, %s104
    %p106 = scmp.eq.s32.totalorder %s17, 0
    %p107 = por %p105, %p106
    %s109 = sadd.s32 %s108, 1
    %p112 = scmp.eq.s32.totalorder %s11, 1
    %p113 = scmp.ne.s32.totalorder %s108, %s110
    %p114 = scmp.eq.s32.totalorder %s11, 0
    %p115 = por %p113, %p114
    %p116 = scmp.ne.s32.totalorder %s108, %s110
    %p117 = scmp.eq.s32.totalorder %s16, 1
    %p118 = por %p116, %p117
    %p119 = scmp.ne.s32.totalorder %s110, %s111
    %p120 = scmp.eq.s32.totalorder %s16, 0
    %p121 = por %p119, %p120
    %p122 = scmp.ne.s32.totalorder %s110, %s111
    %p123 = scmp.eq.s32.totalorder %s17, 1
    %p124 = por %p122, %p123
    %p126 = scmp.ne.s32.totalorder %s111, %s125
    %p127 = scmp.eq.s32.totalorder %s17, 0
    %p128 = por %p126, %p127
    %s129 = ssub.s32 %s11, %s18
    %p130 = scmp.eq.s32.totalorder %s129, 0
    %s132 = sadd.s32 %s131, 1
    %s133 = scalar_select %p130, %s131, %s132
    %p136 = pneg %p130
    %p137 = scmp.eq.s32.totalorder %s11, 1
    %p138 = por %p136, %p137
    %p139 = scmp.ne.s32.totalorder %s131, %s134
    %p140 = scmp.eq.s32.totalorder %s11, 0
    %p141 = por %p139, %p140
    %p142 = scmp.ne.s32.totalorder %s131, %s134
    %p143 = scmp.eq.s32.totalorder %s16, 1
    %p144 = por %p142, %p143
    %p145 = scmp.ne.s32.totalorder %s134, %s135
    %p146 = scmp.eq.s32.totalorder %s16, 0
    %p147 = por %p145, %p146
    %p148 = scmp.ne.s32.totalorder %s134, %s135
    %p149 = scmp.eq.s32.totalorder %s17, 1
    %p150 = por %p148, %p149
    %p152 = scmp.ne.s32.totalorder %s135, %s151
    %p153 = scmp.eq.s32.totalorder %s17, 0
    %p154 = por %p152, %p153
    %p155 = scmp.le.s32.totalorder 1, %s11
    %p156 = scmp.lt.s32.totalorder %s11, 3
    %p157 = pnand %p155, %p156
    %p158 = pneg %p157
    // Predicated region
    $region9: #{patch_embed_forward.6} parent=5 // pred_check
      _
    $region10: #{patch_embed_forward.6} parent=5 // pred_check_branch
      %160 = sbr.rel (%p157) target = $region12
    $region11: #{patch_embed_forward.6} parent=5 // pred_region
      %s161 = ssub.s32 %s11, 1
      // Predicated region
      $region13: #{patch_embed_forward.6} parent=11 // pred_check
        %p162 = pneg %p58
      $region14: #{patch_embed_forward.6} parent=11 // pred_check_branch
        %164 = sbr.rel (%p162) target = $region16
      $region15: #{patch_embed_forward.6} parent=11 // pred_region
        _
      $region16: #{patch_embed_forward.6} parent=11 // pred_fallthru
        _
      // Predicated region
      $region17: #{patch_embed_forward.6} parent=11 // pred_check
        %p165 = pneg %p79
      $region18: #{patch_embed_forward.6} parent=11 // pred_check_branch
        %167 = sbr.rel (%p165) target = $region20
      $region19: #{patch_embed_forward.6} parent=11 // pred_region
        _
      $region20: #{patch_embed_forward.6} parent=11 // pred_fallthru
        _
      // Predicated region
      $region21: #{patch_embed_forward.6} parent=11 // pred_check
        %p168 = pneg %p100
      $region22: #{patch_embed_forward.6} parent=11 // pred_check_branch
        %170 = sbr.rel (%p168) target = $region24
      $region23: #{patch_embed_forward.6} parent=11 // pred_region
        _
      $region24: #{patch_embed_forward.6} parent=11 // pred_fallthru
        _
      // Predicated region
      $region25: #{patch_embed_forward.6} parent=11 // pred_check
        %p171 = pneg %p121
      $region26: #{patch_embed_forward.6} parent=11 // pred_check_branch
        %173 = sbr.rel (%p171) target = $region28
      $region27: #{patch_embed_forward.6} parent=11 // pred_region
        _
      $region28: #{patch_embed_forward.6} parent=11 // pred_fallthru
        _
    $region12: #{patch_embed_forward.6} parent=5 // pred_fallthru
      _
    %p174 = scmp.lt.s32.totalorder %s11, 2
    // Predicated region
    $region29: #{patch_embed_forward.6} parent=5 // pred_check
      %p175 = pneg %p174
    $region30: #{patch_embed_forward.6} parent=5 // pred_check_branch
      %177 = sbr.rel (%p175) target = $region32
    $region31: #{patch_embed_forward.6} parent=5 // pred_region
      // Predicated region
      $region33: #{patch_embed_forward.6} parent=31 // pred_check
        %p178 = pneg %p31
      $region34: #{patch_embed_forward.6} parent=31 // pred_check_branch
        %180 = sbr.rel (%p178) target = $region36
      $region35: #{patch_embed_forward.6} parent=31 // pred_region
        %p181 = scmp.lt.s32.totalorder %s11, 1
        %s182 = scalar_select %p181, %s11, 1
        %s183 = smul.addr %s182, 16
        %s184 = smul.addr %s183, 4
        %s185 = scalar_lea.vmem %s0, %s184
      $region36: #{patch_embed_forward.6} parent=31 // pred_fallthru
        _
    $region32: #{patch_embed_forward.6} parent=5 // pred_fallthru
      _
    %p186 = scmp.le.s32.totalorder 1, %s11
    %p187 = scmp.lt.s32.totalorder %s11, 3
    %p188 = pnand %p186, %p187
    %p189 = pneg %p188
    // Predicated region
    $region37: #{patch_embed_forward.6} parent=5 // pred_check
      _
    $region38: #{patch_embed_forward.6} parent=5 // pred_check_branch
      %191 = sbr.rel (%p188) target = $region40
    $region39: #{patch_embed_forward.6} parent=5 // pred_region
      %s192 = ssub.s32 %s11, 1
      %p193 = scmp.lt.s32.totalorder %s16, 1
      %s194 = scalar_select %p193, %s16, 1
      %s195 = smul.addr %s194, 16
      %s196 = smul.addr %s195, 4
      %s197 = scalar_lea.vmem %s0, %s196
      %p198 = pneg %p37
      %p199 = pneg %p34
      %p200 = pneg %p58
      %p201 = pneg %p55
      %p202 = pneg %p79
      %p203 = pneg %p76
      %p204 = pneg %p100
      %p205 = pneg %p97
      %p206 = pneg %p121
      %p207 = pneg %p118
      %p208 = pneg %p147
      %p209 = pneg %p144
      %p210 = scmp.lt.s32.totalorder %s16, 1
      %s211 = scalar_select %p210, %s16, 1
      %s212 = smul.addr %s211, 3
      %s213 = smul.addr %s212, 8
      %s214 = scalar_lea.vmem %s5, %s213
      %p215 = scmp.lt.s32.totalorder %s16, 1
      %s216 = scalar_select %p215, %s16, 1
      %s217 = smul.addr %s216, 16
      %s218 = smul.addr %s217, 4
      %s219 = scalar_lea.vmem %s0, %s218
      %p220 = scmp.lt.s32.totalorder %s16, 1
      %s221 = scalar_select %p220, %s16, 1
      %s222 = smul.addr %s221, 3
      %s223 = smul.addr %s222, 8
      %s224 = scalar_lea.vmem %s5, %s223
      %v226 = vld [vmem:[%s219] sm:$0xf]
      %v227 = vld [vmem:[%s219 + $0x4] sm:$0xf]
      %v228 = vld [vmem:[%s219 + $0x8] sm:$0x3]
      %v229 = vld [vmem:[%s1] sm:$0xf]
      %v230 = vld [vmem:[%s1 + $0x4] sm:$0xf]
      %v231 = vld [vmem:[%s1 + $0x8] sm:$0xf]
      %v232 = vld [vmem:[%s1 + $0xc] sm:$0xf]
      %v233 = vld [vmem:[%s1 + $0x10] sm:$0xf]
      %v234 = vld [vmem:[%s1 + $0x14] sm:$0xf]
      %s235 = scalar_lea.vmem %s219, 16
      %v236 = vld [vmem:[%s235] sm:$0xf]
      %v237 = vld [vmem:[%s235 + $0x4] sm:$0xf]
      %v238 = vld [vmem:[%s235 + $0x8] sm:$0x3]
      %s239 = scalar_lea.vmem %s1, 24
      %v240 = vld [vmem:[%s239] sm:$0xf]
      %v241 = vld [vmem:[%s239 + $0x4] sm:$0xf]
      %v242 = vld [vmem:[%s239 + $0x8] sm:$0xf]
      %v243 = vld [vmem:[%s239 + $0xc] sm:$0xf]
      %v244 = vld [vmem:[%s239 + $0x10] sm:$0xf]
      %v245 = vld [vmem:[%s239 + $0x14] sm:$0xf]
      %v249 = vunpack.c.l.b16 %v236
      %v250 = vunpack.c.l.b16 %v237
      %v251 = vunpack.c.l.b16 %v238
      %v252 = vpack.c.b16 %v250, %v249
      %v253 = vpack.c.b16 %v251, %v251
      %v260 = vunpack.c.l.b16 %v240
      %v261 = vunpack.c.l.b16 %v241
      %v262 = vunpack.c.l.b16 %v242
      %v263 = vunpack.c.l.b16 %v243
      %v264 = vunpack.c.l.b16 %v244
      %v265 = vunpack.c.l.b16 %v245
      %v266 = vpack.c.b16 %v261, %v260
      %v267 = vpack.c.b16 %v263, %v262
      %v268 = vpack.c.b16 %v265, %v264
      %vm272 = vcmask 392192
      %v274 = vsel %vm272, %v252, 0
      %v277 = vsel %vm272, %v253, 0
      %279 = vmatprep.subr.bf16.mxu0 0
      %280 = vmatpush1.bf16.msra.mxu0 %v266
      %281 = vmatprep.subr.bf16.mxu0 0
      %282 = vmatpush1.bf16.msra.mxu0 %v267
      %283 = vmatprep.subr.bf16.mxu0 0
      %284 = vmatpush1.bf16.msra.mxu0 %v268
      %285 = vmatprep.subr.bf16.mxu0 0
      %286 = vmatpush1.bf16.msra.mxu0 0
      %287 = vmatprep.subr.bf16.mxu0 0
      %288 = vmatpush1.bf16.msra.mxu0 0
      %289 = vmatprep.subr.bf16.mxu0 0
      %290 = vmatpush1.bf16.msra.mxu0 0
      %291 = vmatprep.subr.bf16.mxu0 0
      %292 = vmatpush1.bf16.msra.mxu0 0
      %293 = vmatprep.subr.bf16.mxu0 0
      %294 = vmatpush1.bf16.msra.mxu0 0
      %295 = vmatprep.subr.bf16.mxu0 0
      %296 = vmatpush1.bf16.msra.mxu0 0
      %297 = vmatprep.subr.bf16.mxu0 0
      %298 = vmatpush1.bf16.msra.mxu0 0
      %299 = vmatprep.subr.bf16.mxu0 0
      %300 = vmatpush1.bf16.msra.mxu0 0
      %301 = vmatprep.subr.bf16.mxu0 0
      %302 = vmatpush1.bf16.msra.mxu0 0
      %303 = vmatprep.subr.bf16.mxu0 0
      %304 = vmatpush1.bf16.msra.mxu0 0
      %305 = vmatprep.subr.bf16.mxu0 0
      %306 = vmatpush1.bf16.msra.mxu0 0
      %307 = vmatprep.subr.bf16.mxu0 0
      %308 = vmatpush1.bf16.msra.mxu0 0
      %309 = vmatprep.subr.bf16.mxu0 0
      %310 = vmatpush1.bf16.msra.mxu0 0
      %311 = vmatprep.mubr.bf16.mxu0 0
      %312 = vmatmul.mubr.bf16.gmra.mrb[0].mxu0 %v274
      %v313 = vpop.f32.mrb[0].mxu0
      %v314 = vadd.f32 0.0, %v313
      %v315 = vpop.f32.mrb[0].mxu0
      %v316 = vpop.f32.mrb[0].mxu0
      %v317 = vadd.f32 0.0, %v316
      %v318 = vpop.f32.mrb[0].mxu0
      %319 = vmatprep.mubr.bf16.mxu0 0
      %320 = vmatmul.mubr.bf16.gmra.mrb[0].mxu0 %v277
      %v321 = vpop.f32.mrb[0].mxu0
      %v322 = vadd.f32 0.0, %v321
      %v323 = vpop.f32.mrb[0].mxu0
      %v324 = vpop.f32.mrb[0].mxu0
      %v325 = vpop.f32.mrb[0].mxu0
      %326 = vdwg.mxu0
      %v330 = vunpack.c.l.b16 %v226
      %v331 = vunpack.c.l.b16 %v227
      %v332 = vunpack.c.l.b16 %v228
      %v333 = vpack.c.b16 %v331, %v330
      %v334 = vpack.c.b16 %v332, %v332
      %v341 = vunpack.c.l.b16 %v229
      %v342 = vunpack.c.l.b16 %v230
      %v343 = vunpack.c.l.b16 %v231
      %v344 = vunpack.c.l.b16 %v232
      %v345 = vunpack.c.l.b16 %v233
      %v346 = vunpack.c.l.b16 %v234
      %v347 = vpack.c.b16 %v342, %v341
      %v348 = vpack.c.b16 %v344, %v343
      %v349 = vpack.c.b16 %v346, %v345
      %v354 = vsel %vm272, %v333, 0
      %v357 = vsel %vm272, %v334, 0
      %359 = vmatprep.subr.bf16.mxu0 0
      %360 = vmatpush1.bf16.msra.mxu0 %v347
      %361 = vmatprep.subr.bf16.mxu0 0
      %362 = vmatpush1.bf16.msra.mxu0 %v348
      %363 = vmatprep.subr.bf16.mxu0 0
      %364 = vmatpush1.bf16.msra.mxu0 %v349
      %365 = vmatprep.subr.bf16.mxu0 0
      %366 = vmatpush1.bf16.msra.mxu0 0
      %367 = vmatprep.subr.bf16.mxu0 0
      %368 = vmatpush1.bf16.msra.mxu0 0
      %369 = vmatprep.subr.bf16.mxu0 0
      %370 = vmatpush1.bf16.msra.mxu0 0
      %371 = vmatprep.subr.bf16.mxu0 0
      %372 = vmatpush1.bf16.msra.mxu0 0
      %373 = vmatprep.subr.bf16.mxu0 0
      %374 = vmatpush1.bf16.msra.mxu0 0
      %375 = vmatprep.subr.bf16.mxu0 0
      %376 = vmatpush1.bf16.msra.mxu0 0
      %377 = vmatprep.subr.bf16.mxu0 0
      %378 = vmatpush1.bf16.msra.mxu0 0
      %379 = vmatprep.subr.bf16.mxu0 0
      %380 = vmatpush1.bf16.msra.mxu0 0
      %381 = vmatprep.subr.bf16.mxu0 0
      %382 = vmatpush1.bf16.msra.mxu0 0
      %383 = vmatprep.subr.bf16.mxu0 0
      %384 = vmatpush1.bf16.msra.mxu0 0
      %385 = vmatprep.subr.bf16.mxu0 0
      %386 = vmatpush1.bf16.msra.mxu0 0
      %387 = vmatprep.subr.bf16.mxu0 0
      %388 = vmatpush1.bf16.msra.mxu0 0
      %389 = vmatprep.subr.bf16.mxu0 0
      %390 = vmatpush1.bf16.msra.mxu0 0
      %391 = vmatprep.mubr.bf16.mxu0 0
      %392 = vmatmul.mubr.bf16.gmra.mrb[0].mxu0 %v354
      %v393 = vpop.f32.mrb[0].mxu0
      %v394 = vadd.f32 %v314, %v393
      %v395 = vpop.f32.mrb[0].mxu0
      %v396 = vpop.f32.mrb[0].mxu0
      %v397 = vadd.f32 %v317, %v396
      %v398 = vpop.f32.mrb[0].mxu0
      %399 = vmatprep.mubr.bf16.mxu0 0
      %400 = vmatmul.mubr.bf16.gmra.mrb[0].mxu0 %v357
      %v401 = vpop.f32.mrb[0].mxu0
      %v402 = vadd.f32 %v322, %v401
      %v403 = vpop.f32.mrb[0].mxu0
      %v404 = vpop.f32.mrb[0].mxu0
      %v405 = vpop.f32.mrb[0].mxu0
      %406 = vdwg.mxu0
      %v407 = vld [vmem:[%s219 + $0x8] sm:$0x7]
      %s408 = scalar_lea.vmem %s1, 48
      %v409 = vld [vmem:[%s408] sm:$0xf]
      %v410 = vld [vmem:[%s408 + $0x4] sm:$0xf]
      %v411 = vld [vmem:[%s408 + $0x8] sm:$0xf]
      %v412 = vld [vmem:[%s408 + $0xc] sm:$0xf]
      %v413 = vld [vmem:[%s408 + $0x10] sm:$0xf]
      %v414 = vld [vmem:[%s408 + $0x14] sm:$0xf]
      %v416 = vunpack.c.l.b16 %v407
      %v417 = vpack.c.b16 %v416, %v416
      %vm418 = vsmask.f32 7424
      %v419 = vshrl.u32 %v333, 16
      %v421 = vshll.u32 %v333, 16
      %v423 = vrot.slane %v421, 1
      %v424 = vor.u32 %v419, %v423
      %v426 = vshll.u32 %v417, 16
      %v428 = vrot.slane %v426, 1
      %v429 = vsel %vm418, %v424, %v428
      %v430 = vshrl.u32 %v417, 16
      %v432 = vor.u32 %v430, %v428
      %v439 = vunpack.c.l.b16 %v409
      %v440 = vunpack.c.l.b16 %v410
      %v441 = vunpack.c.l.b16 %v411
      %v442 = vunpack.c.l.b16 %v412
      %v443 = vunpack.c.l.b16 %v413
      %v444 = vunpack.c.l.b16 %v414
      %v445 = vpack.c.b16 %v440, %v439
      %v446 = vpack.c.b16 %v442, %v441
      %v447 = vpack.c.b16 %v444, %v443
      %v452 = vsel %vm272, %v429, 0
      %v455 = vsel %vm272, %v432, 0
      %457 = vmatprep.subr.bf16.mxu0 0
      %458 = vmatpush1.bf16.msra.mxu0 %v445
      %459 = vmatprep.subr.bf16.mxu0 0
      %460 = vmatpush1.bf16.msra.mxu0 %v446
      %461 = vmatprep.subr.bf16.mxu0 0
      %462 = vmatpush1.bf16.msra.mxu0 %v447
      %463 = vmatprep.subr.bf16.mxu0 0
      %464 = vmatpush1.bf16.msra.mxu0 0
      %465 = vmatprep.subr.bf16.mxu0 0
      %466 = vmatpush1.bf16.msra.mxu0 0
      %467 = vmatprep.subr.bf16.mxu0 0
      %468 = vmatpush1.bf16.msra.mxu0 0
      %469 = vmatprep.subr.bf16.mxu0 0
      %470 = vmatpush1.bf16.msra.mxu0 0
      %471 = vmatprep.subr.bf16.mxu0 0
      %472 = vmatpush1.bf16.msra.mxu0 0
      %473 = vmatprep.subr.bf16.mxu0 0
      %474 = vmatpush1.bf16.msra.mxu0 0
      %475 = vmatprep.subr.bf16.mxu0 0
      %476 = vmatpush1.bf16.msra.mxu0 0
      %477 = vmatprep.subr.bf16.mxu0 0
      %478 = vmatpush1.bf16.msra.mxu0 0
      %479 = vmatprep.subr.bf16.mxu0 0
      %480 = vmatpush1.bf16.msra.mxu0 0
      %481 = vmatprep.subr.bf16.mxu0 0
      %482 = vmatpush1.bf16.msra.mxu0 0
      %483 = vmatprep.subr.bf16.mxu0 0
      %484 = vmatpush1.bf16.msra.mxu0 0
      %485 = vmatprep.subr.bf16.mxu0 0
      %486 = vmatpush1.bf16.msra.mxu0 0
      %487 = vmatprep.subr.bf16.mxu0 0
      %488 = vmatpush1.bf16.msra.mxu0 0
      %489 = vmatprep.mubr.bf16.mxu0 0
      %490 = vmatmul.mubr.bf16.gmra.mrb[0].mxu0 %v452
      %v491 = vpop.f32.mrb[0].mxu0
      %v492 = vadd.f32 0.0, %v491
      %v493 = vpop.f32.mrb[0].mxu0
      %v494 = vpop.f32.mrb[0].mxu0
      %v495 = vadd.f32 0.0, %v494
      %v496 = vpop.f32.mrb[0].mxu0
      %497 = vmatprep.mubr.bf16.mxu0 0
      %498 = vmatmul.mubr.bf16.gmra.mrb[0].mxu0 %v455
      %v499 = vpop.f32.mrb[0].mxu0
      %v500 = vadd.f32 0.0, %v499
      %v501 = vpop.f32.mrb[0].mxu0
      %v502 = vpop.f32.mrb[0].mxu0
      %v503 = vpop.f32.mrb[0].mxu0
      %504 = vdwg.mxu0
      %v505 = vadd.f32 %v394, %v492
      %v506 = vadd.f32 %v397, %v495
      %v507 = vadd.f32 %v402, %v500
      %s508 = scalar_lea.vmem %s219, 32
      %v509 = vld [vmem:[%s508] sm:$0xf]
      %v510 = vld [vmem:[%s508 + $0x4] sm:$0xf]
      %v511 = vld [vmem:[%s508 + $0x8] sm:$0x3]
      %s512 = scalar_lea.vmem %s1, 72
      %v513 = vld [vmem:[%s512] sm:$0xf]
      %v514 = vld [vmem:[%s512 + $0x4] sm:$0xf]
      %v515 = vld [vmem:[%s512 + $0x8] sm:$0xf]
      %v516 = vld [vmem:[%s512 + $0xc] sm:$0xf]
      %v517 = vld [vmem:[%s512 + $0x10] sm:$0xf]
      %v518 = vld [vmem:[%s512 + $0x14] sm:$0xf]
      %v522 = vunpack.c.l.b16 %v509
      %v523 = vunpack.c.l.b16 %v510
      %v524 = vunpack.c.l.b16 %v511
      %v525 = vpack.c.b16 %v523, %v522
      %v526 = vpack.c.b16 %v524, %v524
      %v533 = vunpack.c.l.b16 %v513
      %v534 = vunpack.c.l.b16 %v514
      %v535 = vunpack.c.l.b16 %v515
      %v536 = vunpack.c.l.b16 %v516
      %v537 = vunpack.c.l.b16 %v517
      %v538 = vunpack.c.l.b16 %v518
      %v539 = vpack.c.b16 %v534, %v533
      %v540 = vpack.c.b16 %v536, %v535
      %v541 = vpack.c.b16 %v538, %v537
      %v546 = vsel %vm272, %v525, 0
      %v549 = vsel %vm272, %v526, 0
      %551 = vmatprep.subr.bf16.mxu0 0
      %552 = vmatpush1.bf16.msra.mxu0 %v539
      %553 = vmatprep.subr.bf16.mxu0 0
      %554 = vmatpush1.bf16.msra.mxu0 %v540
      %555 = vmatprep.subr.bf16.mxu0 0
      %556 = vmatpush1.bf16.msra.mxu0 %v541
      %557 = vmatprep.subr.bf16.mxu0 0
      %558 = vmatpush1.bf16.msra.mxu0 0
      %559 = vmatprep.subr.bf16.mxu0 0
      %560 = vmatpush1.bf16.msra.mxu0 0
      %561 = vmatprep.subr.bf16.mxu0 0
      %562 = vmatpush1.bf16.msra.mxu0 0
      %563 = vmatprep.subr.bf16.mxu0 0
      %564 = vmatpush1.bf16.msra.mxu0 0
      %565 = vmatprep.subr.bf16.mxu0 0
      %566 = vmatpush1.bf16.msra.mxu0 0
      %567 = vmatprep.subr.bf16.mxu0 0
      %568 = vmatpush1.bf16.msra.mxu0 0
      %569 = vmatprep.subr.bf16.mxu0 0
      %570 = vmatpush1.bf16.msra.mxu0 0
      %571 = vmatprep.subr.bf16.mxu0 0
      %572 = vmatpush1.bf16.msra.mxu0 0
      %573 = vmatprep.subr.bf16.mxu0 0
      %574 = vmatpush1.bf16.msra.mxu0 0
      %575 = vmatprep.subr.bf16.mxu0 0
      %576 = vmatpush1.bf16.msra.mxu0 0
      %577 = vmatprep.subr.bf16.mxu0 0
      %578 = vmatpush1.bf16.msra.mxu0 0
      %579 = vmatprep.subr.bf16.mxu0 0
      %580 = vmatpush1.bf16.msra.mxu0 0
      %581 = vmatprep.subr.bf16.mxu0 0
      %582 = vmatpush1.bf16.msra.mxu0 0
      %583 = vmatprep.mubr.bf16.mxu0 0
      %584 = vmatmul.mubr.bf16.gmra.mrb[0].mxu0 %v546
      %v585 = vpop.f32.mrb[0].mxu0
      %v586 = vadd.f32 0.0, %v585
      %v587 = vpop.f32.mrb[0].mxu0
      %v588 = vpop.f32.mrb[0].mxu0
      %v589 = vadd.f32 0.0, %v588
      %v590 = vpop.f32.mrb[0].mxu0
      %591 = vmatprep.mubr.bf16.mxu0 0
      %592 = vmatmul.mubr.bf16.gmra.mrb[0].mxu0 %v549
      %v593 = vpop.f32.mrb[0].mxu0
      %v594 = vadd.f32 0.0, %v593
      %v595 = vpop.f32.mrb[0].mxu0
      %v596 = vpop.f32.mrb[0].mxu0
      %v597 = vpop.f32.mrb[0].mxu0
      %598 = vdwg.mxu0
      %v599 = vadd.f32 %v505, %v586
      %v600 = vadd.f32 %v506, %v589
      %v601 = vadd.f32 %v507, %v594
      %s602 = scalar_lea.vmem %s219, 48
      %v603 = vld [vmem:[%s602] sm:$0xf]
      %v604 = vld [vmem:[%s602 + $0x4] sm:$0xf]
      %v605 = vld [vmem:[%s602 + $0x8] sm:$0x3]
      %s606 = scalar_lea.vmem %s1, 96
      %v607 = vld [vmem:[%s606] sm:$0xf]
      %v608 = vld [vmem:[%s606 + $0x4] sm:$0xf]
      %v609 = vld [vmem:[%s606 + $0x8] sm:$0xf]
      %v610 = vld [vmem:[%s606 + $0xc] sm:$0xf]
      %v611 = vld [vmem:[%s606 + $0x10] sm:$0xf]
      %v612 = vld [vmem:[%s606 + $0x14] sm:$0xf]
      %v616 = vunpack.c.l.b16 %v603
      %v617 = vunpack.c.l.b16 %v604
      %v618 = vunpack.c.l.b16 %v605
      %v619 = vpack.c.b16 %v617, %v616
      %v620 = vpack.c.b16 %v618, %v618
      %v627 = vunpack.c.l.b16 %v607
      %v628 = vunpack.c.l.b16 %v608
      %v629 = vunpack.c.l.b16 %v609
      %v630 = vunpack.c.l.b16 %v610
      %v631 = vunpack.c.l.b16 %v611
      %v632 = vunpack.c.l.b16 %v612
      %v633 = vpack.c.b16 %v628, %v627
      %v634 = vpack.c.b16 %v630, %v629
      %v635 = vpack.c.b16 %v632, %v631
      %v640 = vsel %vm272, %v619, 0
      %v643 = vsel %vm272, %v620, 0
      %645 = vmatprep.subr.bf16.mxu0 0
      %646 = vmatpush1.bf16.msra.mxu0 %v633
      %647 = vmatprep.subr.bf16.mxu0 0
      %648 = vmatpush1.bf16.msra.mxu0 %v634
      %649 = vmatprep.subr.bf16.mxu0 0
      %650 = vmatpush1.bf16.msra.mxu0 %v635
      %651 = vmatprep.subr.bf16.mxu0 0
      %652 = vmatpush1.bf16.msra.mxu0 0
      %653 = vmatprep.subr.bf16.mxu0 0
      %654 = vmatpush1.bf16.msra.mxu0 0
      %655 = vmatprep.subr.bf16.mxu0 0
      %656 = vmatpush1.bf16.msra.mxu0 0
      %657 = vmatprep.subr.bf16.mxu0 0
      %658 = vmatpush1.bf16.msra.mxu0 0
      %659 = vmatprep.subr.bf16.mxu0 0
      %660 = vmatpush1.bf16.msra.mxu0 0
      %661 = vmatprep.subr.bf16.mxu0 0
      %662 = vmatpush1.bf16.msra.mxu0 0
      %663 = vmatprep.subr.bf16.mxu0 0
      %664 = vmatpush1.bf16.msra.mxu0 0
      %665 = vmatprep.subr.bf16.mxu0 0
      %666 = vmatpush1.bf16.msra.mxu0 0
      %667 = vmatprep.subr.bf16.mxu0 0
      %668 = vmatpush1.bf16.msra.mxu0 0
      %669 = vmatprep.subr.bf16.mxu0 0
      %670 = vmatpush1.bf16.msra.mxu0 0
      %671 = vmatprep.subr.bf16.mxu0 0
      %672 = vmatpush1.bf16.msra.mxu0 0
      %673 = vmatprep.subr.bf16.mxu0 0
      %674 = vmatpush1.bf16.msra.mxu0 0
      %675 = vmatprep.subr.bf16.mxu0 0
      %676 = vmatpush1.bf16.msra.mxu0 0
      %677 = vmatprep.mubr.bf16.mxu0 0
      %678 = vmatmul.mubr.bf16.gmra.mrb[0].mxu0 %v640
      %v679 = vpop.f32.mrb[0].mxu0
      %v680 = vadd.f32 0.0, %v679
      %v681 = vpop.f32.mrb[0].mxu0
      %v682 = vpop.f32.mrb[0].mxu0
      %v683 = vadd.f32 0.0, %v682
      %v684 = vpop.f32.mrb[0].mxu0
      %685 = vmatprep.mubr.bf16.mxu0 0
      %686 = vmatmul.mubr.bf16.gmra.mrb[0].mxu0 %v643
      %v687 = vpop.f32.mrb[0].mxu0
      %v688 = vadd.f32 0.0, %v687
      %v689 = vpop.f32.mrb[0].mxu0
      %v690 = vpop.f32.mrb[0].mxu0
      %v691 = vpop.f32.mrb[0].mxu0
      %692 = vdwg.mxu0
      %v693 = vadd.f32 %v599, %v680
      %v694 = vadd.f32 %v600, %v683
      %v695 = vadd.f32 %v601, %v688
      %v696 = vld [vmem:[%s508 + $0x8] sm:$0x7]
      %s697 = scalar_lea.vmem %s1, 120
      %v698 = vld [vmem:[%s697] sm:$0xf]
      %v699 = vld [vmem:[%s697 + $0x4] sm:$0xf]
      %v700 = vld [vmem:[%s697 + $0x8] sm:$0xf]
      %v701 = vld [vmem:[%s697 + $0xc] sm:$0xf]
      %v702 = vld [vmem:[%s697 + $0x10] sm:$0xf]
      %v703 = vld [vmem:[%s697 + $0x14] sm:$0xf]
      %v705 = vunpack.c.l.b16 %v696
      %v706 = vpack.c.b16 %v705, %v705
      %v707 = vshrl.u32 %v525, 16
      %v709 = vshll.u32 %v525, 16
      %v711 = vrot.slane %v709, 1
      %v712 = vor.u32 %v707, %v711
      %v714 = vshll.u32 %v706, 16
      %v716 = vrot.slane %v714, 1
      %v717 = vsel %vm418, %v712, %v716
      %v718 = vshrl.u32 %v706, 16
      %v720 = vor.u32 %v718, %v716
      %v727 = vunpack.c.l.b16 %v698
      %v728 = vunpack.c.l.b16 %v699
      %v729 = vunpack.c.l.b16 %v700
      %v730 = vunpack.c.l.b16 %v701
      %v731 = vunpack.c.l.b16 %v702
      %v732 = vunpack.c.l.b16 %v703
      %v733 = vpack.c.b16 %v728, %v727
      %v734 = vpack.c.b16 %v730, %v729
      %v735 = vpack.c.b16 %v732, %v731
      %v740 = vsel %vm272, %v717, 0
      %v743 = vsel %vm272, %v720, 0
      %745 = vmatprep.subr.bf16.mxu0 0
      %746 = vmatpush1.bf16.msra.mxu0 %v733
      %747 = vmatprep.subr.bf16.mxu0 0
      %748 = vmatpush1.bf16.msra.mxu0 %v734
      %749 = vmatprep.subr.bf16.mxu0 0
      %750 = vmatpush1.bf16.msra.mxu0 %v735
      %751 = vmatprep.subr.bf16.mxu0 0
      %752 = vmatpush1.bf16.msra.mxu0 0
      %753 = vmatprep.subr.bf16.mxu0 0
      %754 = vmatpush1.bf16.msra.mxu0 0
      %755 = vmatprep.subr.bf16.mxu0 0
      %756 = vmatpush1.bf16.msra.mxu0 0
      %757 = vmatprep.subr.bf16.mxu0 0
      %758 = vmatpush1.bf16.msra.mxu0 0
      %759 = vmatprep.subr.bf16.mxu0 0
      %760 = vmatpush1.bf16.msra.mxu0 0
      %761 = vmatprep.subr.bf16.mxu0 0
      %762 = vmatpush1.bf16.msra.mxu0 0
      %763 = vmatprep.subr.bf16.mxu0 0
      %764 = vmatpush1.bf16.msra.mxu0 0
      %765 = vmatprep.subr.bf16.mxu0 0
      %766 = vmatpush1.bf16.msra.mxu0 0
      %767 = vmatprep.subr.bf16.mxu0 0
      %768 = vmatpush1.bf16.msra.mxu0 0
      %769 = vmatprep.subr.bf16.mxu0 0
      %770 = vmatpush1.bf16.msra.mxu0 0
      %771 = vmatprep.subr.bf16.mxu0 0
      %772 = vmatpush1.bf16.msra.mxu0 0
      %773 = vmatprep.subr.bf16.mxu0 0
      %774 = vmatpush1.bf16.msra.mxu0 0
      %775 = vmatprep.subr.bf16.mxu0 0
      %776 = vmatpush1.bf16.msra.mxu0 0
      %777 = vmatprep.mubr.bf16.mxu0 0
      %778 = vmatmul.mubr.bf16.gmra.mrb[0].mxu0 %v740
      %v779 = vpop.f32.mrb[0].mxu0
      %v780 = vadd.f32 0.0, %v779
      %v781 = vpop.f32.mrb[0].mxu0
      %v782 = vpop.f32.mrb[0].mxu0
      %v783 = vadd.f32 0.0, %v782
      %v784 = vpop.f32.mrb[0].mxu0
      %785 = vmatprep.mubr.bf16.mxu0 0
      %786 = vmatmul.mubr.bf16.gmra.mrb[0].mxu0 %v743
      %v787 = vpop.f32.mrb[0].mxu0
      %v788 = vadd.f32 0.0, %v787
      %v789 = vpop.f32.mrb[0].mxu0
      %v790 = vpop.f32.mrb[0].mxu0
      %v791 = vpop.f32.mrb[0].mxu0
      %792 = vdwg.mxu0
      %v793 = vadd.f32 %v693, %v780
      %v794 = vadd.f32 %v694, %v783
      %v795 = vadd.f32 %v695, %v788
      %v796 = vld [vmem:[%s219] sm:$0xc]
      %v797 = vld [vmem:[%s219 + $0x4] sm:$0xf]
      %v798 = vld [vmem:[%s219 + $0x8] sm:$0xf]
      %v799 = vld [vmem:[%s219 + $0xc] sm:$0x1]
      %s800 = scalar_lea.vmem %s1, 144
      %v801 = vld [vmem:[%s800] sm:$0xf]
      %v802 = vld [vmem:[%s800 + $0x4] sm:$0xf]
      %v803 = vld [vmem:[%s800 + $0x8] sm:$0xf]
      %v804 = vld [vmem:[%s800 + $0xc] sm:$0xf]
      %v805 = vld [vmem:[%s800 + $0x10] sm:$0xf]
      %v806 = vld [vmem:[%s800 + $0x14] sm:$0xf]
      %v811 = vunpack.c.l.b16 %v796
      %v812 = vunpack.c.l.b16 %v797
      %v813 = vunpack.c.l.b16 %v798
      %v814 = vunpack.c.l.b16 %v799
      %v815 = vpack.c.b16 %v812, %v811
      %v816 = vpack.c.b16 %v814, %v813
      %vm817 = vsmask.f32 5376
      %v819 = vshrl.u32 %v815, 16
      %v821 = vrot.slane %v819, 2
      %v822 = vshll.u32 %v815, 16
      %v824 = vrot.slane %v822, 3
      %v825 = vor.u32 %v821, %v824
      %v827 = vshrl.u32 %v816, 16
      %v829 = vrot.slane %v827, 2
      %v830 = vshll.u32 %v816, 16
      %v832 = vrot.slane %v830, 3
      %v833 = vor.u32 %v829, %v832
      %v834 = vsel %vm817, %v825, %v833
      %v841 = vunpack.c.l.b16 %v801
      %v842 = vunpack.c.l.b16 %v802
      %v843 = vunpack.c.l.b16 %v803
      %v844 = vunpack.c.l.b16 %v804
      %v845 = vunpack.c.l.b16 %v805
      %v846 = vunpack.c.l.b16 %v806
      %v847 = vpack.c.b16 %v842, %v841
      %v848 = vpack.c.b16 %v844, %v843
      %v849 = vpack.c.b16 %v846, %v845
      %v854 = vsel %vm272, %v834, 0
      %v857 = vsel %vm272, %v833, 0
      %859 = vmatprep.subr.bf16.mxu0 0
      %860 = vmatpush1.bf16.msra.mxu0 %v847
      %861 = vmatprep.subr.bf16.mxu0 0
      %862 = vmatpush1.bf16.msra.mxu0 %v848
      %863 = vmatprep.subr.bf16.mxu0 0
      %864 = vmatpush1.bf16.msra.mxu0 %v849
      %865 = vmatprep.subr.bf16.mxu0 0
      %866 = vmatpush1.bf16.msra.mxu0 0
      %867 = vmatprep.subr.bf16.mxu0 0
      %868 = vmatpush1.bf16.msra.mxu0 0
      %869 = vmatprep.subr.bf16.mxu0 0
      %870 = vmatpush1.bf16.msra.mxu0 0
      %871 = vmatprep.subr.bf16.mxu0 0
      %872 = vmatpush1.bf16.msra.mxu0 0
      %873 = vmatprep.subr.bf16.mxu0 0
      %874 = vmatpush1.bf16.msra.mxu0 0
      %875 = vmatprep.subr.bf16.mxu0 0
      %876 = vmatpush1.bf16.msra.mxu0 0
      %877 = vmatprep.subr.bf16.mxu0 0
      %878 = vmatpush1.bf16.msra.mxu0 0
      %879 = vmatprep.subr.bf16.mxu0 0
      %880 = vmatpush1.bf16.msra.mxu0 0
      %881 = vmatprep.subr.bf16.mxu0 0
      %882 = vmatpush1.bf16.msra.mxu0 0
      %883 = vmatprep.subr.bf16.mxu0 0
      %884 = vmatpush1.bf16.msra.mxu0 0
      %885 = vmatprep.subr.bf16.mxu0 0
      %886 = vmatpush1.bf16.msra.mxu0 0
      %887 = vmatprep.subr.bf16.mxu0 0
      %888 = vmatpush1.bf16.msra.mxu0 0
      %889 = vmatprep.subr.bf16.mxu0 0
      %890 = vmatpush1.bf16.msra.mxu0 0
      %891 = vmatprep.mubr.bf16.mxu0 0
      %892 = vmatmul.mubr.bf16.gmra.mrb[0].mxu0 %v854
      %v893 = vpop.f32.mrb[0].mxu0
      %v894 = vadd.f32 0.0, %v893
      %v895 = vpop.f32.mrb[0].mxu0
      %v896 = vpop.f32.mrb[0].mxu0
      %v897 = vadd.f32 0.0, %v896
      %v898 = vpop.f32.mrb[0].mxu0
      %899 = vmatprep.mubr.bf16.mxu0 0
      %900 = vmatmul.mubr.bf16.gmra.mrb[0].mxu0 %v857
      %v901 = vpop.f32.mrb[0].mxu0
      %v902 = vadd.f32 0.0, %v901
      %v903 = vpop.f32.mrb[0].mxu0
      %v904 = vpop.f32.mrb[0].mxu0
      %v905 = vpop.f32.mrb[0].mxu0
      %906 = vdwg.mxu0
      %v907 = vadd.f32 %v793, %v894
      %v908 = vadd.f32 %v794, %v897
      %v909 = vadd.f32 %v795, %v902
      %v910 = vld [vmem:[%s235] sm:$0xc]
      %v911 = vld [vmem:[%s235 + $0x4] sm:$0xf]
      %v912 = vld [vmem:[%s235 + $0x8] sm:$0xf]
      %v913 = vld [vmem:[%s235 + $0xc] sm:$0x1]
      %s914 = scalar_lea.vmem %s1, 168
      %v915 = vld [vmem:[%s914] sm:$0xf]
      %v916 = vld [vmem:[%s914 + $0x4] sm:$0xf]
      %v917 = vld [vmem:[%s914 + $0x8] sm:$0xf]
      %v918 = vld [vmem:[%s914 + $0xc] sm:$0xf]
      %v919 = vld [vmem:[%s914 + $0x10] sm:$0xf]
      %v920 = vld [vmem:[%s914 + $0x14] sm:$0xf]
      %v925 = vunpack.c.l.b16 %v910
      %v926 = vunpack.c.l.b16 %v911
      %v927 = vunpack.c.l.b16 %v912
      %v928 = vunpack.c.l.b16 %v913
      %v929 = vpack.c.b16 %v926, %v925
      %v930 = vpack.c.b16 %v928, %v927
      %v932 = vshrl.u32 %v929, 16
      %v934 = vrot.slane %v932, 2
      %v935 = vshll.u32 %v929, 16
      %v937 = vrot.slane %v935, 3
      %v938 = vor.u32 %v934, %v937
      %v940 = vshrl.u32 %v930, 16
      %v942 = vrot.slane %v940, 2
      %v943 = vshll.u32 %v930, 16
      %v945 = vrot.slane %v943, 3
      %v946 = vor.u32 %v942, %v945
      %v947 = vsel %vm817, %v938, %v946
      %v954 = vunpack.c.l.b16 %v915
      %v955 = vunpack.c.l.b16 %v916
      %v956 = vunpack.c.l.b16 %v917
      %v957 = vunpack.c.l.b16 %v918
      %v958 = vunpack.c.l.b16 %v919
      %v959 = vunpack.c.l.b16 %v920
      %v960 = vpack.c.b16 %v955, %v954
      %v961 = vpack.c.b16 %v957, %v956
      %v962 = vpack.c.b16 %v959, %v958
      %v967 = vsel %vm272, %v947, 0
      %v970 = vsel %vm272, %v946, 0
      %972 = vmatprep.subr.bf16.mxu0 0
      %973 = vmatpush1.bf16.msra.mxu0 %v960
      %974 = vmatprep.subr.bf16.mxu0 0
      %975 = vmatpush1.bf16.msra.mxu0 %v961
      %976 = vmatprep.subr.bf16.mxu0 0
      %977 = vmatpush1.bf16.msra.mxu0 %v962
      %978 = vmatprep.subr.bf16.mxu0 0
      %979 = vmatpush1.bf16.msra.mxu0 0
      %980 = vmatprep.subr.bf16.mxu0 0
      %981 = vmatpush1.bf16.msra.mxu0 0
      %982 = vmatprep.subr.bf16.mxu0 0
      %983 = vmatpush1.bf16.msra.mxu0 0
      %984 = vmatprep.subr.bf16.mxu0 0
      %985 = vmatpush1.bf16.msra.mxu0 0
      %986 = vmatprep.subr.bf16.mxu0 0
      %987 = vmatpush1.bf16.msra.mxu0 0
      %988 = vmatprep.subr.bf16.mxu0 0
      %989 = vmatpush1.bf16.msra.mxu0 0
      %990 = vmatprep.subr.bf16.mxu0 0
      %991 = vmatpush1.bf16.msra.mxu0 0
      %992 = vmatprep.subr.bf16.mxu0 0
      %993 = vmatpush1.bf16.msra.mxu0 0
      %994 = vmatprep.subr.bf16.mxu0 0
      %995 = vmatpush1.bf16.msra.mxu0 0
      %996 = vmatprep.subr.bf16.mxu0 0
      %997 = vmatpush1.bf16.msra.mxu0 0
      %998 = vmatprep.subr.bf16.mxu0 0
      %999 = vmatpush1.bf16.msra.mxu0 0
      %1000 = vmatprep.subr.bf16.mxu0 0
      %1001 = vmatpush1.bf16.msra.mxu0 0
      %1002 = vmatprep.subr.bf16.mxu0 0
      %1003 = vmatpush1.bf16.msra.mxu0 0
      %1004 = vmatprep.mubr.bf16.mxu0 0
      %1005 = vmatmul.mubr.bf16.gmra.mrb[0].mxu0 %v967
      %v1006 = vpop.f32.mrb[0].mxu0
      %v1007 = vadd.f32 0.0, %v1006
      %v1008 = vpop.f32.mrb[0].mxu0
      %v1009 = vpop.f32.mrb[0].mxu0
      %v1010 = vadd.f32 0.0, %v1009
      %v1011 = vpop.f32.mrb[0].mxu0
      %1012 = vmatprep.mubr.bf16.mxu0 0
      %1013 = vmatmul.mubr.bf16.gmra.mrb[0].mxu0 %v970
      %v1014 = vpop.f32.mrb[0].mxu0
      %v1015 = vadd.f32 0.0, %v1014
      %v1016 = vpop.f32.mrb[0].mxu0
      %v1017 = vpop.f32.mrb[0].mxu0
      %v1018 = vpop.f32.mrb[0].mxu0
      %1019 = vdwg.mxu0
      %v1020 = vadd.f32 %v907, %v1007
      %v1021 = vadd.f32 %v908, %v1010
      %v1022 = vadd.f32 %v909, %v1015
      %v1023 = vld [vmem:[%s219] sm:$0x8]
      %s1024 = scalar_lea.vmem %s1, 192
      %v1025 = vld [vmem:[%s1024] sm:$0xf]
      %v1026 = vld [vmem:[%s1024 + $0x4] sm:$0xf]
      %v1027 = vld [vmem:[%s1024 + $0x8] sm:$0xf]
      %v1028 = vld [vmem:[%s1024 + $0xc] sm:$0xf]
      %v1029 = vld [vmem:[%s1024 + $0x10] sm:$0xf]
      %v1030 = vld [vmem:[%s1024 + $0x14] sm:$0xf]
      %v1032 = vunpack.c.l.b16 %v1023
      %v1033 = vpack.c.b16 %v812, %v1032
      %vm1034 = vcmask 1044480
      %v1035 = vrot.slane %v1033, 3
      %v1036 = vrot.slane %v816, 3
      %v1037 = vsel %vm1034, %v1035, %v1036
      %v1044 = vunpack.c.l.b16 %v1025
      %v1045 = vunpack.c.l.b16 %v1026
      %v1046 = vunpack.c.l.b16 %v1027
      %v1047 = vunpack.c.l.b16 %v1028
      %v1048 = vunpack.c.l.b16 %v1029
      %v1049 = vunpack.c.l.b16 %v1030
      %v1050 = vpack.c.b16 %v1045, %v1044
      %v1051 = vpack.c.b16 %v1047, %v1046
      %v1052 = vpack.c.b16 %v1049, %v1048
      %v1057 = vsel %vm272, %v1037, 0
      %v1060 = vsel %vm272, %v1036, 0
      %1062 = vmatprep.subr.bf16.mxu0 0
      %1063 = vmatpush1.bf16.msra.mxu0 %v1050
      %1064 = vmatprep.subr.bf16.mxu0 0
      %1065 = vmatpush1.bf16.msra.mxu0 %v1051
      %1066 = vmatprep.subr.bf16.mxu0 0
      %1067 = vmatpush1.bf16.msra.mxu0 %v1052
      %1068 = vmatprep.subr.bf16.mxu0 0
      %1069 = vmatpush1.bf16.msra.mxu0 0
      %1070 = vmatprep.subr.bf16.mxu0 0
      %1071 = vmatpush1.bf16.msra.mxu0 0
      %1072 = vmatprep.subr.bf16.mxu0 0
      %1073 = vmatpush1.bf16.msra.mxu0 0
      %1074 = vmatprep.subr.bf16.mxu0 0
      %1075 = vmatpush1.bf16.msra.mxu0 0
      %1076 = vmatprep.subr.bf16.mxu0 0
      %1077 = vmatpush1.bf16.msra.mxu0 0
      %1078 = vmatprep.subr.bf16.mxu0 0
      %1079 = vmatpush1.bf16.msra.mxu0 0
      %1080 = vmatprep.subr.bf16.mxu0 0
      %1081 = vmatpush1.bf16.msra.mxu0 0
      %1082 = vmatprep.subr.bf16.mxu0 0
      %1083 = vmatpush1.bf16.msra.mxu0 0
      %1084 = vmatprep.subr.bf16.mxu0 0
      %1085 = vmatpush1.bf16.msra.mxu0 0
      %1086 = vmatprep.subr.bf16.mxu0 0
      %1087 = vmatpush1.bf16.msra.mxu0 0
      %1088 = vmatprep.subr.bf16.mxu0 0
      %1089 = vmatpush1.bf16.msra.mxu0 0
      %1090 = vmatprep.subr.bf16.mxu0 0
      %1091 = vmatpush1.bf16.msra.mxu0 0
      %1092 = vmatprep.subr.bf16.mxu0 0
      %1093 = vmatpush1.bf16.msra.mxu0 0
      %1094 = vmatprep.mubr.bf16.mxu0 0
      %1095 = vmatmul.mubr.bf16.gmra.mrb[0].mxu0 %v1057
      %v1096 = vpop.f32.mrb[0].mxu0
      %v1097 = vadd.f32 0.0, %v1096
      %v1098 = vpop.f32.mrb[0].mxu0
      %v1099 = vpop.f32.mrb[0].mxu0
      %v1100 = vadd.f32 0.0, %v1099
      %v1101 = vpop.f32.mrb[0].mxu0
      %1102 = vmatprep.mubr.bf16.mxu0 0
      %1103 = vmatmul.mubr.bf16.gmra.mrb[0].mxu0 %v1060
      %v1104 = vpop.f32.mrb[0].mxu0
      %v1105 = vadd.f32 0.0, %v1104
      %v1106 = vpop.f32.mrb[0].mxu0
      %v1107 = vpop.f32.mrb[0].mxu0
      %v1108 = vpop.f32.mrb[0].mxu0
      %1109 = vdwg.mxu0
      %v1110 = vadd.f32 %v1020, %v1097
      %v1111 = vadd.f32 %v1021, %v1100
      %v1112 = vadd.f32 %v1022, %v1105
      %v1113 = vld [vmem:[%s2] sm:$0x1]
      %v1115 = vlaneseq
      %v1116 = vshrl.u32 %v1115, 7
      %v1117 = vsub.s32 0, %v1116
      %v1118 = vrot.slane %v1113, %v1117
      %v1120 = vadd.f32 %v1110, %v1118
      %v1121 = vadd.f32 %v1111, %v1118
      %v1122 = vadd.f32 %v1112, %v1118
      %v1123 = vmul.f32 %v1120, 0.5
      %v1124 = vmul.f32 %v1121, 0.5
      %v1125 = vmul.f32 %v1122, 0.5
      %v1126 = vmul.f32 %v1120, 0.70710677
      %v1127 = vmul.f32 %v1121, 0.70710677
      %v1128 = vmul.f32 %v1122, 0.70710677
      %v1129 = verf.f32.pop %v1126
      %v1130 = verf.f32.pop %v1127
      %v1131 = verf.f32.pop %v1128
      %v1132 = vadd.f32 %v1129, 1.0
      %v1133 = vadd.f32 %v1130, 1.0
      %v1134 = vadd.f32 %v1131, 1.0
      %v1135 = vmul.f32 %v1123, %v1132
      %v1136 = vmul.f32 %v1124, %v1133
      %v1137 = vmul.f32 %v1125, %v1134
      %v1138 = vlaneseq
      %v1139 = vand.u32 %v1138, 127
      %vm1140 = vcmp.lt.s32.totalorder %v1139, 96
      %v1141 = vsel %vm1140, 1, 0
      %v1142 = vcvt.s32.f32 %v1141
      %v1143 = vmul.f32 %v1135, %v1142
      %v1144 = vmul.f32 %v1136, %v1142
      %v1145 = vmul.f32 %v1137, %v1142
      %1146 = vadd.xlane.f32.xlu0 %v1143
      %v1147 = vpop.xlane.xlu0 %1146
      %1148 = vadd.xlane.f32.xlu0 %v1144
      %v1149 = vpop.xlane.xlu0 %1148
      %vm1150 = vcmask 1043456
      %v1151 = vsel %vm1150, %v1145, 0.0
      %1152 = vadd.xlane.f32.xlu0 %v1151
      %v1153 = vpop.xlane.xlu0 %1152
      %v1154 = vmul.f32 %v1147, 0.010416667
      %v1155 = vmul.f32 %v1149, 0.010416667
      %v1156 = vmul.f32 %v1153, 0.010416667
      %v1157 = vsub.f32 %v1135, %v1154
      %v1158 = vsub.f32 %v1136, %v1155
      %v1159 = vsub.f32 %v1137, %v1156
      %v1160 = vmul.f32 %v1157, %v1142
      %v1161 = vmul.f32 %v1158, %v1142
      %v1162 = vmul.f32 %v1159, %v1142
      %v1163 = vmul.f32 %v1160, %v1160
      %v1164 = vmul.f32 %v1161, %v1161
      %v1165 = vmul.f32 %v1162, %v1162
      %1166 = vadd.xlane.f32.xlu0 %v1163
      %v1167 = vpop.xlane.xlu0 %1166
      %1168 = vadd.xlane.f32.xlu0 %v1164
      %v1169 = vpop.xlane.xlu0 %1168
      %v1170 = vsel %vm1150, %v1165, 0.0
      %1171 = vadd.xlane.f32.xlu0 %v1170
      %v1172 = vpop.xlane.xlu0 %1171
      %v1173 = vmul.f32 %v1167, 0.010416667
      %v1174 = vmul.f32 %v1169, 0.010416667
      %v1175 = vmul.f32 %v1172, 0.010416667
      %v1176 = vadd.f32 %v1173, 1e-05
      %v1177 = vadd.f32 %v1174, 1e-05
      %v1178 = vadd.f32 %v1175, 1e-05
      %v1179 = vrsqrt.pop %v1176
      %v1180 = vrsqrt.pop %v1177
      %v1181 = vrsqrt.pop %v1178
      %v1182 = vmul.f32 %v1160, %v1179
      %v1183 = vmul.f32 %v1161, %v1180
      %v1184 = vmul.f32 %v1162, %v1181
      %v1185 = vld [vmem:[%s3] sm:$0x1]
      %v1187 = vlaneseq
      %v1188 = vshrl.u32 %v1187, 7
      %v1189 = vsub.s32 0, %v1188
      %v1190 = vrot.slane %v1185, %v1189
      %v1192 = vmul.f32 %v1182, %v1190
      %v1193 = vmul.f32 %v1183, %v1190
      %v1194 = vmul.f32 %v1184, %v1190
      %v1195 = vld [vmem:[%s4] sm:$0x1]
      %v1197 = vlaneseq
      %v1198 = vshrl.u32 %v1197, 7
      %v1199 = vsub.s32 0, %v1198
      %v1200 = vrot.slane %v1195, %v1199
      %v1202 = vadd.f32 %v1192, %v1200
      %v1203 = vadd.f32 %v1193, %v1200
      %v1204 = vadd.f32 %v1194, %v1200
      %1205 = vst [vmem:[%s224] sm:$0xff] %v1202
      %1206 = vst [vmem:[%s224 + $0x8] sm:$0xff] %v1203
      %1207 = vst [vmem:[%s224 + $0x10] sm:$0xf] %v1204
      %p1208 = scmp.lt.s32.totalorder %s16, 1
      %s1209 = scalar_select %p1208, %s16, 1
      %s1210 = smul.addr %s1209, 3
      %s1211 = smul.addr %s1210, 8
      %s1212 = scalar_lea.vmem %s5, %s1211
      // Predicated region
      $region41: #{patch_embed_forward.6} parent=39 // pred_check
        %p1213 = pneg %p144
      $region42: #{patch_embed_forward.6} parent=39 // pred_check_branch
        %1215 = sbr.rel (%p1213) target = $region44
      $region43: #{patch_embed_forward.6} parent=39 // pred_region
        _
      $region44: #{patch_embed_forward.6} parent=39 // pred_fallthru
        _
    $region40: #{patch_embed_forward.6} parent=5 // pred_fallthru
      _
    %p1216 = scmp.le.s32.totalorder 2, %s11
    // Predicated region
    $region45: #{patch_embed_forward.6} parent=5 // pred_check
      %p1217 = pneg %p1216
    $region46: #{patch_embed_forward.6} parent=5 // pred_check_branch
      %1219 = sbr.rel (%p1217) target = $region48
    $region47: #{patch_embed_forward.6} parent=5 // pred_region
      %s1220 = ssub.s32 %s11, 2
      // Predicated region
      $region49: #{patch_embed_forward.6} parent=47 // pred_check
        %p1221 = pneg %p150
      $region50: #{patch_embed_forward.6} parent=47 // pred_check_branch
        %1223 = sbr.rel (%p1221) target = $region52
      $region51: #{patch_embed_forward.6} parent=47 // pred_region
        %p1224 = scmp.lt.s32.totalorder %s17, 1
        %s1225 = scalar_select %p1224, %s17, 1
        %s1226 = smul.addr %s1225, 3
        %s1227 = smul.addr %s1226, 8
        %s1228 = scalar_lea.vmem %s5, %s1227
      $region52: #{patch_embed_forward.6} parent=47 // pred_fallthru
        _
    $region48: #{patch_embed_forward.6} parent=5 // pred_fallthru
      _
  $region6: #{patch_embed_forward.6} parent=0 // loop_footer
    %s15 = sadd.s32 1, %s11
  $region7: #{patch_embed_forward.6} parent=0 // loop_footer_branch
    %10 = sbr.rel target = $region3
  $region8: #{patch_embed_forward.6} parent=0 // loop_exit
    _

// kernel: patch_embed_forward.7
$region0: #{patch_embed_forward.7}
  #allocation0 [shape = 'u32[]', space=smem, size = 0x4, offset = 0x4, fixed_abs, tag = 'smem constant byte address 0x4 - core index']
  #allocation1 [shape = 'u32[144,128]{1,0:T(1,128)}', space=vmem, size = 0x12000, scoped, tag = 'internal scratch']
  %s0 = inlined_call_operand.vmem [shape: bf16[2,1,42,96], index: 0, kind: input, shape index: {}]
  %s1 = inlined_call_operand.vmem [shape: bf16[9,96,128], index: 1, kind: input, shape index: {}]
  %s2 = inlined_call_operand.vmem [shape: f32[1,128], index: 2, kind: input, shape index: {}]
  %s3 = inlined_call_operand.vmem [shape: f32[1,128], index: 3, kind: input, shape index: {}]
  %s4 = inlined_call_operand.vmem [shape: f32[1,128], index: 4, kind: input, shape index: {}]
  %s5 = inlined_call_operand.vmem [shape: f32[2,24,128], index: 5, kind: output, shape index: {}]
  %s6 = sld [smem:[#allocation0]]
  $region53: #{patch_embed_forward.7} parent=0
    _
  %s8 = ssub.s32 1, %s6
  %s9 = scalar_select 0, %s8, %s6
  loop: start=0, step=1, limit=4
  $region2: #{patch_embed_forward.7} parent=0 // loop_pre_header
    _
  $region3: #{patch_embed_forward.7} parent=0 // loop_header
    %s11 = sphi 0, %s15
    %p12 = scmp.ge.s32.totalorder %s11, 4
    %s21 = sphi 0, %s23
    %s24 = sphi 0, %s21
    %s25 = sphi 0, %s24
    %s41 = sphi 0, %s25
    %s45 = sphi 0, %s45
    %s47 = sphi 0, %s45
    %s48 = sphi 0, %s47
    %s62 = sphi 0, %s48
    %s66 = sphi 0, %s66
    %s68 = sphi 0, %s66
    %s69 = sphi 0, %s68
    %s83 = sphi 0, %s69
    %s87 = sphi 0, %s87
    %s89 = sphi 0, %s87
    %s90 = sphi 0, %s89
    %s104 = sphi 0, %s90
    %s108 = sphi 0, %s108
    %s110 = sphi 0, %s108
    %s111 = sphi 0, %s110
    %s125 = sphi 0, %s111
    %s131 = sphi 0, %s133
    %s134 = sphi 0, %s131
    %s135 = sphi 0, %s134
    %s151 = sphi 0, %s135
  $region4: #{patch_embed_forward.7} parent=0 // loop_header_branch
    %14 = sbr.rel (%p12) target = $region8
  $region5: #{patch_embed_forward.7} parent=0 // loop_body
    %s16 = ssub.s32 %s11, 1
    %s17 = ssub.s32 %s11, 2
    %s18 = sadd.s32 %s11, 1
    %s19 = ssub.s32 %s11, %s18
    %p20 = scmp.eq.s32.totalorder %s19, 0
    %s22 = sadd.s32 %s21, 1
    %s23 = scalar_select %p20, %s21, %s22
    %p26 = pneg %p20
    %p27 = scmp.eq.s32.totalorder %s11, 1
    %p28 = por %p26, %p27
    %p29 = scmp.ne.s32.totalorder %s21, %s24
    %p30 = scmp.eq.s32.totalorder %s11, 0
    %p31 = por %p29, %p30
    %p32 = scmp.ne.s32.totalorder %s21, %s24
    %p33 = scmp.eq.s32.totalorder %s16, 1
    %p34 = por %p32, %p33
    %p35 = scmp.ne.s32.totalorder %s24, %s25
    %p36 = scmp.eq.s32.totalorder %s16, 0
    %p37 = por %p35, %p36
    %p38 = scmp.ne.s32.totalorder %s24, %s25
    %p39 = scmp.eq.s32.totalorder %s17, 1
    %p40 = por %p38, %p39
    %p42 = scmp.ne.s32.totalorder %s25, %s41
    %p43 = scmp.eq.s32.totalorder %s17, 0
    %p44 = por %p42, %p43
    %s46 = sadd.s32 %s45, 1
    %p49 = scmp.eq.s32.totalorder %s11, 1
    %p50 = scmp.ne.s32.totalorder %s45, %s47
    %p51 = scmp.eq.s32.totalorder %s11, 0
    %p52 = por %p50, %p51
    %p53 = scmp.ne.s32.totalorder %s45, %s47
    %p54 = scmp.eq.s32.totalorder %s16, 1
    %p55 = por %p53, %p54
    %p56 = scmp.ne.s32.totalorder %s47, %s48
    %p57 = scmp.eq.s32.totalorder %s16, 0
    %p58 = por %p56, %p57
    %p59 = scmp.ne.s32.totalorder %s47, %s48
    %p60 = scmp.eq.s32.totalorder %s17, 1
    %p61 = por %p59, %p60
    %p63 = scmp.ne.s32.totalorder %s48, %s62
    %p64 = scmp.eq.s32.totalorder %s17, 0
    %p65 = por %p63, %p64
    %s67 = sadd.s32 %s66, 1
    %p70 = scmp.eq.s32.totalorder %s11, 1
    %p71 = scmp.ne.s32.totalorder %s66, %s68
    %p72 = scmp.eq.s32.totalorder %s11, 0
    %p73 = por %p71, %p72
    %p74 = scmp.ne.s32.totalorder %s66, %s68
    %p75 = scmp.eq.s32.totalorder %s16, 1
    %p76 = por %p74, %p75
    %p77 = scmp.ne.s32.totalorder %s68, %s69
    %p78 = scmp.eq.s32.totalorder %s16, 0
    %p79 = por %p77, %p78
    %p80 = scmp.ne.s32.totalorder %s68, %s69
    %p81 = scmp.eq.s32.totalorder %s17, 1
    %p82 = por %p80, %p81
    %p84 = scmp.ne.s32.totalorder %s69, %s83
    %p85 = scmp.eq.s32.totalorder %s17, 0
    %p86 = por %p84, %p85
    %s88 = sadd.s32 %s87, 1
    %p91 = scmp.eq.s32.totalorder %s11, 1
    %p92 = scmp.ne.s32.totalorder %s87, %s89
    %p93 = scmp.eq.s32.totalorder %s11, 0
    %p94 = por %p92, %p93
    %p95 = scmp.ne.s32.totalorder %s87, %s89
    %p96 = scmp.eq.s32.totalorder %s16, 1
    %p97 = por %p95, %p96
    %p98 = scmp.ne.s32.totalorder %s89, %s90
    %p99 = scmp.eq.s32.totalorder %s16, 0
    %p100 = por %p98, %p99
    %p101 = scmp.ne.s32.totalorder %s89, %s90
    %p102 = scmp.eq.s32.totalorder %s17, 1
    %p103 = por %p101, %p102
    %p105 = scmp.ne.s32.totalorder %s90, %s104
    %p106 = scmp.eq.s32.totalorder %s17, 0
    %p107 = por %p105, %p106
    %s109 = sadd.s32 %s108, 1
    %p112 = scmp.eq.s32.totalorder %s11, 1
    %p113 = scmp.ne.s32.totalorder %s108, %s110
    %p114 = scmp.eq.s32.totalorder %s11, 0
    %p115 = por %p113, %p114
    %p116 = scmp.ne.s32.totalorder %s108, %s110
    %p117 = scmp.eq.s32.totalorder %s16, 1
    %p118 = por %p116, %p117
    %p119 = scmp.ne.s32.totalorder %s110, %s111
    %p120 = scmp.eq.s32.totalorder %s16, 0
    %p121 = por %p119, %p120
    %p122 = scmp.ne.s32.totalorder %s110, %s111
    %p123 = scmp.eq.s32.totalorder %s17, 1
    %p124 = por %p122, %p123
    %p126 = scmp.ne.s32.totalorder %s111, %s125
    %p127 = scmp.eq.s32.totalorder %s17, 0
    %p128 = por %p126, %p127
    %s129 = ssub.s32 %s11, %s18
    %p130 = scmp.eq.s32.totalorder %s129, 0
    %s132 = sadd.s32 %s131, 1
    %s133 = scalar_select %p130, %s131, %s132
    %p136 = pneg %p130
    %p137 = scmp.eq.s32.totalorder %s11, 1
    %p138 = por %p136, %p137
    %p139 = scmp.ne.s32.totalorder %s131, %s134
    %p140 = scmp.eq.s32.totalorder %s11, 0
    %p141 = por %p139, %p140
    %p142 = scmp.ne.s32.totalorder %s131, %s134
    %p143 = scmp.eq.s32.totalorder %s16, 1
    %p144 = por %p142, %p143
    %p145 = scmp.ne.s32.totalorder %s134, %s135
    %p146 = scmp.eq.s32.totalorder %s16, 0
    %p147 = por %p145, %p146
    %p148 = scmp.ne.s32.totalorder %s134, %s135
    %p149 = scmp.eq.s32.totalorder %s17, 1
    %p150 = por %p148, %p149
    %p152 = scmp.ne.s32.totalorder %s135, %s151
    %p153 = scmp.eq.s32.totalorder %s17, 0
    %p154 = por %p152, %p153
    %p155 = scmp.le.s32.totalorder 1, %s11
    %p156 = scmp.lt.s32.totalorder %s11, 3
    %p157 = pnand %p155, %p156
    %p158 = pneg %p157
    // Predicated region
    $region9: #{patch_embed_forward.7} parent=5 // pred_check
      _
    $region10: #{patch_embed_forward.7} parent=5 // pred_check_branch
      %160 = sbr.rel (%p157) target = $region12
    $region11: #{patch_embed_forward.7} parent=5 // pred_region
      %s161 = ssub.s32 %s11, 1
      // Predicated region
      $region13: #{patch_embed_forward.7} parent=11 // pred_check
        %p162 = pneg %p58
      $region14: #{patch_embed_forward.7} parent=11 // pred_check_branch
        %164 = sbr.rel (%p162) target = $region16
      $region15: #{patch_embed_forward.7} parent=11 // pred_region
        _
      $region16: #{patch_embed_forward.7} parent=11 // pred_fallthru
        _
      // Predicated region
      $region17: #{patch_embed_forward.7} parent=11 // pred_check
        %p165 = pneg %p79
      $region18: #{patch_embed_forward.7} parent=11 // pred_check_branch
        %167 = sbr.rel (%p165) target = $region20
      $region19: #{patch_embed_forward.7} parent=11 // pred_region
        _
      $region20: #{patch_embed_forward.7} parent=11 // pred_fallthru
        _
      // Predicated region
      $region21: #{patch_embed_forward.7} parent=11 // pred_check
        %p168 = pneg %p100
      $region22: #{patch_embed_forward.7} parent=11 // pred_check_branch
        %170 = sbr.rel (%p168) target = $region24
      $region23: #{patch_embed_forward.7} parent=11 // pred_region
        _
      $region24: #{patch_embed_forward.7} parent=11 // pred_fallthru
        _
      // Predicated region
      $region25: #{patch_embed_forward.7} parent=11 // pred_check
        %p171 = pneg %p121
      $region26: #{patch_embed_forward.7} parent=11 // pred_check_branch
        %173 = sbr.rel (%p171) target = $region28
      $region27: #{patch_embed_forward.7} parent=11 // pred_region
        _
      $region28: #{patch_embed_forward.7} parent=11 // pred_fallthru
        _
    $region12: #{patch_embed_forward.7} parent=5 // pred_fallthru
      _
    %p174 = scmp.lt.s32.totalorder %s11, 2
    // Predicated region
    $region29: #{patch_embed_forward.7} parent=5 // pred_check
      %p175 = pneg %p174
    $region30: #{patch_embed_forward.7} parent=5 // pred_check_branch
      %177 = sbr.rel (%p175) target = $region32
    $region31: #{patch_embed_forward.7} parent=5 // pred_region
      // Predicated region
      $region33: #{patch_embed_forward.7} parent=31 // pred_check
        %p178 = pneg %p31
      $region34: #{patch_embed_forward.7} parent=31 // pred_check_branch
        %180 = sbr.rel (%p178) target = $region36
      $region35: #{patch_embed_forward.7} parent=31 // pred_region
        %p181 = scmp.lt.s32.totalorder %s11, 1
        %s182 = scalar_select %p181, %s11, 1
        %s183 = smul.addr %s182, 6
        %s184 = smul.addr %s183, 4
        %s185 = scalar_lea.vmem %s0, %s184
      $region36: #{patch_embed_forward.7} parent=31 // pred_fallthru
        _
    $region32: #{patch_embed_forward.7} parent=5 // pred_fallthru
      _
    %p186 = scmp.le.s32.totalorder 1, %s11
    %p187 = scmp.lt.s32.totalorder %s11, 3
    %p188 = pnand %p186, %p187
    %p189 = pneg %p188
    // Predicated region
    $region37: #{patch_embed_forward.7} parent=5 // pred_check
      _
    $region38: #{patch_embed_forward.7} parent=5 // pred_check_branch
      %191 = sbr.rel (%p188) target = $region40
    $region39: #{patch_embed_forward.7} parent=5 // pred_region
      %s192 = ssub.s32 %s11, 1
      %p193 = scmp.lt.s32.totalorder %s16, 1
      %s194 = scalar_select %p193, %s16, 1
      %s195 = smul.addr %s194, 6
      %s196 = smul.addr %s195, 4
      %s197 = scalar_lea.vmem %s0, %s196
      %p198 = pneg %p37
      %p199 = pneg %p34
      %p200 = pneg %p58
      %p201 = pneg %p55
      %p202 = pneg %p79
      %p203 = pneg %p76
      %p204 = pneg %p100
      %p205 = pneg %p97
      %p206 = pneg %p121
      %p207 = pneg %p118
      %p208 = pneg %p147
      %p209 = pneg %p144
      %p210 = scmp.lt.s32.totalorder %s16, 1
      %s211 = scalar_select %p210, %s16, 1
      %s212 = smul.addr %s211, 3
      %s213 = smul.addr %s212, 8
      %s214 = scalar_lea.vmem %s5, %s213
      %p215 = scmp.lt.s32.totalorder %s16, 1
      %s216 = scalar_select %p215, %s16, 1
      %s217 = smul.addr %s216, 6
      %s218 = smul.addr %s217, 4
      %s219 = scalar_lea.vmem %s0, %s218
      %p220 = scmp.lt.s32.totalorder %s16, 1
      %s221 = scalar_select %p220, %s16, 1
      %s222 = smul.addr %s221, 3
      %s223 = smul.addr %s222, 8
      %s224 = scalar_lea.vmem %s5, %s223
      %v226 = vld [vmem:[%s219] sm:$0xf]
      %v227 = vld [vmem:[%s219 + $0x4] sm:$0xf]
      %v228 = vld [vmem:[%s219 + $0x8] sm:$0xf]
      %v229 = vld [vmem:[%s1] sm:$0xf]
      %v230 = vld [vmem:[%s1 + $0x4] sm:$0xf]
      %v231 = vld [vmem:[%s1 + $0x8] sm:$0xf]
      %v232 = vld [vmem:[%s1 + $0xc] sm:$0xf]
      %v233 = vld [vmem:[%s1 + $0x10] sm:$0xf]
      %v234 = vld [vmem:[%s1 + $0x14] sm:$0xf]
      %v235 = vld [vmem:[%s1 + $0x18] sm:$0xf]
      %v236 = vld [vmem:[%s1 + $0x1c] sm:$0xf]
      %v237 = vld [vmem:[%s1 + $0x20] sm:$0xf]
      %v238 = vld [vmem:[%s1 + $0x24] sm:$0xf]
      %v239 = vld [vmem:[%s1 + $0x28] sm:$0xf]
      %v240 = vld [vmem:[%s1 + $0x2c] sm:$0xf]
      %v241 = vld [vmem:[%s219 + $0xc] sm:$0x1]
      %s242 = scalar_lea.vmem %s1, 48
      %v243 = vld [vmem:[%s242] sm:$0xf]
      %v244 = vld [vmem:[%s242 + $0x4] sm:$0xf]
      %v245 = vld [vmem:[%s242 + $0x8] sm:$0xf]
      %v246 = vld [vmem:[%s242 + $0xc] sm:$0xf]
      %v247 = vld [vmem:[%s242 + $0x10] sm:$0xf]
      %v248 = vld [vmem:[%s242 + $0x14] sm:$0xf]
      %v249 = vld [vmem:[%s242 + $0x18] sm:$0xf]
      %v250 = vld [vmem:[%s242 + $0x1c] sm:$0xf]
      %v251 = vld [vmem:[%s242 + $0x20] sm:$0xf]
      %v252 = vld [vmem:[%s242 + $0x24] sm:$0xf]
      %v253 = vld [vmem:[%s242 + $0x28] sm:$0xf]
      %v254 = vld [vmem:[%s242 + $0x2c] sm:$0xf]
      %v259 = vunpack.c.l.b16 %v226
      %v260 = vunpack.c.l.b16 %v227
      %v261 = vunpack.c.l.b16 %v228
      %v262 = vunpack.c.l.b16 %v241
      %v263 = vpack.c.b16 %v260, %v259
      %v264 = vpack.c.b16 %v262, %v261
      %vm265 = vsmask.f32 7424
      %v267 = vshrl.u32 %v263, 16
      %v269 = vshll.u32 %v263, 16
      %v271 = vrot.slane %v269, 1
      %v272 = vor.u32 %v267, %v271
      %v274 = vshll.u32 %v264, 16
      %v276 = vrot.slane %v274, 1
      %v277 = vsel %vm265, %v272, %v276
      %v278 = vshrl.u32 %v264, 16
      %v280 = vor.u32 %v278, %v276
      %v293 = vunpack.c.l.b16 %v243
      %v294 = vunpack.c.l.b16 %v244
      %v295 = vunpack.c.l.b16 %v245
      %v296 = vunpack.c.l.b16 %v246
      %v297 = vunpack.c.l.b16 %v247
      %v298 = vunpack.c.l.b16 %v248
      %v299 = vunpack.c.l.b16 %v249
      %v300 = vunpack.c.l.b16 %v250
      %v301 = vunpack.c.l.b16 %v251
      %v302 = vunpack.c.l.b16 %v252
      %v303 = vunpack.c.l.b16 %v253
      %v304 = vunpack.c.l.b16 %v254
      %v305 = vpack.c.b16 %v294, %v293
      %v306 = vpack.c.b16 %v296, %v295
      %v307 = vpack.c.b16 %v298, %v297
      %v308 = vpack.c.b16 %v300, %v299
      %v309 = vpack.c.b16 %v302, %v301
      %v310 = vpack.c.b16 %v304, %v303
      %vm317 = vcmask 785408
      %v319 = vsel %vm317, %v277, 0
      %v322 = vsel %vm317, %v280, 0
      %324 = vmatprep.subr.bf16.mxu0 0
      %325 = vmatpush1.bf16.msra.mxu0 %v305
      %326 = vmatprep.subr.bf16.mxu0 0
      %327 = vmatpush1.bf16.msra.mxu0 %v306
      %328 = vmatprep.subr.bf16.mxu0 0
      %329 = vmatpush1.bf16.msra.mxu0 %v307
      %330 = vmatprep.subr.bf16.mxu0 0
      %331 = vmatpush1.bf16.msra.mxu0 %v308
      %332 = vmatprep.subr.bf16.mxu0 0
      %333 = vmatpush1.bf16.msra.mxu0 %v309
      %334 = vmatprep.subr.bf16.mxu0 0
      %335 = vmatpush1.bf16.msra.mxu0 %v310
      %336 = vmatprep.subr.bf16.mxu0 0
      %337 = vmatpush1.bf16.msra.mxu0 0
      %338 = vmatprep.subr.bf16.mxu0 0
      %339 = vmatpush1.bf16.msra.mxu0 0
      %340 = vmatprep.subr.bf16.mxu0 0
      %341 = vmatpush1.bf16.msra.mxu0 0
      %342 = vmatprep.subr.bf16.mxu0 0
      %343 = vmatpush1.bf16.msra.mxu0 0
      %344 = vmatprep.subr.bf16.mxu0 0
      %345 = vmatpush1.bf16.msra.mxu0 0
      %346 = vmatprep.subr.bf16.mxu0 0
      %347 = vmatpush1.bf16.msra.mxu0 0
      %348 = vmatprep.subr.bf16.mxu0 0
      %349 = vmatpush1.bf16.msra.mxu0 0
      %350 = vmatprep.subr.bf16.mxu0 0
      %351 = vmatpush1.bf16.msra.mxu0 0
      %352 = vmatprep.subr.bf16.mxu0 0
      %353 = vmatpush1.bf16.msra.mxu0 0
      %354 = vmatprep.subr.bf16.mxu0 0
      %355 = vmatpush1.bf16.msra.mxu0 0
      %356 = vmatprep.mubr.bf16.mxu0 0
      %357 = vmatmul.mubr.bf16.gmra.mrb[0].mxu0 %v319
      %v358 = vpop.f32.mrb[0].mxu0
      %v359 = vadd.f32 0.0, %v358
      %v360 = vpop.f32.mrb[0].mxu0
      %v361 = vpop.f32.mrb[0].mxu0
      %v362 = vadd.f32 0.0, %v361
      %v363 = vpop.f32.mrb[0].mxu0
      %364 = vmatprep.mubr.bf16.mxu0 0
      %365 = vmatmul.mubr.bf16.gmra.mrb[0].mxu0 %v322
      %v366 = vpop.f32.mrb[0].mxu0
      %v367 = vadd.f32 0.0, %v366
      %v368 = vpop.f32.mrb[0].mxu0
      %v369 = vpop.f32.mrb[0].mxu0
      %v370 = vpop.f32.mrb[0].mxu0
      %371 = vdwg.mxu0
      %v372 = vpack.c.b16 %v261, %v261
      %v385 = vunpack.c.l.b16 %v229
      %v386 = vunpack.c.l.b16 %v230
      %v387 = vunpack.c.l.b16 %v231
      %v388 = vunpack.c.l.b16 %v232
      %v389 = vunpack.c.l.b16 %v233
      %v390 = vunpack.c.l.b16 %v234
      %v391 = vunpack.c.l.b16 %v235
      %v392 = vunpack.c.l.b16 %v236
      %v393 = vunpack.c.l.b16 %v237
      %v394 = vunpack.c.l.b16 %v238
      %v395 = vunpack.c.l.b16 %v239
      %v396 = vunpack.c.l.b16 %v240
      %v397 = vpack.c.b16 %v386, %v385
      %v398 = vpack.c.b16 %v388, %v387
      %v399 = vpack.c.b16 %v390, %v389
      %v400 = vpack.c.b16 %v392, %v391
      %v401 = vpack.c.b16 %v394, %v393
      %v402 = vpack.c.b16 %v396, %v395
      %v409 = vsel %vm317, %v263, 0
      %v412 = vsel %vm317, %v372, 0
      %414 = vmatprep.subr.bf16.mxu0 0
      %415 = vmatpush1.bf16.msra.mxu0 %v397
      %416 = vmatprep.subr.bf16.mxu0 0
      %417 = vmatpush1.bf16.msra.mxu0 %v398
      %418 = vmatprep.subr.bf16.mxu0 0
      %419 = vmatpush1.bf16.msra.mxu0 %v399
      %420 = vmatprep.subr.bf16.mxu0 0
      %421 = vmatpush1.bf16.msra.mxu0 %v400
      %422 = vmatprep.subr.bf16.mxu0 0
      %423 = vmatpush1.bf16.msra.mxu0 %v401
      %424 = vmatprep.subr.bf16.mxu0 0
      %425 = vmatpush1.bf16.msra.mxu0 %v402
      %426 = vmatprep.subr.bf16.mxu0 0
      %427 = vmatpush1.bf16.msra.mxu0 0
      %428 = vmatprep.subr.bf16.mxu0 0
      %429 = vmatpush1.bf16.msra.mxu0 0
      %430 = vmatprep.subr.bf16.mxu0 0
      %431 = vmatpush1.bf16.msra.mxu0 0
      %432 = vmatprep.subr.bf16.mxu0 0
      %433 = vmatpush1.bf16.msra.mxu0 0
      %434 = vmatprep.subr.bf16.mxu0 0
      %435 = vmatpush1.bf16.msra.mxu0 0
      %436 = vmatprep.subr.bf16.mxu0 0
      %437 = vmatpush1.bf16.msra.mxu0 0
      %438 = vmatprep.subr.bf16.mxu0 0
      %439 = vmatpush1.bf16.msra.mxu0 0
      %440 = vmatprep.subr.bf16.mxu0 0
      %441 = vmatpush1.bf16.msra.mxu0 0
      %442 = vmatprep.subr.bf16.mxu0 0
      %443 = vmatpush1.bf16.msra.mxu0 0
      %444 = vmatprep.subr.bf16.mxu0 0
      %445 = vmatpush1.bf16.msra.mxu0 0
      %446 = vmatprep.mubr.bf16.mxu0 0
      %447 = vmatmul.mubr.bf16.gmra.mrb[0].mxu0 %v409
      %v448 = vpop.f32.mrb[0].mxu0
      %v449 = vadd.f32 %v359, %v448
      %v450 = vpop.f32.mrb[0].mxu0
      %v451 = vpop.f32.mrb[0].mxu0
      %v452 = vadd.f32 %v362, %v451
      %v453 = vpop.f32.mrb[0].mxu0
      %454 = vmatprep.mubr.bf16.mxu0 0
      %455 = vmatmul.mubr.bf16.gmra.mrb[0].mxu0 %v412
      %v456 = vpop.f32.mrb[0].mxu0
      %v457 = vadd.f32 %v367, %v456
      %v458 = vpop.f32.mrb[0].mxu0
      %v459 = vpop.f32.mrb[0].mxu0
      %v460 = vpop.f32.mrb[0].mxu0
      %461 = vdwg.mxu0
      %v462 = vld [vmem:[%s219] sm:$0xe]
      %s463 = scalar_lea.vmem %s1, 96
      %v464 = vld [vmem:[%s463] sm:$0xf]
      %v465 = vld [vmem:[%s463 + $0x4] sm:$0xf]
      %v466 = vld [vmem:[%s463 + $0x8] sm:$0xf]
      %v467 = vld [vmem:[%s463 + $0xc] sm:$0xf]
      %v468 = vld [vmem:[%s463 + $0x10] sm:$0xf]
      %v469 = vld [vmem:[%s463 + $0x14] sm:$0xf]
      %v470 = vld [vmem:[%s463 + $0x18] sm:$0xf]
      %v471 = vld [vmem:[%s463 + $0x1c] sm:$0xf]
      %v472 = vld [vmem:[%s463 + $0x20] sm:$0xf]
      %v473 = vld [vmem:[%s463 + $0x24] sm:$0xf]
      %v474 = vld [vmem:[%s463 + $0x28] sm:$0xf]
      %v475 = vld [vmem:[%s463 + $0x2c] sm:$0xf]
      %v477 = vunpack.c.l.b16 %v462
      %v478 = vpack.c.b16 %v260, %v477
      %vm479 = vcmask 1046528
      %v480 = vrot.slane %v478, 1
      %v481 = vrot.slane %v264, 1
      %v482 = vsel %vm479, %v480, %v481
      %v495 = vunpack.c.l.b16 %v464
      %v496 = vunpack.c.l.b16 %v465
      %v497 = vunpack.c.l.b16 %v466
      %v498 = vunpack.c.l.b16 %v467
      %v499 = vunpack.c.l.b16 %v468
      %v500 = vunpack.c.l.b16 %v469
      %v501 = vunpack.c.l.b16 %v470
      %v502 = vunpack.c.l.b16 %v471
      %v503 = vunpack.c.l.b16 %v472
      %v504 = vunpack.c.l.b16 %v473
      %v505 = vunpack.c.l.b16 %v474
      %v506 = vunpack.c.l.b16 %v475
      %v507 = vpack.c.b16 %v496, %v495
      %v508 = vpack.c.b16 %v498, %v497
      %v509 = vpack.c.b16 %v500, %v499
      %v510 = vpack.c.b16 %v502, %v501
      %v511 = vpack.c.b16 %v504, %v503
      %v512 = vpack.c.b16 %v506, %v505
      %v520 = vsel %vm317, %v482, 0
      %v523 = vsel %vm317, %v481, 0
      %525 = vmatprep.subr.bf16.mxu0 0
      %526 = vmatpush1.bf16.msra.mxu0 %v507
      %527 = vmatprep.subr.bf16.mxu0 0
      %528 = vmatpush1.bf16.msra.mxu0 %v508
      %529 = vmatprep.subr.bf16.mxu0 0
      %530 = vmatpush1.bf16.msra.mxu0 %v509
      %531 = vmatprep.subr.bf16.mxu0 0
      %532 = vmatpush1.bf16.msra.mxu0 %v510
      %533 = vmatprep.subr.bf16.mxu0 0
      %534 = vmatpush1.bf16.msra.mxu0 %v511
      %535 = vmatprep.subr.bf16.mxu0 0
      %536 = vmatpush1.bf16.msra.mxu0 %v512
      %537 = vmatprep.subr.bf16.mxu0 0
      %538 = vmatpush1.bf16.msra.mxu0 0
      %539 = vmatprep.subr.bf16.mxu0 0
      %540 = vmatpush1.bf16.msra.mxu0 0
      %541 = vmatprep.subr.bf16.mxu0 0
      %542 = vmatpush1.bf16.msra.mxu0 0
      %543 = vmatprep.subr.bf16.mxu0 0
      %544 = vmatpush1.bf16.msra.mxu0 0
      %545 = vmatprep.subr.bf16.mxu0 0
      %546 = vmatpush1.bf16.msra.mxu0 0
      %547 = vmatprep.subr.bf16.mxu0 0
      %548 = vmatpush1.bf16.msra.mxu0 0
      %549 = vmatprep.subr.bf16.mxu0 0
      %550 = vmatpush1.bf16.msra.mxu0 0
      %551 = vmatprep.subr.bf16.mxu0 0
      %552 = vmatpush1.bf16.msra.mxu0 0
      %553 = vmatprep.subr.bf16.mxu0 0
      %554 = vmatpush1.bf16.msra.mxu0 0
      %555 = vmatprep.subr.bf16.mxu0 0
      %556 = vmatpush1.bf16.msra.mxu0 0
      %557 = vmatprep.mubr.bf16.mxu0 0
      %558 = vmatmul.mubr.bf16.gmra.mrb[0].mxu0 %v520
      %v559 = vpop.f32.mrb[0].mxu0
      %v560 = vadd.f32 0.0, %v559
      %v561 = vpop.f32.mrb[0].mxu0
      %v562 = vpop.f32.mrb[0].mxu0
      %v563 = vadd.f32 0.0, %v562
      %v564 = vpop.f32.mrb[0].mxu0
      %565 = vmatprep.mubr.bf16.mxu0 0
      %566 = vmatmul.mubr.bf16.gmra.mrb[0].mxu0 %v523
      %v567 = vpop.f32.mrb[0].mxu0
      %v568 = vadd.f32 0.0, %v567
      %v569 = vpop.f32.mrb[0].mxu0
      %v570 = vpop.f32.mrb[0].mxu0
      %v571 = vpop.f32.mrb[0].mxu0
      %572 = vdwg.mxu0
      %v573 = vadd.f32 %v449, %v560
      %v574 = vadd.f32 %v452, %v563
      %v575 = vadd.f32 %v457, %v568
      %v576 = vld [vmem:[%s219] sm:$0x8]
      %v577 = vld [vmem:[%s219 + $0xc] sm:$0x7]
      %s578 = scalar_lea.vmem %s1, 144
      %v579 = vld [vmem:[%s578] sm:$0xf]
      %v580 = vld [vmem:[%s578 + $0x4] sm:$0xf]
      %v581 = vld [vmem:[%s578 + $0x8] sm:$0xf]
      %v582 = vld [vmem:[%s578 + $0xc] sm:$0xf]
      %v583 = vld [vmem:[%s578 + $0x10] sm:$0xf]
      %v584 = vld [vmem:[%s578 + $0x14] sm:$0xf]
      %v585 = vld [vmem:[%s578 + $0x18] sm:$0xf]
      %v586 = vld [vmem:[%s578 + $0x1c] sm:$0xf]
      %v587 = vld [vmem:[%s578 + $0x20] sm:$0xf]
      %v588 = vld [vmem:[%s578 + $0x24] sm:$0xf]
      %v589 = vld [vmem:[%s578 + $0x28] sm:$0xf]
      %v590 = vld [vmem:[%s578 + $0x2c] sm:$0xf]
      %v593 = vunpack.c.l.b16 %v576
      %v594 = vunpack.c.l.b16 %v577
      %v595 = vpack.c.b16 %v260, %v593
      %v596 = vpack.c.b16 %v594, %v261
      %vm597 = vcmask 1044480
      %v598 = vrot.slane %v595, 3
      %v599 = vrot.slane %v596, 3
      %v600 = vsel %vm597, %v598, %v599
      %v613 = vunpack.c.l.b16 %v579
      %v614 = vunpack.c.l.b16 %v580
      %v615 = vunpack.c.l.b16 %v581
      %v616 = vunpack.c.l.b16 %v582
      %v617 = vunpack.c.l.b16 %v583
      %v618 = vunpack.c.l.b16 %v584
      %v619 = vunpack.c.l.b16 %v585
      %v620 = vunpack.c.l.b16 %v586
      %v621 = vunpack.c.l.b16 %v587
      %v622 = vunpack.c.l.b16 %v588
      %v623 = vunpack.c.l.b16 %v589
      %v624 = vunpack.c.l.b16 %v590
      %v625 = vpack.c.b16 %v614, %v613
      %v626 = vpack.c.b16 %v616, %v615
      %v627 = vpack.c.b16 %v618, %v617
      %v628 = vpack.c.b16 %v620, %v619
      %v629 = vpack.c.b16 %v622, %v621
      %v630 = vpack.c.b16 %v624, %v623
      %v638 = vsel %vm317, %v600, 0
      %v641 = vsel %vm317, %v599, 0
      %643 = vmatprep.subr.bf16.mxu0 0
      %644 = vmatpush1.bf16.msra.mxu0 %v625
      %645 = vmatprep.subr.bf16.mxu0 0
      %646 = vmatpush1.bf16.msra.mxu0 %v626
      %647 = vmatprep.subr.bf16.mxu0 0
      %648 = vmatpush1.bf16.msra.mxu0 %v627
      %649 = vmatprep.subr.bf16.mxu0 0
      %650 = vmatpush1.bf16.msra.mxu0 %v628
      %651 = vmatprep.subr.bf16.mxu0 0
      %652 = vmatpush1.bf16.msra.mxu0 %v629
      %653 = vmatprep.subr.bf16.mxu0 0
      %654 = vmatpush1.bf16.msra.mxu0 %v630
      %655 = vmatprep.subr.bf16.mxu0 0
      %656 = vmatpush1.bf16.msra.mxu0 0
      %657 = vmatprep.subr.bf16.mxu0 0
      %658 = vmatpush1.bf16.msra.mxu0 0
      %659 = vmatprep.subr.bf16.mxu0 0
      %660 = vmatpush1.bf16.msra.mxu0 0
      %661 = vmatprep.subr.bf16.mxu0 0
      %662 = vmatpush1.bf16.msra.mxu0 0
      %663 = vmatprep.subr.bf16.mxu0 0
      %664 = vmatpush1.bf16.msra.mxu0 0
      %665 = vmatprep.subr.bf16.mxu0 0
      %666 = vmatpush1.bf16.msra.mxu0 0
      %667 = vmatprep.subr.bf16.mxu0 0
      %668 = vmatpush1.bf16.msra.mxu0 0
      %669 = vmatprep.subr.bf16.mxu0 0
      %670 = vmatpush1.bf16.msra.mxu0 0
      %671 = vmatprep.subr.bf16.mxu0 0
      %672 = vmatpush1.bf16.msra.mxu0 0
      %673 = vmatprep.subr.bf16.mxu0 0
      %674 = vmatpush1.bf16.msra.mxu0 0
      %675 = vmatprep.mubr.bf16.mxu0 0
      %676 = vmatmul.mubr.bf16.gmra.mrb[0].mxu0 %v638
      %v677 = vpop.f32.mrb[0].mxu0
      %v678 = vadd.f32 0.0, %v677
      %v679 = vpop.f32.mrb[0].mxu0
      %v680 = vpop.f32.mrb[0].mxu0
      %v681 = vadd.f32 0.0, %v680
      %v682 = vpop.f32.mrb[0].mxu0
      %683 = vmatprep.mubr.bf16.mxu0 0
      %684 = vmatmul.mubr.bf16.gmra.mrb[0].mxu0 %v641
      %v685 = vpop.f32.mrb[0].mxu0
      %v686 = vadd.f32 0.0, %v685
      %v687 = vpop.f32.mrb[0].mxu0
      %v688 = vpop.f32.mrb[0].mxu0
      %v689 = vpop.f32.mrb[0].mxu0
      %690 = vdwg.mxu0
      %v691 = vadd.f32 %v573, %v678
      %v692 = vadd.f32 %v574, %v681
      %v693 = vadd.f32 %v575, %v686
      %v694 = vld [vmem:[%s219 + $0xc] sm:$0xf]
      %s695 = scalar_lea.vmem %s1, 192
      %v696 = vld [vmem:[%s695] sm:$0xf]
      %v697 = vld [vmem:[%s695 + $0x4] sm:$0xf]
      %v698 = vld [vmem:[%s695 + $0x8] sm:$0xf]
      %v699 = vld [vmem:[%s695 + $0xc] sm:$0xf]
      %v700 = vld [vmem:[%s695 + $0x10] sm:$0xf]
      %v701 = vld [vmem:[%s695 + $0x14] sm:$0xf]
      %v702 = vld [vmem:[%s695 + $0x18] sm:$0xf]
      %v703 = vld [vmem:[%s695 + $0x1c] sm:$0xf]
      %v704 = vld [vmem:[%s695 + $0x20] sm:$0xf]
      %v705 = vld [vmem:[%s695 + $0x24] sm:$0xf]
      %v706 = vld [vmem:[%s695 + $0x28] sm:$0xf]
      %v707 = vld [vmem:[%s695 + $0x2c] sm:$0xf]
      %v709 = vunpack.c.l.b16 %v694
      %v710 = vpack.c.b16 %v709, %v261
      %vm711 = vsmask.f32 4352
      %v713 = vshrl.u32 %v595, 16
      %v715 = vrot.slane %v713, 3
      %v716 = vshll.u32 %v595, 16
      %v718 = vrot.slane %v716, 4
      %v719 = vor.u32 %v715, %v718
      %v721 = vshrl.u32 %v710, 16
      %v723 = vrot.slane %v721, 3
      %v724 = vshll.u32 %v710, 16
      %v726 = vrot.slane %v724, 4
      %v727 = vor.u32 %v723, %v726
      %v728 = vsel %vm711, %v719, %v727
      %v741 = vunpack.c.l.b16 %v696
      %v742 = vunpack.c.l.b16 %v697
      %v743 = vunpack.c.l.b16 %v698
      %v744 = vunpack.c.l.b16 %v699
      %v745 = vunpack.c.l.b16 %v700
      %v746 = vunpack.c.l.b16 %v701
      %v747 = vunpack.c.l.b16 %v702
      %v748 = vunpack.c.l.b16 %v703
      %v749 = vunpack.c.l.b16 %v704
      %v750 = vunpack.c.l.b16 %v705
      %v751 = vunpack.c.l.b16 %v706
      %v752 = vunpack.c.l.b16 %v707
      %v753 = vpack.c.b16 %v742, %v741
      %v754 = vpack.c.b16 %v744, %v743
      %v755 = vpack.c.b16 %v746, %v745
      %v756 = vpack.c.b16 %v748, %v747
      %v757 = vpack.c.b16 %v750, %v749
      %v758 = vpack.c.b16 %v752, %v751
      %v766 = vsel %vm317, %v728, 0
      %v769 = vsel %vm317, %v727, 0
      %771 = vmatprep.subr.bf16.mxu0 0
      %772 = vmatpush1.bf16.msra.mxu0 %v753
      %773 = vmatprep.subr.bf16.mxu0 0
      %774 = vmatpush1.bf16.msra.mxu0 %v754
      %775 = vmatprep.subr.bf16.mxu0 0
      %776 = vmatpush1.bf16.msra.mxu0 %v755
      %777 = vmatprep.subr.bf16.mxu0 0
      %778 = vmatpush1.bf16.msra.mxu0 %v756
      %779 = vmatprep.subr.bf16.mxu0 0
      %780 = vmatpush1.bf16.msra.mxu0 %v757
      %781 = vmatprep.subr.bf16.mxu0 0
      %782 = vmatpush1.bf16.msra.mxu0 %v758
      %783 = vmatprep.subr.bf16.mxu0 0
      %784 = vmatpush1.bf16.msra.mxu0 0
      %785 = vmatprep.subr.bf16.mxu0 0
      %786 = vmatpush1.bf16.msra.mxu0 0
      %787 = vmatprep.subr.bf16.mxu0 0
      %788 = vmatpush1.bf16.msra.mxu0 0
      %789 = vmatprep.subr.bf16.mxu0 0
      %790 = vmatpush1.bf16.msra.mxu0 0
      %791 = vmatprep.subr.bf16.mxu0 0
      %792 = vmatpush1.bf16.msra.mxu0 0
      %793 = vmatprep.subr.bf16.mxu0 0
      %794 = vmatpush1.bf16.msra.mxu0 0
      %795 = vmatprep.subr.bf16.mxu0 0
      %796 = vmatpush1.bf16.msra.mxu0 0
      %797 = vmatprep.subr.bf16.mxu0 0
      %798 = vmatpush1.bf16.msra.mxu0 0
      %799 = vmatprep.subr.bf16.mxu0 0
      %800 = vmatpush1.bf16.msra.mxu0 0
      %801 = vmatprep.subr.bf16.mxu0 0
      %802 = vmatpush1.bf16.msra.mxu0 0
      %803 = vmatprep.mubr.bf16.mxu0 0
      %804 = vmatmul.mubr.bf16.gmra.mrb[0].mxu0 %v766
      %v805 = vpop.f32.mrb[0].mxu0
      %v806 = vadd.f32 0.0, %v805
      %v807 = vpop.f32.mrb[0].mxu0
      %v808 = vpop.f32.mrb[0].mxu0
      %v809 = vadd.f32 0.0, %v808
      %v810 = vpop.f32.mrb[0].mxu0
      %811 = vmatprep.mubr.bf16.mxu0 0
      %812 = vmatmul.mubr.bf16.gmra.mrb[0].mxu0 %v769
      %v813 = vpop.f32.mrb[0].mxu0
      %v814 = vadd.f32 0.0, %v813
      %v815 = vpop.f32.mrb[0].mxu0
      %v816 = vpop.f32.mrb[0].mxu0
      %v817 = vpop.f32.mrb[0].mxu0
      %818 = vdwg.mxu0
      %v819 = vadd.f32 %v691, %v806
      %v820 = vadd.f32 %v692, %v809
      %v821 = vadd.f32 %v693, %v814
      %s822 = scalar_lea.vmem %s1, 240
      %v823 = vld [vmem:[%s822] sm:$0xf]
      %v824 = vld [vmem:[%s822 + $0x4] sm:$0xf]
      %v825 = vld [vmem:[%s822 + $0x8] sm:$0xf]
      %v826 = vld [vmem:[%s822 + $0xc] sm:$0xf]
      %v827 = vld [vmem:[%s822 + $0x10] sm:$0xf]
      %v828 = vld [vmem:[%s822 + $0x14] sm:$0xf]
      %v829 = vld [vmem:[%s822 + $0x18] sm:$0xf]
      %v830 = vld [vmem:[%s822 + $0x1c] sm:$0xf]
      %v831 = vld [vmem:[%s822 + $0x20] sm:$0xf]
      %v832 = vld [vmem:[%s822 + $0x24] sm:$0xf]
      %v833 = vld [vmem:[%s822 + $0x28] sm:$0xf]
      %v834 = vld [vmem:[%s822 + $0x2c] sm:$0xf]
      %v835 = vpack.c.b16 %v261, %v260
      %v836 = vpack.c.b16 %v709, %v709
      %v849 = vunpack.c.l.b16 %v823
      %v850 = vunpack.c.l.b16 %v824
      %v851 = vunpack.c.l.b16 %v825
      %v852 = vunpack.c.l.b16 %v826
      %v853 = vunpack.c.l.b16 %v827
      %v854 = vunpack.c.l.b16 %v828
      %v855 = vunpack.c.l.b16 %v829
      %v856 = vunpack.c.l.b16 %v830
      %v857 = vunpack.c.l.b16 %v831
      %v858 = vunpack.c.l.b16 %v832
      %v859 = vunpack.c.l.b16 %v833
      %v860 = vunpack.c.l.b16 %v834
      %v861 = vpack.c.b16 %v850, %v849
      %v862 = vpack.c.b16 %v852, %v851
      %v863 = vpack.c.b16 %v854, %v853
      %v864 = vpack.c.b16 %v856, %v855
      %v865 = vpack.c.b16 %v858, %v857
      %v866 = vpack.c.b16 %v860, %v859
      %v874 = vsel %vm317, %v835, 0
      %v877 = vsel %vm317, %v836, 0
      %879 = vmatprep.subr.bf16.mxu0 0
      %880 = vmatpush1.bf16.msra.mxu0 %v861
      %881 = vmatprep.subr.bf16.mxu0 0
      %882 = vmatpush1.bf16.msra.mxu0 %v862
      %883 = vmatprep.subr.bf16.mxu0 0
      %884 = vmatpush1.bf16.msra.mxu0 %v863
      %885 = vmatprep.subr.bf16.mxu0 0
      %886 = vmatpush1.bf16.msra.mxu0 %v864
      %887 = vmatprep.subr.bf16.mxu0 0
      %888 = vmatpush1.bf16.msra.mxu0 %v865
      %889 = vmatprep.subr.bf16.mxu0 0
      %890 = vmatpush1.bf16.msra.mxu0 %v866
      %891 = vmatprep.subr.bf16.mxu0 0
      %892 = vmatpush1.bf16.msra.mxu0 0
      %893 = vmatprep.subr.bf16.mxu0 0
      %894 = vmatpush1.bf16.msra.mxu0 0
      %895 = vmatprep.subr.bf16.mxu0 0
      %896 = vmatpush1.bf16.msra.mxu0 0
      %897 = vmatprep.subr.bf16.mxu0 0
      %898 = vmatpush1.bf16.msra.mxu0 0
      %899 = vmatprep.subr.bf16.mxu0 0
      %900 = vmatpush1.bf16.msra.mxu0 0
      %901 = vmatprep.subr.bf16.mxu0 0
      %902 = vmatpush1.bf16.msra.mxu0 0
      %903 = vmatprep.subr.bf16.mxu0 0
      %904 = vmatpush1.bf16.msra.mxu0 0
      %905 = vmatprep.subr.bf16.mxu0 0
      %906 = vmatpush1.bf16.msra.mxu0 0
      %907 = vmatprep.subr.bf16.mxu0 0
      %908 = vmatpush1.bf16.msra.mxu0 0
      %909 = vmatprep.subr.bf16.mxu0 0
      %910 = vmatpush1.bf16.msra.mxu0 0
      %911 = vmatprep.mubr.bf16.mxu0 0
      %912 = vmatmul.mubr.bf16.gmra.mrb[0].mxu0 %v874
      %v913 = vpop.f32.mrb[0].mxu0
      %v914 = vadd.f32 0.0, %v913
      %v915 = vpop.f32.mrb[0].mxu0
      %v916 = vpop.f32.mrb[0].mxu0
      %v917 = vadd.f32 0.0, %v916
      %v918 = vpop.f32.mrb[0].mxu0
      %919 = vmatprep.mubr.bf16.mxu0 0
      %920 = vmatmul.mubr.bf16.gmra.mrb[0].mxu0 %v877
      %v921 = vpop.f32.mrb[0].mxu0
      %v922 = vadd.f32 0.0, %v921
      %v923 = vpop.f32.mrb[0].mxu0
      %v924 = vpop.f32.mrb[0].mxu0
      %v925 = vpop.f32.mrb[0].mxu0
      %926 = vdwg.mxu0
      %v927 = vadd.f32 %v819, %v914
      %v928 = vadd.f32 %v820, %v917
      %v929 = vadd.f32 %v821, %v922
      %v930 = vld [vmem:[%s219 + $0x4] sm:$0xc]
      %v931 = vld [vmem:[%s219 + $0x8] sm:$0xf]
      %v932 = vld [vmem:[%s219 + $0xc] sm:$0xf]
      %v933 = vld [vmem:[%s219 + $0x10] sm:$0x3]
      %s934 = scalar_lea.vmem %s1, 288
      %v935 = vld [vmem:[%s934] sm:$0xf]
      %v936 = vld [vmem:[%s934 + $0x4] sm:$0xf]
      %v937 = vld [vmem:[%s934 + $0x8] sm:$0xf]
      %v938 = vld [vmem:[%s934 + $0xc] sm:$0xf]
      %v939 = vld [vmem:[%s934 + $0x10] sm:$0xf]
      %v940 = vld [vmem:[%s934 + $0x14] sm:$0xf]
      %v941 = vld [vmem:[%s934 + $0x18] sm:$0xf]
      %v942 = vld [vmem:[%s934 + $0x1c] sm:$0xf]
      %v943 = vld [vmem:[%s934 + $0x20] sm:$0xf]
      %v944 = vld [vmem:[%s934 + $0x24] sm:$0xf]
      %v945 = vld [vmem:[%s934 + $0x28] sm:$0xf]
      %v946 = vld [vmem:[%s934 + $0x2c] sm:$0xf]
      %v951 = vunpack.c.l.b16 %v930
      %v952 = vunpack.c.l.b16 %v931
      %v953 = vunpack.c.l.b16 %v932
      %v954 = vunpack.c.l.b16 %v933
      %v955 = vpack.c.b16 %v952, %v951
      %v956 = vpack.c.b16 %v954, %v953
      %vm957 = vcmask 1045504
      %v958 = vrot.slane %v955, 2
      %v959 = vrot.slane %v956, 2
      %v960 = vsel %vm957, %v958, %v959
      %v973 = vunpack.c.l.b16 %v935
      %v974 = vunpack.c.l.b16 %v936
      %v975 = vunpack.c.l.b16 %v937
      %v976 = vunpack.c.l.b16 %v938
      %v977 = vunpack.c.l.b16 %v939
      %v978 = vunpack.c.l.b16 %v940
      %v979 = vunpack.c.l.b16 %v941
      %v980 = vunpack.c.l.b16 %v942
      %v981 = vunpack.c.l.b16 %v943
      %v982 = vunpack.c.l.b16 %v944
      %v983 = vunpack.c.l.b16 %v945
      %v984 = vunpack.c.l.b16 %v946
      %v985 = vpack.c.b16 %v974, %v973
      %v986 = vpack.c.b16 %v976, %v975
      %v987 = vpack.c.b16 %v978, %v977
      %v988 = vpack.c.b16 %v980, %v979
      %v989 = vpack.c.b16 %v982, %v981
      %v990 = vpack.c.b16 %v984, %v983
      %v998 = vsel %vm317, %v960, 0
      %v1001 = vsel %vm317, %v959, 0
      %1003 = vmatprep.subr.bf16.mxu0 0
      %1004 = vmatpush1.bf16.msra.mxu0 %v985
      %1005 = vmatprep.subr.bf16.mxu0 0
      %1006 = vmatpush1.bf16.msra.mxu0 %v986
      %1007 = vmatprep.subr.bf16.mxu0 0
      %1008 = vmatpush1.bf16.msra.mxu0 %v987
      %1009 = vmatprep.subr.bf16.mxu0 0
      %1010 = vmatpush1.bf16.msra.mxu0 %v988
      %1011 = vmatprep.subr.bf16.mxu0 0
      %1012 = vmatpush1.bf16.msra.mxu0 %v989
      %1013 = vmatprep.subr.bf16.mxu0 0
      %1014 = vmatpush1.bf16.msra.mxu0 %v990
      %1015 = vmatprep.subr.bf16.mxu0 0
      %1016 = vmatpush1.bf16.msra.mxu0 0
      %1017 = vmatprep.subr.bf16.mxu0 0
      %1018 = vmatpush1.bf16.msra.mxu0 0
      %1019 = vmatprep.subr.bf16.mxu0 0
      %1020 = vmatpush1.bf16.msra.mxu0 0
      %1021 = vmatprep.subr.bf16.mxu0 0
      %1022 = vmatpush1.bf16.msra.mxu0 0
      %1023 = vmatprep.subr.bf16.mxu0 0
      %1024 = vmatpush1.bf16.msra.mxu0 0
      %1025 = vmatprep.subr.bf16.mxu0 0
      %1026 = vmatpush1.bf16.msra.mxu0 0
      %1027 = vmatprep.subr.bf16.mxu0 0
      %1028 = vmatpush1.bf16.msra.mxu0 0
      %1029 = vmatprep.subr.bf16.mxu0 0
      %1030 = vmatpush1.bf16.msra.mxu0 0
      %1031 = vmatprep.subr.bf16.mxu0 0
      %1032 = vmatpush1.bf16.msra.mxu0 0
      %1033 = vmatprep.subr.bf16.mxu0 0
      %1034 = vmatpush1.bf16.msra.mxu0 0
      %1035 = vmatprep.mubr.bf16.mxu0 0
      %1036 = vmatmul.mubr.bf16.gmra.mrb[0].mxu0 %v998
      %v1037 = vpop.f32.mrb[0].mxu0
      %v1038 = vadd.f32 0.0, %v1037
      %v1039 = vpop.f32.mrb[0].mxu0
      %v1040 = vpop.f32.mrb[0].mxu0
      %v1041 = vadd.f32 0.0, %v1040
      %v1042 = vpop.f32.mrb[0].mxu0
      %1043 = vmatprep.mubr.bf16.mxu0 0
      %1044 = vmatmul.mubr.bf16.gmra.mrb[0].mxu0 %v1001
      %v1045 = vpop.f32.mrb[0].mxu0
      %v1046 = vadd.f32 0.0, %v1045
      %v1047 = vpop.f32.mrb[0].mxu0
      %v1048 = vpop.f32.mrb[0].mxu0
      %v1049 = vpop.f32.mrb[0].mxu0
      %1050 = vdwg.mxu0
      %v1051 = vadd.f32 %v927, %v1038
      %v1052 = vadd.f32 %v928, %v1041
      %v1053 = vadd.f32 %v929, %v1046
      %v1054 = vld [vmem:[%s219 + $0x10] sm:$0x7]
      %s1055 = scalar_lea.vmem %s1, 336
      %v1056 = vld [vmem:[%s1055] sm:$0xf]
      %v1057 = vld [vmem:[%s1055 + $0x4] sm:$0xf]
      %v1058 = vld [vmem:[%s1055 + $0x8] sm:$0xf]
      %v1059 = vld [vmem:[%s1055 + $0xc] sm:$0xf]
      %v1060 = vld [vmem:[%s1055 + $0x10] sm:$0xf]
      %v1061 = vld [vmem:[%s1055 + $0x14] sm:$0xf]
      %v1062 = vld [vmem:[%s1055 + $0x18] sm:$0xf]
      %v1063 = vld [vmem:[%s1055 + $0x1c] sm:$0xf]
      %v1064 = vld [vmem:[%s1055 + $0x20] sm:$0xf]
      %v1065 = vld [vmem:[%s1055 + $0x24] sm:$0xf]
      %v1066 = vld [vmem:[%s1055 + $0x28] sm:$0xf]
      %v1067 = vld [vmem:[%s1055 + $0x2c] sm:$0xf]
      %v1069 = vunpack.c.l.b16 %v1054
      %v1070 = vpack.c.b16 %v1069, %v953
      %vm1071 = vsmask.f32 5376
      %v1073 = vshrl.u32 %v955, 16
      %v1075 = vrot.slane %v1073, 2
      %v1076 = vshll.u32 %v955, 16
      %v1078 = vrot.slane %v1076, 3
      %v1079 = vor.u32 %v1075, %v1078
      %v1081 = vshrl.u32 %v1070, 16
      %v1083 = vrot.slane %v1081, 2
      %v1084 = vshll.u32 %v1070, 16
      %v1086 = vrot.slane %v1084, 3
      %v1087 = vor.u32 %v1083, %v1086
      %v1088 = vsel %vm1071, %v1079, %v1087
      %v1101 = vunpack.c.l.b16 %v1056
      %v1102 = vunpack.c.l.b16 %v1057
      %v1103 = vunpack.c.l.b16 %v1058
      %v1104 = vunpack.c.l.b16 %v1059
      %v1105 = vunpack.c.l.b16 %v1060
      %v1106 = vunpack.c.l.b16 %v1061
      %v1107 = vunpack.c.l.b16 %v1062
      %v1108 = vunpack.c.l.b16 %v1063
      %v1109 = vunpack.c.l.b16 %v1064
      %v1110 = vunpack.c.l.b16 %v1065
      %v1111 = vunpack.c.l.b16 %v1066
      %v1112 = vunpack.c.l.b16 %v1067
      %v1113 = vpack.c.b16 %v1102, %v1101
      %v1114 = vpack.c.b16 %v1104, %v1103
      %v1115 = vpack.c.b16 %v1106, %v1105
      %v1116 = vpack.c.b16 %v1108, %v1107
      %v1117 = vpack.c.b16 %v1110, %v1109
      %v1118 = vpack.c.b16 %v1112, %v1111
      %v1126 = vsel %vm317, %v1088, 0
      %v1129 = vsel %vm317, %v1087, 0
      %1131 = vmatprep.subr.bf16.mxu0 0
      %1132 = vmatpush1.bf16.msra.mxu0 %v1113
      %1133 = vmatprep.subr.bf16.mxu0 0
      %1134 = vmatpush1.bf16.msra.mxu0 %v1114
      %1135 = vmatprep.subr.bf16.mxu0 0
      %1136 = vmatpush1.bf16.msra.mxu0 %v1115
      %1137 = vmatprep.subr.bf16.mxu0 0
      %1138 = vmatpush1.bf16.msra.mxu0 %v1116
      %1139 = vmatprep.subr.bf16.mxu0 0
      %1140 = vmatpush1.bf16.msra.mxu0 %v1117
      %1141 = vmatprep.subr.bf16.mxu0 0
      %1142 = vmatpush1.bf16.msra.mxu0 %v1118
      %1143 = vmatprep.subr.bf16.mxu0 0
      %1144 = vmatpush1.bf16.msra.mxu0 0
      %1145 = vmatprep.subr.bf16.mxu0 0
      %1146 = vmatpush1.bf16.msra.mxu0 0
      %1147 = vmatprep.subr.bf16.mxu0 0
      %1148 = vmatpush1.bf16.msra.mxu0 0
      %1149 = vmatprep.subr.bf16.mxu0 0
      %1150 = vmatpush1.bf16.msra.mxu0 0
      %1151 = vmatprep.subr.bf16.mxu0 0
      %1152 = vmatpush1.bf16.msra.mxu0 0
      %1153 = vmatprep.subr.bf16.mxu0 0
      %1154 = vmatpush1.bf16.msra.mxu0 0
      %1155 = vmatprep.subr.bf16.mxu0 0
      %1156 = vmatpush1.bf16.msra.mxu0 0
      %1157 = vmatprep.subr.bf16.mxu0 0
      %1158 = vmatpush1.bf16.msra.mxu0 0
      %1159 = vmatprep.subr.bf16.mxu0 0
      %1160 = vmatpush1.bf16.msra.mxu0 0
      %1161 = vmatprep.subr.bf16.mxu0 0
      %1162 = vmatpush1.bf16.msra.mxu0 0
      %1163 = vmatprep.mubr.bf16.mxu0 0
      %1164 = vmatmul.mubr.bf16.gmra.mrb[0].mxu0 %v1126
      %v1165 = vpop.f32.mrb[0].mxu0
      %v1166 = vadd.f32 0.0, %v1165
      %v1167 = vpop.f32.mrb[0].mxu0
      %v1168 = vpop.f32.mrb[0].mxu0
      %v1169 = vadd.f32 0.0, %v1168
      %v1170 = vpop.f32.mrb[0].mxu0
      %1171 = vmatprep.mubr.bf16.mxu0 0
      %1172 = vmatmul.mubr.bf16.gmra.mrb[0].mxu0 %v1129
      %v1173 = vpop.f32.mrb[0].mxu0
      %v1174 = vadd.f32 0.0, %v1173
      %v1175 = vpop.f32.mrb[0].mxu0
      %v1176 = vpop.f32.mrb[0].mxu0
      %v1177 = vpop.f32.mrb[0].mxu0
      %1178 = vdwg.mxu0
      %v1179 = vadd.f32 %v1051, %v1166
      %v1180 = vadd.f32 %v1052, %v1169
      %v1181 = vadd.f32 %v1053, %v1174
      %v1182 = vld [vmem:[%s219 + $0x4] sm:$0x8]
      %s1183 = scalar_lea.vmem %s1, 384
      %v1184 = vld [vmem:[%s1183] sm:$0xf]
      %v1185 = vld [vmem:[%s1183 + $0x4] sm:$0xf]
      %v1186 = vld [vmem:[%s1183 + $0x8] sm:$0xf]
      %v1187 = vld [vmem:[%s1183 + $0xc] sm:$0xf]
      %v1188 = vld [vmem:[%s1183 + $0x10] sm:$0xf]
      %v1189 = vld [vmem:[%s1183 + $0x14] sm:$0xf]
      %v1190 = vld [vmem:[%s1183 + $0x18] sm:$0xf]
      %v1191 = vld [vmem:[%s1183 + $0x1c] sm:$0xf]
      %v1192 = vld [vmem:[%s1183 + $0x20] sm:$0xf]
      %v1193 = vld [vmem:[%s1183 + $0x24] sm:$0xf]
      %v1194 = vld [vmem:[%s1183 + $0x28] sm:$0xf]
      %v1195 = vld [vmem:[%s1183 + $0x2c] sm:$0xf]
      %v1197 = vunpack.c.l.b16 %v1182
      %v1198 = vpack.c.b16 %v952, %v1197
      %v1199 = vrot.slane %v1198, 3
      %v1200 = vrot.slane %v1070, 3
      %v1201 = vsel %vm597, %v1199, %v1200
      %v1214 = vunpack.c.l.b16 %v1184
      %v1215 = vunpack.c.l.b16 %v1185
      %v1216 = vunpack.c.l.b16 %v1186
      %v1217 = vunpack.c.l.b16 %v1187
      %v1218 = vunpack.c.l.b16 %v1188
      %v1219 = vunpack.c.l.b16 %v1189
      %v1220 = vunpack.c.l.b16 %v1190
      %v1221 = vunpack.c.l.b16 %v1191
      %v1222 = vunpack.c.l.b16 %v1192
      %v1223 = vunpack.c.l.b16 %v1193
      %v1224 = vunpack.c.l.b16 %v1194
      %v1225 = vunpack.c.l.b16 %v1195
      %v1226 = vpack.c.b16 %v1215, %v1214
      %v1227 = vpack.c.b16 %v1217, %v1216
      %v1228 = vpack.c.b16 %v1219, %v1218
      %v1229 = vpack.c.b16 %v1221, %v1220
      %v1230 = vpack.c.b16 %v1223, %v1222
      %v1231 = vpack.c.b16 %v1225, %v1224
      %v1239 = vsel %vm317, %v1201, 0
      %v1242 = vsel %vm317, %v1200, 0
      %1244 = vmatprep.subr.bf16.mxu0 0
      %1245 = vmatpush1.bf16.msra.mxu0 %v1226
      %1246 = vmatprep.subr.bf16.mxu0 0
      %1247 = vmatpush1.bf16.msra.mxu0 %v1227
      %1248 = vmatprep.subr.bf16.mxu0 0
      %1249 = vmatpush1.bf16.msra.mxu0 %v1228
      %1250 = vmatprep.subr.bf16.mxu0 0
      %1251 = vmatpush1.bf16.msra.mxu0 %v1229
      %1252 = vmatprep.subr.bf16.mxu0 0
      %1253 = vmatpush1.bf16.msra.mxu0 %v1230
      %1254 = vmatprep.subr.bf16.mxu0 0
      %1255 = vmatpush1.bf16.msra.mxu0 %v1231
      %1256 = vmatprep.subr.bf16.mxu0 0
      %1257 = vmatpush1.bf16.msra.mxu0 0
      %1258 = vmatprep.subr.bf16.mxu0 0
      %1259 = vmatpush1.bf16.msra.mxu0 0
      %1260 = vmatprep.subr.bf16.mxu0 0
      %1261 = vmatpush1.bf16.msra.mxu0 0
      %1262 = vmatprep.subr.bf16.mxu0 0
      %1263 = vmatpush1.bf16.msra.mxu0 0
      %1264 = vmatprep.subr.bf16.mxu0 0
      %1265 = vmatpush1.bf16.msra.mxu0 0
      %1266 = vmatprep.subr.bf16.mxu0 0
      %1267 = vmatpush1.bf16.msra.mxu0 0
      %1268 = vmatprep.subr.bf16.mxu0 0
      %1269 = vmatpush1.bf16.msra.mxu0 0
      %1270 = vmatprep.subr.bf16.mxu0 0
      %1271 = vmatpush1.bf16.msra.mxu0 0
      %1272 = vmatprep.subr.bf16.mxu0 0
      %1273 = vmatpush1.bf16.msra.mxu0 0
      %1274 = vmatprep.subr.bf16.mxu0 0
      %1275 = vmatpush1.bf16.msra.mxu0 0
      %1276 = vmatprep.mubr.bf16.mxu0 0
      %1277 = vmatmul.mubr.bf16.gmra.mrb[0].mxu0 %v1239
      %v1278 = vpop.f32.mrb[0].mxu0
      %v1279 = vadd.f32 0.0, %v1278
      %v1280 = vpop.f32.mrb[0].mxu0
      %v1281 = vpop.f32.mrb[0].mxu0
      %v1282 = vadd.f32 0.0, %v1281
      %v1283 = vpop.f32.mrb[0].mxu0
      %1284 = vmatprep.mubr.bf16.mxu0 0
      %1285 = vmatmul.mubr.bf16.gmra.mrb[0].mxu0 %v1242
      %v1286 = vpop.f32.mrb[0].mxu0
      %v1287 = vadd.f32 0.0, %v1286
      %v1288 = vpop.f32.mrb[0].mxu0
      %v1289 = vpop.f32.mrb[0].mxu0
      %v1290 = vpop.f32.mrb[0].mxu0
      %1291 = vdwg.mxu0
      %v1292 = vadd.f32 %v1179, %v1279
      %v1293 = vadd.f32 %v1180, %v1282
      %v1294 = vadd.f32 %v1181, %v1287
      %v1295 = vld [vmem:[%s2] sm:$0x1]
      %v1297 = vlaneseq
      %v1298 = vshrl.u32 %v1297, 7
      %v1299 = vsub.s32 0, %v1298
      %v1300 = vrot.slane %v1295, %v1299
      %v1302 = vadd.f32 %v1292, %v1300
      %v1303 = vadd.f32 %v1293, %v1300
      %v1304 = vadd.f32 %v1294, %v1300
      %1305 = vst [vmem:[%s224] sm:$0xff] %v1302
      %1306 = vst [vmem:[%s224 + $0x8] sm:$0xff] %v1303
      %1307 = vst [vmem:[%s224 + $0x10] sm:$0xff] %v1304
      %p1308 = scmp.lt.s32.totalorder %s16, 1
      %s1309 = scalar_select %p1308, %s16, 1
      %s1310 = smul.addr %s1309, 3
      %s1311 = smul.addr %s1310, 8
      %s1312 = scalar_lea.vmem %s5, %s1311
      // Predicated region
      $region41: #{patch_embed_forward.7} parent=39 // pred_check
        %p1313 = pneg %p144
      $region42: #{patch_embed_forward.7} parent=39 // pred_check_branch
        %1315 = sbr.rel (%p1313) target = $region44
      $region43: #{patch_embed_forward.7} parent=39 // pred_region
        _
      $region44: #{patch_embed_forward.7} parent=39 // pred_fallthru
        _
    $region40: #{patch_embed_forward.7} parent=5 // pred_fallthru
      _
    %p1316 = scmp.le.s32.totalorder 2, %s11
    // Predicated region
    $region45: #{patch_embed_forward.7} parent=5 // pred_check
      %p1317 = pneg %p1316
    $region46: #{patch_embed_forward.7} parent=5 // pred_check_branch
      %1319 = sbr.rel (%p1317) target = $region48
    $region47: #{patch_embed_forward.7} parent=5 // pred_region
      %s1320 = ssub.s32 %s11, 2
      // Predicated region
      $region49: #{patch_embed_forward.7} parent=47 // pred_check
        %p1321 = pneg %p150
      $region50: #{patch_embed_forward.7} parent=47 // pred_check_branch
        %1323 = sbr.rel (%p1321) target = $region52
      $region51: #{patch_embed_forward.7} parent=47 // pred_region
        %p1324 = scmp.lt.s32.totalorder %s17, 1
        %s1325 = scalar_select %p1324, %s17, 1
        %s1326 = smul.addr %s1325, 3
        %s1327 = smul.addr %s1326, 8
        %s1328 = scalar_lea.vmem %s5, %s1327
      $region52: #{patch_embed_forward.7} parent=47 // pred_fallthru
        _
    $region48: #{patch_embed_forward.7} parent=5 // pred_fallthru
      _
  $region6: #{patch_embed_forward.7} parent=0 // loop_footer
    %s15 = sadd.s32 1, %s11
  $region7: #{patch_embed_forward.7} parent=0 // loop_footer_branch
    %10 = sbr.rel target = $region3
  $region8: #{patch_embed_forward.7} parent=0 // loop_exit
    _

</llo_original>
